<compile_context>
chip_gen: v5e
topology: v5e:2x2
jax: 0.10.0
libtpu: 0.0.40
codegen_flags: <defaults>
</compile_context>

<pallas_src>
import functools

import numpy as np
import jax
import jax.numpy as jnp
from jax.experimental import pallas as pl
from jax.experimental.pallas import tpu as pltpu


# ----------------------------------------------------------------------------
# One-time weight packing (numpy, outside jit).
# ----------------------------------------------------------------------------
def _conv_toeplitz_rhs(w, l_in):
    """torch conv weight [Cout, Cin, K] (valid conv, stride 1 along an axis of
    length l_in) -> M [Cin*l_in, Cout*l_out] such that for activations
    A [rows, Cin*l_in] (lane index ci*l_in + i):
        (A @ M)[r, co*l_out + o] = sum_{ci,k} w[co,ci,k] * A[r, ci*l_in + o + k]
    i.e. the whole conv is a single lane-dense MXU dot."""
    w = np.asarray(w, np.float32)
    cout, cin, k = w.shape
    l_out = l_in - k + 1
    i = np.arange(l_in)[:, None]
    o = np.arange(l_out)[None, :]
    d = i - o                                              # [l_in, l_out]
    valid = (d >= 0) & (d < k)
    m = w[:, :, np.clip(d, 0, k - 1)]                      # [Cout, Cin, l_in, l_out]
    m = np.where(valid[None, None], m, 0.0)
    return np.transpose(m, (1, 2, 0, 3)).reshape(cin * l_in, cout * l_out)


def pack_params(params, *, n_times, n_elec, max_pool):
    """Build the kernel-ready weight list (call once, outside the jitted fwd)."""
    p = max_pool if (max_pool is not None and max_pool > 1) else 1
    weights = []                    # flat list, consumed in-order by the kernel

    def add(arr, dtype):
        weights.append(jnp.asarray(np.asarray(arr), dtype=dtype))

    # --- spatial block: conv along electrodes, packed as LEFT multiplies -----
    # activations [Cin*Hin, T] -> [Cout*Hout, T]
    cin, hin = 1, n_elec
    for (w, b) in params["spatial"]:
        cout, wcin, k = np.asarray(w).shape
        assert wcin == cin
        hout = hin - k + 1
        add(_conv_toeplitz_rhs(w, hin).T, jnp.bfloat16)         # [Cout*Hout, Cin*Hin]
        add(np.repeat(np.asarray(b, np.float32), hout)[:, None], jnp.float32)
        cin, hin = cout, hout
    c_sp, h_sp = cin, hin
    # TODO(synk): reconstruction assumes the spatial kernels collapse the
    # electrode axis to exactly 1 (so torch's transpose(1,2) feeds temporal
    # in_channels=1), same as the validated previous reconstruction.
    assert h_sp == 1, "spatial kernel sizes must collapse the electrode axis to 1"

    # --- temporal blocks: conv along time, packed as RIGHT multiplies --------
    # activations [C_sp, Cin*Tin] -> [C_sp, Cout*Tout]
    tin = n_times
    pending = None        # (C_prev, T_prev): input is an un-compacted p-window max
    c_last = t_last_b = None
    for ((wa, ba), (wb, bb)) in params["temporal"]:
        cout, cin_t, ka = np.asarray(wa).shape
        kb = np.asarray(wb).shape[2]
        tout_a = tin - ka + 1
        ma = _conv_toeplitz_rhs(wa, tin)                        # [Cin*Tin, Cout*Tout_a]
        if pending is not None:
            # Fold the previous max-pool's lane compaction into this weight:
            # rows land at the stride-p selected source lanes, zeros elsewhere.
            c_prev, t_prev = pending
            assert cin_t == c_prev
            width_prev = c_prev * t_prev - (p - 1)
            rows = (np.arange(c_prev)[:, None] * t_prev
                    + p * np.arange(tin)[None, :]).reshape(-1)
            # invariant: the pool window never crosses a channel boundary
            assert rows.max() < width_prev
            big = np.zeros((width_prev, ma.shape[1]), np.float32)
            big[rows] = ma
            ma = big
        add(ma, jnp.bfloat16)
        add(np.repeat(np.asarray(ba, np.float32), tout_a)[None, :], jnp.float32)

        tout_b = tout_a - kb + 1
        add(_conv_toeplitz_rhs(wb, tout_a), jnp.bfloat16)       # [Cout*Tout_a, Cout*Tout_b]
        add(np.repeat(np.asarray(bb, np.float32), tout_b)[None, :], jnp.float32)

        if p > 1:
            pending = (cout, tout_b)
            tin = tout_b // p
        else:
            pending = None
            tin = tout_b
        c_last, t_last_b = cout, tout_b

    n_times_ = tin
    out_cols = c_last * t_last_b - (p - 1)     # un-compacted final-pool lane width

    # --- MLP layer 1: fold final pool compaction + torch NCHW flatten --------
    # The kernel computes (all plain 2-D ops, no reshapes):
    #   H2 = t @ V                 [c_sp, c_sp*hidden]
    #   S  = sum_rows(H2 * M)      keep only each row's own hidden block
    #   h1 = S @ R + bp @ W1bp + b1
    w1 = np.asarray(params["mlp"][0][0], np.float32)            # [hidden, in_channel]
    b1 = np.asarray(params["mlp"][0][1], np.float32)
    hidden = w1.shape[0]
    n_conv_feat = c_last * c_sp * n_times_
    n_bp = w1.shape[1] - n_conv_feat
    assert n_bp > 0

    c_idx = np.arange(c_last)
    t_idx = np.arange(n_times_)
    h_idx = np.arange(c_sp)
    lanes = (c_idx[:, None] * t_last_b + p * t_idx[None, :]).reshape(-1)
    assert lanes.max() < out_cols              # pool window never crosses a channel
    # torch flatten order of [C_last, H=c_sp, T'] is c*(c_sp*T') + h*T' + t'
    torch_cols = (c_idx[:, None, None] * (c_sp * n_times_)
                  + h_idx[None, :, None] * n_times_
                  + t_idx[None, None, :])                       # [c_last, c_sp, T']
    blk = w1[:, torch_cols]                                     # [hidden, c_last, c_sp, T']
    blk = np.transpose(blk, (1, 3, 2, 0)).reshape(c_last * n_times_, c_sp * hidden)
    v = np.zeros((out_cols, c_sp * hidden), np.float32)
    v[lanes, :] = blk
    m_sel = np.kron(np.eye(c_sp, dtype=np.float32),
                    np.ones((1, hidden), np.float32))           # [c_sp, c_sp*hidden]
    r_sel = np.tile(np.eye(hidden, dtype=np.float32), (c_sp, 1))  # [c_sp*hidden, hidden]

    add(v, jnp.bfloat16)
    add(m_sel, jnp.float32)
    add(r_sel, jnp.bfloat16)
    add(w1[:, n_conv_feat:].T, jnp.bfloat16)                    # [n_bp, hidden]
    add(b1[None, :], jnp.float32)

    # --- remaining MLP layers -------------------------------------------------
    for (w, b) in params["mlp"][1:]:
        add(np.asarray(w, np.float32).T, jnp.bfloat16)
        add(np.asarray(b, np.float32)[None, :], jnp.float32)

    meta = dict(n_spatial=len(params["spatial"]),
                n_temporal_block=len(params["temporal"]),
                pool=p, n_mlp_layers=len(params["mlp"]),
                dout=int(np.asarray(params["mlp"][-1][0]).shape[0]),
                n_bp=int(n_bp), c_sp=c_sp, n_times_=n_times_, out_cols=out_cols)
    return {"weights": weights}, meta


# ----------------------------------------------------------------------------
# Fully fused kernel: spatial + temporal + pool + bp-concat + MLP, one program
# per sample (grid=(B,), "parallel" so samples map to TensorCores).
# ----------------------------------------------------------------------------
def _make_fused_kernel(n_spatial, n_temporal_block, pool, n_mlp_layers):
    def kernel(x_ref, bp_ref, *refs):
        o_ref = refs[-1]
        it = iter(refs[:-1])

        def nxt():
            return next(it)[...]

        def mxu(a, b):
            return jnp.dot(a.astype(jnp.bfloat16), b.astype(jnp.bfloat16),
                           preferred_element_type=jnp.float32)

        # ---- spatial block: left-multiplied Toeplitz convs + bias + ReLU ----
        a = x_ref[0]                                       # [n_elec, T] f32
        for _ in range(n_spatial):
            w, b = nxt(), nxt()                            # [rows, cols] bf16, [rows, 1] f32
            a = jnp.maximum(mxu(w, a) + b, 0.0)

        # ---- temporal blocks: right-multiplied Toeplitz convs + fused pool ---
        t = a                                              # [c_sp, Cin*T] (H_sp == 1)
        for _ in range(n_temporal_block):
            for _ in range(2):
                w, b = nxt(), nxt()                        # [cols_in, cols_out], [1, cols_out]
                t = jnp.maximum(mxu(t, w) + b, 0.0)
            if pool > 1:                                   # in-window max; lane compaction is
                wd = t.shape[-1] - (pool - 1)              # folded into the next packed weight
                m = t[:, :wd]
                for sh in range(1, pool):
                    m = jnp.maximum(m, t[:, sh:sh + wd])
                t = m

        # ---- MLP layer 1 (final pool compaction + NCHW flatten in V/M/R) -----
        v, m_sel, r_sel, w1bp, b1 = nxt(), nxt(), nxt(), nxt(), nxt()
        h2 = mxu(t, v)                                     # [c_sp, c_sp*hidden]
        s = jnp.sum(h2 * m_sel, axis=0, keepdims=True)     # [1, c_sp*hidden]
        h = mxu(s, r_sel) + mxu(bp_ref[0], w1bp) + b1      # [1, hidden]
        h = jnp.maximum(h, 0.0)

        # ---- remaining MLP layers --------------------------------------------
        for i in range(1, n_mlp_layers):
            w, b = nxt(), nxt()
            h = mxu(h, w) + b
            if i < n_mlp_layers - 1:
                h = jnp.maximum(h, 0.0)
        # TODO(synk): dropout is the identity at inference time (mlp_dropout unused).
        o_ref[0] = h
    return kernel


# ----------------------------------------------------------------------------
# Forward pass (mirrors RPS_SCNN_ECoG.forward)
# ----------------------------------------------------------------------------
def rps_scnn_ecog_forward(arrays, x, bp, *, meta):
    batch = x.shape[0]
    n_elec = x.shape[1] * x.shape[2]                # C == 1 -> n_elec
    t_len = x.shape[3]
    xk = x.reshape(batch, n_elec, t_len)            # no data movement
    bpk = bp.reshape(batch, 1, -1)
    weights = arrays["weights"]
    dout = meta["dout"]

    kernel = _make_fused_kernel(meta["n_spatial"], meta["n_temporal_block"],
                                meta["pool"], meta["n_mlp_layers"])

    in_specs = [pl.BlockSpec((1, n_elec, t_len), lambda b: (b, 0, 0)),
                pl.BlockSpec((1, 1, bpk.shape[-1]), lambda b: (b, 0, 0))]
    for arr in weights:                             # resident full-block weights
        in_specs.append(pl.BlockSpec(arr.shape, lambda b: (0, 0)))

    out = pl.pallas_call(
        kernel,
        out_shape=jax.ShapeDtypeStruct((batch, 1, dout), jnp.float32),
        grid=(batch,),
        in_specs=in_specs,
        out_specs=pl.BlockSpec((1, 1, dout), lambda b: (b, 0, 0)),
        compiler_params=pltpu.CompilerParams(
            dimension_semantics=("parallel",),      # samples -> TCs on multi-core chips
            vmem_limit_bytes=32 * 1024 * 1024),
    )(xk, bpk, *weights)
    return out.reshape(batch, dout)


# ----------------------------------------------------------------------------
# Parameters (reconstructed sub-module shapes) + pure-JAX reference forward.
# ----------------------------------------------------------------------------
def init_params(key, n_spatial_layer, spatial_kernel_size, temporal_n_block,
                temporal_kernel_size, n_times, mlp_n_layer, mlp_hidden,
                max_pool, n_elec):
    def winit(k, shape, fan_in):
        return jax.random.normal(k, shape, jnp.float32) * (1.0 / jnp.sqrt(fan_in))

    keys = iter(jax.random.split(key, 64))

    spatial = []
    cin = 1
    for i in range(n_spatial_layer):
        cout = 16 * (i + 1)
        kk = spatial_kernel_size[i]
        spatial.append((winit(next(keys), (cout, cin, kk), cin * kk),
                        jnp.zeros((cout,), jnp.float32)))
        cin = cout

    temporal = []
    tin = 1
    t_len = n_times
    for j in range(temporal_n_block):
        cout = 16 * (j + 1)
        kk = temporal_kernel_size[j]
        wa = winit(next(keys), (cout, tin, kk), tin * kk)
        wb = winit(next(keys), (cout, cout, kk), cout * kk)
        temporal.append(((wa, jnp.zeros((cout,), jnp.float32)),
                         (wb, jnp.zeros((cout,), jnp.float32))))
        tin = cout
        t_len = t_len - 2 * (kk - 1)
        if max_pool is not None:
            t_len = t_len // max_pool

    in_channel = temporal_n_block * 16 * n_spatial_layer * 16 * t_len + n_elec * 6

    mlp = []
    din = in_channel
    mlp.append((winit(next(keys), (mlp_hidden, din), din),
                jnp.zeros((mlp_hidden,), jnp.float32)))
    din = mlp_hidden
    for _ in range(mlp_n_layer):
        mlp.append((winit(next(keys), (mlp_hidden, din), din),
                    jnp.zeros((mlp_hidden,), jnp.float32)))
    mlp.append((winit(next(keys), (1, din), din), jnp.zeros((1,), jnp.float32)))

    return {"spatial": spatial, "temporal": temporal, "mlp": mlp}, t_len, in_channel


def reference_forward(params, x, bp, *, max_pool):
    """Plain-JAX mirror of the torch module (runtime check only)."""
    h = x
    for (w, b) in params["spatial"]:
        k = w.shape[2]
        hout = h.shape[2] - k + 1
        patches = jnp.stack([h[:, :, s:s + hout, :] for s in range(k)], axis=2)
        h = jnp.maximum(jnp.einsum("oik,bikhw->bohw", w, patches)
                        + b[None, :, None, None], 0.0)
    t = jnp.transpose(h, (0, 2, 1, 3))                      # torch.transpose(x, 1, 2)
    for ((wa, ba), (wb, bb)) in params["temporal"]:
        for (w, b) in ((wa, ba), (wb, bb)):
            k = w.shape[2]
            tout = t.shape[3] - k + 1
            patches = jnp.stack([t[:, :, :, s:s + tout] for s in range(k)], axis=2)
            t = jnp.maximum(jnp.einsum("oik,bikht->boht", w, patches)
                            + b[None, :, None, None], 0.0)
        if max_pool is not None and max_pool > 1:
            tp_ = t.shape[3] // max_pool
            t = jnp.max(t[..., :tp_ * max_pool].reshape(t.shape[:3] + (tp_, max_pool)),
                        axis=-1)
    feat = t.reshape(t.shape[0], -1)
    feat = jnp.concatenate([feat, bp.reshape(bp.shape[0], -1)], axis=1)
    y = feat
    mlp = params["mlp"]
    for i, (w, b) in enumerate(mlp):
        y = y @ w.T + b[None, :]
        if i < len(mlp) - 1:
            y = jnp.maximum(y, 0.0)
    return y


# ----------------------------------------------------------------------------
# Demo
# ----------------------------------------------------------------------------
if __name__ == "__main__":
    B = 2
    n_elec = 62                      # fixed by the `+ 62 * 6` bandpower term
    n_times = 40
    n_spatial_layer = 2
    spatial_kernel_size = [31, 32]   # collapses the 62 electrodes down to 1
    temporal_n_block = 2
    temporal_kernel_size = [3, 3]
    mlp_n_layer = 1
    mlp_hidden = 32
    max_pool = 2

    key = jax.random.PRNGKey(0)
    k_x, k_bp, k_p = jax.random.split(key, 3)
    x = jax.random.normal(k_x, (B, 1, n_elec, n_times), jnp.float32)   # NCHW
    bp = jax.random.normal(k_bp, (B, n_elec, 6), jnp.float32)          # bandpowers

    params, n_times_, in_channel = init_params(
        k_p, n_spatial_layer, spatial_kernel_size, temporal_n_block,
        temporal_kernel_size, n_times, mlp_n_layer, mlp_hidden, max_pool, n_elec)

    arrays, meta = pack_params(params, n_times=n_times, n_elec=n_elec,
                               max_pool=max_pool)
    assert meta["n_times_"] == n_times_
    assert meta["n_bp"] == n_elec * 6

    fwd = jax.jit(functools.partial(rps_scnn_ecog_forward, meta=meta))
    out = jax.block_until_ready(fwd(arrays, x, bp))

    assert out.shape == (B, 1), out.shape
    assert bool(jnp.all(jnp.isfinite(out)))

    with jax.default_matmul_precision("highest"):
        ref = reference_forward(params, x, bp, max_pool=max_pool)
    # Kernel dots use bf16 operands with f32 accumulation, so compare against
    # the f32 "highest"-precision reference with a bf16-appropriate tolerance.
    assert bool(jnp.allclose(out, ref, rtol=3e-2, atol=3e-2)), (out, ref)

    print("KERNEL_OK")
</pallas_src>

<mosaic_0001>
module attributes {stable_mosaic.version = 11 : i64} {
  func.func @kernel(%arg0: i32, %arg1: memref<1x62x40xf32, #tpu.memory_space<vmem>>, %arg2: memref<1x1x372xf32, #tpu.memory_space<vmem>>, %arg3: memref<512x62xbf16, #tpu.memory_space<vmem>>, %arg4: memref<512x1xf32, #tpu.memory_space<vmem>>, %arg5: memref<32x512xbf16, #tpu.memory_space<vmem>>, %arg6: memref<32x1xf32, #tpu.memory_space<vmem>>, %arg7: memref<40x608xbf16, #tpu.memory_space<vmem>>, %arg8: memref<1x608xf32, #tpu.memory_space<vmem>>, %arg9: memref<608x576xbf16, #tpu.memory_space<vmem>>, %arg10: memref<1x576xf32, #tpu.memory_space<vmem>>, %arg11: memref<575x512xbf16, #tpu.memory_space<vmem>>, %arg12: memref<1x512xf32, #tpu.memory_space<vmem>>, %arg13: memref<512x448xbf16, #tpu.memory_space<vmem>>, %arg14: memref<1x448xf32, #tpu.memory_space<vmem>>, %arg15: memref<447x1024xbf16, #tpu.memory_space<vmem>>, %arg16: memref<32x1024xf32, #tpu.memory_space<vmem>>, %arg17: memref<1024x32xbf16, #tpu.memory_space<vmem>>, %arg18: memref<372x32xbf16, #tpu.memory_space<vmem>>, %arg19: memref<1x32xf32, #tpu.memory_space<vmem>>, %arg20: memref<32x32xbf16, #tpu.memory_space<vmem>>, %arg21: memref<1x32xf32, #tpu.memory_space<vmem>>, %arg22: memref<32x1xbf16, #tpu.memory_space<vmem>>, %arg23: memref<1x1xf32, #tpu.memory_space<vmem>>, %arg24: memref<1x1x1xf32, #tpu.memory_space<vmem>>) attributes {dimension_semantics = [#tpu.dimension_semantics<parallel>], iteration_bounds = array<i64: 2>, scalar_prefetch = 0 : i64, scratch_operands = 0 : i64, tpu.core_type = #tpu.core_type<tc>, window_params = [{transform_indices = @transform_0, window_bounds = array<i64: 1, 62, 40>}, {transform_indices = @transform_1, window_bounds = array<i64: 1, 1, 372>}, {pipeline_mode = #tpu.pipeline_mode<synchronous>, transform_indices = @transform_2, window_bounds = array<i64: 512, 62>}, {pipeline_mode = #tpu.pipeline_mode<synchronous>, transform_indices = @transform_3, window_bounds = array<i64: 512, 1>}, {pipeline_mode = #tpu.pipeline_mode<synchronous>, transform_indices = @transform_4, window_bounds = array<i64: 32, 512>}, {pipeline_mode = #tpu.pipeline_mode<synchronous>, transform_indices = @transform_5, window_bounds = array<i64: 32, 1>}, {pipeline_mode = #tpu.pipeline_mode<synchronous>, transform_indices = @transform_6, window_bounds = array<i64: 40, 608>}, {pipeline_mode = #tpu.pipeline_mode<synchronous>, transform_indices = @transform_7, window_bounds = array<i64: 1, 608>}, {pipeline_mode = #tpu.pipeline_mode<synchronous>, transform_indices = @transform_8, window_bounds = array<i64: 608, 576>}, {pipeline_mode = #tpu.pipeline_mode<synchronous>, transform_indices = @transform_9, window_bounds = array<i64: 1, 576>}, {pipeline_mode = #tpu.pipeline_mode<synchronous>, transform_indices = @transform_10, window_bounds = array<i64: 575, 512>}, {pipeline_mode = #tpu.pipeline_mode<synchronous>, transform_indices = @transform_11, window_bounds = array<i64: 1, 512>}, {pipeline_mode = #tpu.pipeline_mode<synchronous>, transform_indices = @transform_12, window_bounds = array<i64: 512, 448>}, {pipeline_mode = #tpu.pipeline_mode<synchronous>, transform_indices = @transform_13, window_bounds = array<i64: 1, 448>}, {pipeline_mode = #tpu.pipeline_mode<synchronous>, transform_indices = @transform_14, window_bounds = array<i64: 447, 1024>}, {pipeline_mode = #tpu.pipeline_mode<synchronous>, transform_indices = @transform_15, window_bounds = array<i64: 32, 1024>}, {pipeline_mode = #tpu.pipeline_mode<synchronous>, transform_indices = @transform_16, window_bounds = array<i64: 1024, 32>}, {pipeline_mode = #tpu.pipeline_mode<synchronous>, transform_indices = @transform_17, window_bounds = array<i64: 372, 32>}, {pipeline_mode = #tpu.pipeline_mode<synchronous>, transform_indices = @transform_18, window_bounds = array<i64: 1, 32>}, {pipeline_mode = #tpu.pipeline_mode<synchronous>, transform_indices = @transform_19, window_bounds = array<i64: 32, 32>}, {pipeline_mode = #tpu.pipeline_mode<synchronous>, transform_indices = @transform_20, window_bounds = array<i64: 1, 32>}, {pipeline_mode = #tpu.pipeline_mode<synchronous>, transform_indices = @transform_21, window_bounds = array<i64: 32, 1>}, {pipeline_mode = #tpu.pipeline_mode<synchronous>, transform_indices = @transform_22, window_bounds = array<i64: 1, 1>}, {transform_indices = @transform_23, window_bounds = array<i64: 1, 1, 1>}]} {
    %c0 = arith.constant 0 : index
    %c0_0 = arith.constant 0 : index
    %c0_1 = arith.constant 0 : index
    %0 = vector.load %arg1[%c0, %c0_0, %c0_1] : memref<1x62x40xf32, #tpu.memory_space<vmem>>, vector<1x62x40xf32>
    %1 = vector.shape_cast %0 : vector<1x62x40xf32> to vector<62x40xf32>
    %c0_2 = arith.constant 0 : index
    %c0_3 = arith.constant 0 : index
    %2 = vector.load %arg3[%c0_2, %c0_3] : memref<512x62xbf16, #tpu.memory_space<vmem>>, vector<512x62xbf16>
    %c0_4 = arith.constant 0 : index
    %c0_5 = arith.constant 0 : index
    %3 = vector.load %arg4[%c0_4, %c0_5] : memref<512x1xf32, #tpu.memory_space<vmem>>, vector<512x1xf32>
    %4 = arith.truncf %1 : vector<62x40xf32> to vector<62x40xbf16>
    %cst = arith.constant dense<0.000000e+00> : vector<512x40xf32>
    %5 = tpu.matmul %2, %4, %cst {dimension_numbers = #tpu.dot_dimension_numbers<[1], [0], [0], [1], [0, 0, 1, 1], [], []>} : vector<512x62xbf16>, vector<62x40xbf16>, vector<512x40xf32> -> vector<512x40xf32>
    %6 = vector.broadcast %3 : vector<512x1xf32> to vector<512x40xf32>
    %7 = arith.addf %5, %6 : vector<512x40xf32>
    %cst_6 = arith.constant 0.000000e+00 : f32
    %8 = vector.broadcast %cst_6 : f32 to vector<512x40xf32>
    %9 = arith.maximumf %7, %8 : vector<512x40xf32>
    %c0_7 = arith.constant 0 : index
    %c0_8 = arith.constant 0 : index
    %10 = vector.load %arg5[%c0_7, %c0_8] : memref<32x512xbf16, #tpu.memory_space<vmem>>, vector<32x512xbf16>
    %c0_9 = arith.constant 0 : index
    %c0_10 = arith.constant 0 : index
    %11 = vector.load %arg6[%c0_9, %c0_10] : memref<32x1xf32, #tpu.memory_space<vmem>>, vector<32x1xf32>
    %12 = arith.truncf %9 : vector<512x40xf32> to vector<512x40xbf16>
    %cst_11 = arith.constant dense<0.000000e+00> : vector<32x40xf32>
    %13 = tpu.matmul %10, %12, %cst_11 {dimension_numbers = #tpu.dot_dimension_numbers<[1], [0], [0], [1], [0, 0, 1, 1], [], []>} : vector<32x512xbf16>, vector<512x40xbf16>, vector<32x40xf32> -> vector<32x40xf32>
    %14 = vector.broadcast %11 : vector<32x1xf32> to vector<32x40xf32>
    %15 = arith.addf %13, %14 : vector<32x40xf32>
    %cst_12 = arith.constant 0.000000e+00 : f32
    %16 = vector.broadcast %cst_12 : f32 to vector<32x40xf32>
    %17 = arith.maximumf %15, %16 : vector<32x40xf32>
    %c0_13 = arith.constant 0 : index
    %c0_14 = arith.constant 0 : index
    %18 = vector.load %arg7[%c0_13, %c0_14] : memref<40x608xbf16, #tpu.memory_space<vmem>>, vector<40x608xbf16>
    %c0_15 = arith.constant 0 : index
    %c0_16 = arith.constant 0 : index
    %19 = vector.load %arg8[%c0_15, %c0_16] : memref<1x608xf32, #tpu.memory_space<vmem>>, vector<1x608xf32>
    %20 = arith.truncf %17 : vector<32x40xf32> to vector<32x40xbf16>
    %cst_17 = arith.constant dense<0.000000e+00> : vector<32x608xf32>
    %21 = tpu.matmul %20, %18, %cst_17 {dimension_numbers = #tpu.dot_dimension_numbers<[1], [0], [0], [1], [0, 0, 1, 1], [], []>} : vector<32x40xbf16>, vector<40x608xbf16>, vector<32x608xf32> -> vector<32x608xf32>
    %22 = vector.broadcast %19 : vector<1x608xf32> to vector<32x608xf32>
    %23 = arith.addf %21, %22 : vector<32x608xf32>
    %cst_18 = arith.constant 0.000000e+00 : f32
    %24 = vector.broadcast %cst_18 : f32 to vector<32x608xf32>
    %25 = arith.maximumf %23, %24 : vector<32x608xf32>
    %c0_19 = arith.constant 0 : index
    %c0_20 = arith.constant 0 : index
    %26 = vector.load %arg9[%c0_19, %c0_20] : memref<608x576xbf16, #tpu.memory_space<vmem>>, vector<608x576xbf16>
    %c0_21 = arith.constant 0 : index
    %c0_22 = arith.constant 0 : index
    %27 = vector.load %arg10[%c0_21, %c0_22] : memref<1x576xf32, #tpu.memory_space<vmem>>, vector<1x576xf32>
    %28 = arith.truncf %25 : vector<32x608xf32> to vector<32x608xbf16>
    %cst_23 = arith.constant dense<0.000000e+00> : vector<32x576xf32>
    %29 = tpu.matmul %28, %26, %cst_23 {dimension_numbers = #tpu.dot_dimension_numbers<[1], [0], [0], [1], [0, 0, 1, 1], [], []>} : vector<32x608xbf16>, vector<608x576xbf16>, vector<32x576xf32> -> vector<32x576xf32>
    %30 = vector.broadcast %27 : vector<1x576xf32> to vector<32x576xf32>
    %31 = arith.addf %29, %30 : vector<32x576xf32>
    %cst_24 = arith.constant 0.000000e+00 : f32
    %32 = vector.broadcast %cst_24 : f32 to vector<32x576xf32>
    %33 = arith.maximumf %31, %32 : vector<32x576xf32>
    %34 = vector.extract_strided_slice %33 {offsets = [0, 0], sizes = [32, 575], strides = [1, 1]} : vector<32x576xf32> to vector<32x575xf32>
    %35 = vector.extract_strided_slice %33 {offsets = [0, 1], sizes = [32, 575], strides = [1, 1]} : vector<32x576xf32> to vector<32x575xf32>
    %36 = arith.maximumf %34, %35 : vector<32x575xf32>
    %c0_25 = arith.constant 0 : index
    %c0_26 = arith.constant 0 : index
    %37 = vector.load %arg11[%c0_25, %c0_26] : memref<575x512xbf16, #tpu.memory_space<vmem>>, vector<575x512xbf16>
    %c0_27 = arith.constant 0 : index
    %c0_28 = arith.constant 0 : index
    %38 = vector.load %arg12[%c0_27, %c0_28] : memref<1x512xf32, #tpu.memory_space<vmem>>, vector<1x512xf32>
    %39 = arith.truncf %36 : vector<32x575xf32> to vector<32x575xbf16>
    %cst_29 = arith.constant dense<0.000000e+00> : vector<32x512xf32>
    %40 = tpu.matmul %39, %37, %cst_29 {dimension_numbers = #tpu.dot_dimension_numbers<[1], [0], [0], [1], [0, 0, 1, 1], [], []>} : vector<32x575xbf16>, vector<575x512xbf16>, vector<32x512xf32> -> vector<32x512xf32>
    %41 = vector.broadcast %38 : vector<1x512xf32> to vector<32x512xf32>
    %42 = arith.addf %40, %41 : vector<32x512xf32>
    %cst_30 = arith.constant 0.000000e+00 : f32
    %43 = vector.broadcast %cst_30 : f32 to vector<32x512xf32>
    %44 = arith.maximumf %42, %43 : vector<32x512xf32>
    %c0_31 = arith.constant 0 : index
    %c0_32 = arith.constant 0 : index
    %45 = vector.load %arg13[%c0_31, %c0_32] : memref<512x448xbf16, #tpu.memory_space<vmem>>, vector<512x448xbf16>
    %c0_33 = arith.constant 0 : index
    %c0_34 = arith.constant 0 : index
    %46 = vector.load %arg14[%c0_33, %c0_34] : memref<1x448xf32, #tpu.memory_space<vmem>>, vector<1x448xf32>
    %47 = arith.truncf %44 : vector<32x512xf32> to vector<32x512xbf16>
    %cst_35 = arith.constant dense<0.000000e+00> : vector<32x448xf32>
    %48 = tpu.matmul %47, %45, %cst_35 {dimension_numbers = #tpu.dot_dimension_numbers<[1], [0], [0], [1], [0, 0, 1, 1], [], []>} : vector<32x512xbf16>, vector<512x448xbf16>, vector<32x448xf32> -> vector<32x448xf32>
    %49 = vector.broadcast %46 : vector<1x448xf32> to vector<32x448xf32>
    %50 = arith.addf %48, %49 : vector<32x448xf32>
    %cst_36 = arith.constant 0.000000e+00 : f32
    %51 = vector.broadcast %cst_36 : f32 to vector<32x448xf32>
    %52 = arith.maximumf %50, %51 : vector<32x448xf32>
    %53 = vector.extract_strided_slice %52 {offsets = [0, 0], sizes = [32, 447], strides = [1, 1]} : vector<32x448xf32> to vector<32x447xf32>
    %54 = vector.extract_strided_slice %52 {offsets = [0, 1], sizes = [32, 447], strides = [1, 1]} : vector<32x448xf32> to vector<32x447xf32>
    %55 = arith.maximumf %53, %54 : vector<32x447xf32>
    %c0_37 = arith.constant 0 : index
    %c0_38 = arith.constant 0 : index
    %56 = vector.load %arg15[%c0_37, %c0_38] : memref<447x1024xbf16, #tpu.memory_space<vmem>>, vector<447x1024xbf16>
    %c0_39 = arith.constant 0 : index
    %c0_40 = arith.constant 0 : index
    %57 = vector.load %arg16[%c0_39, %c0_40] : memref<32x1024xf32, #tpu.memory_space<vmem>>, vector<32x1024xf32>
    %c0_41 = arith.constant 0 : index
    %c0_42 = arith.constant 0 : index
    %58 = vector.load %arg17[%c0_41, %c0_42] : memref<1024x32xbf16, #tpu.memory_space<vmem>>, vector<1024x32xbf16>
    %c0_43 = arith.constant 0 : index
    %c0_44 = arith.constant 0 : index
    %59 = vector.load %arg18[%c0_43, %c0_44] : memref<372x32xbf16, #tpu.memory_space<vmem>>, vector<372x32xbf16>
    %c0_45 = arith.constant 0 : index
    %c0_46 = arith.constant 0 : index
    %60 = vector.load %arg19[%c0_45, %c0_46] : memref<1x32xf32, #tpu.memory_space<vmem>>, vector<1x32xf32>
    %61 = arith.truncf %55 : vector<32x447xf32> to vector<32x447xbf16>
    %cst_47 = arith.constant dense<0.000000e+00> : vector<32x1024xf32>
    %62 = tpu.matmul %61, %56, %cst_47 {dimension_numbers = #tpu.dot_dimension_numbers<[1], [0], [0], [1], [0, 0, 1, 1], [], []>} : vector<32x447xbf16>, vector<447x1024xbf16>, vector<32x1024xf32> -> vector<32x1024xf32>
    %63 = arith.mulf %62, %57 : vector<32x1024xf32>
    %cst_48 = arith.constant dense<0.000000e+00> : vector<1024xf32>
    %64 = vector.multi_reduction <add>, %63, %cst_48 [0] : vector<32x1024xf32> to vector<1024xf32>
    %65 = vector.shape_cast %64 : vector<1024xf32> to vector<1x1024xf32>
    %66 = arith.truncf %65 : vector<1x1024xf32> to vector<1x1024xbf16>
    %cst_49 = arith.constant dense<0.000000e+00> : vector<1x32xf32>
    %67 = tpu.matmul %66, %58, %cst_49 {dimension_numbers = #tpu.dot_dimension_numbers<[1], [0], [0], [1], [0, 0, 1, 1], [], []>} : vector<1x1024xbf16>, vector<1024x32xbf16>, vector<1x32xf32> -> vector<1x32xf32>
    %c0_50 = arith.constant 0 : index
    %c0_51 = arith.constant 0 : index
    %c0_52 = arith.constant 0 : index
    %68 = vector.load %arg2[%c0_50, %c0_51, %c0_52] : memref<1x1x372xf32, #tpu.memory_space<vmem>>, vector<1x1x372xf32>
    %69 = vector.shape_cast %68 : vector<1x1x372xf32> to vector<1x372xf32>
    %70 = arith.truncf %69 : vector<1x372xf32> to vector<1x372xbf16>
    %cst_53 = arith.constant dense<0.000000e+00> : vector<1x32xf32>
    %71 = tpu.matmul %70, %59, %cst_53 {dimension_numbers = #tpu.dot_dimension_numbers<[1], [0], [0], [1], [0, 0, 1, 1], [], []>} : vector<1x372xbf16>, vector<372x32xbf16>, vector<1x32xf32> -> vector<1x32xf32>
    %72 = arith.addf %67, %71 : vector<1x32xf32>
    %73 = arith.addf %72, %60 : vector<1x32xf32>
    %cst_54 = arith.constant 0.000000e+00 : f32
    %74 = vector.broadcast %cst_54 : f32 to vector<1x32xf32>
    %75 = arith.maximumf %73, %74 : vector<1x32xf32>
    %c0_55 = arith.constant 0 : index
    %c0_56 = arith.constant 0 : index
    %76 = vector.load %arg20[%c0_55, %c0_56] : memref<32x32xbf16, #tpu.memory_space<vmem>>, vector<32x32xbf16>
    %c0_57 = arith.constant 0 : index
    %c0_58 = arith.constant 0 : index
    %77 = vector.load %arg21[%c0_57, %c0_58] : memref<1x32xf32, #tpu.memory_space<vmem>>, vector<1x32xf32>
    %78 = arith.truncf %75 : vector<1x32xf32> to vector<1x32xbf16>
    %cst_59 = arith.constant dense<0.000000e+00> : vector<1x32xf32>
    %79 = tpu.matmul %78, %76, %cst_59 {dimension_numbers = #tpu.dot_dimension_numbers<[1], [0], [0], [1], [0, 0, 1, 1], [], []>} : vector<1x32xbf16>, vector<32x32xbf16>, vector<1x32xf32> -> vector<1x32xf32>
    %80 = arith.addf %79, %77 : vector<1x32xf32>
    %cst_60 = arith.constant 0.000000e+00 : f32
    %81 = vector.broadcast %cst_60 : f32 to vector<1x32xf32>
    %82 = arith.maximumf %80, %81 : vector<1x32xf32>
    %c0_61 = arith.constant 0 : index
    %c0_62 = arith.constant 0 : index
    %83 = vector.load %arg22[%c0_61, %c0_62] : memref<32x1xbf16, #tpu.memory_space<vmem>>, vector<32x1xbf16>
    %c0_63 = arith.constant 0 : index
    %c0_64 = arith.constant 0 : index
    %84 = vector.load %arg23[%c0_63, %c0_64] : memref<1x1xf32, #tpu.memory_space<vmem>>, vector<1x1xf32>
    %85 = arith.truncf %82 : vector<1x32xf32> to vector<1x32xbf16>
    %cst_65 = arith.constant dense<0.000000e+00> : vector<1x1xf32>
    %86 = tpu.matmul %85, %83, %cst_65 {dimension_numbers = #tpu.dot_dimension_numbers<[1], [0], [0], [1], [0, 0, 1, 1], [], []>} : vector<1x32xbf16>, vector<32x1xbf16>, vector<1x1xf32> -> vector<1x1xf32>
    %87 = arith.addf %86, %84 : vector<1x1xf32>
    %c0_66 = arith.constant 0 : index
    %c0_67 = arith.constant 0 : index
    %c0_68 = arith.constant 0 : index
    %88 = vector.load %arg24[%c0_66, %c0_67, %c0_68] : memref<1x1x1xf32, #tpu.memory_space<vmem>>, vector<1x1x1xf32>
    %89 = vector.shape_cast %88 : vector<1x1x1xf32> to vector<1x1xf32>
    %90 = vector.shape_cast %87 : vector<1x1xf32> to vector<1x1x1xf32>
    tpu.vector_store %arg24[%c0_66, %c0_67, %c0_68], %90 {strides = array<i32>} : memref<1x1x1xf32, #tpu.memory_space<vmem>>, vector<1x1x1xf32>,
    return
  }
  func.func @transform_0(%arg0: i32) -> (i32, i32, i32) {
    %c0_i32 = arith.constant 0 : i32
    %c0_i32_0 = arith.constant 0 : i32
    %c0_i32_1 = arith.constant 0 : i32
    return %arg0, %c0_i32, %c0_i32_0 : i32, i32, i32
  }
  func.func @transform_1(%arg0: i32) -> (i32, i32, i32) {
    %c0_i32 = arith.constant 0 : i32
    %c0_i32_0 = arith.constant 0 : i32
    %c0_i32_1 = arith.constant 0 : i32
    return %arg0, %c0_i32, %c0_i32_0 : i32, i32, i32
  }
  func.func @transform_2(%arg0: i32) -> (i32, i32) {
    %c0_i32 = arith.constant 0 : i32
    %c0_i32_0 = arith.constant 0 : i32
    %c0_i32_1 = arith.constant 0 : i32
    return %c0_i32, %c0_i32_0 : i32, i32
  }
  func.func @transform_3(%arg0: i32) -> (i32, i32) {
    %c0_i32 = arith.constant 0 : i32
    %c0_i32_0 = arith.constant 0 : i32
    %c0_i32_1 = arith.constant 0 : i32
    return %c0_i32, %c0_i32_0 : i32, i32
  }
  func.func @transform_4(%arg0: i32) -> (i32, i32) {
    %c0_i32 = arith.constant 0 : i32
    %c0_i32_0 = arith.constant 0 : i32
    %c0_i32_1 = arith.constant 0 : i32
    return %c0_i32, %c0_i32_0 : i32, i32
  }
  func.func @transform_5(%arg0: i32) -> (i32, i32) {
    %c0_i32 = arith.constant 0 : i32
    %c0_i32_0 = arith.constant 0 : i32
    %c0_i32_1 = arith.constant 0 : i32
    return %c0_i32, %c0_i32_0 : i32, i32
  }
  func.func @transform_6(%arg0: i32) -> (i32, i32) {
    %c0_i32 = arith.constant 0 : i32
    %c0_i32_0 = arith.constant 0 : i32
    %c0_i32_1 = arith.constant 0 : i32
    return %c0_i32, %c0_i32_0 : i32, i32
  }
  func.func @transform_7(%arg0: i32) -> (i32, i32) {
    %c0_i32 = arith.constant 0 : i32
    %c0_i32_0 = arith.constant 0 : i32
    %c0_i32_1 = arith.constant 0 : i32
    return %c0_i32, %c0_i32_0 : i32, i32
  }
  func.func @transform_8(%arg0: i32) -> (i32, i32) {
    %c0_i32 = arith.constant 0 : i32
    %c0_i32_0 = arith.constant 0 : i32
    %c0_i32_1 = arith.constant 0 : i32
    return %c0_i32, %c0_i32_0 : i32, i32
  }
  func.func @transform_9(%arg0: i32) -> (i32, i32) {
    %c0_i32 = arith.constant 0 : i32
    %c0_i32_0 = arith.constant 0 : i32
    %c0_i32_1 = arith.constant 0 : i32
    return %c0_i32, %c0_i32_0 : i32, i32
  }
  func.func @transform_10(%arg0: i32) -> (i32, i32) {
    %c0_i32 = arith.constant 0 : i32
    %c0_i32_0 = arith.constant 0 : i32
    %c0_i32_1 = arith.constant 0 : i32
    return %c0_i32, %c0_i32_0 : i32, i32
  }
  func.func @transform_11(%arg0: i32) -> (i32, i32) {
    %c0_i32 = arith.constant 0 : i32
    %c0_i32_0 = arith.constant 0 : i32
    %c0_i32_1 = arith.constant 0 : i32
    return %c0_i32, %c0_i32_0 : i32, i32
  }
  func.func @transform_12(%arg0: i32) -> (i32, i32) {
    %c0_i32 = arith.constant 0 : i32
    %c0_i32_0 = arith.constant 0 : i32
    %c0_i32_1 = arith.constant 0 : i32
    return %c0_i32, %c0_i32_0 : i32, i32
  }
  func.func @transform_13(%arg0: i32) -> (i32, i32) {
    %c0_i32 = arith.constant 0 : i32
    %c0_i32_0 = arith.constant 0 : i32
    %c0_i32_1 = arith.constant 0 : i32
    return %c0_i32, %c0_i32_0 : i32, i32
  }
  func.func @transform_14(%arg0: i32) -> (i32, i32) {
    %c0_i32 = arith.constant 0 : i32
    %c0_i32_0 = arith.constant 0 : i32
    %c0_i32_1 = arith.constant 0 : i32
    return %c0_i32, %c0_i32_0 : i32, i32
  }
  func.func @transform_15(%arg0: i32) -> (i32, i32) {
    %c0_i32 = arith.constant 0 : i32
    %c0_i32_0 = arith.constant 0 : i32
    %c0_i32_1 = arith.constant 0 : i32
    return %c0_i32, %c0_i32_0 : i32, i32
  }
  func.func @transform_16(%arg0: i32) -> (i32, i32) {
    %c0_i32 = arith.constant 0 : i32
    %c0_i32_0 = arith.constant 0 : i32
    %c0_i32_1 = arith.constant 0 : i32
    return %c0_i32, %c0_i32_0 : i32, i32
  }
  func.func @transform_17(%arg0: i32) -> (i32, i32) {
    %c0_i32 = arith.constant 0 : i32
    %c0_i32_0 = arith.constant 0 : i32
    %c0_i32_1 = arith.constant 0 : i32
    return %c0_i32, %c0_i32_0 : i32, i32
  }
  func.func @transform_18(%arg0: i32) -> (i32, i32) {
    %c0_i32 = arith.constant 0 : i32
    %c0_i32_0 = arith.constant 0 : i32
    %c0_i32_1 = arith.constant 0 : i32
    return %c0_i32, %c0_i32_0 : i32, i32
  }
  func.func @transform_19(%arg0: i32) -> (i32, i32) {
    %c0_i32 = arith.constant 0 : i32
    %c0_i32_0 = arith.constant 0 : i32
    %c0_i32_1 = arith.constant 0 : i32
    return %c0_i32, %c0_i32_0 : i32, i32
  }
  func.func @transform_20(%arg0: i32) -> (i32, i32) {
    %c0_i32 = arith.constant 0 : i32
    %c0_i32_0 = arith.constant 0 : i32
    %c0_i32_1 = arith.constant 0 : i32
    return %c0_i32, %c0_i32_0 : i32, i32
  }
  func.func @transform_21(%arg0: i32) -> (i32, i32) {
    %c0_i32 = arith.constant 0 : i32
    %c0_i32_0 = arith.constant 0 : i32
    %c0_i32_1 = arith.constant 0 : i32
    return %c0_i32, %c0_i32_0 : i32, i32
  }
  func.func @transform_22(%arg0: i32) -> (i32, i32) {
    %c0_i32 = arith.constant 0 : i32
    %c0_i32_0 = arith.constant 0 : i32
    %c0_i32_1 = arith.constant 0 : i32
    return %c0_i32, %c0_i32_0 : i32, i32
  }
  func.func @transform_23(%arg0: i32) -> (i32, i32, i32) {
    %c0_i32 = arith.constant 0 : i32
    %c0_i32_0 = arith.constant 0 : i32
    %c0_i32_1 = arith.constant 0 : i32
    return %arg0, %c0_i32, %c0_i32_0 : i32, i32, i32
  }
}

</mosaic_0001>

<llo_original>
// kernel: rps_scnn_ecog_forward.1
$region0: #{rps_scnn_ecog_forward.1}
  #allocation0 [shape = 'u32[]', space=smem, size = 0x4, offset = 0x4, fixed_abs, tag = 'smem constant byte address 0x4 - core index']
  #allocation1 [shape = 'u32[72,128]{1,0:T(1,128)}', space=vmem, size = 0x9000, scoped, tag = 'internal scratch']
  #allocation2 [shape = 'f32[1,1]{1,0:T(1,128)S(1)}', space=vmem, size = 0x200, scoped, tag = 'scoped memory for rps_scnn_ecog_forward.1']
  %s0 = inlined_call_operand.vmem [shape: f32[2,62,40], index: 0, kind: input, shape index: {}]
  %s1 = inlined_call_operand.vmem [shape: f32[2,1,372], index: 1, kind: input, shape index: {}]
  %s2 = inlined_call_operand.vmem [shape: bf16[512,62], index: 2, kind: input, shape index: {}]
  %s3 = inlined_call_operand.vmem [shape: f32[512,1], index: 3, kind: input, shape index: {}]
  %s4 = inlined_call_operand.vmem [shape: bf16[32,512], index: 4, kind: input, shape index: {}]
  %s5 = inlined_call_operand.vmem [shape: f32[32,1], index: 5, kind: input, shape index: {}]
  %s6 = inlined_call_operand.vmem [shape: bf16[40,608], index: 6, kind: input, shape index: {}]
  %s7 = inlined_call_operand.vmem [shape: f32[1,608], index: 7, kind: input, shape index: {}]
  %s8 = inlined_call_operand.vmem [shape: bf16[608,576], index: 8, kind: input, shape index: {}]
  %s9 = inlined_call_operand.vmem [shape: f32[1,576], index: 9, kind: input, shape index: {}]
  %s10 = inlined_call_operand.vmem [shape: bf16[575,512], index: 10, kind: input, shape index: {}]
  %s11 = inlined_call_operand.vmem [shape: f32[1,512], index: 11, kind: input, shape index: {}]
  %s12 = inlined_call_operand.vmem [shape: bf16[512,448], index: 12, kind: input, shape index: {}]
  %s13 = inlined_call_operand.vmem [shape: f32[1,448], index: 13, kind: input, shape index: {}]
  %s14 = inlined_call_operand.vmem [shape: bf16[447,1024], index: 14, kind: input, shape index: {}]
  %s15 = inlined_call_operand.vmem [shape: f32[32,1024], index: 15, kind: input, shape index: {}]
  %s16 = inlined_call_operand.vmem [shape: bf16[1024,32], index: 16, kind: input, shape index: {}]
  %s17 = inlined_call_operand.vmem [shape: bf16[372,32], index: 17, kind: input, shape index: {}]
  %s18 = inlined_call_operand.vmem [shape: f32[1,32], index: 18, kind: input, shape index: {}]
  %s19 = inlined_call_operand.vmem [shape: bf16[32,32], index: 19, kind: input, shape index: {}]
  %s20 = inlined_call_operand.vmem [shape: f32[1,32], index: 20, kind: input, shape index: {}]
  %s21 = inlined_call_operand.vmem [shape: bf16[32,1], index: 21, kind: input, shape index: {}]
  %s22 = inlined_call_operand.<no memory space> [shape: f32[1,1], index: 22, kind: input, shape index: {}]
  %s23 = inlined_call_operand.vmem [shape: f32[2,1,1], index: 23, kind: output, shape index: {}]
  %s24 = sld [smem:[#allocation0]]
  $region125: #{rps_scnn_ecog_forward.1} parent=0
    _
  %s26 = ssub.s32 1, %s24
  %s27 = scalar_select 0, %s26, %s24
  %v28 = vstv %s22
  %29 = vst [vmem:[#allocation2] sm:$0x1] %v28
  loop: start=0, step=1, limit=4
  $region2: #{rps_scnn_ecog_forward.1} parent=0 // loop_pre_header
    _
  $region3: #{rps_scnn_ecog_forward.1} parent=0 // loop_header
    %s31 = sphi 0, %s35
    %p32 = scmp.ge.s32.totalorder %s31, 4
    %s41 = sphi 0, %s43
    %s44 = sphi 0, %s41
    %s45 = sphi 0, %s44
    %s61 = sphi 0, %s45
    %s67 = sphi 0, %s69
    %s70 = sphi 0, %s67
    %s71 = sphi 0, %s70
    %s87 = sphi 0, %s71
    %s91 = sphi 0, %s91
    %s93 = sphi 0, %s91
    %s94 = sphi 0, %s93
    %s108 = sphi 0, %s94
    %s112 = sphi 0, %s112
    %s114 = sphi 0, %s112
    %s115 = sphi 0, %s114
    %s129 = sphi 0, %s115
    %s133 = sphi 0, %s133
    %s135 = sphi 0, %s133
    %s136 = sphi 0, %s135
    %s150 = sphi 0, %s136
    %s154 = sphi 0, %s154
    %s156 = sphi 0, %s154
    %s157 = sphi 0, %s156
    %s171 = sphi 0, %s157
    %s175 = sphi 0, %s175
    %s177 = sphi 0, %s175
    %s178 = sphi 0, %s177
    %s192 = sphi 0, %s178
    %s196 = sphi 0, %s196
    %s198 = sphi 0, %s196
    %s199 = sphi 0, %s198
    %s213 = sphi 0, %s199
    %s217 = sphi 0, %s217
    %s219 = sphi 0, %s217
    %s220 = sphi 0, %s219
    %s234 = sphi 0, %s220
    %s238 = sphi 0, %s238
    %s240 = sphi 0, %s238
    %s241 = sphi 0, %s240
    %s255 = sphi 0, %s241
    %s259 = sphi 0, %s259
    %s261 = sphi 0, %s259
    %s262 = sphi 0, %s261
    %s276 = sphi 0, %s262
    %s280 = sphi 0, %s280
    %s282 = sphi 0, %s280
    %s283 = sphi 0, %s282
    %s297 = sphi 0, %s283
    %s301 = sphi 0, %s301
    %s303 = sphi 0, %s301
    %s304 = sphi 0, %s303
    %s318 = sphi 0, %s304
    %s322 = sphi 0, %s322
    %s324 = sphi 0, %s322
    %s325 = sphi 0, %s324
    %s339 = sphi 0, %s325
    %s343 = sphi 0, %s343
    %s345 = sphi 0, %s343
    %s346 = sphi 0, %s345
    %s360 = sphi 0, %s346
    %s364 = sphi 0, %s364
    %s366 = sphi 0, %s364
    %s367 = sphi 0, %s366
    %s381 = sphi 0, %s367
    %s385 = sphi 0, %s385
    %s387 = sphi 0, %s385
    %s388 = sphi 0, %s387
    %s402 = sphi 0, %s388
    %s406 = sphi 0, %s406
    %s408 = sphi 0, %s406
    %s409 = sphi 0, %s408
    %s423 = sphi 0, %s409
    %s427 = sphi 0, %s427
    %s429 = sphi 0, %s427
    %s430 = sphi 0, %s429
    %s444 = sphi 0, %s430
    %s448 = sphi 0, %s448
    %s450 = sphi 0, %s448
    %s451 = sphi 0, %s450
    %s465 = sphi 0, %s451
    %s469 = sphi 0, %s469
    %s471 = sphi 0, %s469
    %s472 = sphi 0, %s471
    %s486 = sphi 0, %s472
    %s490 = sphi 0, %s490
    %s492 = sphi 0, %s490
    %s493 = sphi 0, %s492
    %s507 = sphi 0, %s493
    %s511 = sphi 0, %s511
    %s513 = sphi 0, %s511
    %s514 = sphi 0, %s513
    %s528 = sphi 0, %s514
    %s534 = sphi 0, %s536
    %s537 = sphi 0, %s534
    %s538 = sphi 0, %s537
    %s554 = sphi 0, %s538
  $region4: #{rps_scnn_ecog_forward.1} parent=0 // loop_header_branch
    %34 = sbr.rel (%p32) target = $region8
  $region5: #{rps_scnn_ecog_forward.1} parent=0 // loop_body
    %s36 = ssub.s32 %s31, 1
    %s37 = ssub.s32 %s31, 2
    %s38 = sadd.s32 %s31, 1
    %s39 = ssub.s32 %s31, %s38
    %p40 = scmp.eq.s32.totalorder %s39, 0
    %s42 = sadd.s32 %s41, 1
    %s43 = scalar_select %p40, %s41, %s42
    %p46 = pneg %p40
    %p47 = scmp.eq.s32.totalorder %s31, 1
    %p48 = por %p46, %p47
    %p49 = scmp.ne.s32.totalorder %s41, %s44
    %p50 = scmp.eq.s32.totalorder %s31, 0
    %p51 = por %p49, %p50
    %p52 = scmp.ne.s32.totalorder %s41, %s44
    %p53 = scmp.eq.s32.totalorder %s36, 1
    %p54 = por %p52, %p53
    %p55 = scmp.ne.s32.totalorder %s44, %s45
    %p56 = scmp.eq.s32.totalorder %s36, 0
    %p57 = por %p55, %p56
    %p58 = scmp.ne.s32.totalorder %s44, %s45
    %p59 = scmp.eq.s32.totalorder %s37, 1
    %p60 = por %p58, %p59
    %p62 = scmp.ne.s32.totalorder %s45, %s61
    %p63 = scmp.eq.s32.totalorder %s37, 0
    %p64 = por %p62, %p63
    %s65 = ssub.s32 %s31, %s38
    %p66 = scmp.eq.s32.totalorder %s65, 0
    %s68 = sadd.s32 %s67, 1
    %s69 = scalar_select %p66, %s67, %s68
    %p72 = pneg %p66
    %p73 = scmp.eq.s32.totalorder %s31, 1
    %p74 = por %p72, %p73
    %p75 = scmp.ne.s32.totalorder %s67, %s70
    %p76 = scmp.eq.s32.totalorder %s31, 0
    %p77 = por %p75, %p76
    %p78 = scmp.ne.s32.totalorder %s67, %s70
    %p79 = scmp.eq.s32.totalorder %s36, 1
    %p80 = por %p78, %p79
    %p81 = scmp.ne.s32.totalorder %s70, %s71
    %p82 = scmp.eq.s32.totalorder %s36, 0
    %p83 = por %p81, %p82
    %p84 = scmp.ne.s32.totalorder %s70, %s71
    %p85 = scmp.eq.s32.totalorder %s37, 1
    %p86 = por %p84, %p85
    %p88 = scmp.ne.s32.totalorder %s71, %s87
    %p89 = scmp.eq.s32.totalorder %s37, 0
    %p90 = por %p88, %p89
    %s92 = sadd.s32 %s91, 1
    %p95 = scmp.eq.s32.totalorder %s31, 1
    %p96 = scmp.ne.s32.totalorder %s91, %s93
    %p97 = scmp.eq.s32.totalorder %s31, 0
    %p98 = por %p96, %p97
    %p99 = scmp.ne.s32.totalorder %s91, %s93
    %p100 = scmp.eq.s32.totalorder %s36, 1
    %p101 = por %p99, %p100
    %p102 = scmp.ne.s32.totalorder %s93, %s94
    %p103 = scmp.eq.s32.totalorder %s36, 0
    %p104 = por %p102, %p103
    %p105 = scmp.ne.s32.totalorder %s93, %s94
    %p106 = scmp.eq.s32.totalorder %s37, 1
    %p107 = por %p105, %p106
    %p109 = scmp.ne.s32.totalorder %s94, %s108
    %p110 = scmp.eq.s32.totalorder %s37, 0
    %p111 = por %p109, %p110
    %s113 = sadd.s32 %s112, 1
    %p116 = scmp.eq.s32.totalorder %s31, 1
    %p117 = scmp.ne.s32.totalorder %s112, %s114
    %p118 = scmp.eq.s32.totalorder %s31, 0
    %p119 = por %p117, %p118
    %p120 = scmp.ne.s32.totalorder %s112, %s114
    %p121 = scmp.eq.s32.totalorder %s36, 1
    %p122 = por %p120, %p121
    %p123 = scmp.ne.s32.totalorder %s114, %s115
    %p124 = scmp.eq.s32.totalorder %s36, 0
    %p125 = por %p123, %p124
    %p126 = scmp.ne.s32.totalorder %s114, %s115
    %p127 = scmp.eq.s32.totalorder %s37, 1
    %p128 = por %p126, %p127
    %p130 = scmp.ne.s32.totalorder %s115, %s129
    %p131 = scmp.eq.s32.totalorder %s37, 0
    %p132 = por %p130, %p131
    %s134 = sadd.s32 %s133, 1
    %p137 = scmp.eq.s32.totalorder %s31, 1
    %p138 = scmp.ne.s32.totalorder %s133, %s135
    %p139 = scmp.eq.s32.totalorder %s31, 0
    %p140 = por %p138, %p139
    %p141 = scmp.ne.s32.totalorder %s133, %s135
    %p142 = scmp.eq.s32.totalorder %s36, 1
    %p143 = por %p141, %p142
    %p144 = scmp.ne.s32.totalorder %s135, %s136
    %p145 = scmp.eq.s32.totalorder %s36, 0
    %p146 = por %p144, %p145
    %p147 = scmp.ne.s32.totalorder %s135, %s136
    %p148 = scmp.eq.s32.totalorder %s37, 1
    %p149 = por %p147, %p148
    %p151 = scmp.ne.s32.totalorder %s136, %s150
    %p152 = scmp.eq.s32.totalorder %s37, 0
    %p153 = por %p151, %p152
    %s155 = sadd.s32 %s154, 1
    %p158 = scmp.eq.s32.totalorder %s31, 1
    %p159 = scmp.ne.s32.totalorder %s154, %s156
    %p160 = scmp.eq.s32.totalorder %s31, 0
    %p161 = por %p159, %p160
    %p162 = scmp.ne.s32.totalorder %s154, %s156
    %p163 = scmp.eq.s32.totalorder %s36, 1
    %p164 = por %p162, %p163
    %p165 = scmp.ne.s32.totalorder %s156, %s157
    %p166 = scmp.eq.s32.totalorder %s36, 0
    %p167 = por %p165, %p166
    %p168 = scmp.ne.s32.totalorder %s156, %s157
    %p169 = scmp.eq.s32.totalorder %s37, 1
    %p170 = por %p168, %p169
    %p172 = scmp.ne.s32.totalorder %s157, %s171
    %p173 = scmp.eq.s32.totalorder %s37, 0
    %p174 = por %p172, %p173
    %s176 = sadd.s32 %s175, 1
    %p179 = scmp.eq.s32.totalorder %s31, 1
    %p180 = scmp.ne.s32.totalorder %s175, %s177
    %p181 = scmp.eq.s32.totalorder %s31, 0
    %p182 = por %p180, %p181
    %p183 = scmp.ne.s32.totalorder %s175, %s177
    %p184 = scmp.eq.s32.totalorder %s36, 1
    %p185 = por %p183, %p184
    %p186 = scmp.ne.s32.totalorder %s177, %s178
    %p187 = scmp.eq.s32.totalorder %s36, 0
    %p188 = por %p186, %p187
    %p189 = scmp.ne.s32.totalorder %s177, %s178
    %p190 = scmp.eq.s32.totalorder %s37, 1
    %p191 = por %p189, %p190
    %p193 = scmp.ne.s32.totalorder %s178, %s192
    %p194 = scmp.eq.s32.totalorder %s37, 0
    %p195 = por %p193, %p194
    %s197 = sadd.s32 %s196, 1
    %p200 = scmp.eq.s32.totalorder %s31, 1
    %p201 = scmp.ne.s32.totalorder %s196, %s198
    %p202 = scmp.eq.s32.totalorder %s31, 0
    %p203 = por %p201, %p202
    %p204 = scmp.ne.s32.totalorder %s196, %s198
    %p205 = scmp.eq.s32.totalorder %s36, 1
    %p206 = por %p204, %p205
    %p207 = scmp.ne.s32.totalorder %s198, %s199
    %p208 = scmp.eq.s32.totalorder %s36, 0
    %p209 = por %p207, %p208
    %p210 = scmp.ne.s32.totalorder %s198, %s199
    %p211 = scmp.eq.s32.totalorder %s37, 1
    %p212 = por %p210, %p211
    %p214 = scmp.ne.s32.totalorder %s199, %s213
    %p215 = scmp.eq.s32.totalorder %s37, 0
    %p216 = por %p214, %p215
    %s218 = sadd.s32 %s217, 1
    %p221 = scmp.eq.s32.totalorder %s31, 1
    %p222 = scmp.ne.s32.totalorder %s217, %s219
    %p223 = scmp.eq.s32.totalorder %s31, 0
    %p224 = por %p222, %p223
    %p225 = scmp.ne.s32.totalorder %s217, %s219
    %p226 = scmp.eq.s32.totalorder %s36, 1
    %p227 = por %p225, %p226
    %p228 = scmp.ne.s32.totalorder %s219, %s220
    %p229 = scmp.eq.s32.totalorder %s36, 0
    %p230 = por %p228, %p229
    %p231 = scmp.ne.s32.totalorder %s219, %s220
    %p232 = scmp.eq.s32.totalorder %s37, 1
    %p233 = por %p231, %p232
    %p235 = scmp.ne.s32.totalorder %s220, %s234
    %p236 = scmp.eq.s32.totalorder %s37, 0
    %p237 = por %p235, %p236
    %s239 = sadd.s32 %s238, 1
    %p242 = scmp.eq.s32.totalorder %s31, 1
    %p243 = scmp.ne.s32.totalorder %s238, %s240
    %p244 = scmp.eq.s32.totalorder %s31, 0
    %p245 = por %p243, %p244
    %p246 = scmp.ne.s32.totalorder %s238, %s240
    %p247 = scmp.eq.s32.totalorder %s36, 1
    %p248 = por %p246, %p247
    %p249 = scmp.ne.s32.totalorder %s240, %s241
    %p250 = scmp.eq.s32.totalorder %s36, 0
    %p251 = por %p249, %p250
    %p252 = scmp.ne.s32.totalorder %s240, %s241
    %p253 = scmp.eq.s32.totalorder %s37, 1
    %p254 = por %p252, %p253
    %p256 = scmp.ne.s32.totalorder %s241, %s255
    %p257 = scmp.eq.s32.totalorder %s37, 0
    %p258 = por %p256, %p257
    %s260 = sadd.s32 %s259, 1
    %p263 = scmp.eq.s32.totalorder %s31, 1
    %p264 = scmp.ne.s32.totalorder %s259, %s261
    %p265 = scmp.eq.s32.totalorder %s31, 0
    %p266 = por %p264, %p265
    %p267 = scmp.ne.s32.totalorder %s259, %s261
    %p268 = scmp.eq.s32.totalorder %s36, 1
    %p269 = por %p267, %p268
    %p270 = scmp.ne.s32.totalorder %s261, %s262
    %p271 = scmp.eq.s32.totalorder %s36, 0
    %p272 = por %p270, %p271
    %p273 = scmp.ne.s32.totalorder %s261, %s262
    %p274 = scmp.eq.s32.totalorder %s37, 1
    %p275 = por %p273, %p274
    %p277 = scmp.ne.s32.totalorder %s262, %s276
    %p278 = scmp.eq.s32.totalorder %s37, 0
    %p279 = por %p277, %p278
    %s281 = sadd.s32 %s280, 1
    %p284 = scmp.eq.s32.totalorder %s31, 1
    %p285 = scmp.ne.s32.totalorder %s280, %s282
    %p286 = scmp.eq.s32.totalorder %s31, 0
    %p287 = por %p285, %p286
    %p288 = scmp.ne.s32.totalorder %s280, %s282
    %p289 = scmp.eq.s32.totalorder %s36, 1
    %p290 = por %p288, %p289
    %p291 = scmp.ne.s32.totalorder %s282, %s283
    %p292 = scmp.eq.s32.totalorder %s36, 0
    %p293 = por %p291, %p292
    %p294 = scmp.ne.s32.totalorder %s282, %s283
    %p295 = scmp.eq.s32.totalorder %s37, 1
    %p296 = por %p294, %p295
    %p298 = scmp.ne.s32.totalorder %s283, %s297
    %p299 = scmp.eq.s32.totalorder %s37, 0
    %p300 = por %p298, %p299
    %s302 = sadd.s32 %s301, 1
    %p305 = scmp.eq.s32.totalorder %s31, 1
    %p306 = scmp.ne.s32.totalorder %s301, %s303
    %p307 = scmp.eq.s32.totalorder %s31, 0
    %p308 = por %p306, %p307
    %p309 = scmp.ne.s32.totalorder %s301, %s303
    %p310 = scmp.eq.s32.totalorder %s36, 1
    %p311 = por %p309, %p310
    %p312 = scmp.ne.s32.totalorder %s303, %s304
    %p313 = scmp.eq.s32.totalorder %s36, 0
    %p314 = por %p312, %p313
    %p315 = scmp.ne.s32.totalorder %s303, %s304
    %p316 = scmp.eq.s32.totalorder %s37, 1
    %p317 = por %p315, %p316
    %p319 = scmp.ne.s32.totalorder %s304, %s318
    %p320 = scmp.eq.s32.totalorder %s37, 0
    %p321 = por %p319, %p320
    %s323 = sadd.s32 %s322, 1
    %p326 = scmp.eq.s32.totalorder %s31, 1
    %p327 = scmp.ne.s32.totalorder %s322, %s324
    %p328 = scmp.eq.s32.totalorder %s31, 0
    %p329 = por %p327, %p328
    %p330 = scmp.ne.s32.totalorder %s322, %s324
    %p331 = scmp.eq.s32.totalorder %s36, 1
    %p332 = por %p330, %p331
    %p333 = scmp.ne.s32.totalorder %s324, %s325
    %p334 = scmp.eq.s32.totalorder %s36, 0
    %p335 = por %p333, %p334
    %p336 = scmp.ne.s32.totalorder %s324, %s325
    %p337 = scmp.eq.s32.totalorder %s37, 1
    %p338 = por %p336, %p337
    %p340 = scmp.ne.s32.totalorder %s325, %s339
    %p341 = scmp.eq.s32.totalorder %s37, 0
    %p342 = por %p340, %p341
    %s344 = sadd.s32 %s343, 1
    %p347 = scmp.eq.s32.totalorder %s31, 1
    %p348 = scmp.ne.s32.totalorder %s343, %s345
    %p349 = scmp.eq.s32.totalorder %s31, 0
    %p350 = por %p348, %p349
    %p351 = scmp.ne.s32.totalorder %s343, %s345
    %p352 = scmp.eq.s32.totalorder %s36, 1
    %p353 = por %p351, %p352
    %p354 = scmp.ne.s32.totalorder %s345, %s346
    %p355 = scmp.eq.s32.totalorder %s36, 0
    %p356 = por %p354, %p355
    %p357 = scmp.ne.s32.totalorder %s345, %s346
    %p358 = scmp.eq.s32.totalorder %s37, 1
    %p359 = por %p357, %p358
    %p361 = scmp.ne.s32.totalorder %s346, %s360
    %p362 = scmp.eq.s32.totalorder %s37, 0
    %p363 = por %p361, %p362
    %s365 = sadd.s32 %s364, 1
    %p368 = scmp.eq.s32.totalorder %s31, 1
    %p369 = scmp.ne.s32.totalorder %s364, %s366
    %p370 = scmp.eq.s32.totalorder %s31, 0
    %p371 = por %p369, %p370
    %p372 = scmp.ne.s32.totalorder %s364, %s366
    %p373 = scmp.eq.s32.totalorder %s36, 1
    %p374 = por %p372, %p373
    %p375 = scmp.ne.s32.totalorder %s366, %s367
    %p376 = scmp.eq.s32.totalorder %s36, 0
    %p377 = por %p375, %p376
    %p378 = scmp.ne.s32.totalorder %s366, %s367
    %p379 = scmp.eq.s32.totalorder %s37, 1
    %p380 = por %p378, %p379
    %p382 = scmp.ne.s32.totalorder %s367, %s381
    %p383 = scmp.eq.s32.totalorder %s37, 0
    %p384 = por %p382, %p383
    %s386 = sadd.s32 %s385, 1
    %p389 = scmp.eq.s32.totalorder %s31, 1
    %p390 = scmp.ne.s32.totalorder %s385, %s387
    %p391 = scmp.eq.s32.totalorder %s31, 0
    %p392 = por %p390, %p391
    %p393 = scmp.ne.s32.totalorder %s385, %s387
    %p394 = scmp.eq.s32.totalorder %s36, 1
    %p395 = por %p393, %p394
    %p396 = scmp.ne.s32.totalorder %s387, %s388
    %p397 = scmp.eq.s32.totalorder %s36, 0
    %p398 = por %p396, %p397
    %p399 = scmp.ne.s32.totalorder %s387, %s388
    %p400 = scmp.eq.s32.totalorder %s37, 1
    %p401 = por %p399, %p400
    %p403 = scmp.ne.s32.totalorder %s388, %s402
    %p404 = scmp.eq.s32.totalorder %s37, 0
    %p405 = por %p403, %p404
    %s407 = sadd.s32 %s406, 1
    %p410 = scmp.eq.s32.totalorder %s31, 1
    %p411 = scmp.ne.s32.totalorder %s406, %s408
    %p412 = scmp.eq.s32.totalorder %s31, 0
    %p413 = por %p411, %p412
    %p414 = scmp.ne.s32.totalorder %s406, %s408
    %p415 = scmp.eq.s32.totalorder %s36, 1
    %p416 = por %p414, %p415
    %p417 = scmp.ne.s32.totalorder %s408, %s409
    %p418 = scmp.eq.s32.totalorder %s36, 0
    %p419 = por %p417, %p418
    %p420 = scmp.ne.s32.totalorder %s408, %s409
    %p421 = scmp.eq.s32.totalorder %s37, 1
    %p422 = por %p420, %p421
    %p424 = scmp.ne.s32.totalorder %s409, %s423
    %p425 = scmp.eq.s32.totalorder %s37, 0
    %p426 = por %p424, %p425
    %s428 = sadd.s32 %s427, 1
    %p431 = scmp.eq.s32.totalorder %s31, 1
    %p432 = scmp.ne.s32.totalorder %s427, %s429
    %p433 = scmp.eq.s32.totalorder %s31, 0
    %p434 = por %p432, %p433
    %p435 = scmp.ne.s32.totalorder %s427, %s429
    %p436 = scmp.eq.s32.totalorder %s36, 1
    %p437 = por %p435, %p436
    %p438 = scmp.ne.s32.totalorder %s429, %s430
    %p439 = scmp.eq.s32.totalorder %s36, 0
    %p440 = por %p438, %p439
    %p441 = scmp.ne.s32.totalorder %s429, %s430
    %p442 = scmp.eq.s32.totalorder %s37, 1
    %p443 = por %p441, %p442
    %p445 = scmp.ne.s32.totalorder %s430, %s444
    %p446 = scmp.eq.s32.totalorder %s37, 0
    %p447 = por %p445, %p446
    %s449 = sadd.s32 %s448, 1
    %p452 = scmp.eq.s32.totalorder %s31, 1
    %p453 = scmp.ne.s32.totalorder %s448, %s450
    %p454 = scmp.eq.s32.totalorder %s31, 0
    %p455 = por %p453, %p454
    %p456 = scmp.ne.s32.totalorder %s448, %s450
    %p457 = scmp.eq.s32.totalorder %s36, 1
    %p458 = por %p456, %p457
    %p459 = scmp.ne.s32.totalorder %s450, %s451
    %p460 = scmp.eq.s32.totalorder %s36, 0
    %p461 = por %p459, %p460
    %p462 = scmp.ne.s32.totalorder %s450, %s451
    %p463 = scmp.eq.s32.totalorder %s37, 1
    %p464 = por %p462, %p463
    %p466 = scmp.ne.s32.totalorder %s451, %s465
    %p467 = scmp.eq.s32.totalorder %s37, 0
    %p468 = por %p466, %p467
    %s470 = sadd.s32 %s469, 1
    %p473 = scmp.eq.s32.totalorder %s31, 1
    %p474 = scmp.ne.s32.totalorder %s469, %s471
    %p475 = scmp.eq.s32.totalorder %s31, 0
    %p476 = por %p474, %p475
    %p477 = scmp.ne.s32.totalorder %s469, %s471
    %p478 = scmp.eq.s32.totalorder %s36, 1
    %p479 = por %p477, %p478
    %p480 = scmp.ne.s32.totalorder %s471, %s472
    %p481 = scmp.eq.s32.totalorder %s36, 0
    %p482 = por %p480, %p481
    %p483 = scmp.ne.s32.totalorder %s471, %s472
    %p484 = scmp.eq.s32.totalorder %s37, 1
    %p485 = por %p483, %p484
    %p487 = scmp.ne.s32.totalorder %s472, %s486
    %p488 = scmp.eq.s32.totalorder %s37, 0
    %p489 = por %p487, %p488
    %s491 = sadd.s32 %s490, 1
    %p494 = scmp.eq.s32.totalorder %s31, 1
    %p495 = scmp.ne.s32.totalorder %s490, %s492
    %p496 = scmp.eq.s32.totalorder %s31, 0
    %p497 = por %p495, %p496
    %p498 = scmp.ne.s32.totalorder %s490, %s492
    %p499 = scmp.eq.s32.totalorder %s36, 1
    %p500 = por %p498, %p499
    %p501 = scmp.ne.s32.totalorder %s492, %s493
    %p502 = scmp.eq.s32.totalorder %s36, 0
    %p503 = por %p501, %p502
    %p504 = scmp.ne.s32.totalorder %s492, %s493
    %p505 = scmp.eq.s32.totalorder %s37, 1
    %p506 = por %p504, %p505
    %p508 = scmp.ne.s32.totalorder %s493, %s507
    %p509 = scmp.eq.s32.totalorder %s37, 0
    %p510 = por %p508, %p509
    %s512 = sadd.s32 %s511, 1
    %p515 = scmp.eq.s32.totalorder %s31, 1
    %p516 = scmp.ne.s32.totalorder %s511, %s513
    %p517 = scmp.eq.s32.totalorder %s31, 0
    %p518 = por %p516, %p517
    %p519 = scmp.ne.s32.totalorder %s511, %s513
    %p520 = scmp.eq.s32.totalorder %s36, 1
    %p521 = por %p519, %p520
    %p522 = scmp.ne.s32.totalorder %s513, %s514
    %p523 = scmp.eq.s32.totalorder %s36, 0
    %p524 = por %p522, %p523
    %p525 = scmp.ne.s32.totalorder %s513, %s514
    %p526 = scmp.eq.s32.totalorder %s37, 1
    %p527 = por %p525, %p526
    %p529 = scmp.ne.s32.totalorder %s514, %s528
    %p530 = scmp.eq.s32.totalorder %s37, 0
    %p531 = por %p529, %p530
    %s532 = ssub.s32 %s31, %s38
    %p533 = scmp.eq.s32.totalorder %s532, 0
    %s535 = sadd.s32 %s534, 1
    %s536 = scalar_select %p533, %s534, %s535
    %p539 = pneg %p533
    %p540 = scmp.eq.s32.totalorder %s31, 1
    %p541 = por %p539, %p540
    %p542 = scmp.ne.s32.totalorder %s534, %s537
    %p543 = scmp.eq.s32.totalorder %s31, 0
    %p544 = por %p542, %p543
    %p545 = scmp.ne.s32.totalorder %s534, %s537
    %p546 = scmp.eq.s32.totalorder %s36, 1
    %p547 = por %p545, %p546
    %p548 = scmp.ne.s32.totalorder %s537, %s538
    %p549 = scmp.eq.s32.totalorder %s36, 0
    %p550 = por %p548, %p549
    %p551 = scmp.ne.s32.totalorder %s537, %s538
    %p552 = scmp.eq.s32.totalorder %s37, 1
    %p553 = por %p551, %p552
    %p555 = scmp.ne.s32.totalorder %s538, %s554
    %p556 = scmp.eq.s32.totalorder %s37, 0
    %p557 = por %p555, %p556
    %p558 = scmp.le.s32.totalorder 1, %s31
    %p559 = scmp.lt.s32.totalorder %s31, 3
    %p560 = pnand %p558, %p559
    %p561 = pneg %p560
    // Predicated region
    $region9: #{rps_scnn_ecog_forward.1} parent=5 // pred_check
      _
    $region10: #{rps_scnn_ecog_forward.1} parent=5 // pred_check_branch
      %563 = sbr.rel (%p560) target = $region12
    $region11: #{rps_scnn_ecog_forward.1} parent=5 // pred_region
      %s564 = ssub.s32 %s31, 1
      // Predicated region
      $region13: #{rps_scnn_ecog_forward.1} parent=11 // pred_check
        %p565 = pneg %p104
      $region14: #{rps_scnn_ecog_forward.1} parent=11 // pred_check_branch
        %567 = sbr.rel (%p565) target = $region16
      $region15: #{rps_scnn_ecog_forward.1} parent=11 // pred_region
        _
      $region16: #{rps_scnn_ecog_forward.1} parent=11 // pred_fallthru
        _
      // Predicated region
      $region17: #{rps_scnn_ecog_forward.1} parent=11 // pred_check
        %p568 = pneg %p125
      $region18: #{rps_scnn_ecog_forward.1} parent=11 // pred_check_branch
        %570 = sbr.rel (%p568) target = $region20
      $region19: #{rps_scnn_ecog_forward.1} parent=11 // pred_region
        _
      $region20: #{rps_scnn_ecog_forward.1} parent=11 // pred_fallthru
        _
      // Predicated region
      $region21: #{rps_scnn_ecog_forward.1} parent=11 // pred_check
        %p571 = pneg %p146
      $region22: #{rps_scnn_ecog_forward.1} parent=11 // pred_check_branch
        %573 = sbr.rel (%p571) target = $region24
      $region23: #{rps_scnn_ecog_forward.1} parent=11 // pred_region
        _
      $region24: #{rps_scnn_ecog_forward.1} parent=11 // pred_fallthru
        _
      // Predicated region
      $region25: #{rps_scnn_ecog_forward.1} parent=11 // pred_check
        %p574 = pneg %p167
      $region26: #{rps_scnn_ecog_forward.1} parent=11 // pred_check_branch
        %576 = sbr.rel (%p574) target = $region28
      $region27: #{rps_scnn_ecog_forward.1} parent=11 // pred_region
        _
      $region28: #{rps_scnn_ecog_forward.1} parent=11 // pred_fallthru
        _
      // Predicated region
      $region29: #{rps_scnn_ecog_forward.1} parent=11 // pred_check
        %p577 = pneg %p188
      $region30: #{rps_scnn_ecog_forward.1} parent=11 // pred_check_branch
        %579 = sbr.rel (%p577) target = $region32
      $region31: #{rps_scnn_ecog_forward.1} parent=11 // pred_region
        _
      $region32: #{rps_scnn_ecog_forward.1} parent=11 // pred_fallthru
        _
      // Predicated region
      $region33: #{rps_scnn_ecog_forward.1} parent=11 // pred_check
        %p580 = pneg %p209
      $region34: #{rps_scnn_ecog_forward.1} parent=11 // pred_check_branch
        %582 = sbr.rel (%p580) target = $region36
      $region35: #{rps_scnn_ecog_forward.1} parent=11 // pred_region
        _
      $region36: #{rps_scnn_ecog_forward.1} parent=11 // pred_fallthru
        _
      // Predicated region
      $region37: #{rps_scnn_ecog_forward.1} parent=11 // pred_check
        %p583 = pneg %p230
      $region38: #{rps_scnn_ecog_forward.1} parent=11 // pred_check_branch
        %585 = sbr.rel (%p583) target = $region40
      $region39: #{rps_scnn_ecog_forward.1} parent=11 // pred_region
        _
      $region40: #{rps_scnn_ecog_forward.1} parent=11 // pred_fallthru
        _
      // Predicated region
      $region41: #{rps_scnn_ecog_forward.1} parent=11 // pred_check
        %p586 = pneg %p251
      $region42: #{rps_scnn_ecog_forward.1} parent=11 // pred_check_branch
        %588 = sbr.rel (%p586) target = $region44
      $region43: #{rps_scnn_ecog_forward.1} parent=11 // pred_region
        _
      $region44: #{rps_scnn_ecog_forward.1} parent=11 // pred_fallthru
        _
      // Predicated region
      $region45: #{rps_scnn_ecog_forward.1} parent=11 // pred_check
        %p589 = pneg %p272
      $region46: #{rps_scnn_ecog_forward.1} parent=11 // pred_check_branch
        %591 = sbr.rel (%p589) target = $region48
      $region47: #{rps_scnn_ecog_forward.1} parent=11 // pred_region
        _
      $region48: #{rps_scnn_ecog_forward.1} parent=11 // pred_fallthru
        _
      // Predicated region
      $region49: #{rps_scnn_ecog_forward.1} parent=11 // pred_check
        %p592 = pneg %p293
      $region50: #{rps_scnn_ecog_forward.1} parent=11 // pred_check_branch
        %594 = sbr.rel (%p592) target = $region52
      $region51: #{rps_scnn_ecog_forward.1} parent=11 // pred_region
        _
      $region52: #{rps_scnn_ecog_forward.1} parent=11 // pred_fallthru
        _
      // Predicated region
      $region53: #{rps_scnn_ecog_forward.1} parent=11 // pred_check
        %p595 = pneg %p314
      $region54: #{rps_scnn_ecog_forward.1} parent=11 // pred_check_branch
        %597 = sbr.rel (%p595) target = $region56
      $region55: #{rps_scnn_ecog_forward.1} parent=11 // pred_region
        _
      $region56: #{rps_scnn_ecog_forward.1} parent=11 // pred_fallthru
        _
      // Predicated region
      $region57: #{rps_scnn_ecog_forward.1} parent=11 // pred_check
        %p598 = pneg %p335
      $region58: #{rps_scnn_ecog_forward.1} parent=11 // pred_check_branch
        %600 = sbr.rel (%p598) target = $region60
      $region59: #{rps_scnn_ecog_forward.1} parent=11 // pred_region
        _
      $region60: #{rps_scnn_ecog_forward.1} parent=11 // pred_fallthru
        _
      // Predicated region
      $region61: #{rps_scnn_ecog_forward.1} parent=11 // pred_check
        %p601 = pneg %p356
      $region62: #{rps_scnn_ecog_forward.1} parent=11 // pred_check_branch
        %603 = sbr.rel (%p601) target = $region64
      $region63: #{rps_scnn_ecog_forward.1} parent=11 // pred_region
        _
      $region64: #{rps_scnn_ecog_forward.1} parent=11 // pred_fallthru
        _
      // Predicated region
      $region65: #{rps_scnn_ecog_forward.1} parent=11 // pred_check
        %p604 = pneg %p377
      $region66: #{rps_scnn_ecog_forward.1} parent=11 // pred_check_branch
        %606 = sbr.rel (%p604) target = $region68
      $region67: #{rps_scnn_ecog_forward.1} parent=11 // pred_region
        _
      $region68: #{rps_scnn_ecog_forward.1} parent=11 // pred_fallthru
        _
      // Predicated region
      $region69: #{rps_scnn_ecog_forward.1} parent=11 // pred_check
        %p607 = pneg %p398
      $region70: #{rps_scnn_ecog_forward.1} parent=11 // pred_check_branch
        %609 = sbr.rel (%p607) target = $region72
      $region71: #{rps_scnn_ecog_forward.1} parent=11 // pred_region
        _
      $region72: #{rps_scnn_ecog_forward.1} parent=11 // pred_fallthru
        _
      // Predicated region
      $region73: #{rps_scnn_ecog_forward.1} parent=11 // pred_check
        %p610 = pneg %p419
      $region74: #{rps_scnn_ecog_forward.1} parent=11 // pred_check_branch
        %612 = sbr.rel (%p610) target = $region76
      $region75: #{rps_scnn_ecog_forward.1} parent=11 // pred_region
        _
      $region76: #{rps_scnn_ecog_forward.1} parent=11 // pred_fallthru
        _
      // Predicated region
      $region77: #{rps_scnn_ecog_forward.1} parent=11 // pred_check
        %p613 = pneg %p440
      $region78: #{rps_scnn_ecog_forward.1} parent=11 // pred_check_branch
        %615 = sbr.rel (%p613) target = $region80
      $region79: #{rps_scnn_ecog_forward.1} parent=11 // pred_region
        _
      $region80: #{rps_scnn_ecog_forward.1} parent=11 // pred_fallthru
        _
      // Predicated region
      $region81: #{rps_scnn_ecog_forward.1} parent=11 // pred_check
        %p616 = pneg %p461
      $region82: #{rps_scnn_ecog_forward.1} parent=11 // pred_check_branch
        %618 = sbr.rel (%p616) target = $region84
      $region83: #{rps_scnn_ecog_forward.1} parent=11 // pred_region
        _
      $region84: #{rps_scnn_ecog_forward.1} parent=11 // pred_fallthru
        _
      // Predicated region
      $region85: #{rps_scnn_ecog_forward.1} parent=11 // pred_check
        %p619 = pneg %p482
      $region86: #{rps_scnn_ecog_forward.1} parent=11 // pred_check_branch
        %621 = sbr.rel (%p619) target = $region88
      $region87: #{rps_scnn_ecog_forward.1} parent=11 // pred_region
        _
      $region88: #{rps_scnn_ecog_forward.1} parent=11 // pred_fallthru
        _
      // Predicated region
      $region89: #{rps_scnn_ecog_forward.1} parent=11 // pred_check
        %p622 = pneg %p503
      $region90: #{rps_scnn_ecog_forward.1} parent=11 // pred_check_branch
        %624 = sbr.rel (%p622) target = $region92
      $region91: #{rps_scnn_ecog_forward.1} parent=11 // pred_region
        _
      $region92: #{rps_scnn_ecog_forward.1} parent=11 // pred_fallthru
        _
      // Predicated region
      $region93: #{rps_scnn_ecog_forward.1} parent=11 // pred_check
        %p625 = pneg %p524
      $region94: #{rps_scnn_ecog_forward.1} parent=11 // pred_check_branch
        %627 = sbr.rel (%p625) target = $region96
      $region95: #{rps_scnn_ecog_forward.1} parent=11 // pred_region
        _
      $region96: #{rps_scnn_ecog_forward.1} parent=11 // pred_fallthru
        _
    $region12: #{rps_scnn_ecog_forward.1} parent=5 // pred_fallthru
      _
    %p628 = scmp.lt.s32.totalorder %s31, 2
    // Predicated region
    $region97: #{rps_scnn_ecog_forward.1} parent=5 // pred_check
      %p629 = pneg %p628
    $region98: #{rps_scnn_ecog_forward.1} parent=5 // pred_check_branch
      %631 = sbr.rel (%p629) target = $region100
    $region99: #{rps_scnn_ecog_forward.1} parent=5 // pred_region
      // Predicated region
      $region101: #{rps_scnn_ecog_forward.1} parent=99 // pred_check
        %p632 = pneg %p51
      $region102: #{rps_scnn_ecog_forward.1} parent=99 // pred_check_branch
        %634 = sbr.rel (%p632) target = $region104
      $region103: #{rps_scnn_ecog_forward.1} parent=99 // pred_region
        %p635 = scmp.lt.s32.totalorder %s31, 1
        %s636 = scalar_select %p635, %s31, 1
        %s637 = smul.addr %s636, 8
        %s638 = smul.addr %s637, 8
        %s639 = scalar_lea.vmem %s0, %s638
      $region104: #{rps_scnn_ecog_forward.1} parent=99 // pred_fallthru
        _
      // Predicated region
      $region105: #{rps_scnn_ecog_forward.1} parent=99 // pred_check
        %p640 = pneg %p77
      $region106: #{rps_scnn_ecog_forward.1} parent=99 // pred_check_branch
        %642 = sbr.rel (%p640) target = $region108
      $region107: #{rps_scnn_ecog_forward.1} parent=99 // pred_region
        %p643 = scmp.lt.s32.totalorder %s31, 1
        %s644 = scalar_select %p643, %s31, 1
        %s645 = smul.addr %s644, 3
        %s646 = scalar_lea.vmem %s1, %s645
      $region108: #{rps_scnn_ecog_forward.1} parent=99 // pred_fallthru
        _
    $region100: #{rps_scnn_ecog_forward.1} parent=5 // pred_fallthru
      _
    %p647 = scmp.le.s32.totalorder 1, %s31
    %p648 = scmp.lt.s32.totalorder %s31, 3
    %p649 = pnand %p647, %p648
    %p650 = pneg %p649
    // Predicated region
    $region109: #{rps_scnn_ecog_forward.1} parent=5 // pred_check
      _
    $region110: #{rps_scnn_ecog_forward.1} parent=5 // pred_check_branch
      %652 = sbr.rel (%p649) target = $region112
    $region111: #{rps_scnn_ecog_forward.1} parent=5 // pred_region
      %s653 = ssub.s32 %s31, 1
      %p654 = scmp.lt.s32.totalorder %s36, 1
      %s655 = scalar_select %p654, %s36, 1
      %s656 = smul.addr %s655, 8
      %s657 = smul.addr %s656, 8
      %s658 = scalar_lea.vmem %s0, %s657
      %p659 = pneg %p57
      %p660 = pneg %p54
      %p661 = scmp.lt.s32.totalorder %s36, 1
      %s662 = scalar_select %p661, %s36, 1
      %s663 = smul.addr %s662, 3
      %s664 = scalar_lea.vmem %s1, %s663
      %p665 = pneg %p83
      %p666 = pneg %p80
      %p667 = pneg %p104
      %p668 = pneg %p101
      %p669 = pneg %p125
      %p670 = pneg %p122
      %p671 = pneg %p146
      %p672 = pneg %p143
      %p673 = pneg %p167
      %p674 = pneg %p164
      %p675 = pneg %p188
      %p676 = pneg %p185
      %p677 = pneg %p209
      %p678 = pneg %p206
      %p679 = pneg %p230
      %p680 = pneg %p227
      %p681 = pneg %p251
      %p682 = pneg %p248
      %p683 = pneg %p272
      %p684 = pneg %p269
      %p685 = pneg %p293
      %p686 = pneg %p290
      %p687 = pneg %p314
      %p688 = pneg %p311
      %p689 = pneg %p335
      %p690 = pneg %p332
      %p691 = pneg %p356
      %p692 = pneg %p353
      %p693 = pneg %p377
      %p694 = pneg %p374
      %p695 = pneg %p398
      %p696 = pneg %p395
      %p697 = pneg %p419
      %p698 = pneg %p416
      %p699 = pneg %p440
      %p700 = pneg %p437
      %p701 = pneg %p461
      %p702 = pneg %p458
      %p703 = pneg %p482
      %p704 = pneg %p479
      %p705 = pneg %p503
      %p706 = pneg %p500
      %p707 = pneg %p524
      %p708 = pneg %p521
      %p709 = pneg %p550
      %p710 = pneg %p547
      %p711 = scmp.lt.s32.totalorder %s36, 1
      %s712 = scalar_select %p711, %s36, 1
      %s713 = scalar_lea.vmem %s23, %s712
      %p714 = scmp.lt.s32.totalorder %s36, 1
      %s715 = scalar_select %p714, %s36, 1
      %s716 = smul.addr %s715, 8
      %s717 = smul.addr %s716, 8
      %s718 = scalar_lea.vmem %s0, %s717
      %p719 = scmp.lt.s32.totalorder %s36, 1
      %s720 = scalar_select %p719, %s36, 1
      %s721 = smul.addr %s720, 3
      %s722 = scalar_lea.vmem %s1, %s721
      %p723 = scmp.lt.s32.totalorder %s36, 1
      %s724 = scalar_select %p723, %s36, 1
      %s725 = scalar_lea.vmem %s23, %s724
      %v727 = vld [vmem:[%s718] sm:$0xff]
      %v728 = vld [vmem:[%s718 + $0x8] sm:$0xff]
      %v729 = vld [vmem:[%s718 + $0x10] sm:$0xff]
      %v730 = vld [vmem:[%s718 + $0x18] sm:$0xff]
      %v731 = vld [vmem:[%s718 + $0x20] sm:$0xff]
      %v732 = vld [vmem:[%s718 + $0x28] sm:$0xff]
      %v733 = vld [vmem:[%s718 + $0x30] sm:$0xff]
      %v734 = vld [vmem:[%s718 + $0x38] sm:$0x3f]
      %v735 = vld [vmem:[%s2] sm:$0xf]
      %v736 = vld [vmem:[%s2 + $0x4] sm:$0xf]
      %v737 = vld [vmem:[%s2 + $0x8] sm:$0xf]
      %v738 = vld [vmem:[%s2 + $0xc] sm:$0xf]
      %v739 = vld [vmem:[%s2 + $0x10] sm:$0xf]
      %v740 = vld [vmem:[%s2 + $0x14] sm:$0xf]
      %v741 = vld [vmem:[%s2 + $0x18] sm:$0xf]
      %v742 = vld [vmem:[%s2 + $0x1c] sm:$0xf]
      %v743 = vld [vmem:[%s2 + $0x20] sm:$0xf]
      %v744 = vld [vmem:[%s2 + $0x24] sm:$0xf]
      %v745 = vld [vmem:[%s2 + $0x28] sm:$0xf]
      %v746 = vld [vmem:[%s2 + $0x2c] sm:$0xf]
      %v747 = vld [vmem:[%s2 + $0x30] sm:$0xf]
      %v748 = vld [vmem:[%s2 + $0x34] sm:$0xf]
      %v749 = vld [vmem:[%s2 + $0x38] sm:$0xf]
      %v750 = vld [vmem:[%s2 + $0x3c] sm:$0xf]
      %v751 = vld [vmem:[%s2 + $0x40] sm:$0xf]
      %v752 = vld [vmem:[%s2 + $0x44] sm:$0xf]
      %v753 = vld [vmem:[%s2 + $0x48] sm:$0xf]
      %v754 = vld [vmem:[%s2 + $0x4c] sm:$0xf]
      %v755 = vld [vmem:[%s2 + $0x50] sm:$0xf]
      %v756 = vld [vmem:[%s2 + $0x54] sm:$0xf]
      %v757 = vld [vmem:[%s2 + $0x58] sm:$0xf]
      %v758 = vld [vmem:[%s2 + $0x5c] sm:$0xf]
      %v759 = vld [vmem:[%s2 + $0x60] sm:$0xf]
      %v760 = vld [vmem:[%s2 + $0x64] sm:$0xf]
      %v761 = vld [vmem:[%s2 + $0x68] sm:$0xf]
      %v762 = vld [vmem:[%s2 + $0x6c] sm:$0xf]
      %v763 = vld [vmem:[%s2 + $0x70] sm:$0xf]
      %v764 = vld [vmem:[%s2 + $0x74] sm:$0xf]
      %v765 = vld [vmem:[%s2 + $0x78] sm:$0xf]
      %v766 = vld [vmem:[%s2 + $0x7c] sm:$0xf]
      %v767 = vld [vmem:[%s2 + $0x80] sm:$0xf]
      %v768 = vld [vmem:[%s2 + $0x84] sm:$0xf]
      %v769 = vld [vmem:[%s2 + $0x88] sm:$0xf]
      %v770 = vld [vmem:[%s2 + $0x8c] sm:$0xf]
      %v771 = vld [vmem:[%s2 + $0x90] sm:$0xf]
      %v772 = vld [vmem:[%s2 + $0x94] sm:$0xf]
      %v773 = vld [vmem:[%s2 + $0x98] sm:$0xf]
      %v774 = vld [vmem:[%s2 + $0x9c] sm:$0xf]
      %v775 = vld [vmem:[%s2 + $0xa0] sm:$0xf]
      %v776 = vld [vmem:[%s2 + $0xa4] sm:$0xf]
      %v777 = vld [vmem:[%s2 + $0xa8] sm:$0xf]
      %v778 = vld [vmem:[%s2 + $0xac] sm:$0xf]
      %v779 = vld [vmem:[%s2 + $0xb0] sm:$0xf]
      %v780 = vld [vmem:[%s2 + $0xb4] sm:$0xf]
      %v781 = vld [vmem:[%s2 + $0xb8] sm:$0xf]
      %v782 = vld [vmem:[%s2 + $0xbc] sm:$0xf]
      %v783 = vld [vmem:[%s2 + $0xc0] sm:$0xf]
      %v784 = vld [vmem:[%s2 + $0xc4] sm:$0xf]
      %v785 = vld [vmem:[%s2 + $0xc8] sm:$0xf]
      %v786 = vld [vmem:[%s2 + $0xcc] sm:$0xf]
      %v787 = vld [vmem:[%s2 + $0xd0] sm:$0xf]
      %v788 = vld [vmem:[%s2 + $0xd4] sm:$0xf]
      %v789 = vld [vmem:[%s2 + $0xd8] sm:$0xf]
      %v790 = vld [vmem:[%s2 + $0xdc] sm:$0xf]
      %v791 = vld [vmem:[%s2 + $0xe0] sm:$0xf]
      %v792 = vld [vmem:[%s2 + $0xe4] sm:$0xf]
      %v793 = vld [vmem:[%s2 + $0xe8] sm:$0xf]
      %v794 = vld [vmem:[%s2 + $0xec] sm:$0xf]
      %v795 = vld [vmem:[%s2 + $0xf0] sm:$0xf]
      %v796 = vld [vmem:[%s2 + $0xf4] sm:$0xf]
      %v797 = vld [vmem:[%s2 + $0xf8] sm:$0xf]
      %v798 = vld [vmem:[%s2 + $0xfc] sm:$0xf]
      %v799 = vld [vmem:[%s3] sm:$0xff]
      %v800 = vld [vmem:[%s3 + $0x8] sm:$0xff]
      %v801 = vld [vmem:[%s3 + $0x10] sm:$0xff]
      %v802 = vld [vmem:[%s3 + $0x18] sm:$0xff]
      %v803 = vld [vmem:[%s3 + $0x20] sm:$0xff]
      %v804 = vld [vmem:[%s3 + $0x28] sm:$0xff]
      %v805 = vld [vmem:[%s3 + $0x30] sm:$0xff]
      %v806 = vld [vmem:[%s3 + $0x38] sm:$0xff]
      %v807 = vld [vmem:[%s3 + $0x40] sm:$0xff]
      %v808 = vld [vmem:[%s3 + $0x48] sm:$0xff]
      %v809 = vld [vmem:[%s3 + $0x50] sm:$0xff]
      %v810 = vld [vmem:[%s3 + $0x58] sm:$0xff]
      %v811 = vld [vmem:[%s3 + $0x60] sm:$0xff]
      %v812 = vld [vmem:[%s3 + $0x68] sm:$0xff]
      %v813 = vld [vmem:[%s3 + $0x70] sm:$0xff]
      %v814 = vld [vmem:[%s3 + $0x78] sm:$0xff]
      %v815 = vld [vmem:[%s3 + $0x80] sm:$0xff]
      %v816 = vld [vmem:[%s3 + $0x88] sm:$0xff]
      %v817 = vld [vmem:[%s3 + $0x90] sm:$0xff]
      %v818 = vld [vmem:[%s3 + $0x98] sm:$0xff]
      %v819 = vld [vmem:[%s3 + $0xa0] sm:$0xff]
      %v820 = vld [vmem:[%s3 + $0xa8] sm:$0xff]
      %v821 = vld [vmem:[%s3 + $0xb0] sm:$0xff]
      %v822 = vld [vmem:[%s3 + $0xb8] sm:$0xff]
      %v823 = vld [vmem:[%s3 + $0xc0] sm:$0xff]
      %v824 = vld [vmem:[%s3 + $0xc8] sm:$0xff]
      %v825 = vld [vmem:[%s3 + $0xd0] sm:$0xff]
      %v826 = vld [vmem:[%s3 + $0xd8] sm:$0xff]
      %v827 = vld [vmem:[%s3 + $0xe0] sm:$0xff]
      %v828 = vld [vmem:[%s3 + $0xe8] sm:$0xff]
      %v829 = vld [vmem:[%s3 + $0xf0] sm:$0xff]
      %v830 = vld [vmem:[%s3 + $0xf8] sm:$0xff]
      %v831 = vld [vmem:[%s3 + $0x100] sm:$0xff]
      %v832 = vld [vmem:[%s3 + $0x108] sm:$0xff]
      %v833 = vld [vmem:[%s3 + $0x110] sm:$0xff]
      %v834 = vld [vmem:[%s3 + $0x118] sm:$0xff]
      %v835 = vld [vmem:[%s3 + $0x120] sm:$0xff]
      %v836 = vld [vmem:[%s3 + $0x128] sm:$0xff]
      %v837 = vld [vmem:[%s3 + $0x130] sm:$0xff]
      %v838 = vld [vmem:[%s3 + $0x138] sm:$0xff]
      %v839 = vld [vmem:[%s3 + $0x140] sm:$0xff]
      %v840 = vld [vmem:[%s3 + $0x148] sm:$0xff]
      %v841 = vld [vmem:[%s3 + $0x150] sm:$0xff]
      %v842 = vld [vmem:[%s3 + $0x158] sm:$0xff]
      %v843 = vld [vmem:[%s3 + $0x160] sm:$0xff]
      %v844 = vld [vmem:[%s3 + $0x168] sm:$0xff]
      %v845 = vld [vmem:[%s3 + $0x170] sm:$0xff]
      %v846 = vld [vmem:[%s3 + $0x178] sm:$0xff]
      %v847 = vld [vmem:[%s3 + $0x180] sm:$0xff]
      %v848 = vld [vmem:[%s3 + $0x188] sm:$0xff]
      %v849 = vld [vmem:[%s3 + $0x190] sm:$0xff]
      %v850 = vld [vmem:[%s3 + $0x198] sm:$0xff]
      %v851 = vld [vmem:[%s3 + $0x1a0] sm:$0xff]
      %v852 = vld [vmem:[%s3 + $0x1a8] sm:$0xff]
      %v853 = vld [vmem:[%s3 + $0x1b0] sm:$0xff]
      %v854 = vld [vmem:[%s3 + $0x1b8] sm:$0xff]
      %v855 = vld [vmem:[%s3 + $0x1c0] sm:$0xff]
      %v856 = vld [vmem:[%s3 + $0x1c8] sm:$0xff]
      %v857 = vld [vmem:[%s3 + $0x1d0] sm:$0xff]
      %v858 = vld [vmem:[%s3 + $0x1d8] sm:$0xff]
      %v859 = vld [vmem:[%s3 + $0x1e0] sm:$0xff]
      %v860 = vld [vmem:[%s3 + $0x1e8] sm:$0xff]
      %v861 = vld [vmem:[%s3 + $0x1f0] sm:$0xff]
      %v862 = vld [vmem:[%s3 + $0x1f8] sm:$0xff]
      %v863 = vpack.c.bf16 %v728, %v727
      %v864 = vpack.c.bf16 %v730, %v729
      %v865 = vpack.c.bf16 %v732, %v731
      %v866 = vpack.c.bf16 %v734, %v733
      %868 = vset.pattern.permute.xlu0 0
      %869 = vperm.xlu0 %868, %v799
      %v870 = vpop.permute.xlu0 %869
      %873 = vset.pattern.permute.xlu0 0
      %874 = vperm.xlu0 %873, %v800
      %v875 = vpop.permute.xlu0 %874
      %878 = vset.pattern.permute.xlu0 0
      %879 = vperm.xlu0 %878, %v801
      %v880 = vpop.permute.xlu0 %879
      %883 = vset.pattern.permute.xlu0 0
      %884 = vperm.xlu0 %883, %v802
      %v885 = vpop.permute.xlu0 %884
      %888 = vset.pattern.permute.xlu0 0
      %889 = vperm.xlu0 %888, %v803
      %v890 = vpop.permute.xlu0 %889
      %893 = vset.pattern.permute.xlu0 0
      %894 = vperm.xlu0 %893, %v804
      %v895 = vpop.permute.xlu0 %894
      %898 = vset.pattern.permute.xlu0 0
      %899 = vperm.xlu0 %898, %v805
      %v900 = vpop.permute.xlu0 %899
      %903 = vset.pattern.permute.xlu0 0
      %904 = vperm.xlu0 %903, %v806
      %v905 = vpop.permute.xlu0 %904
      %908 = vset.pattern.permute.xlu0 0
      %909 = vperm.xlu0 %908, %v807
      %v910 = vpop.permute.xlu0 %909
      %913 = vset.pattern.permute.xlu0 0
      %914 = vperm.xlu0 %913, %v808
      %v915 = vpop.permute.xlu0 %914
      %918 = vset.pattern.permute.xlu0 0
      %919 = vperm.xlu0 %918, %v809
      %v920 = vpop.permute.xlu0 %919
      %923 = vset.pattern.permute.xlu0 0
      %924 = vperm.xlu0 %923, %v810
      %v925 = vpop.permute.xlu0 %924
      %928 = vset.pattern.permute.xlu0 0
      %929 = vperm.xlu0 %928, %v811
      %v930 = vpop.permute.xlu0 %929
      %933 = vset.pattern.permute.xlu0 0
      %934 = vperm.xlu0 %933, %v812
      %v935 = vpop.permute.xlu0 %934
      %938 = vset.pattern.permute.xlu0 0
      %939 = vperm.xlu0 %938, %v813
      %v940 = vpop.permute.xlu0 %939
      %943 = vset.pattern.permute.xlu0 0
      %944 = vperm.xlu0 %943, %v814
      %v945 = vpop.permute.xlu0 %944
      %948 = vset.pattern.permute.xlu0 0
      %949 = vperm.xlu0 %948, %v815
      %v950 = vpop.permute.xlu0 %949
      %953 = vset.pattern.permute.xlu0 0
      %954 = vperm.xlu0 %953, %v816
      %v955 = vpop.permute.xlu0 %954
      %958 = vset.pattern.permute.xlu0 0
      %959 = vperm.xlu0 %958, %v817
      %v960 = vpop.permute.xlu0 %959
      %963 = vset.pattern.permute.xlu0 0
      %964 = vperm.xlu0 %963, %v818
      %v965 = vpop.permute.xlu0 %964
      %968 = vset.pattern.permute.xlu0 0
      %969 = vperm.xlu0 %968, %v819
      %v970 = vpop.permute.xlu0 %969
      %973 = vset.pattern.permute.xlu0 0
      %974 = vperm.xlu0 %973, %v820
      %v975 = vpop.permute.xlu0 %974
      %978 = vset.pattern.permute.xlu0 0
      %979 = vperm.xlu0 %978, %v821
      %v980 = vpop.permute.xlu0 %979
      %983 = vset.pattern.permute.xlu0 0
      %984 = vperm.xlu0 %983, %v822
      %v985 = vpop.permute.xlu0 %984
      %988 = vset.pattern.permute.xlu0 0
      %989 = vperm.xlu0 %988, %v823
      %v990 = vpop.permute.xlu0 %989
      %993 = vset.pattern.permute.xlu0 0
      %994 = vperm.xlu0 %993, %v824
      %v995 = vpop.permute.xlu0 %994
      %998 = vset.pattern.permute.xlu0 0
      %999 = vperm.xlu0 %998, %v825
      %v1000 = vpop.permute.xlu0 %999
      %1003 = vset.pattern.permute.xlu0 0
      %1004 = vperm.xlu0 %1003, %v826
      %v1005 = vpop.permute.xlu0 %1004
      %1008 = vset.pattern.permute.xlu0 0
      %1009 = vperm.xlu0 %1008, %v827
      %v1010 = vpop.permute.xlu0 %1009
      %1013 = vset.pattern.permute.xlu0 0
      %1014 = vperm.xlu0 %1013, %v828
      %v1015 = vpop.permute.xlu0 %1014
      %1018 = vset.pattern.permute.xlu0 0
      %1019 = vperm.xlu0 %1018, %v829
      %v1020 = vpop.permute.xlu0 %1019
      %1023 = vset.pattern.permute.xlu0 0
      %1024 = vperm.xlu0 %1023, %v830
      %v1025 = vpop.permute.xlu0 %1024
      %1028 = vset.pattern.permute.xlu0 0
      %1029 = vperm.xlu0 %1028, %v831
      %v1030 = vpop.permute.xlu0 %1029
      %1033 = vset.pattern.permute.xlu0 0
      %1034 = vperm.xlu0 %1033, %v832
      %v1035 = vpop.permute.xlu0 %1034
      %1038 = vset.pattern.permute.xlu0 0
      %1039 = vperm.xlu0 %1038, %v833
      %v1040 = vpop.permute.xlu0 %1039
      %1043 = vset.pattern.permute.xlu0 0
      %1044 = vperm.xlu0 %1043, %v834
      %v1045 = vpop.permute.xlu0 %1044
      %1048 = vset.pattern.permute.xlu0 0
      %1049 = vperm.xlu0 %1048, %v835
      %v1050 = vpop.permute.xlu0 %1049
      %1053 = vset.pattern.permute.xlu0 0
      %1054 = vperm.xlu0 %1053, %v836
      %v1055 = vpop.permute.xlu0 %1054
      %1058 = vset.pattern.permute.xlu0 0
      %1059 = vperm.xlu0 %1058, %v837
      %v1060 = vpop.permute.xlu0 %1059
      %1063 = vset.pattern.permute.xlu0 0
      %1064 = vperm.xlu0 %1063, %v838
      %v1065 = vpop.permute.xlu0 %1064
      %1068 = vset.pattern.permute.xlu0 0
      %1069 = vperm.xlu0 %1068, %v839
      %v1070 = vpop.permute.xlu0 %1069
      %1073 = vset.pattern.permute.xlu0 0
      %1074 = vperm.xlu0 %1073, %v840
      %v1075 = vpop.permute.xlu0 %1074
      %1078 = vset.pattern.permute.xlu0 0
      %1079 = vperm.xlu0 %1078, %v841
      %v1080 = vpop.permute.xlu0 %1079
      %1083 = vset.pattern.permute.xlu0 0
      %1084 = vperm.xlu0 %1083, %v842
      %v1085 = vpop.permute.xlu0 %1084
      %1088 = vset.pattern.permute.xlu0 0
      %1089 = vperm.xlu0 %1088, %v843
      %v1090 = vpop.permute.xlu0 %1089
      %1093 = vset.pattern.permute.xlu0 0
      %1094 = vperm.xlu0 %1093, %v844
      %v1095 = vpop.permute.xlu0 %1094
      %1098 = vset.pattern.permute.xlu0 0
      %1099 = vperm.xlu0 %1098, %v845
      %v1100 = vpop.permute.xlu0 %1099
      %1103 = vset.pattern.permute.xlu0 0
      %1104 = vperm.xlu0 %1103, %v846
      %v1105 = vpop.permute.xlu0 %1104
      %1108 = vset.pattern.permute.xlu0 0
      %1109 = vperm.xlu0 %1108, %v847
      %v1110 = vpop.permute.xlu0 %1109
      %1113 = vset.pattern.permute.xlu0 0
      %1114 = vperm.xlu0 %1113, %v848
      %v1115 = vpop.permute.xlu0 %1114
      %1118 = vset.pattern.permute.xlu0 0
      %1119 = vperm.xlu0 %1118, %v849
      %v1120 = vpop.permute.xlu0 %1119
      %1123 = vset.pattern.permute.xlu0 0
      %1124 = vperm.xlu0 %1123, %v850
      %v1125 = vpop.permute.xlu0 %1124
      %1128 = vset.pattern.permute.xlu0 0
      %1129 = vperm.xlu0 %1128, %v851
      %v1130 = vpop.permute.xlu0 %1129
      %1133 = vset.pattern.permute.xlu0 0
      %1134 = vperm.xlu0 %1133, %v852
      %v1135 = vpop.permute.xlu0 %1134
      %1138 = vset.pattern.permute.xlu0 0
      %1139 = vperm.xlu0 %1138, %v853
      %v1140 = vpop.permute.xlu0 %1139
      %1143 = vset.pattern.permute.xlu0 0
      %1144 = vperm.xlu0 %1143, %v854
      %v1145 = vpop.permute.xlu0 %1144
      %1148 = vset.pattern.permute.xlu0 0
      %1149 = vperm.xlu0 %1148, %v855
      %v1150 = vpop.permute.xlu0 %1149
      %1153 = vset.pattern.permute.xlu0 0
      %1154 = vperm.xlu0 %1153, %v856
      %v1155 = vpop.permute.xlu0 %1154
      %1158 = vset.pattern.permute.xlu0 0
      %1159 = vperm.xlu0 %1158, %v857
      %v1160 = vpop.permute.xlu0 %1159
      %1163 = vset.pattern.permute.xlu0 0
      %1164 = vperm.xlu0 %1163, %v858
      %v1165 = vpop.permute.xlu0 %1164
      %1168 = vset.pattern.permute.xlu0 0
      %1169 = vperm.xlu0 %1168, %v859
      %v1170 = vpop.permute.xlu0 %1169
      %1173 = vset.pattern.permute.xlu0 0
      %1174 = vperm.xlu0 %1173, %v860
      %v1175 = vpop.permute.xlu0 %1174
      %1178 = vset.pattern.permute.xlu0 0
      %1179 = vperm.xlu0 %1178, %v861
      %v1180 = vpop.permute.xlu0 %1179
      %1183 = vset.pattern.permute.xlu0 0
      %1184 = vperm.xlu0 %1183, %v862
      %v1185 = vpop.permute.xlu0 %1184
      %v1251 = vunpack.c.l.b16 %v735
      %v1252 = vunpack.c.l.b16 %v736
      %v1253 = vunpack.c.l.b16 %v737
      %v1254 = vunpack.c.l.b16 %v738
      %v1255 = vunpack.c.l.b16 %v739
      %v1256 = vunpack.c.l.b16 %v740
      %v1257 = vunpack.c.l.b16 %v741
      %v1258 = vunpack.c.l.b16 %v742
      %v1259 = vunpack.c.l.b16 %v743
      %v1260 = vunpack.c.l.b16 %v744
      %v1261 = vunpack.c.l.b16 %v745
      %v1262 = vunpack.c.l.b16 %v746
      %v1263 = vunpack.c.l.b16 %v747
      %v1264 = vunpack.c.l.b16 %v748
      %v1265 = vunpack.c.l.b16 %v749
      %v1266 = vunpack.c.l.b16 %v750
      %v1267 = vunpack.c.l.b16 %v751
      %v1268 = vunpack.c.l.b16 %v752
      %v1269 = vunpack.c.l.b16 %v753
      %v1270 = vunpack.c.l.b16 %v754
      %v1271 = vunpack.c.l.b16 %v755
      %v1272 = vunpack.c.l.b16 %v756
      %v1273 = vunpack.c.l.b16 %v757
      %v1274 = vunpack.c.l.b16 %v758
      %v1275 = vunpack.c.l.b16 %v759
      %v1276 = vunpack.c.l.b16 %v760
      %v1277 = vunpack.c.l.b16 %v761
      %v1278 = vunpack.c.l.b16 %v762
      %v1279 = vunpack.c.l.b16 %v763
      %v1280 = vunpack.c.l.b16 %v764
      %v1281 = vunpack.c.l.b16 %v765
      %v1282 = vunpack.c.l.b16 %v766
      %v1283 = vunpack.c.l.b16 %v767
      %v1284 = vunpack.c.l.b16 %v768
      %v1285 = vunpack.c.l.b16 %v769
      %v1286 = vunpack.c.l.b16 %v770
      %v1287 = vunpack.c.l.b16 %v771
      %v1288 = vunpack.c.l.b16 %v772
      %v1289 = vunpack.c.l.b16 %v773
      %v1290 = vunpack.c.l.b16 %v774
      %v1291 = vunpack.c.l.b16 %v775
      %v1292 = vunpack.c.l.b16 %v776
      %v1293 = vunpack.c.l.b16 %v777
      %v1294 = vunpack.c.l.b16 %v778
      %v1295 = vunpack.c.l.b16 %v779
      %v1296 = vunpack.c.l.b16 %v780
      %v1297 = vunpack.c.l.b16 %v781
      %v1298 = vunpack.c.l.b16 %v782
      %v1299 = vunpack.c.l.b16 %v783
      %v1300 = vunpack.c.l.b16 %v784
      %v1301 = vunpack.c.l.b16 %v785
      %v1302 = vunpack.c.l.b16 %v786
      %v1303 = vunpack.c.l.b16 %v787
      %v1304 = vunpack.c.l.b16 %v788
      %v1305 = vunpack.c.l.b16 %v789
      %v1306 = vunpack.c.l.b16 %v790
      %v1307 = vunpack.c.l.b16 %v791
      %v1308 = vunpack.c.l.b16 %v792
      %v1309 = vunpack.c.l.b16 %v793
      %v1310 = vunpack.c.l.b16 %v794
      %v1311 = vunpack.c.l.b16 %v795
      %v1312 = vunpack.c.l.b16 %v796
      %v1313 = vunpack.c.l.b16 %v797
      %v1314 = vunpack.c.l.b16 %v798
      %v1315 = vpack.c.b16 %v1252, %v1251
      %v1316 = vpack.c.b16 %v1254, %v1253
      %v1317 = vpack.c.b16 %v1256, %v1255
      %v1318 = vpack.c.b16 %v1258, %v1257
      %v1319 = vpack.c.b16 %v1260, %v1259
      %v1320 = vpack.c.b16 %v1262, %v1261
      %v1321 = vpack.c.b16 %v1264, %v1263
      %v1322 = vpack.c.b16 %v1266, %v1265
      %v1323 = vpack.c.b16 %v1268, %v1267
      %v1324 = vpack.c.b16 %v1270, %v1269
      %v1325 = vpack.c.b16 %v1272, %v1271
      %v1326 = vpack.c.b16 %v1274, %v1273
      %v1327 = vpack.c.b16 %v1276, %v1275
      %v1328 = vpack.c.b16 %v1278, %v1277
      %v1329 = vpack.c.b16 %v1280, %v1279
      %v1330 = vpack.c.b16 %v1282, %v1281
      %v1331 = vpack.c.b16 %v1284, %v1283
      %v1332 = vpack.c.b16 %v1286, %v1285
      %v1333 = vpack.c.b16 %v1288, %v1287
      %v1334 = vpack.c.b16 %v1290, %v1289
      %v1335 = vpack.c.b16 %v1292, %v1291
      %v1336 = vpack.c.b16 %v1294, %v1293
      %v1337 = vpack.c.b16 %v1296, %v1295
      %v1338 = vpack.c.b16 %v1298, %v1297
      %v1339 = vpack.c.b16 %v1300, %v1299
      %v1340 = vpack.c.b16 %v1302, %v1301
      %v1341 = vpack.c.b16 %v1304, %v1303
      %v1342 = vpack.c.b16 %v1306, %v1305
      %v1343 = vpack.c.b16 %v1308, %v1307
      %v1344 = vpack.c.b16 %v1310, %v1309
      %v1345 = vpack.c.b16 %v1312, %v1311
      %v1346 = vpack.c.b16 %v1314, %v1313
      %vm1347 = vcmask 506880
      %v1349 = vsel %vm1347, %v1315, 0
      %v1352 = vsel %vm1347, %v1316, 0
      %v1355 = vsel %vm1347, %v1317, 0
      %v1358 = vsel %vm1347, %v1318, 0
      %v1361 = vsel %vm1347, %v1319, 0
      %v1364 = vsel %vm1347, %v1320, 0
      %v1367 = vsel %vm1347, %v1321, 0
      %v1370 = vsel %vm1347, %v1322, 0
      %v1373 = vsel %vm1347, %v1323, 0
      %v1376 = vsel %vm1347, %v1324, 0
      %v1379 = vsel %vm1347, %v1325, 0
      %v1382 = vsel %vm1347, %v1326, 0
      %v1385 = vsel %vm1347, %v1327, 0
      %v1388 = vsel %vm1347, %v1328, 0
      %v1391 = vsel %vm1347, %v1329, 0
      %v1394 = vsel %vm1347, %v1330, 0
      %v1397 = vsel %vm1347, %v1331, 0
      %v1400 = vsel %vm1347, %v1332, 0
      %v1403 = vsel %vm1347, %v1333, 0
      %v1406 = vsel %vm1347, %v1334, 0
      %v1409 = vsel %vm1347, %v1335, 0
      %v1412 = vsel %vm1347, %v1336, 0
      %v1415 = vsel %vm1347, %v1337, 0
      %v1418 = vsel %vm1347, %v1338, 0
      %v1421 = vsel %vm1347, %v1339, 0
      %v1424 = vsel %vm1347, %v1340, 0
      %v1427 = vsel %vm1347, %v1341, 0
      %v1430 = vsel %vm1347, %v1342, 0
      %v1433 = vsel %vm1347, %v1343, 0
      %v1436 = vsel %vm1347, %v1344, 0
      %v1439 = vsel %vm1347, %v1345, 0
      %v1442 = vsel %vm1347, %v1346, 0
      %vm1444 = vcmask 1046528
      %v1446 = vsel %vm1444, %v866, 0
      %1448 = vmatpush.bf16.msra.mxu0 0
      %1449 = vmatpush.bf16.msra.mxu0 0
      %1450 = vmatpush.bf16.msra.mxu0 0
      %1451 = vmatpush.bf16.msra.mxu0 0
      %1452 = vmatpush.bf16.msra.mxu0 %v1446
      %1453 = vmatpush.bf16.msra.mxu0 %v865
      %1454 = vmatpush.bf16.msra.mxu0 %v864
      %1455 = vmatpush.bf16.msra.mxu0 %v863
      %1456 = vmatmul.bf16.gmra.mxu0 %v1349
      %v1457 = vpop.f32.mrf.mxu0
      %v1458 = vadd.f32 %v870, %v1457
      %v1459 = vpop.f32.mrf.mxu0
      %v1460 = vadd.f32 %v875, %v1459
      %1461 = vmatmul.bf16.gmra.mxu0 %v1352
      %v1462 = vpop.f32.mrf.mxu0
      %v1463 = vadd.f32 %v880, %v1462
      %v1464 = vpop.f32.mrf.mxu0
      %v1465 = vadd.f32 %v885, %v1464
      %1466 = vmatmul.bf16.gmra.mxu0 %v1355
      %v1467 = vpop.f32.mrf.mxu0
      %v1468 = vadd.f32 %v890, %v1467
      %v1469 = vpop.f32.mrf.mxu0
      %v1470 = vadd.f32 %v895, %v1469
      %1471 = vmatmul.bf16.gmra.mxu0 %v1358
      %v1472 = vpop.f32.mrf.mxu0
      %v1473 = vadd.f32 %v900, %v1472
      %v1474 = vpop.f32.mrf.mxu0
      %v1475 = vadd.f32 %v905, %v1474
      %1476 = vmatmul.bf16.gmra.mxu0 %v1361
      %v1477 = vpop.f32.mrf.mxu0
      %v1478 = vadd.f32 %v910, %v1477
      %v1479 = vpop.f32.mrf.mxu0
      %v1480 = vadd.f32 %v915, %v1479
      %1481 = vmatmul.bf16.gmra.mxu0 %v1364
      %v1482 = vpop.f32.mrf.mxu0
      %v1483 = vadd.f32 %v920, %v1482
      %v1484 = vpop.f32.mrf.mxu0
      %v1485 = vadd.f32 %v925, %v1484
      %1486 = vmatmul.bf16.gmra.mxu0 %v1367
      %v1487 = vpop.f32.mrf.mxu0
      %v1488 = vadd.f32 %v930, %v1487
      %v1489 = vpop.f32.mrf.mxu0
      %v1490 = vadd.f32 %v935, %v1489
      %1491 = vmatmul.bf16.gmra.mxu0 %v1370
      %v1492 = vpop.f32.mrf.mxu0
      %v1493 = vadd.f32 %v940, %v1492
      %v1494 = vpop.f32.mrf.mxu0
      %v1495 = vadd.f32 %v945, %v1494
      %1496 = vmatmul.bf16.gmra.mxu0 %v1373
      %v1497 = vpop.f32.mrf.mxu0
      %v1498 = vadd.f32 %v950, %v1497
      %v1499 = vpop.f32.mrf.mxu0
      %v1500 = vadd.f32 %v955, %v1499
      %1501 = vmatmul.bf16.gmra.mxu0 %v1376
      %v1502 = vpop.f32.mrf.mxu0
      %v1503 = vadd.f32 %v960, %v1502
      %v1504 = vpop.f32.mrf.mxu0
      %v1505 = vadd.f32 %v965, %v1504
      %1506 = vmatmul.bf16.gmra.mxu0 %v1379
      %v1507 = vpop.f32.mrf.mxu0
      %v1508 = vadd.f32 %v970, %v1507
      %v1509 = vpop.f32.mrf.mxu0
      %v1510 = vadd.f32 %v975, %v1509
      %1511 = vmatmul.bf16.gmra.mxu0 %v1382
      %v1512 = vpop.f32.mrf.mxu0
      %v1513 = vadd.f32 %v980, %v1512
      %v1514 = vpop.f32.mrf.mxu0
      %v1515 = vadd.f32 %v985, %v1514
      %1516 = vmatmul.bf16.gmra.mxu0 %v1385
      %v1517 = vpop.f32.mrf.mxu0
      %v1518 = vadd.f32 %v990, %v1517
      %v1519 = vpop.f32.mrf.mxu0
      %v1520 = vadd.f32 %v995, %v1519
      %1521 = vmatmul.bf16.gmra.mxu0 %v1388
      %v1522 = vpop.f32.mrf.mxu0
      %v1523 = vadd.f32 %v1000, %v1522
      %v1524 = vpop.f32.mrf.mxu0
      %v1525 = vadd.f32 %v1005, %v1524
      %1526 = vmatmul.bf16.gmra.mxu0 %v1391
      %v1527 = vpop.f32.mrf.mxu0
      %v1528 = vadd.f32 %v1010, %v1527
      %v1529 = vpop.f32.mrf.mxu0
      %v1530 = vadd.f32 %v1015, %v1529
      %1531 = vmatmul.bf16.gmra.mxu0 %v1394
      %v1532 = vpop.f32.mrf.mxu0
      %v1533 = vadd.f32 %v1020, %v1532
      %v1534 = vpop.f32.mrf.mxu0
      %v1535 = vadd.f32 %v1025, %v1534
      %1536 = vmatmul.bf16.gmra.mxu0 %v1397
      %v1537 = vpop.f32.mrf.mxu0
      %v1538 = vadd.f32 %v1030, %v1537
      %v1539 = vpop.f32.mrf.mxu0
      %v1540 = vadd.f32 %v1035, %v1539
      %1541 = vmatmul.bf16.gmra.mxu0 %v1400
      %v1542 = vpop.f32.mrf.mxu0
      %v1543 = vadd.f32 %v1040, %v1542
      %v1544 = vpop.f32.mrf.mxu0
      %v1545 = vadd.f32 %v1045, %v1544
      %1546 = vmatmul.bf16.gmra.mxu0 %v1403
      %v1547 = vpop.f32.mrf.mxu0
      %v1548 = vadd.f32 %v1050, %v1547
      %v1549 = vpop.f32.mrf.mxu0
      %v1550 = vadd.f32 %v1055, %v1549
      %1551 = vmatmul.bf16.gmra.mxu0 %v1406
      %v1552 = vpop.f32.mrf.mxu0
      %v1553 = vadd.f32 %v1060, %v1552
      %v1554 = vpop.f32.mrf.mxu0
      %v1555 = vadd.f32 %v1065, %v1554
      %1556 = vmatmul.bf16.gmra.mxu0 %v1409
      %v1557 = vpop.f32.mrf.mxu0
      %v1558 = vadd.f32 %v1070, %v1557
      %v1559 = vpop.f32.mrf.mxu0
      %v1560 = vadd.f32 %v1075, %v1559
      %1561 = vmatmul.bf16.gmra.mxu0 %v1412
      %v1562 = vpop.f32.mrf.mxu0
      %v1563 = vadd.f32 %v1080, %v1562
      %v1564 = vpop.f32.mrf.mxu0
      %v1565 = vadd.f32 %v1085, %v1564
      %1566 = vmatmul.bf16.gmra.mxu0 %v1415
      %v1567 = vpop.f32.mrf.mxu0
      %v1568 = vadd.f32 %v1090, %v1567
      %v1569 = vpop.f32.mrf.mxu0
      %v1570 = vadd.f32 %v1095, %v1569
      %1571 = vmatmul.bf16.gmra.mxu0 %v1418
      %v1572 = vpop.f32.mrf.mxu0
      %v1573 = vadd.f32 %v1100, %v1572
      %v1574 = vpop.f32.mrf.mxu0
      %v1575 = vadd.f32 %v1105, %v1574
      %1576 = vmatmul.bf16.gmra.mxu0 %v1421
      %v1577 = vpop.f32.mrf.mxu0
      %v1578 = vadd.f32 %v1110, %v1577
      %v1579 = vpop.f32.mrf.mxu0
      %v1580 = vadd.f32 %v1115, %v1579
      %1581 = vmatmul.bf16.gmra.mxu0 %v1424
      %v1582 = vpop.f32.mrf.mxu0
      %v1583 = vadd.f32 %v1120, %v1582
      %v1584 = vpop.f32.mrf.mxu0
      %v1585 = vadd.f32 %v1125, %v1584
      %1586 = vmatmul.bf16.gmra.mxu0 %v1427
      %v1587 = vpop.f32.mrf.mxu0
      %v1588 = vadd.f32 %v1130, %v1587
      %v1589 = vpop.f32.mrf.mxu0
      %v1590 = vadd.f32 %v1135, %v1589
      %1591 = vmatmul.bf16.gmra.mxu0 %v1430
      %v1592 = vpop.f32.mrf.mxu0
      %v1593 = vadd.f32 %v1140, %v1592
      %v1594 = vpop.f32.mrf.mxu0
      %v1595 = vadd.f32 %v1145, %v1594
      %1596 = vmatmul.bf16.gmra.mxu0 %v1433
      %v1597 = vpop.f32.mrf.mxu0
      %v1598 = vadd.f32 %v1150, %v1597
      %v1599 = vpop.f32.mrf.mxu0
      %v1600 = vadd.f32 %v1155, %v1599
      %1601 = vmatmul.bf16.gmra.mxu0 %v1436
      %v1602 = vpop.f32.mrf.mxu0
      %v1603 = vadd.f32 %v1160, %v1602
      %v1604 = vpop.f32.mrf.mxu0
      %v1605 = vadd.f32 %v1165, %v1604
      %1606 = vmatmul.bf16.gmra.mxu0 %v1439
      %v1607 = vpop.f32.mrf.mxu0
      %v1608 = vadd.f32 %v1170, %v1607
      %v1609 = vpop.f32.mrf.mxu0
      %v1610 = vadd.f32 %v1175, %v1609
      %1611 = vmatmul.bf16.gmra.mxu0 %v1442
      %v1612 = vpop.f32.mrf.mxu0
      %v1613 = vadd.f32 %v1180, %v1612
      %v1614 = vpop.f32.mrf.mxu0
      %v1615 = vadd.f32 %v1185, %v1614
      %1616 = vdwg.mxu0
      %v1617 = vmax.f32 %v1458, 0.0
      %v1618 = vmax.f32 %v1460, 0.0
      %v1619 = vmax.f32 %v1463, 0.0
      %v1620 = vmax.f32 %v1465, 0.0
      %v1621 = vmax.f32 %v1468, 0.0
      %v1622 = vmax.f32 %v1470, 0.0
      %v1623 = vmax.f32 %v1473, 0.0
      %v1624 = vmax.f32 %v1475, 0.0
      %v1625 = vmax.f32 %v1478, 0.0
      %v1626 = vmax.f32 %v1480, 0.0
      %v1627 = vmax.f32 %v1483, 0.0
      %v1628 = vmax.f32 %v1485, 0.0
      %v1629 = vmax.f32 %v1488, 0.0
      %v1630 = vmax.f32 %v1490, 0.0
      %v1631 = vmax.f32 %v1493, 0.0
      %v1632 = vmax.f32 %v1495, 0.0
      %v1633 = vmax.f32 %v1498, 0.0
      %v1634 = vmax.f32 %v1500, 0.0
      %v1635 = vmax.f32 %v1503, 0.0
      %v1636 = vmax.f32 %v1505, 0.0
      %v1637 = vmax.f32 %v1508, 0.0
      %v1638 = vmax.f32 %v1510, 0.0
      %v1639 = vmax.f32 %v1513, 0.0
      %v1640 = vmax.f32 %v1515, 0.0
      %v1641 = vmax.f32 %v1518, 0.0
      %v1642 = vmax.f32 %v1520, 0.0
      %v1643 = vmax.f32 %v1523, 0.0
      %v1644 = vmax.f32 %v1525, 0.0
      %v1645 = vmax.f32 %v1528, 0.0
      %v1646 = vmax.f32 %v1530, 0.0
      %v1647 = vmax.f32 %v1533, 0.0
      %v1648 = vmax.f32 %v1535, 0.0
      %v1649 = vmax.f32 %v1538, 0.0
      %v1650 = vmax.f32 %v1540, 0.0
      %v1651 = vmax.f32 %v1543, 0.0
      %v1652 = vmax.f32 %v1545, 0.0
      %v1653 = vmax.f32 %v1548, 0.0
      %v1654 = vmax.f32 %v1550, 0.0
      %v1655 = vmax.f32 %v1553, 0.0
      %v1656 = vmax.f32 %v1555, 0.0
      %v1657 = vmax.f32 %v1558, 0.0
      %v1658 = vmax.f32 %v1560, 0.0
      %v1659 = vmax.f32 %v1563, 0.0
      %v1660 = vmax.f32 %v1565, 0.0
      %v1661 = vmax.f32 %v1568, 0.0
      %v1662 = vmax.f32 %v1570, 0.0
      %v1663 = vmax.f32 %v1573, 0.0
      %v1664 = vmax.f32 %v1575, 0.0
      %v1665 = vmax.f32 %v1578, 0.0
      %v1666 = vmax.f32 %v1580, 0.0
      %v1667 = vmax.f32 %v1583, 0.0
      %v1668 = vmax.f32 %v1585, 0.0
      %v1669 = vmax.f32 %v1588, 0.0
      %v1670 = vmax.f32 %v1590, 0.0
      %v1671 = vmax.f32 %v1593, 0.0
      %v1672 = vmax.f32 %v1595, 0.0
      %v1673 = vmax.f32 %v1598, 0.0
      %v1674 = vmax.f32 %v1600, 0.0
      %v1675 = vmax.f32 %v1603, 0.0
      %v1676 = vmax.f32 %v1605, 0.0
      %v1677 = vmax.f32 %v1608, 0.0
      %v1678 = vmax.f32 %v1610, 0.0
      %v1679 = vmax.f32 %v1613, 0.0
      %v1680 = vmax.f32 %v1615, 0.0
      %v1681 = vld [vmem:[%s4] sm:$0xff]
      %v1682 = vld [vmem:[%s4 + $0x8] sm:$0xff]
      %v1683 = vld [vmem:[%s4 + $0x10] sm:$0xff]
      %v1684 = vld [vmem:[%s4 + $0x18] sm:$0xff]
      %v1685 = vld [vmem:[%s4 + $0x20] sm:$0xff]
      %v1686 = vld [vmem:[%s4 + $0x28] sm:$0xff]
      %v1687 = vld [vmem:[%s4 + $0x30] sm:$0xff]
      %v1688 = vld [vmem:[%s4 + $0x38] sm:$0xff]
      %v1689 = vld [vmem:[%s5] sm:$0xff]
      %v1690 = vld [vmem:[%s5 + $0x8] sm:$0xff]
      %v1691 = vld [vmem:[%s5 + $0x10] sm:$0xff]
      %v1692 = vld [vmem:[%s5 + $0x18] sm:$0xff]
      %v1693 = vpack.c.bf16 %v1618, %v1617
      %v1694 = vpack.c.bf16 %v1620, %v1619
      %v1695 = vpack.c.bf16 %v1622, %v1621
      %v1696 = vpack.c.bf16 %v1624, %v1623
      %v1697 = vpack.c.bf16 %v1626, %v1625
      %v1698 = vpack.c.bf16 %v1628, %v1627
      %v1699 = vpack.c.bf16 %v1630, %v1629
      %v1700 = vpack.c.bf16 %v1632, %v1631
      %v1701 = vpack.c.bf16 %v1634, %v1633
      %v1702 = vpack.c.bf16 %v1636, %v1635
      %v1703 = vpack.c.bf16 %v1638, %v1637
      %v1704 = vpack.c.bf16 %v1640, %v1639
      %v1705 = vpack.c.bf16 %v1642, %v1641
      %v1706 = vpack.c.bf16 %v1644, %v1643
      %v1707 = vpack.c.bf16 %v1646, %v1645
      %v1708 = vpack.c.bf16 %v1648, %v1647
      %v1709 = vpack.c.bf16 %v1650, %v1649
      %v1710 = vpack.c.bf16 %v1652, %v1651
      %v1711 = vpack.c.bf16 %v1654, %v1653
      %v1712 = vpack.c.bf16 %v1656, %v1655
      %v1713 = vpack.c.bf16 %v1658, %v1657
      %v1714 = vpack.c.bf16 %v1660, %v1659
      %v1715 = vpack.c.bf16 %v1662, %v1661
      %v1716 = vpack.c.bf16 %v1664, %v1663
      %v1717 = vpack.c.bf16 %v1666, %v1665
      %v1718 = vpack.c.bf16 %v1668, %v1667
      %v1719 = vpack.c.bf16 %v1670, %v1669
      %v1720 = vpack.c.bf16 %v1672, %v1671
      %v1721 = vpack.c.bf16 %v1674, %v1673
      %v1722 = vpack.c.bf16 %v1676, %v1675
      %v1723 = vpack.c.bf16 %v1678, %v1677
      %v1724 = vpack.c.bf16 %v1680, %v1679
      %1726 = vset.pattern.permute.xlu0 0
      %1727 = vperm.xlu0 %1726, %v1689
      %v1728 = vpop.permute.xlu0 %1727
      %1731 = vset.pattern.permute.xlu0 0
      %1732 = vperm.xlu0 %1731, %v1690
      %v1733 = vpop.permute.xlu0 %1732
      %1736 = vset.pattern.permute.xlu0 0
      %1737 = vperm.xlu0 %1736, %v1691
      %v1738 = vpop.permute.xlu0 %1737
      %1741 = vset.pattern.permute.xlu0 0
      %1742 = vperm.xlu0 %1741, %v1692
      %v1743 = vpop.permute.xlu0 %1742
      %v1753 = vunpack.c.l.b16 %v1681
      %v1754 = vunpack.c.h.b16 %v1681
      %v1755 = vunpack.c.l.b16 %v1682
      %v1756 = vunpack.c.h.b16 %v1682
      %v1757 = vunpack.c.l.b16 %v1683
      %v1758 = vunpack.c.h.b16 %v1683
      %v1759 = vunpack.c.l.b16 %v1684
      %v1760 = vunpack.c.h.b16 %v1684
      %v1761 = vunpack.c.l.b16 %v1685
      %v1762 = vunpack.c.h.b16 %v1685
      %v1763 = vunpack.c.l.b16 %v1686
      %v1764 = vunpack.c.h.b16 %v1686
      %v1765 = vunpack.c.l.b16 %v1687
      %v1766 = vunpack.c.h.b16 %v1687
      %v1767 = vunpack.c.l.b16 %v1688
      %v1768 = vunpack.c.h.b16 %v1688
      %v1769 = vpack.c.b16 %v1757, %v1753
      %v1770 = vpack.c.b16 %v1758, %v1754
      %v1771 = vpack.c.b16 %v1759, %v1755
      %v1772 = vpack.c.b16 %v1760, %v1756
      %v1773 = vpack.c.b16 %v1765, %v1761
      %v1774 = vpack.c.b16 %v1766, %v1762
      %v1775 = vpack.c.b16 %v1767, %v1763
      %v1776 = vpack.c.b16 %v1768, %v1764
      %1785 = vmatpush.bf16.msra.mxu0 %v1700
      %1786 = vmatpush.bf16.msra.mxu0 %v1699
      %1787 = vmatpush.bf16.msra.mxu0 %v1698
      %1788 = vmatpush.bf16.msra.mxu0 %v1697
      %1789 = vmatpush.bf16.msra.mxu0 %v1696
      %1790 = vmatpush.bf16.msra.mxu0 %v1695
      %1791 = vmatpush.bf16.msra.mxu0 %v1694
      %1792 = vmatpush.bf16.msra.mxu0 %v1693
      %1793 = vmatmul.bf16.gmra.mxu0 %v1769
      %v1794 = vpop.f32.mrf.mxu0
      %v1795 = vadd.f32 %v1728, %v1794
      %v1796 = vpop.f32.mrf.mxu0
      %v1797 = vadd.f32 %v1733, %v1796
      %1798 = vmatmul.bf16.gmra.mxu0 %v1773
      %v1799 = vpop.f32.mrf.mxu0
      %v1800 = vadd.f32 %v1738, %v1799
      %v1801 = vpop.f32.mrf.mxu0
      %v1802 = vadd.f32 %v1743, %v1801
      %1803 = vdwg.mxu0
      %1804 = vmatpush.bf16.msra.mxu0 %v1708
      %1805 = vmatpush.bf16.msra.mxu0 %v1707
      %1806 = vmatpush.bf16.msra.mxu0 %v1706
      %1807 = vmatpush.bf16.msra.mxu0 %v1705
      %1808 = vmatpush.bf16.msra.mxu0 %v1704
      %1809 = vmatpush.bf16.msra.mxu0 %v1703
      %1810 = vmatpush.bf16.msra.mxu0 %v1702
      %1811 = vmatpush.bf16.msra.mxu0 %v1701
      %1812 = vmatmul.bf16.gmra.mxu0 %v1770
      %v1813 = vpop.f32.mrf.mxu0
      %v1814 = vadd.f32 %v1795, %v1813
      %v1815 = vpop.f32.mrf.mxu0
      %v1816 = vadd.f32 %v1797, %v1815
      %1817 = vmatmul.bf16.gmra.mxu0 %v1774
      %v1818 = vpop.f32.mrf.mxu0
      %v1819 = vadd.f32 %v1800, %v1818
      %v1820 = vpop.f32.mrf.mxu0
      %v1821 = vadd.f32 %v1802, %v1820
      %1822 = vdwg.mxu0
      %1823 = vmatpush.bf16.msra.mxu0 %v1716
      %1824 = vmatpush.bf16.msra.mxu0 %v1715
      %1825 = vmatpush.bf16.msra.mxu0 %v1714
      %1826 = vmatpush.bf16.msra.mxu0 %v1713
      %1827 = vmatpush.bf16.msra.mxu0 %v1712
      %1828 = vmatpush.bf16.msra.mxu0 %v1711
      %1829 = vmatpush.bf16.msra.mxu0 %v1710
      %1830 = vmatpush.bf16.msra.mxu0 %v1709
      %1831 = vmatmul.bf16.gmra.mxu0 %v1771
      %v1832 = vpop.f32.mrf.mxu0
      %v1833 = vadd.f32 %v1814, %v1832
      %v1834 = vpop.f32.mrf.mxu0
      %v1835 = vadd.f32 %v1816, %v1834
      %1836 = vmatmul.bf16.gmra.mxu0 %v1775
      %v1837 = vpop.f32.mrf.mxu0
      %v1838 = vadd.f32 %v1819, %v1837
      %v1839 = vpop.f32.mrf.mxu0
      %v1840 = vadd.f32 %v1821, %v1839
      %1841 = vdwg.mxu0
      %1842 = vmatpush.bf16.msra.mxu0 %v1724
      %1843 = vmatpush.bf16.msra.mxu0 %v1723
      %1844 = vmatpush.bf16.msra.mxu0 %v1722
      %1845 = vmatpush.bf16.msra.mxu0 %v1721
      %1846 = vmatpush.bf16.msra.mxu0 %v1720
      %1847 = vmatpush.bf16.msra.mxu0 %v1719
      %1848 = vmatpush.bf16.msra.mxu0 %v1718
      %1849 = vmatpush.bf16.msra.mxu0 %v1717
      %1850 = vmatmul.bf16.gmra.mxu0 %v1772
      %v1851 = vpop.f32.mrf.mxu0
      %v1852 = vadd.f32 %v1833, %v1851
      %v1853 = vpop.f32.mrf.mxu0
      %v1854 = vadd.f32 %v1835, %v1853
      %1855 = vmatmul.bf16.gmra.mxu0 %v1776
      %v1856 = vpop.f32.mrf.mxu0
      %v1857 = vadd.f32 %v1838, %v1856
      %v1858 = vpop.f32.mrf.mxu0
      %v1859 = vadd.f32 %v1840, %v1858
      %1860 = vdwg.mxu0
      %v1861 = vmax.f32 %v1852, 0.0
      %v1862 = vmax.f32 %v1854, 0.0
      %v1863 = vmax.f32 %v1857, 0.0
      %v1864 = vmax.f32 %v1859, 0.0
      %v1865 = vld [vmem:[%s6] sm:$0xff]
      %v1866 = vld [vmem:[%s6 + $0x8] sm:$0xff]
      %v1867 = vld [vmem:[%s6 + $0x10] sm:$0xf]
      %v1868 = vld [vmem:[%s6 + $0x14] sm:$0xff]
      %v1869 = vld [vmem:[%s6 + $0x1c] sm:$0xff]
      %v1870 = vld [vmem:[%s6 + $0x24] sm:$0xf]
      %v1871 = vld [vmem:[%s6 + $0x28] sm:$0xff]
      %v1872 = vld [vmem:[%s6 + $0x30] sm:$0xff]
      %v1873 = vld [vmem:[%s6 + $0x38] sm:$0xf]
      %v1874 = vld [vmem:[%s6 + $0x3c] sm:$0xff]
      %v1875 = vld [vmem:[%s6 + $0x44] sm:$0xff]
      %v1876 = vld [vmem:[%s6 + $0x4c] sm:$0xf]
      %v1877 = vld [vmem:[%s6 + $0x50] sm:$0xff]
      %v1878 = vld [vmem:[%s6 + $0x58] sm:$0xff]
      %v1879 = vld [vmem:[%s6 + $0x60] sm:$0xf]
      %v1880 = vld [vmem:[%s7] sm:$0x1f]
      %v1881 = vpack.c.bf16 %v1862, %v1861
      %v1882 = vpack.c.bf16 %v1864, %v1863
      %v1884 = vperm.slane %v1880, 0
      %v1885 = vperm.slane %v1880, 1
      %v1886 = vperm.slane %v1880, 2
      %v1887 = vperm.slane %v1880, 3
      %v1888 = vperm.slane %v1880, 4
      %v1909 = vunpack.c.l.b16 %v1865
      %v1910 = vunpack.c.h.b16 %v1865
      %v1911 = vunpack.c.l.b16 %v1866
      %v1912 = vunpack.c.h.b16 %v1866
      %v1913 = vunpack.c.l.b16 %v1867
      %v1914 = vunpack.c.l.b16 %v1868
      %v1915 = vunpack.c.h.b16 %v1868
      %v1916 = vunpack.c.l.b16 %v1869
      %v1917 = vunpack.c.h.b16 %v1869
      %v1918 = vunpack.c.l.b16 %v1870
      %v1919 = vunpack.c.l.b16 %v1871
      %v1920 = vunpack.c.h.b16 %v1871
      %v1921 = vunpack.c.l.b16 %v1872
      %v1922 = vunpack.c.h.b16 %v1872
      %v1923 = vunpack.c.l.b16 %v1873
      %v1924 = vunpack.c.l.b16 %v1874
      %v1925 = vunpack.c.h.b16 %v1874
      %v1926 = vunpack.c.l.b16 %v1875
      %v1927 = vunpack.c.h.b16 %v1875
      %v1928 = vunpack.c.l.b16 %v1876
      %v1929 = vunpack.c.l.b16 %v1877
      %v1930 = vunpack.c.h.b16 %v1877
      %v1931 = vunpack.c.l.b16 %v1878
      %v1932 = vunpack.c.h.b16 %v1878
      %v1933 = vunpack.c.l.b16 %v1879
      %v1934 = vpack.c.b16 %v1914, %v1909
      %v1935 = vpack.c.b16 %v1915, %v1910
      %v1936 = vpack.c.b16 %v1916, %v1911
      %v1937 = vpack.c.b16 %v1917, %v1912
      %v1938 = vpack.c.b16 %v1918, %v1913
      %v1939 = vpack.c.b16 %v1924, %v1919
      %v1940 = vpack.c.b16 %v1925, %v1920
      %v1941 = vpack.c.b16 %v1926, %v1921
      %v1942 = vpack.c.b16 %v1927, %v1922
      %v1943 = vpack.c.b16 %v1928, %v1923
      %v1944 = vpack.c.b16 %v1929, %v1929
      %v1945 = vpack.c.b16 %v1930, %v1930
      %v1946 = vpack.c.b16 %v1931, %v1931
      %v1947 = vpack.c.b16 %v1932, %v1932
      %v1948 = vpack.c.b16 %v1933, %v1933
      %vm1959 = vcmask 326656
      %v1961 = vsel %vm1959, %v1881, 0
      %v1964 = vsel %vm1959, %v1882, 0
      %vm1966 = vcmask 1043456
      %v1968 = vsel %vm1966, %v1944, 0
      %v1971 = vsel %vm1966, %v1945, 0
      %v1974 = vsel %vm1966, %v1946, 0
      %v1977 = vsel %vm1966, %v1947, 0
      %v1980 = vsel %vm1966, %v1948, 0
      %1982 = vmatpush.bf16.msra.mxu0 0
      %1983 = vmatpush.bf16.msra.mxu0 0
      %1984 = vmatpush.bf16.msra.mxu0 0
      %1985 = vmatpush.bf16.msra.mxu0 0
      %1986 = vmatpush.bf16.msra.mxu0 0
      %1987 = vmatpush.bf16.msra.mxu0 %v1968
      %1988 = vmatpush.bf16.msra.mxu0 %v1939
      %1989 = vmatpush.bf16.msra.mxu0 %v1934
      %1990 = vmatmul.bf16.gmra.mxu0 %v1961
      %v1991 = vpop.f32.mrf.mxu0
      %v1992 = vadd.f32 %v1884, %v1991
      %v1993 = vpop.f32.mrf.mxu0
      %v1994 = vadd.f32 %v1884, %v1993
      %1995 = vmatmul.bf16.gmra.mxu0 %v1964
      %v1996 = vpop.f32.mrf.mxu0
      %v1997 = vadd.f32 %v1884, %v1996
      %v1998 = vpop.f32.mrf.mxu0
      %v1999 = vadd.f32 %v1884, %v1998
      %2000 = vdwg.mxu0
      %2001 = vmatpush.bf16.msra.mxu0 0
      %2002 = vmatpush.bf16.msra.mxu0 0
      %2003 = vmatpush.bf16.msra.mxu0 0
      %2004 = vmatpush.bf16.msra.mxu0 0
      %2005 = vmatpush.bf16.msra.mxu0 0
      %2006 = vmatpush.bf16.msra.mxu0 %v1971
      %2007 = vmatpush.bf16.msra.mxu0 %v1940
      %2008 = vmatpush.bf16.msra.mxu0 %v1935
      %2009 = vmatmul.bf16.gmra.mxu0 %v1961
      %v2010 = vpop.f32.mrf.mxu0
      %v2011 = vadd.f32 %v1885, %v2010
      %v2012 = vpop.f32.mrf.mxu0
      %v2013 = vadd.f32 %v1885, %v2012
      %2014 = vmatmul.bf16.gmra.mxu0 %v1964
      %v2015 = vpop.f32.mrf.mxu0
      %v2016 = vadd.f32 %v1885, %v2015
      %v2017 = vpop.f32.mrf.mxu0
      %v2018 = vadd.f32 %v1885, %v2017
      %2019 = vdwg.mxu0
      %2020 = vmatpush.bf16.msra.mxu0 0
      %2021 = vmatpush.bf16.msra.mxu0 0
      %2022 = vmatpush.bf16.msra.mxu0 0
      %2023 = vmatpush.bf16.msra.mxu0 0
      %2024 = vmatpush.bf16.msra.mxu0 0
      %2025 = vmatpush.bf16.msra.mxu0 %v1974
      %2026 = vmatpush.bf16.msra.mxu0 %v1941
      %2027 = vmatpush.bf16.msra.mxu0 %v1936
      %2028 = vmatmul.bf16.gmra.mxu0 %v1961
      %v2029 = vpop.f32.mrf.mxu0
      %v2030 = vadd.f32 %v1886, %v2029
      %v2031 = vpop.f32.mrf.mxu0
      %v2032 = vadd.f32 %v1886, %v2031
      %2033 = vmatmul.bf16.gmra.mxu0 %v1964
      %v2034 = vpop.f32.mrf.mxu0
      %v2035 = vadd.f32 %v1886, %v2034
      %v2036 = vpop.f32.mrf.mxu0
      %v2037 = vadd.f32 %v1886, %v2036
      %2038 = vdwg.mxu0
      %2039 = vmatpush.bf16.msra.mxu0 0
      %2040 = vmatpush.bf16.msra.mxu0 0
      %2041 = vmatpush.bf16.msra.mxu0 0
      %2042 = vmatpush.bf16.msra.mxu0 0
      %2043 = vmatpush.bf16.msra.mxu0 0
      %2044 = vmatpush.bf16.msra.mxu0 %v1977
      %2045 = vmatpush.bf16.msra.mxu0 %v1942
      %2046 = vmatpush.bf16.msra.mxu0 %v1937
      %2047 = vmatmul.bf16.gmra.mxu0 %v1961
      %v2048 = vpop.f32.mrf.mxu0
      %v2049 = vadd.f32 %v1887, %v2048
      %v2050 = vpop.f32.mrf.mxu0
      %v2051 = vadd.f32 %v1887, %v2050
      %2052 = vmatmul.bf16.gmra.mxu0 %v1964
      %v2053 = vpop.f32.mrf.mxu0
      %v2054 = vadd.f32 %v1887, %v2053
      %v2055 = vpop.f32.mrf.mxu0
      %v2056 = vadd.f32 %v1887, %v2055
      %2057 = vdwg.mxu0
      %2058 = vmatpush.bf16.msra.mxu0 0
      %2059 = vmatpush.bf16.msra.mxu0 0
      %2060 = vmatpush.bf16.msra.mxu0 0
      %2061 = vmatpush.bf16.msra.mxu0 0
      %2062 = vmatpush.bf16.msra.mxu0 0
      %2063 = vmatpush.bf16.msra.mxu0 %v1980
      %2064 = vmatpush.bf16.msra.mxu0 %v1943
      %2065 = vmatpush.bf16.msra.mxu0 %v1938
      %2066 = vmatmul.bf16.gmra.mxu0 %v1961
      %v2067 = vpop.f32.mrf.mxu0
      %v2068 = vadd.f32 %v1888, %v2067
      %v2069 = vpop.f32.mrf.mxu0
      %v2070 = vadd.f32 %v1888, %v2069
      %2071 = vmatmul.bf16.gmra.mxu0 %v1964
      %v2072 = vpop.f32.mrf.mxu0
      %v2073 = vadd.f32 %v1888, %v2072
      %v2074 = vpop.f32.mrf.mxu0
      %v2075 = vadd.f32 %v1888, %v2074
      %2076 = vdwg.mxu0
      %v2077 = vmax.f32 %v1992, 0.0
      %v2078 = vmax.f32 %v2011, 0.0
      %v2079 = vmax.f32 %v2030, 0.0
      %v2080 = vmax.f32 %v2049, 0.0
      %v2081 = vmax.f32 %v2068, 0.0
      %v2082 = vmax.f32 %v1994, 0.0
      %v2083 = vmax.f32 %v2013, 0.0
      %v2084 = vmax.f32 %v2032, 0.0
      %v2085 = vmax.f32 %v2051, 0.0
      %v2086 = vmax.f32 %v2070, 0.0
      %v2087 = vmax.f32 %v1997, 0.0
      %v2088 = vmax.f32 %v2016, 0.0
      %v2089 = vmax.f32 %v2035, 0.0
      %v2090 = vmax.f32 %v2054, 0.0
      %v2091 = vmax.f32 %v2073, 0.0
      %v2092 = vmax.f32 %v1999, 0.0
      %v2093 = vmax.f32 %v2018, 0.0
      %v2094 = vmax.f32 %v2037, 0.0
      %v2095 = vmax.f32 %v2056, 0.0
      %v2096 = vmax.f32 %v2075, 0.0
      %v2097 = vld [vmem:[%s8] sm:$0xff]
      %v2098 = vld [vmem:[%s8 + $0x8] sm:$0xff]
      %v2099 = vld [vmem:[%s8 + $0x10] sm:$0xf]
      %v2100 = vld [vmem:[%s8 + $0x14] sm:$0xff]
      %v2101 = vld [vmem:[%s8 + $0x1c] sm:$0xff]
      %v2102 = vld [vmem:[%s8 + $0x24] sm:$0xf]
      %v2103 = vld [vmem:[%s8 + $0x28] sm:$0xff]
      %v2104 = vld [vmem:[%s8 + $0x30] sm:$0xff]
      %v2105 = vld [vmem:[%s8 + $0x38] sm:$0xf]
      %v2106 = vld [vmem:[%s8 + $0x3c] sm:$0xff]
      %v2107 = vld [vmem:[%s8 + $0x44] sm:$0xff]
      %v2108 = vld [vmem:[%s8 + $0x4c] sm:$0xf]
      %v2109 = vld [vmem:[%s8 + $0x50] sm:$0xff]
      %v2110 = vld [vmem:[%s8 + $0x58] sm:$0xff]
      %v2111 = vld [vmem:[%s8 + $0x60] sm:$0xf]
      %v2112 = vld [vmem:[%s8 + $0x64] sm:$0xff]
      %v2113 = vld [vmem:[%s8 + $0x6c] sm:$0xff]
      %v2114 = vld [vmem:[%s8 + $0x74] sm:$0xf]
      %v2115 = vld [vmem:[%s8 + $0x78] sm:$0xff]
      %v2116 = vld [vmem:[%s8 + $0x80] sm:$0xff]
      %v2117 = vld [vmem:[%s8 + $0x88] sm:$0xf]
      %v2118 = vld [vmem:[%s8 + $0x8c] sm:$0xff]
      %v2119 = vld [vmem:[%s8 + $0x94] sm:$0xff]
      %v2120 = vld [vmem:[%s8 + $0x9c] sm:$0xf]
      %v2121 = vld [vmem:[%s8 + $0xa0] sm:$0xff]
      %v2122 = vld [vmem:[%s8 + $0xa8] sm:$0xff]
      %v2123 = vld [vmem:[%s8 + $0xb0] sm:$0xf]
      %v2124 = vld [vmem:[%s8 + $0xb4] sm:$0xff]
      %v2125 = vld [vmem:[%s8 + $0xbc] sm:$0xff]
      %v2126 = vld [vmem:[%s8 + $0xc4] sm:$0xf]
      %v2127 = vld [vmem:[%s8 + $0xc8] sm:$0xff]
      %v2128 = vld [vmem:[%s8 + $0xd0] sm:$0xff]
      %v2129 = vld [vmem:[%s8 + $0xd8] sm:$0xf]
      %v2130 = vld [vmem:[%s8 + $0xdc] sm:$0xff]
      %v2131 = vld [vmem:[%s8 + $0xe4] sm:$0xff]
      %v2132 = vld [vmem:[%s8 + $0xec] sm:$0xf]
      %v2133 = vld [vmem:[%s8 + $0xf0] sm:$0xff]
      %v2134 = vld [vmem:[%s8 + $0xf8] sm:$0xff]
      %v2135 = vld [vmem:[%s8 + $0x100] sm:$0xf]
      %v2136 = vld [vmem:[%s8 + $0x104] sm:$0xff]
      %v2137 = vld [vmem:[%s8 + $0x10c] sm:$0xff]
      %v2138 = vld [vmem:[%s8 + $0x114] sm:$0xf]
      %v2139 = vld [vmem:[%s8 + $0x118] sm:$0xff]
      %v2140 = vld [vmem:[%s8 + $0x120] sm:$0xff]
      %v2141 = vld [vmem:[%s8 + $0x128] sm:$0xf]
      %v2142 = vld [vmem:[%s8 + $0x12c] sm:$0xff]
      %v2143 = vld [vmem:[%s8 + $0x134] sm:$0xff]
      %v2144 = vld [vmem:[%s8 + $0x13c] sm:$0xf]
      %v2145 = vld [vmem:[%s8 + $0x140] sm:$0xff]
      %v2146 = vld [vmem:[%s8 + $0x148] sm:$0xff]
      %v2147 = vld [vmem:[%s8 + $0x150] sm:$0xf]
      %v2148 = vld [vmem:[%s8 + $0x154] sm:$0xff]
      %v2149 = vld [vmem:[%s8 + $0x15c] sm:$0xff]
      %v2150 = vld [vmem:[%s8 + $0x164] sm:$0xf]
      %v2151 = vld [vmem:[%s8 + $0x168] sm:$0xff]
      %v2152 = vld [vmem:[%s8 + $0x170] sm:$0xff]
      %v2153 = vld [vmem:[%s8 + $0x178] sm:$0xf]
      %v2154 = vld [vmem:[%s8 + $0x17c] sm:$0xff]
      %v2155 = vld [vmem:[%s8 + $0x184] sm:$0xff]
      %v2156 = vld [vmem:[%s8 + $0x18c] sm:$0xf]
      %v2157 = vld [vmem:[%s8 + $0x190] sm:$0xff]
      %v2158 = vld [vmem:[%s8 + $0x198] sm:$0xff]
      %v2159 = vld [vmem:[%s8 + $0x1a0] sm:$0xf]
      %v2160 = vld [vmem:[%s8 + $0x1a4] sm:$0xff]
      %v2161 = vld [vmem:[%s8 + $0x1ac] sm:$0xff]
      %v2162 = vld [vmem:[%s8 + $0x1b4] sm:$0xf]
      %v2163 = vld [vmem:[%s8 + $0x1b8] sm:$0xff]
      %v2164 = vld [vmem:[%s8 + $0x1c0] sm:$0xff]
      %v2165 = vld [vmem:[%s8 + $0x1c8] sm:$0xf]
      %v2166 = vld [vmem:[%s8 + $0x1cc] sm:$0xff]
      %v2167 = vld [vmem:[%s8 + $0x1d4] sm:$0xff]
      %v2168 = vld [vmem:[%s8 + $0x1dc] sm:$0xf]
      %v2169 = vld [vmem:[%s8 + $0x1e0] sm:$0xff]
      %v2170 = vld [vmem:[%s8 + $0x1e8] sm:$0xff]
      %v2171 = vld [vmem:[%s8 + $0x1f0] sm:$0xf]
      %v2172 = vld [vmem:[%s8 + $0x1f4] sm:$0xff]
      %v2173 = vld [vmem:[%s8 + $0x1fc] sm:$0xff]
      %v2174 = vld [vmem:[%s8 + $0x204] sm:$0xf]
      %v2175 = vld [vmem:[%s8 + $0x208] sm:$0xff]
      %v2176 = vld [vmem:[%s8 + $0x210] sm:$0xff]
      %v2177 = vld [vmem:[%s8 + $0x218] sm:$0xf]
      %v2178 = vld [vmem:[%s8 + $0x21c] sm:$0xff]
      %v2179 = vld [vmem:[%s8 + $0x224] sm:$0xff]
      %v2180 = vld [vmem:[%s8 + $0x22c] sm:$0xf]
      %v2181 = vld [vmem:[%s8 + $0x230] sm:$0xff]
      %v2182 = vld [vmem:[%s8 + $0x238] sm:$0xff]
      %v2183 = vld [vmem:[%s8 + $0x240] sm:$0xf]
      %v2184 = vld [vmem:[%s8 + $0x244] sm:$0xff]
      %v2185 = vld [vmem:[%s8 + $0x24c] sm:$0xff]
      %v2186 = vld [vmem:[%s8 + $0x254] sm:$0xf]
      %v2187 = vld [vmem:[%s8 + $0x258] sm:$0xff]
      %v2188 = vld [vmem:[%s8 + $0x260] sm:$0xff]
      %v2189 = vld [vmem:[%s8 + $0x268] sm:$0xf]
      %v2190 = vld [vmem:[%s8 + $0x26c] sm:$0xff]
      %v2191 = vld [vmem:[%s8 + $0x274] sm:$0xff]
      %v2192 = vld [vmem:[%s8 + $0x27c] sm:$0xf]
      %v2193 = vld [vmem:[%s8 + $0x280] sm:$0xff]
      %v2194 = vld [vmem:[%s8 + $0x288] sm:$0xff]
      %v2195 = vld [vmem:[%s8 + $0x290] sm:$0xf]
      %v2196 = vld [vmem:[%s8 + $0x294] sm:$0xff]
      %v2197 = vld [vmem:[%s8 + $0x29c] sm:$0xff]
      %v2198 = vld [vmem:[%s8 + $0x2a4] sm:$0xf]
      %v2199 = vld [vmem:[%s8 + $0x2a8] sm:$0xff]
      %v2200 = vld [vmem:[%s8 + $0x2b0] sm:$0xff]
      %v2201 = vld [vmem:[%s8 + $0x2b8] sm:$0xf]
      %v2202 = vld [vmem:[%s8 + $0x2bc] sm:$0xff]
      %v2203 = vld [vmem:[%s8 + $0x2c4] sm:$0xff]
      %v2204 = vld [vmem:[%s8 + $0x2cc] sm:$0xf]
      %v2205 = vld [vmem:[%s8 + $0x2d0] sm:$0xff]
      %v2206 = vld [vmem:[%s8 + $0x2d8] sm:$0xff]
      %v2207 = vld [vmem:[%s8 + $0x2e0] sm:$0xf]
      %v2208 = vld [vmem:[%s8 + $0x2e4] sm:$0xff]
      %v2209 = vld [vmem:[%s8 + $0x2ec] sm:$0xff]
      %v2210 = vld [vmem:[%s8 + $0x2f4] sm:$0xf]
      %v2211 = vld [vmem:[%s8 + $0x2f8] sm:$0xff]
      %v2212 = vld [vmem:[%s8 + $0x300] sm:$0xff]
      %v2213 = vld [vmem:[%s8 + $0x308] sm:$0xf]
      %v2214 = vld [vmem:[%s8 + $0x30c] sm:$0xff]
      %v2215 = vld [vmem:[%s8 + $0x314] sm:$0xff]
      %v2216 = vld [vmem:[%s8 + $0x31c] sm:$0xf]
      %v2217 = vld [vmem:[%s8 + $0x320] sm:$0xff]
      %v2218 = vld [vmem:[%s8 + $0x328] sm:$0xff]
      %v2219 = vld [vmem:[%s8 + $0x330] sm:$0xf]
      %v2220 = vld [vmem:[%s8 + $0x334] sm:$0xff]
      %v2221 = vld [vmem:[%s8 + $0x33c] sm:$0xff]
      %v2222 = vld [vmem:[%s8 + $0x344] sm:$0xf]
      %v2223 = vld [vmem:[%s8 + $0x348] sm:$0xff]
      %v2224 = vld [vmem:[%s8 + $0x350] sm:$0xff]
      %v2225 = vld [vmem:[%s8 + $0x358] sm:$0xf]
      %v2226 = vld [vmem:[%s8 + $0x35c] sm:$0xff]
      %v2227 = vld [vmem:[%s8 + $0x364] sm:$0xff]
      %v2228 = vld [vmem:[%s8 + $0x36c] sm:$0xf]
      %v2229 = vld [vmem:[%s8 + $0x370] sm:$0xff]
      %v2230 = vld [vmem:[%s8 + $0x378] sm:$0xff]
      %v2231 = vld [vmem:[%s8 + $0x380] sm:$0xf]
      %v2232 = vld [vmem:[%s8 + $0x384] sm:$0xff]
      %v2233 = vld [vmem:[%s8 + $0x38c] sm:$0xff]
      %v2234 = vld [vmem:[%s8 + $0x394] sm:$0xf]
      %v2235 = vld [vmem:[%s8 + $0x398] sm:$0xff]
      %v2236 = vld [vmem:[%s8 + $0x3a0] sm:$0xff]
      %v2237 = vld [vmem:[%s8 + $0x3a8] sm:$0xf]
      %v2238 = vld [vmem:[%s8 + $0x3ac] sm:$0xff]
      %v2239 = vld [vmem:[%s8 + $0x3b4] sm:$0xff]
      %v2240 = vld [vmem:[%s8 + $0x3bc] sm:$0xf]
      %v2241 = vld [vmem:[%s8 + $0x3c0] sm:$0xff]
      %v2242 = vld [vmem:[%s8 + $0x3c8] sm:$0xff]
      %v2243 = vld [vmem:[%s8 + $0x3d0] sm:$0xf]
      %v2244 = vld [vmem:[%s8 + $0x3d4] sm:$0xff]
      %v2245 = vld [vmem:[%s8 + $0x3dc] sm:$0xff]
      %v2246 = vld [vmem:[%s8 + $0x3e4] sm:$0xf]
      %v2247 = vld [vmem:[%s8 + $0x3e8] sm:$0xff]
      %v2248 = vld [vmem:[%s8 + $0x3f0] sm:$0xff]
      %v2249 = vld [vmem:[%s8 + $0x3f8] sm:$0xf]
      %v2250 = vld [vmem:[%s8 + $0x3fc] sm:$0xff]
      %v2251 = vld [vmem:[%s8 + $0x404] sm:$0xff]
      %v2252 = vld [vmem:[%s8 + $0x40c] sm:$0xf]
      %v2253 = vld [vmem:[%s8 + $0x410] sm:$0xff]
      %v2254 = vld [vmem:[%s8 + $0x418] sm:$0xff]
      %v2255 = vld [vmem:[%s8 + $0x420] sm:$0xf]
      %v2256 = vld [vmem:[%s8 + $0x424] sm:$0xff]
      %v2257 = vld [vmem:[%s8 + $0x42c] sm:$0xff]
      %v2258 = vld [vmem:[%s8 + $0x434] sm:$0xf]
      %v2259 = vld [vmem:[%s8 + $0x438] sm:$0xff]
      %v2260 = vld [vmem:[%s8 + $0x440] sm:$0xff]
      %v2261 = vld [vmem:[%s8 + $0x448] sm:$0xf]
      %v2262 = vld [vmem:[%s8 + $0x44c] sm:$0xff]
      %v2263 = vld [vmem:[%s8 + $0x454] sm:$0xff]
      %v2264 = vld [vmem:[%s8 + $0x45c] sm:$0xf]
      %v2265 = vld [vmem:[%s8 + $0x460] sm:$0xff]
      %v2266 = vld [vmem:[%s8 + $0x468] sm:$0xff]
      %v2267 = vld [vmem:[%s8 + $0x470] sm:$0xf]
      %v2268 = vld [vmem:[%s8 + $0x474] sm:$0xff]
      %v2269 = vld [vmem:[%s8 + $0x47c] sm:$0xff]
      %v2270 = vld [vmem:[%s8 + $0x484] sm:$0xf]
      %v2271 = vld [vmem:[%s8 + $0x488] sm:$0xff]
      %v2272 = vld [vmem:[%s8 + $0x490] sm:$0xff]
      %v2273 = vld [vmem:[%s8 + $0x498] sm:$0xf]
      %v2274 = vld [vmem:[%s8 + $0x49c] sm:$0xff]
      %v2275 = vld [vmem:[%s8 + $0x4a4] sm:$0xff]
      %v2276 = vld [vmem:[%s8 + $0x4ac] sm:$0xf]
      %v2277 = vld [vmem:[%s8 + $0x4b0] sm:$0xff]
      %v2278 = vld [vmem:[%s8 + $0x4b8] sm:$0xff]
      %v2279 = vld [vmem:[%s8 + $0x4c0] sm:$0xf]
      %v2280 = vld [vmem:[%s8 + $0x4c4] sm:$0xff]
      %v2281 = vld [vmem:[%s8 + $0x4cc] sm:$0xff]
      %v2282 = vld [vmem:[%s8 + $0x4d4] sm:$0xf]
      %v2283 = vld [vmem:[%s8 + $0x4d8] sm:$0xff]
      %v2284 = vld [vmem:[%s8 + $0x4e0] sm:$0xff]
      %v2285 = vld [vmem:[%s8 + $0x4e8] sm:$0xf]
      %v2286 = vld [vmem:[%s8 + $0x4ec] sm:$0xff]
      %v2287 = vld [vmem:[%s8 + $0x4f4] sm:$0xff]
      %v2288 = vld [vmem:[%s8 + $0x4fc] sm:$0xf]
      %v2289 = vld [vmem:[%s8 + $0x500] sm:$0xff]
      %v2290 = vld [vmem:[%s8 + $0x508] sm:$0xff]
      %v2291 = vld [vmem:[%s8 + $0x510] sm:$0xf]
      %v2292 = vld [vmem:[%s8 + $0x514] sm:$0xff]
      %v2293 = vld [vmem:[%s8 + $0x51c] sm:$0xff]
      %v2294 = vld [vmem:[%s8 + $0x524] sm:$0xf]
      %v2295 = vld [vmem:[%s8 + $0x528] sm:$0xff]
      %v2296 = vld [vmem:[%s8 + $0x530] sm:$0xff]
      %v2297 = vld [vmem:[%s8 + $0x538] sm:$0xf]
      %v2298 = vld [vmem:[%s8 + $0x53c] sm:$0xff]
      %v2299 = vld [vmem:[%s8 + $0x544] sm:$0xff]
      %v2300 = vld [vmem:[%s8 + $0x54c] sm:$0xf]
      %v2301 = vld [vmem:[%s8 + $0x550] sm:$0xff]
      %v2302 = vld [vmem:[%s8 + $0x558] sm:$0xff]
      %v2303 = vld [vmem:[%s8 + $0x560] sm:$0xf]
      %v2304 = vld [vmem:[%s8 + $0x564] sm:$0xff]
      %v2305 = vld [vmem:[%s8 + $0x56c] sm:$0xff]
      %v2306 = vld [vmem:[%s8 + $0x574] sm:$0xf]
      %v2307 = vld [vmem:[%s8 + $0x578] sm:$0xff]
      %v2308 = vld [vmem:[%s8 + $0x580] sm:$0xff]
      %v2309 = vld [vmem:[%s8 + $0x588] sm:$0xf]
      %v2310 = vld [vmem:[%s8 + $0x58c] sm:$0xff]
      %v2311 = vld [vmem:[%s8 + $0x594] sm:$0xff]
      %v2312 = vld [vmem:[%s8 + $0x59c] sm:$0xf]
      %v2313 = vld [vmem:[%s8 + $0x5a0] sm:$0xff]
      %v2314 = vld [vmem:[%s8 + $0x5a8] sm:$0xff]
      %v2315 = vld [vmem:[%s8 + $0x5b0] sm:$0xf]
      %v2316 = vld [vmem:[%s8 + $0x5b4] sm:$0xff]
      %v2317 = vld [vmem:[%s8 + $0x5bc] sm:$0xff]
      %v2318 = vld [vmem:[%s8 + $0x5c4] sm:$0xf]
      %v2319 = vld [vmem:[%s8 + $0x5c8] sm:$0xff]
      %v2320 = vld [vmem:[%s8 + $0x5d0] sm:$0xff]
      %v2321 = vld [vmem:[%s8 + $0x5d8] sm:$0xf]
      %v2322 = vld [vmem:[%s8 + $0x5dc] sm:$0xff]
      %v2323 = vld [vmem:[%s8 + $0x5e4] sm:$0xff]
      %v2324 = vld [vmem:[%s8 + $0x5ec] sm:$0xf]
      %v2325 = vld [vmem:[%s9] sm:$0x1f]
      %v2326 = vpack.c.bf16 %v2082, %v2077
      %v2327 = vpack.c.bf16 %v2083, %v2078
      %v2328 = vpack.c.bf16 %v2084, %v2079
      %v2329 = vpack.c.bf16 %v2085, %v2080
      %v2330 = vpack.c.bf16 %v2086, %v2081
      %v2331 = vpack.c.bf16 %v2092, %v2087
      %v2332 = vpack.c.bf16 %v2093, %v2088
      %v2333 = vpack.c.bf16 %v2094, %v2089
      %v2334 = vpack.c.bf16 %v2095, %v2090
      %v2335 = vpack.c.bf16 %v2096, %v2091
      %v2337 = vperm.slane %v2325, 0
      %v2338 = vperm.slane %v2325, 1
      %v2339 = vperm.slane %v2325, 2
      %v2340 = vperm.slane %v2325, 3
      %v2341 = vperm.slane %v2325, 4
      %v2575 = vunpack.c.l.b16 %v2097
      %v2576 = vunpack.c.h.b16 %v2097
      %v2577 = vunpack.c.l.b16 %v2098
      %v2578 = vunpack.c.h.b16 %v2098
      %v2579 = vunpack.c.l.b16 %v2099
      %v2580 = vunpack.c.l.b16 %v2100
      %v2581 = vunpack.c.h.b16 %v2100
      %v2582 = vunpack.c.l.b16 %v2101
      %v2583 = vunpack.c.h.b16 %v2101
      %v2584 = vunpack.c.l.b16 %v2102
      %v2585 = vunpack.c.l.b16 %v2103
      %v2586 = vunpack.c.h.b16 %v2103
      %v2587 = vunpack.c.l.b16 %v2104
      %v2588 = vunpack.c.h.b16 %v2104
      %v2589 = vunpack.c.l.b16 %v2105
      %v2590 = vunpack.c.l.b16 %v2106
      %v2591 = vunpack.c.h.b16 %v2106
      %v2592 = vunpack.c.l.b16 %v2107
      %v2593 = vunpack.c.h.b16 %v2107
      %v2594 = vunpack.c.l.b16 %v2108
      %v2595 = vunpack.c.l.b16 %v2109
      %v2596 = vunpack.c.h.b16 %v2109
      %v2597 = vunpack.c.l.b16 %v2110
      %v2598 = vunpack.c.h.b16 %v2110
      %v2599 = vunpack.c.l.b16 %v2111
      %v2600 = vunpack.c.l.b16 %v2112
      %v2601 = vunpack.c.h.b16 %v2112
      %v2602 = vunpack.c.l.b16 %v2113
      %v2603 = vunpack.c.h.b16 %v2113
      %v2604 = vunpack.c.l.b16 %v2114
      %v2605 = vunpack.c.l.b16 %v2115
      %v2606 = vunpack.c.h.b16 %v2115
      %v2607 = vunpack.c.l.b16 %v2116
      %v2608 = vunpack.c.h.b16 %v2116
      %v2609 = vunpack.c.l.b16 %v2117
      %v2610 = vunpack.c.l.b16 %v2118
      %v2611 = vunpack.c.h.b16 %v2118
      %v2612 = vunpack.c.l.b16 %v2119
      %v2613 = vunpack.c.h.b16 %v2119
      %v2614 = vunpack.c.l.b16 %v2120
      %v2615 = vunpack.c.l.b16 %v2121
      %v2616 = vunpack.c.h.b16 %v2121
      %v2617 = vunpack.c.l.b16 %v2122
      %v2618 = vunpack.c.h.b16 %v2122
      %v2619 = vunpack.c.l.b16 %v2123
      %v2620 = vunpack.c.l.b16 %v2124
      %v2621 = vunpack.c.h.b16 %v2124
      %v2622 = vunpack.c.l.b16 %v2125
      %v2623 = vunpack.c.h.b16 %v2125
      %v2624 = vunpack.c.l.b16 %v2126
      %v2625 = vunpack.c.l.b16 %v2127
      %v2626 = vunpack.c.h.b16 %v2127
      %v2627 = vunpack.c.l.b16 %v2128
      %v2628 = vunpack.c.h.b16 %v2128
      %v2629 = vunpack.c.l.b16 %v2129
      %v2630 = vunpack.c.l.b16 %v2130
      %v2631 = vunpack.c.h.b16 %v2130
      %v2632 = vunpack.c.l.b16 %v2131
      %v2633 = vunpack.c.h.b16 %v2131
      %v2634 = vunpack.c.l.b16 %v2132
      %v2635 = vunpack.c.l.b16 %v2133
      %v2636 = vunpack.c.h.b16 %v2133
      %v2637 = vunpack.c.l.b16 %v2134
      %v2638 = vunpack.c.h.b16 %v2134
      %v2639 = vunpack.c.l.b16 %v2135
      %v2640 = vunpack.c.l.b16 %v2136
      %v2641 = vunpack.c.h.b16 %v2136
      %v2642 = vunpack.c.l.b16 %v2137
      %v2643 = vunpack.c.h.b16 %v2137
      %v2644 = vunpack.c.l.b16 %v2138
      %v2645 = vunpack.c.l.b16 %v2139
      %v2646 = vunpack.c.h.b16 %v2139
      %v2647 = vunpack.c.l.b16 %v2140
      %v2648 = vunpack.c.h.b16 %v2140
      %v2649 = vunpack.c.l.b16 %v2141
      %v2650 = vunpack.c.l.b16 %v2142
      %v2651 = vunpack.c.h.b16 %v2142
      %v2652 = vunpack.c.l.b16 %v2143
      %v2653 = vunpack.c.h.b16 %v2143
      %v2654 = vunpack.c.l.b16 %v2144
      %v2655 = vunpack.c.l.b16 %v2145
      %v2656 = vunpack.c.h.b16 %v2145
      %v2657 = vunpack.c.l.b16 %v2146
      %v2658 = vunpack.c.h.b16 %v2146
      %v2659 = vunpack.c.l.b16 %v2147
      %v2660 = vunpack.c.l.b16 %v2148
      %v2661 = vunpack.c.h.b16 %v2148
      %v2662 = vunpack.c.l.b16 %v2149
      %v2663 = vunpack.c.h.b16 %v2149
      %v2664 = vunpack.c.l.b16 %v2150
      %v2665 = vunpack.c.l.b16 %v2151
      %v2666 = vunpack.c.h.b16 %v2151
      %v2667 = vunpack.c.l.b16 %v2152
      %v2668 = vunpack.c.h.b16 %v2152
      %v2669 = vunpack.c.l.b16 %v2153
      %v2670 = vunpack.c.l.b16 %v2154
      %v2671 = vunpack.c.h.b16 %v2154
      %v2672 = vunpack.c.l.b16 %v2155
      %v2673 = vunpack.c.h.b16 %v2155
      %v2674 = vunpack.c.l.b16 %v2156
      %v2675 = vunpack.c.l.b16 %v2157
      %v2676 = vunpack.c.h.b16 %v2157
      %v2677 = vunpack.c.l.b16 %v2158
      %v2678 = vunpack.c.h.b16 %v2158
      %v2679 = vunpack.c.l.b16 %v2159
      %v2680 = vunpack.c.l.b16 %v2160
      %v2681 = vunpack.c.h.b16 %v2160
      %v2682 = vunpack.c.l.b16 %v2161
      %v2683 = vunpack.c.h.b16 %v2161
      %v2684 = vunpack.c.l.b16 %v2162
      %v2685 = vunpack.c.l.b16 %v2163
      %v2686 = vunpack.c.h.b16 %v2163
      %v2687 = vunpack.c.l.b16 %v2164
      %v2688 = vunpack.c.h.b16 %v2164
      %v2689 = vunpack.c.l.b16 %v2165
      %v2690 = vunpack.c.l.b16 %v2166
      %v2691 = vunpack.c.h.b16 %v2166
      %v2692 = vunpack.c.l.b16 %v2167
      %v2693 = vunpack.c.h.b16 %v2167
      %v2694 = vunpack.c.l.b16 %v2168
      %v2695 = vunpack.c.l.b16 %v2169
      %v2696 = vunpack.c.h.b16 %v2169
      %v2697 = vunpack.c.l.b16 %v2170
      %v2698 = vunpack.c.h.b16 %v2170
      %v2699 = vunpack.c.l.b16 %v2171
      %v2700 = vunpack.c.l.b16 %v2172
      %v2701 = vunpack.c.h.b16 %v2172
      %v2702 = vunpack.c.l.b16 %v2173
      %v2703 = vunpack.c.h.b16 %v2173
      %v2704 = vunpack.c.l.b16 %v2174
      %v2705 = vunpack.c.l.b16 %v2175
      %v2706 = vunpack.c.h.b16 %v2175
      %v2707 = vunpack.c.l.b16 %v2176
      %v2708 = vunpack.c.h.b16 %v2176
      %v2709 = vunpack.c.l.b16 %v2177
      %v2710 = vunpack.c.l.b16 %v2178
      %v2711 = vunpack.c.h.b16 %v2178
      %v2712 = vunpack.c.l.b16 %v2179
      %v2713 = vunpack.c.h.b16 %v2179
      %v2714 = vunpack.c.l.b16 %v2180
      %v2715 = vunpack.c.l.b16 %v2181
      %v2716 = vunpack.c.h.b16 %v2181
      %v2717 = vunpack.c.l.b16 %v2182
      %v2718 = vunpack.c.h.b16 %v2182
      %v2719 = vunpack.c.l.b16 %v2183
      %v2720 = vunpack.c.l.b16 %v2184
      %v2721 = vunpack.c.h.b16 %v2184
      %v2722 = vunpack.c.l.b16 %v2185
      %v2723 = vunpack.c.h.b16 %v2185
      %v2724 = vunpack.c.l.b16 %v2186
      %v2725 = vunpack.c.l.b16 %v2187
      %v2726 = vunpack.c.h.b16 %v2187
      %v2727 = vunpack.c.l.b16 %v2188
      %v2728 = vunpack.c.h.b16 %v2188
      %v2729 = vunpack.c.l.b16 %v2189
      %v2730 = vunpack.c.l.b16 %v2190
      %v2731 = vunpack.c.h.b16 %v2190
      %v2732 = vunpack.c.l.b16 %v2191
      %v2733 = vunpack.c.h.b16 %v2191
      %v2734 = vunpack.c.l.b16 %v2192
      %v2735 = vunpack.c.l.b16 %v2193
      %v2736 = vunpack.c.h.b16 %v2193
      %v2737 = vunpack.c.l.b16 %v2194
      %v2738 = vunpack.c.h.b16 %v2194
      %v2739 = vunpack.c.l.b16 %v2195
      %v2740 = vunpack.c.l.b16 %v2196
      %v2741 = vunpack.c.h.b16 %v2196
      %v2742 = vunpack.c.l.b16 %v2197
      %v2743 = vunpack.c.h.b16 %v2197
      %v2744 = vunpack.c.l.b16 %v2198
      %v2745 = vunpack.c.l.b16 %v2199
      %v2746 = vunpack.c.h.b16 %v2199
      %v2747 = vunpack.c.l.b16 %v2200
      %v2748 = vunpack.c.h.b16 %v2200
      %v2749 = vunpack.c.l.b16 %v2201
      %v2750 = vunpack.c.l.b16 %v2202
      %v2751 = vunpack.c.h.b16 %v2202
      %v2752 = vunpack.c.l.b16 %v2203
      %v2753 = vunpack.c.h.b16 %v2203
      %v2754 = vunpack.c.l.b16 %v2204
      %v2755 = vunpack.c.l.b16 %v2205
      %v2756 = vunpack.c.h.b16 %v2205
      %v2757 = vunpack.c.l.b16 %v2206
      %v2758 = vunpack.c.h.b16 %v2206
      %v2759 = vunpack.c.l.b16 %v2207
      %v2760 = vunpack.c.l.b16 %v2208
      %v2761 = vunpack.c.h.b16 %v2208
      %v2762 = vunpack.c.l.b16 %v2209
      %v2763 = vunpack.c.h.b16 %v2209
      %v2764 = vunpack.c.l.b16 %v2210
      %v2765 = vunpack.c.l.b16 %v2211
      %v2766 = vunpack.c.h.b16 %v2211
      %v2767 = vunpack.c.l.b16 %v2212
      %v2768 = vunpack.c.h.b16 %v2212
      %v2769 = vunpack.c.l.b16 %v2213
      %v2770 = vunpack.c.l.b16 %v2214
      %v2771 = vunpack.c.h.b16 %v2214
      %v2772 = vunpack.c.l.b16 %v2215
      %v2773 = vunpack.c.h.b16 %v2215
      %v2774 = vunpack.c.l.b16 %v2216
      %v2775 = vunpack.c.l.b16 %v2217
      %v2776 = vunpack.c.h.b16 %v2217
      %v2777 = vunpack.c.l.b16 %v2218
      %v2778 = vunpack.c.h.b16 %v2218
      %v2779 = vunpack.c.l.b16 %v2219
      %v2780 = vunpack.c.l.b16 %v2220
      %v2781 = vunpack.c.h.b16 %v2220
      %v2782 = vunpack.c.l.b16 %v2221
      %v2783 = vunpack.c.h.b16 %v2221
      %v2784 = vunpack.c.l.b16 %v2222
      %v2785 = vunpack.c.l.b16 %v2223
      %v2786 = vunpack.c.h.b16 %v2223
      %v2787 = vunpack.c.l.b16 %v2224
      %v2788 = vunpack.c.h.b16 %v2224
      %v2789 = vunpack.c.l.b16 %v2225
      %v2790 = vunpack.c.l.b16 %v2226
      %v2791 = vunpack.c.h.b16 %v2226
      %v2792 = vunpack.c.l.b16 %v2227
      %v2793 = vunpack.c.h.b16 %v2227
      %v2794 = vunpack.c.l.b16 %v2228
      %v2795 = vunpack.c.l.b16 %v2229
      %v2796 = vunpack.c.h.b16 %v2229
      %v2797 = vunpack.c.l.b16 %v2230
      %v2798 = vunpack.c.h.b16 %v2230
      %v2799 = vunpack.c.l.b16 %v2231
      %v2800 = vunpack.c.l.b16 %v2232
      %v2801 = vunpack.c.h.b16 %v2232
      %v2802 = vunpack.c.l.b16 %v2233
      %v2803 = vunpack.c.h.b16 %v2233
      %v2804 = vunpack.c.l.b16 %v2234
      %v2805 = vunpack.c.l.b16 %v2235
      %v2806 = vunpack.c.h.b16 %v2235
      %v2807 = vunpack.c.l.b16 %v2236
      %v2808 = vunpack.c.h.b16 %v2236
      %v2809 = vunpack.c.l.b16 %v2237
      %v2810 = vunpack.c.l.b16 %v2238
      %v2811 = vunpack.c.h.b16 %v2238
      %v2812 = vunpack.c.l.b16 %v2239
      %v2813 = vunpack.c.h.b16 %v2239
      %v2814 = vunpack.c.l.b16 %v2240
      %v2815 = vunpack.c.l.b16 %v2241
      %v2816 = vunpack.c.h.b16 %v2241
      %v2817 = vunpack.c.l.b16 %v2242
      %v2818 = vunpack.c.h.b16 %v2242
      %v2819 = vunpack.c.l.b16 %v2243
      %v2820 = vunpack.c.l.b16 %v2244
      %v2821 = vunpack.c.h.b16 %v2244
      %v2822 = vunpack.c.l.b16 %v2245
      %v2823 = vunpack.c.h.b16 %v2245
      %v2824 = vunpack.c.l.b16 %v2246
      %v2825 = vunpack.c.l.b16 %v2247
      %v2826 = vunpack.c.h.b16 %v2247
      %v2827 = vunpack.c.l.b16 %v2248
      %v2828 = vunpack.c.h.b16 %v2248
      %v2829 = vunpack.c.l.b16 %v2249
      %v2830 = vunpack.c.l.b16 %v2250
      %v2831 = vunpack.c.h.b16 %v2250
      %v2832 = vunpack.c.l.b16 %v2251
      %v2833 = vunpack.c.h.b16 %v2251
      %v2834 = vunpack.c.l.b16 %v2252
      %v2835 = vunpack.c.l.b16 %v2253
      %v2836 = vunpack.c.h.b16 %v2253
      %v2837 = vunpack.c.l.b16 %v2254
      %v2838 = vunpack.c.h.b16 %v2254
      %v2839 = vunpack.c.l.b16 %v2255
      %v2840 = vunpack.c.l.b16 %v2256
      %v2841 = vunpack.c.h.b16 %v2256
      %v2842 = vunpack.c.l.b16 %v2257
      %v2843 = vunpack.c.h.b16 %v2257
      %v2844 = vunpack.c.l.b16 %v2258
      %v2845 = vunpack.c.l.b16 %v2259
      %v2846 = vunpack.c.h.b16 %v2259
      %v2847 = vunpack.c.l.b16 %v2260
      %v2848 = vunpack.c.h.b16 %v2260
      %v2849 = vunpack.c.l.b16 %v2261
      %v2850 = vunpack.c.l.b16 %v2262
      %v2851 = vunpack.c.h.b16 %v2262
      %v2852 = vunpack.c.l.b16 %v2263
      %v2853 = vunpack.c.h.b16 %v2263
      %v2854 = vunpack.c.l.b16 %v2264
      %v2855 = vunpack.c.l.b16 %v2265
      %v2856 = vunpack.c.h.b16 %v2265
      %v2857 = vunpack.c.l.b16 %v2266
      %v2858 = vunpack.c.h.b16 %v2266
      %v2859 = vunpack.c.l.b16 %v2267
      %v2860 = vunpack.c.l.b16 %v2268
      %v2861 = vunpack.c.h.b16 %v2268
      %v2862 = vunpack.c.l.b16 %v2269
      %v2863 = vunpack.c.h.b16 %v2269
      %v2864 = vunpack.c.l.b16 %v2270
      %v2865 = vunpack.c.l.b16 %v2271
      %v2866 = vunpack.c.h.b16 %v2271
      %v2867 = vunpack.c.l.b16 %v2272
      %v2868 = vunpack.c.h.b16 %v2272
      %v2869 = vunpack.c.l.b16 %v2273
      %v2870 = vunpack.c.l.b16 %v2274
      %v2871 = vunpack.c.h.b16 %v2274
      %v2872 = vunpack.c.l.b16 %v2275
      %v2873 = vunpack.c.h.b16 %v2275
      %v2874 = vunpack.c.l.b16 %v2276
      %v2875 = vunpack.c.l.b16 %v2277
      %v2876 = vunpack.c.h.b16 %v2277
      %v2877 = vunpack.c.l.b16 %v2278
      %v2878 = vunpack.c.h.b16 %v2278
      %v2879 = vunpack.c.l.b16 %v2279
      %v2880 = vunpack.c.l.b16 %v2280
      %v2881 = vunpack.c.h.b16 %v2280
      %v2882 = vunpack.c.l.b16 %v2281
      %v2883 = vunpack.c.h.b16 %v2281
      %v2884 = vunpack.c.l.b16 %v2282
      %v2885 = vunpack.c.l.b16 %v2283
      %v2886 = vunpack.c.h.b16 %v2283
      %v2887 = vunpack.c.l.b16 %v2284
      %v2888 = vunpack.c.h.b16 %v2284
      %v2889 = vunpack.c.l.b16 %v2285
      %v2890 = vunpack.c.l.b16 %v2286
      %v2891 = vunpack.c.h.b16 %v2286
      %v2892 = vunpack.c.l.b16 %v2287
      %v2893 = vunpack.c.h.b16 %v2287
      %v2894 = vunpack.c.l.b16 %v2288
      %v2895 = vunpack.c.l.b16 %v2289
      %v2896 = vunpack.c.h.b16 %v2289
      %v2897 = vunpack.c.l.b16 %v2290
      %v2898 = vunpack.c.h.b16 %v2290
      %v2899 = vunpack.c.l.b16 %v2291
      %v2900 = vunpack.c.l.b16 %v2292
      %v2901 = vunpack.c.h.b16 %v2292
      %v2902 = vunpack.c.l.b16 %v2293
      %v2903 = vunpack.c.h.b16 %v2293
      %v2904 = vunpack.c.l.b16 %v2294
      %v2905 = vunpack.c.l.b16 %v2295
      %v2906 = vunpack.c.h.b16 %v2295
      %v2907 = vunpack.c.l.b16 %v2296
      %v2908 = vunpack.c.h.b16 %v2296
      %v2909 = vunpack.c.l.b16 %v2297
      %v2910 = vunpack.c.l.b16 %v2298
      %v2911 = vunpack.c.h.b16 %v2298
      %v2912 = vunpack.c.l.b16 %v2299
      %v2913 = vunpack.c.h.b16 %v2299
      %v2914 = vunpack.c.l.b16 %v2300
      %v2915 = vunpack.c.l.b16 %v2301
      %v2916 = vunpack.c.h.b16 %v2301
      %v2917 = vunpack.c.l.b16 %v2302
      %v2918 = vunpack.c.h.b16 %v2302
      %v2919 = vunpack.c.l.b16 %v2303
      %v2920 = vunpack.c.l.b16 %v2304
      %v2921 = vunpack.c.h.b16 %v2304
      %v2922 = vunpack.c.l.b16 %v2305
      %v2923 = vunpack.c.h.b16 %v2305
      %v2924 = vunpack.c.l.b16 %v2306
      %v2925 = vunpack.c.l.b16 %v2307
      %v2926 = vunpack.c.h.b16 %v2307
      %v2927 = vunpack.c.l.b16 %v2308
      %v2928 = vunpack.c.h.b16 %v2308
      %v2929 = vunpack.c.l.b16 %v2309
      %v2930 = vunpack.c.l.b16 %v2310
      %v2931 = vunpack.c.h.b16 %v2310
      %v2932 = vunpack.c.l.b16 %v2311
      %v2933 = vunpack.c.h.b16 %v2311
      %v2934 = vunpack.c.l.b16 %v2312
      %v2935 = vunpack.c.l.b16 %v2313
      %v2936 = vunpack.c.h.b16 %v2313
      %v2937 = vunpack.c.l.b16 %v2314
      %v2938 = vunpack.c.h.b16 %v2314
      %v2939 = vunpack.c.l.b16 %v2315
      %v2940 = vunpack.c.l.b16 %v2316
      %v2941 = vunpack.c.h.b16 %v2316
      %v2942 = vunpack.c.l.b16 %v2317
      %v2943 = vunpack.c.h.b16 %v2317
      %v2944 = vunpack.c.l.b16 %v2318
      %v2945 = vunpack.c.l.b16 %v2319
      %v2946 = vunpack.c.h.b16 %v2319
      %v2947 = vunpack.c.l.b16 %v2320
      %v2948 = vunpack.c.h.b16 %v2320
      %v2949 = vunpack.c.l.b16 %v2321
      %v2950 = vunpack.c.l.b16 %v2322
      %v2951 = vunpack.c.h.b16 %v2322
      %v2952 = vunpack.c.l.b16 %v2323
      %v2953 = vunpack.c.h.b16 %v2323
      %v2954 = vunpack.c.l.b16 %v2324
      %v2955 = vpack.c.b16 %v2580, %v2575
      %v2956 = vpack.c.b16 %v2581, %v2576
      %v2957 = vpack.c.b16 %v2582, %v2577
      %v2958 = vpack.c.b16 %v2583, %v2578
      %v2959 = vpack.c.b16 %v2584, %v2579
      %v2960 = vpack.c.b16 %v2590, %v2585
      %v2961 = vpack.c.b16 %v2591, %v2586
      %v2962 = vpack.c.b16 %v2592, %v2587
      %v2963 = vpack.c.b16 %v2593, %v2588
      %v2964 = vpack.c.b16 %v2594, %v2589
      %v2965 = vpack.c.b16 %v2600, %v2595
      %v2966 = vpack.c.b16 %v2601, %v2596
      %v2967 = vpack.c.b16 %v2602, %v2597
      %v2968 = vpack.c.b16 %v2603, %v2598
      %v2969 = vpack.c.b16 %v2604, %v2599
      %v2970 = vpack.c.b16 %v2610, %v2605
      %v2971 = vpack.c.b16 %v2611, %v2606
      %v2972 = vpack.c.b16 %v2612, %v2607
      %v2973 = vpack.c.b16 %v2613, %v2608
      %v2974 = vpack.c.b16 %v2614, %v2609
      %v2975 = vpack.c.b16 %v2620, %v2615
      %v2976 = vpack.c.b16 %v2621, %v2616
      %v2977 = vpack.c.b16 %v2622, %v2617
      %v2978 = vpack.c.b16 %v2623, %v2618
      %v2979 = vpack.c.b16 %v2624, %v2619
      %v2980 = vpack.c.b16 %v2630, %v2625
      %v2981 = vpack.c.b16 %v2631, %v2626
      %v2982 = vpack.c.b16 %v2632, %v2627
      %v2983 = vpack.c.b16 %v2633, %v2628
      %v2984 = vpack.c.b16 %v2634, %v2629
      %v2985 = vpack.c.b16 %v2640, %v2635
      %v2986 = vpack.c.b16 %v2641, %v2636
      %v2987 = vpack.c.b16 %v2642, %v2637
      %v2988 = vpack.c.b16 %v2643, %v2638
      %v2989 = vpack.c.b16 %v2644, %v2639
      %v2990 = vpack.c.b16 %v2650, %v2645
      %v2991 = vpack.c.b16 %v2651, %v2646
      %v2992 = vpack.c.b16 %v2652, %v2647
      %v2993 = vpack.c.b16 %v2653, %v2648
      %v2994 = vpack.c.b16 %v2654, %v2649
      %v2995 = vpack.c.b16 %v2660, %v2655
      %v2996 = vpack.c.b16 %v2661, %v2656
      %v2997 = vpack.c.b16 %v2662, %v2657
      %v2998 = vpack.c.b16 %v2663, %v2658
      %v2999 = vpack.c.b16 %v2664, %v2659
      %v3000 = vpack.c.b16 %v2670, %v2665
      %v3001 = vpack.c.b16 %v2671, %v2666
      %v3002 = vpack.c.b16 %v2672, %v2667
      %v3003 = vpack.c.b16 %v2673, %v2668
      %v3004 = vpack.c.b16 %v2674, %v2669
      %v3005 = vpack.c.b16 %v2680, %v2675
      %v3006 = vpack.c.b16 %v2681, %v2676
      %v3007 = vpack.c.b16 %v2682, %v2677
      %v3008 = vpack.c.b16 %v2683, %v2678
      %v3009 = vpack.c.b16 %v2684, %v2679
      %v3010 = vpack.c.b16 %v2690, %v2685
      %v3011 = vpack.c.b16 %v2691, %v2686
      %v3012 = vpack.c.b16 %v2692, %v2687
      %v3013 = vpack.c.b16 %v2693, %v2688
      %v3014 = vpack.c.b16 %v2694, %v2689
      %v3015 = vpack.c.b16 %v2700, %v2695
      %v3016 = vpack.c.b16 %v2701, %v2696
      %v3017 = vpack.c.b16 %v2702, %v2697
      %v3018 = vpack.c.b16 %v2703, %v2698
      %v3019 = vpack.c.b16 %v2704, %v2699
      %v3020 = vpack.c.b16 %v2710, %v2705
      %v3021 = vpack.c.b16 %v2711, %v2706
      %v3022 = vpack.c.b16 %v2712, %v2707
      %v3023 = vpack.c.b16 %v2713, %v2708
      %v3024 = vpack.c.b16 %v2714, %v2709
      %v3025 = vpack.c.b16 %v2720, %v2715
      %v3026 = vpack.c.b16 %v2721, %v2716
      %v3027 = vpack.c.b16 %v2722, %v2717
      %v3028 = vpack.c.b16 %v2723, %v2718
      %v3029 = vpack.c.b16 %v2724, %v2719
      %v3030 = vpack.c.b16 %v2730, %v2725
      %v3031 = vpack.c.b16 %v2731, %v2726
      %v3032 = vpack.c.b16 %v2732, %v2727
      %v3033 = vpack.c.b16 %v2733, %v2728
      %v3034 = vpack.c.b16 %v2734, %v2729
      %v3035 = vpack.c.b16 %v2740, %v2735
      %v3036 = vpack.c.b16 %v2741, %v2736
      %v3037 = vpack.c.b16 %v2742, %v2737
      %v3038 = vpack.c.b16 %v2743, %v2738
      %v3039 = vpack.c.b16 %v2744, %v2739
      %v3040 = vpack.c.b16 %v2750, %v2745
      %v3041 = vpack.c.b16 %v2751, %v2746
      %v3042 = vpack.c.b16 %v2752, %v2747
      %v3043 = vpack.c.b16 %v2753, %v2748
      %v3044 = vpack.c.b16 %v2754, %v2749
      %v3045 = vpack.c.b16 %v2760, %v2755
      %v3046 = vpack.c.b16 %v2761, %v2756
      %v3047 = vpack.c.b16 %v2762, %v2757
      %v3048 = vpack.c.b16 %v2763, %v2758
      %v3049 = vpack.c.b16 %v2764, %v2759
      %v3050 = vpack.c.b16 %v2770, %v2765
      %v3051 = vpack.c.b16 %v2771, %v2766
      %v3052 = vpack.c.b16 %v2772, %v2767
      %v3053 = vpack.c.b16 %v2773, %v2768
      %v3054 = vpack.c.b16 %v2774, %v2769
      %v3055 = vpack.c.b16 %v2780, %v2775
      %v3056 = vpack.c.b16 %v2781, %v2776
      %v3057 = vpack.c.b16 %v2782, %v2777
      %v3058 = vpack.c.b16 %v2783, %v2778
      %v3059 = vpack.c.b16 %v2784, %v2779
      %v3060 = vpack.c.b16 %v2790, %v2785
      %v3061 = vpack.c.b16 %v2791, %v2786
      %v3062 = vpack.c.b16 %v2792, %v2787
      %v3063 = vpack.c.b16 %v2793, %v2788
      %v3064 = vpack.c.b16 %v2794, %v2789
      %v3065 = vpack.c.b16 %v2800, %v2795
      %v3066 = vpack.c.b16 %v2801, %v2796
      %v3067 = vpack.c.b16 %v2802, %v2797
      %v3068 = vpack.c.b16 %v2803, %v2798
      %v3069 = vpack.c.b16 %v2804, %v2799
      %v3070 = vpack.c.b16 %v2810, %v2805
      %v3071 = vpack.c.b16 %v2811, %v2806
      %v3072 = vpack.c.b16 %v2812, %v2807
      %v3073 = vpack.c.b16 %v2813, %v2808
      %v3074 = vpack.c.b16 %v2814, %v2809
      %v3075 = vpack.c.b16 %v2820, %v2815
      %v3076 = vpack.c.b16 %v2821, %v2816
      %v3077 = vpack.c.b16 %v2822, %v2817
      %v3078 = vpack.c.b16 %v2823, %v2818
      %v3079 = vpack.c.b16 %v2824, %v2819
      %v3080 = vpack.c.b16 %v2830, %v2825
      %v3081 = vpack.c.b16 %v2831, %v2826
      %v3082 = vpack.c.b16 %v2832, %v2827
      %v3083 = vpack.c.b16 %v2833, %v2828
      %v3084 = vpack.c.b16 %v2834, %v2829
      %v3085 = vpack.c.b16 %v2840, %v2835
      %v3086 = vpack.c.b16 %v2841, %v2836
      %v3087 = vpack.c.b16 %v2842, %v2837
      %v3088 = vpack.c.b16 %v2843, %v2838
      %v3089 = vpack.c.b16 %v2844, %v2839
      %v3090 = vpack.c.b16 %v2850, %v2845
      %v3091 = vpack.c.b16 %v2851, %v2846
      %v3092 = vpack.c.b16 %v2852, %v2847
      %v3093 = vpack.c.b16 %v2853, %v2848
      %v3094 = vpack.c.b16 %v2854, %v2849
      %v3095 = vpack.c.b16 %v2860, %v2855
      %v3096 = vpack.c.b16 %v2861, %v2856
      %v3097 = vpack.c.b16 %v2862, %v2857
      %v3098 = vpack.c.b16 %v2863, %v2858
      %v3099 = vpack.c.b16 %v2864, %v2859
      %v3100 = vpack.c.b16 %v2870, %v2865
      %v3101 = vpack.c.b16 %v2871, %v2866
      %v3102 = vpack.c.b16 %v2872, %v2867
      %v3103 = vpack.c.b16 %v2873, %v2868
      %v3104 = vpack.c.b16 %v2874, %v2869
      %v3105 = vpack.c.b16 %v2880, %v2875
      %v3106 = vpack.c.b16 %v2881, %v2876
      %v3107 = vpack.c.b16 %v2882, %v2877
      %v3108 = vpack.c.b16 %v2883, %v2878
      %v3109 = vpack.c.b16 %v2884, %v2879
      %v3110 = vpack.c.b16 %v2890, %v2885
      %v3111 = vpack.c.b16 %v2891, %v2886
      %v3112 = vpack.c.b16 %v2892, %v2887
      %v3113 = vpack.c.b16 %v2893, %v2888
      %v3114 = vpack.c.b16 %v2894, %v2889
      %v3115 = vpack.c.b16 %v2900, %v2895
      %v3116 = vpack.c.b16 %v2901, %v2896
      %v3117 = vpack.c.b16 %v2902, %v2897
      %v3118 = vpack.c.b16 %v2903, %v2898
      %v3119 = vpack.c.b16 %v2904, %v2899
      %v3120 = vpack.c.b16 %v2910, %v2905
      %v3121 = vpack.c.b16 %v2911, %v2906
      %v3122 = vpack.c.b16 %v2912, %v2907
      %v3123 = vpack.c.b16 %v2913, %v2908
      %v3124 = vpack.c.b16 %v2914, %v2909
      %v3125 = vpack.c.b16 %v2920, %v2915
      %v3126 = vpack.c.b16 %v2921, %v2916
      %v3127 = vpack.c.b16 %v2922, %v2917
      %v3128 = vpack.c.b16 %v2923, %v2918
      %v3129 = vpack.c.b16 %v2924, %v2919
      %v3130 = vpack.c.b16 %v2930, %v2925
      %v3131 = vpack.c.b16 %v2931, %v2926
      %v3132 = vpack.c.b16 %v2932, %v2927
      %v3133 = vpack.c.b16 %v2933, %v2928
      %v3134 = vpack.c.b16 %v2934, %v2929
      %v3135 = vpack.c.b16 %v2940, %v2935
      %v3136 = vpack.c.b16 %v2941, %v2936
      %v3137 = vpack.c.b16 %v2942, %v2937
      %v3138 = vpack.c.b16 %v2943, %v2938
      %v3139 = vpack.c.b16 %v2944, %v2939
      %v3140 = vpack.c.b16 %v2950, %v2945
      %v3141 = vpack.c.b16 %v2951, %v2946
      %v3142 = vpack.c.b16 %v2952, %v2947
      %v3143 = vpack.c.b16 %v2953, %v2948
      %v3144 = vpack.c.b16 %v2954, %v2949
      %vm3335 = vcmask 785408
      %v3337 = vsel %vm3335, %v2330, 0
      %v3340 = vsel %vm3335, %v2335, 0
      %3342 = vmatpush.bf16.msra.mxu0 %v2990
      %3343 = vmatpush.bf16.msra.mxu0 %v2985
      %3344 = vmatpush.bf16.msra.mxu0 %v2980
      %3345 = vmatpush.bf16.msra.mxu0 %v2975
      %3346 = vmatpush.bf16.msra.mxu0 %v2970
      %3347 = vmatpush.bf16.msra.mxu0 %v2965
      %3348 = vmatpush.bf16.msra.mxu0 %v2960
      %3349 = vmatpush.bf16.msra.mxu0 %v2955
      %3350 = vmatmul.bf16.gmra.mxu0 %v2326
      %v3351 = vpop.f32.mrf.mxu0
      %v3352 = vadd.f32 %v2337, %v3351
      %v3353 = vpop.f32.mrf.mxu0
      %v3354 = vadd.f32 %v2337, %v3353
      %3355 = vmatmul.bf16.gmra.mxu0 %v2331
      %v3356 = vpop.f32.mrf.mxu0
      %v3357 = vadd.f32 %v2337, %v3356
      %v3358 = vpop.f32.mrf.mxu0
      %v3359 = vadd.f32 %v2337, %v3358
      %3360 = vdwg.mxu0
      %3361 = vmatpush.bf16.msra.mxu0 %v3030
      %3362 = vmatpush.bf16.msra.mxu0 %v3025
      %3363 = vmatpush.bf16.msra.mxu0 %v3020
      %3364 = vmatpush.bf16.msra.mxu0 %v3015
      %3365 = vmatpush.bf16.msra.mxu0 %v3010
      %3366 = vmatpush.bf16.msra.mxu0 %v3005
      %3367 = vmatpush.bf16.msra.mxu0 %v3000
      %3368 = vmatpush.bf16.msra.mxu0 %v2995
      %3369 = vmatmul.bf16.gmra.mxu0 %v2327
      %v3370 = vpop.f32.mrf.mxu0
      %v3371 = vadd.f32 %v3352, %v3370
      %v3372 = vpop.f32.mrf.mxu0
      %v3373 = vadd.f32 %v3354, %v3372
      %3374 = vmatmul.bf16.gmra.mxu0 %v2332
      %v3375 = vpop.f32.mrf.mxu0
      %v3376 = vadd.f32 %v3357, %v3375
      %v3377 = vpop.f32.mrf.mxu0
      %v3378 = vadd.f32 %v3359, %v3377
      %3379 = vdwg.mxu0
      %3380 = vmatpush.bf16.msra.mxu0 %v3070
      %3381 = vmatpush.bf16.msra.mxu0 %v3065
      %3382 = vmatpush.bf16.msra.mxu0 %v3060
      %3383 = vmatpush.bf16.msra.mxu0 %v3055
      %3384 = vmatpush.bf16.msra.mxu0 %v3050
      %3385 = vmatpush.bf16.msra.mxu0 %v3045
      %3386 = vmatpush.bf16.msra.mxu0 %v3040
      %3387 = vmatpush.bf16.msra.mxu0 %v3035
      %3388 = vmatmul.bf16.gmra.mxu0 %v2328
      %v3389 = vpop.f32.mrf.mxu0
      %v3390 = vadd.f32 %v3371, %v3389
      %v3391 = vpop.f32.mrf.mxu0
      %v3392 = vadd.f32 %v3373, %v3391
      %3393 = vmatmul.bf16.gmra.mxu0 %v2333
      %v3394 = vpop.f32.mrf.mxu0
      %v3395 = vadd.f32 %v3376, %v3394
      %v3396 = vpop.f32.mrf.mxu0
      %v3397 = vadd.f32 %v3378, %v3396
      %3398 = vdwg.mxu0
      %3399 = vmatpush.bf16.msra.mxu0 %v3110
      %3400 = vmatpush.bf16.msra.mxu0 %v3105
      %3401 = vmatpush.bf16.msra.mxu0 %v3100
      %3402 = vmatpush.bf16.msra.mxu0 %v3095
      %3403 = vmatpush.bf16.msra.mxu0 %v3090
      %3404 = vmatpush.bf16.msra.mxu0 %v3085
      %3405 = vmatpush.bf16.msra.mxu0 %v3080
      %3406 = vmatpush.bf16.msra.mxu0 %v3075
      %3407 = vmatmul.bf16.gmra.mxu0 %v2329
      %v3408 = vpop.f32.mrf.mxu0
      %v3409 = vadd.f32 %v3390, %v3408
      %v3410 = vpop.f32.mrf.mxu0
      %v3411 = vadd.f32 %v3392, %v3410
      %3412 = vmatmul.bf16.gmra.mxu0 %v2334
      %v3413 = vpop.f32.mrf.mxu0
      %v3414 = vadd.f32 %v3395, %v3413
      %v3415 = vpop.f32.mrf.mxu0
      %v3416 = vadd.f32 %v3397, %v3415
      %3417 = vdwg.mxu0
      %3418 = vmatpush.bf16.msra.mxu0 0
      %3419 = vmatpush.bf16.msra.mxu0 0
      %3420 = vmatpush.bf16.msra.mxu0 %v3140
      %3421 = vmatpush.bf16.msra.mxu0 %v3135
      %3422 = vmatpush.bf16.msra.mxu0 %v3130
      %3423 = vmatpush.bf16.msra.mxu0 %v3125
      %3424 = vmatpush.bf16.msra.mxu0 %v3120
      %3425 = vmatpush.bf16.msra.mxu0 %v3115
      %3426 = vmatmul.bf16.gmra.mxu0 %v3337
      %v3427 = vpop.f32.mrf.mxu0
      %v3428 = vadd.f32 %v3409, %v3427
      %v3429 = vpop.f32.mrf.mxu0
      %v3430 = vadd.f32 %v3411, %v3429
      %3431 = vmatmul.bf16.gmra.mxu0 %v3340
      %v3432 = vpop.f32.mrf.mxu0
      %v3433 = vadd.f32 %v3414, %v3432
      %v3434 = vpop.f32.mrf.mxu0
      %v3435 = vadd.f32 %v3416, %v3434
      %3436 = vdwg.mxu0
      %3437 = vmatpush.bf16.msra.mxu0 %v2991
      %3438 = vmatpush.bf16.msra.mxu0 %v2986
      %3439 = vmatpush.bf16.msra.mxu0 %v2981
      %3440 = vmatpush.bf16.msra.mxu0 %v2976
      %3441 = vmatpush.bf16.msra.mxu0 %v2971
      %3442 = vmatpush.bf16.msra.mxu0 %v2966
      %3443 = vmatpush.bf16.msra.mxu0 %v2961
      %3444 = vmatpush.bf16.msra.mxu0 %v2956
      %3445 = vmatmul.bf16.gmra.mxu0 %v2326
      %v3446 = vpop.f32.mrf.mxu0
      %v3447 = vadd.f32 %v2338, %v3446
      %v3448 = vpop.f32.mrf.mxu0
      %v3449 = vadd.f32 %v2338, %v3448
      %3450 = vmatmul.bf16.gmra.mxu0 %v2331
      %v3451 = vpop.f32.mrf.mxu0
      %v3452 = vadd.f32 %v2338, %v3451
      %v3453 = vpop.f32.mrf.mxu0
      %v3454 = vadd.f32 %v2338, %v3453
      %3455 = vdwg.mxu0
      %3456 = vmatpush.bf16.msra.mxu0 %v3031
      %3457 = vmatpush.bf16.msra.mxu0 %v3026
      %3458 = vmatpush.bf16.msra.mxu0 %v3021
      %3459 = vmatpush.bf16.msra.mxu0 %v3016
      %3460 = vmatpush.bf16.msra.mxu0 %v3011
      %3461 = vmatpush.bf16.msra.mxu0 %v3006
      %3462 = vmatpush.bf16.msra.mxu0 %v3001
      %3463 = vmatpush.bf16.msra.mxu0 %v2996
      %3464 = vmatmul.bf16.gmra.mxu0 %v2327
      %v3465 = vpop.f32.mrf.mxu0
      %v3466 = vadd.f32 %v3447, %v3465
      %v3467 = vpop.f32.mrf.mxu0
      %v3468 = vadd.f32 %v3449, %v3467
      %3469 = vmatmul.bf16.gmra.mxu0 %v2332
      %v3470 = vpop.f32.mrf.mxu0
      %v3471 = vadd.f32 %v3452, %v3470
      %v3472 = vpop.f32.mrf.mxu0
      %v3473 = vadd.f32 %v3454, %v3472
      %3474 = vdwg.mxu0
      %3475 = vmatpush.bf16.msra.mxu0 %v3071
      %3476 = vmatpush.bf16.msra.mxu0 %v3066
      %3477 = vmatpush.bf16.msra.mxu0 %v3061
      %3478 = vmatpush.bf16.msra.mxu0 %v3056
      %3479 = vmatpush.bf16.msra.mxu0 %v3051
      %3480 = vmatpush.bf16.msra.mxu0 %v3046
      %3481 = vmatpush.bf16.msra.mxu0 %v3041
      %3482 = vmatpush.bf16.msra.mxu0 %v3036
      %3483 = vmatmul.bf16.gmra.mxu0 %v2328
      %v3484 = vpop.f32.mrf.mxu0
      %v3485 = vadd.f32 %v3466, %v3484
      %v3486 = vpop.f32.mrf.mxu0
      %v3487 = vadd.f32 %v3468, %v3486
      %3488 = vmatmul.bf16.gmra.mxu0 %v2333
      %v3489 = vpop.f32.mrf.mxu0
      %v3490 = vadd.f32 %v3471, %v3489
      %v3491 = vpop.f32.mrf.mxu0
      %v3492 = vadd.f32 %v3473, %v3491
      %3493 = vdwg.mxu0
      %3494 = vmatpush.bf16.msra.mxu0 %v3111
      %3495 = vmatpush.bf16.msra.mxu0 %v3106
      %3496 = vmatpush.bf16.msra.mxu0 %v3101
      %3497 = vmatpush.bf16.msra.mxu0 %v3096
      %3498 = vmatpush.bf16.msra.mxu0 %v3091
      %3499 = vmatpush.bf16.msra.mxu0 %v3086
      %3500 = vmatpush.bf16.msra.mxu0 %v3081
      %3501 = vmatpush.bf16.msra.mxu0 %v3076
      %3502 = vmatmul.bf16.gmra.mxu0 %v2329
      %v3503 = vpop.f32.mrf.mxu0
      %v3504 = vadd.f32 %v3485, %v3503
      %v3505 = vpop.f32.mrf.mxu0
      %v3506 = vadd.f32 %v3487, %v3505
      %3507 = vmatmul.bf16.gmra.mxu0 %v2334
      %v3508 = vpop.f32.mrf.mxu0
      %v3509 = vadd.f32 %v3490, %v3508
      %v3510 = vpop.f32.mrf.mxu0
      %v3511 = vadd.f32 %v3492, %v3510
      %3512 = vdwg.mxu0
      %3513 = vmatpush.bf16.msra.mxu0 0
      %3514 = vmatpush.bf16.msra.mxu0 0
      %3515 = vmatpush.bf16.msra.mxu0 %v3141
      %3516 = vmatpush.bf16.msra.mxu0 %v3136
      %3517 = vmatpush.bf16.msra.mxu0 %v3131
      %3518 = vmatpush.bf16.msra.mxu0 %v3126
      %3519 = vmatpush.bf16.msra.mxu0 %v3121
      %3520 = vmatpush.bf16.msra.mxu0 %v3116
      %3521 = vmatmul.bf16.gmra.mxu0 %v3337
      %v3522 = vpop.f32.mrf.mxu0
      %v3523 = vadd.f32 %v3504, %v3522
      %v3524 = vpop.f32.mrf.mxu0
      %v3525 = vadd.f32 %v3506, %v3524
      %3526 = vmatmul.bf16.gmra.mxu0 %v3340
      %v3527 = vpop.f32.mrf.mxu0
      %v3528 = vadd.f32 %v3509, %v3527
      %v3529 = vpop.f32.mrf.mxu0
      %v3530 = vadd.f32 %v3511, %v3529
      %3531 = vdwg.mxu0
      %3532 = vmatpush.bf16.msra.mxu0 %v2992
      %3533 = vmatpush.bf16.msra.mxu0 %v2987
      %3534 = vmatpush.bf16.msra.mxu0 %v2982
      %3535 = vmatpush.bf16.msra.mxu0 %v2977
      %3536 = vmatpush.bf16.msra.mxu0 %v2972
      %3537 = vmatpush.bf16.msra.mxu0 %v2967
      %3538 = vmatpush.bf16.msra.mxu0 %v2962
      %3539 = vmatpush.bf16.msra.mxu0 %v2957
      %3540 = vmatmul.bf16.gmra.mxu0 %v2326
      %v3541 = vpop.f32.mrf.mxu0
      %v3542 = vadd.f32 %v2339, %v3541
      %v3543 = vpop.f32.mrf.mxu0
      %v3544 = vadd.f32 %v2339, %v3543
      %3545 = vmatmul.bf16.gmra.mxu0 %v2331
      %v3546 = vpop.f32.mrf.mxu0
      %v3547 = vadd.f32 %v2339, %v3546
      %v3548 = vpop.f32.mrf.mxu0
      %v3549 = vadd.f32 %v2339, %v3548
      %3550 = vdwg.mxu0
      %3551 = vmatpush.bf16.msra.mxu0 %v3032
      %3552 = vmatpush.bf16.msra.mxu0 %v3027
      %3553 = vmatpush.bf16.msra.mxu0 %v3022
      %3554 = vmatpush.bf16.msra.mxu0 %v3017
      %3555 = vmatpush.bf16.msra.mxu0 %v3012
      %3556 = vmatpush.bf16.msra.mxu0 %v3007
      %3557 = vmatpush.bf16.msra.mxu0 %v3002
      %3558 = vmatpush.bf16.msra.mxu0 %v2997
      %3559 = vmatmul.bf16.gmra.mxu0 %v2327
      %v3560 = vpop.f32.mrf.mxu0
      %v3561 = vadd.f32 %v3542, %v3560
      %v3562 = vpop.f32.mrf.mxu0
      %v3563 = vadd.f32 %v3544, %v3562
      %3564 = vmatmul.bf16.gmra.mxu0 %v2332
      %v3565 = vpop.f32.mrf.mxu0
      %v3566 = vadd.f32 %v3547, %v3565
      %v3567 = vpop.f32.mrf.mxu0
      %v3568 = vadd.f32 %v3549, %v3567
      %3569 = vdwg.mxu0
      %3570 = vmatpush.bf16.msra.mxu0 %v3072
      %3571 = vmatpush.bf16.msra.mxu0 %v3067
      %3572 = vmatpush.bf16.msra.mxu0 %v3062
      %3573 = vmatpush.bf16.msra.mxu0 %v3057
      %3574 = vmatpush.bf16.msra.mxu0 %v3052
      %3575 = vmatpush.bf16.msra.mxu0 %v3047
      %3576 = vmatpush.bf16.msra.mxu0 %v3042
      %3577 = vmatpush.bf16.msra.mxu0 %v3037
      %3578 = vmatmul.bf16.gmra.mxu0 %v2328
      %v3579 = vpop.f32.mrf.mxu0
      %v3580 = vadd.f32 %v3561, %v3579
      %v3581 = vpop.f32.mrf.mxu0
      %v3582 = vadd.f32 %v3563, %v3581
      %3583 = vmatmul.bf16.gmra.mxu0 %v2333
      %v3584 = vpop.f32.mrf.mxu0
      %v3585 = vadd.f32 %v3566, %v3584
      %v3586 = vpop.f32.mrf.mxu0
      %v3587 = vadd.f32 %v3568, %v3586
      %3588 = vdwg.mxu0
      %3589 = vmatpush.bf16.msra.mxu0 %v3112
      %3590 = vmatpush.bf16.msra.mxu0 %v3107
      %3591 = vmatpush.bf16.msra.mxu0 %v3102
      %3592 = vmatpush.bf16.msra.mxu0 %v3097
      %3593 = vmatpush.bf16.msra.mxu0 %v3092
      %3594 = vmatpush.bf16.msra.mxu0 %v3087
      %3595 = vmatpush.bf16.msra.mxu0 %v3082
      %3596 = vmatpush.bf16.msra.mxu0 %v3077
      %3597 = vmatmul.bf16.gmra.mxu0 %v2329
      %v3598 = vpop.f32.mrf.mxu0
      %v3599 = vadd.f32 %v3580, %v3598
      %v3600 = vpop.f32.mrf.mxu0
      %v3601 = vadd.f32 %v3582, %v3600
      %3602 = vmatmul.bf16.gmra.mxu0 %v2334
      %v3603 = vpop.f32.mrf.mxu0
      %v3604 = vadd.f32 %v3585, %v3603
      %v3605 = vpop.f32.mrf.mxu0
      %v3606 = vadd.f32 %v3587, %v3605
      %3607 = vdwg.mxu0
      %3608 = vmatpush.bf16.msra.mxu0 0
      %3609 = vmatpush.bf16.msra.mxu0 0
      %3610 = vmatpush.bf16.msra.mxu0 %v3142
      %3611 = vmatpush.bf16.msra.mxu0 %v3137
      %3612 = vmatpush.bf16.msra.mxu0 %v3132
      %3613 = vmatpush.bf16.msra.mxu0 %v3127
      %3614 = vmatpush.bf16.msra.mxu0 %v3122
      %3615 = vmatpush.bf16.msra.mxu0 %v3117
      %3616 = vmatmul.bf16.gmra.mxu0 %v3337
      %v3617 = vpop.f32.mrf.mxu0
      %v3618 = vadd.f32 %v3599, %v3617
      %v3619 = vpop.f32.mrf.mxu0
      %v3620 = vadd.f32 %v3601, %v3619
      %3621 = vmatmul.bf16.gmra.mxu0 %v3340
      %v3622 = vpop.f32.mrf.mxu0
      %v3623 = vadd.f32 %v3604, %v3622
      %v3624 = vpop.f32.mrf.mxu0
      %v3625 = vadd.f32 %v3606, %v3624
      %3626 = vdwg.mxu0
      %3627 = vmatpush.bf16.msra.mxu0 %v2993
      %3628 = vmatpush.bf16.msra.mxu0 %v2988
      %3629 = vmatpush.bf16.msra.mxu0 %v2983
      %3630 = vmatpush.bf16.msra.mxu0 %v2978
      %3631 = vmatpush.bf16.msra.mxu0 %v2973
      %3632 = vmatpush.bf16.msra.mxu0 %v2968
      %3633 = vmatpush.bf16.msra.mxu0 %v2963
      %3634 = vmatpush.bf16.msra.mxu0 %v2958
      %3635 = vmatmul.bf16.gmra.mxu0 %v2326
      %v3636 = vpop.f32.mrf.mxu0
      %v3637 = vadd.f32 %v2340, %v3636
      %v3638 = vpop.f32.mrf.mxu0
      %v3639 = vadd.f32 %v2340, %v3638
      %3640 = vmatmul.bf16.gmra.mxu0 %v2331
      %v3641 = vpop.f32.mrf.mxu0
      %v3642 = vadd.f32 %v2340, %v3641
      %v3643 = vpop.f32.mrf.mxu0
      %v3644 = vadd.f32 %v2340, %v3643
      %3645 = vdwg.mxu0
      %3646 = vmatpush.bf16.msra.mxu0 %v3033
      %3647 = vmatpush.bf16.msra.mxu0 %v3028
      %3648 = vmatpush.bf16.msra.mxu0 %v3023
      %3649 = vmatpush.bf16.msra.mxu0 %v3018
      %3650 = vmatpush.bf16.msra.mxu0 %v3013
      %3651 = vmatpush.bf16.msra.mxu0 %v3008
      %3652 = vmatpush.bf16.msra.mxu0 %v3003
      %3653 = vmatpush.bf16.msra.mxu0 %v2998
      %3654 = vmatmul.bf16.gmra.mxu0 %v2327
      %v3655 = vpop.f32.mrf.mxu0
      %v3656 = vadd.f32 %v3637, %v3655
      %v3657 = vpop.f32.mrf.mxu0
      %v3658 = vadd.f32 %v3639, %v3657
      %3659 = vmatmul.bf16.gmra.mxu0 %v2332
      %v3660 = vpop.f32.mrf.mxu0
      %v3661 = vadd.f32 %v3642, %v3660
      %v3662 = vpop.f32.mrf.mxu0
      %v3663 = vadd.f32 %v3644, %v3662
      %3664 = vdwg.mxu0
      %3665 = vmatpush.bf16.msra.mxu0 %v3073
      %3666 = vmatpush.bf16.msra.mxu0 %v3068
      %3667 = vmatpush.bf16.msra.mxu0 %v3063
      %3668 = vmatpush.bf16.msra.mxu0 %v3058
      %3669 = vmatpush.bf16.msra.mxu0 %v3053
      %3670 = vmatpush.bf16.msra.mxu0 %v3048
      %3671 = vmatpush.bf16.msra.mxu0 %v3043
      %3672 = vmatpush.bf16.msra.mxu0 %v3038
      %3673 = vmatmul.bf16.gmra.mxu0 %v2328
      %v3674 = vpop.f32.mrf.mxu0
      %v3675 = vadd.f32 %v3656, %v3674
      %v3676 = vpop.f32.mrf.mxu0
      %v3677 = vadd.f32 %v3658, %v3676
      %3678 = vmatmul.bf16.gmra.mxu0 %v2333
      %v3679 = vpop.f32.mrf.mxu0
      %v3680 = vadd.f32 %v3661, %v3679
      %v3681 = vpop.f32.mrf.mxu0
      %v3682 = vadd.f32 %v3663, %v3681
      %3683 = vdwg.mxu0
      %3684 = vmatpush.bf16.msra.mxu0 %v3113
      %3685 = vmatpush.bf16.msra.mxu0 %v3108
      %3686 = vmatpush.bf16.msra.mxu0 %v3103
      %3687 = vmatpush.bf16.msra.mxu0 %v3098
      %3688 = vmatpush.bf16.msra.mxu0 %v3093
      %3689 = vmatpush.bf16.msra.mxu0 %v3088
      %3690 = vmatpush.bf16.msra.mxu0 %v3083
      %3691 = vmatpush.bf16.msra.mxu0 %v3078
      %3692 = vmatmul.bf16.gmra.mxu0 %v2329
      %v3693 = vpop.f32.mrf.mxu0
      %v3694 = vadd.f32 %v3675, %v3693
      %v3695 = vpop.f32.mrf.mxu0
      %v3696 = vadd.f32 %v3677, %v3695
      %3697 = vmatmul.bf16.gmra.mxu0 %v2334
      %v3698 = vpop.f32.mrf.mxu0
      %v3699 = vadd.f32 %v3680, %v3698
      %v3700 = vpop.f32.mrf.mxu0
      %v3701 = vadd.f32 %v3682, %v3700
      %3702 = vdwg.mxu0
      %3703 = vmatpush.bf16.msra.mxu0 0
      %3704 = vmatpush.bf16.msra.mxu0 0
      %3705 = vmatpush.bf16.msra.mxu0 %v3143
      %3706 = vmatpush.bf16.msra.mxu0 %v3138
      %3707 = vmatpush.bf16.msra.mxu0 %v3133
      %3708 = vmatpush.bf16.msra.mxu0 %v3128
      %3709 = vmatpush.bf16.msra.mxu0 %v3123
      %3710 = vmatpush.bf16.msra.mxu0 %v3118
      %3711 = vmatmul.bf16.gmra.mxu0 %v3337
      %v3712 = vpop.f32.mrf.mxu0
      %v3713 = vadd.f32 %v3694, %v3712
      %v3714 = vpop.f32.mrf.mxu0
      %v3715 = vadd.f32 %v3696, %v3714
      %3716 = vmatmul.bf16.gmra.mxu0 %v3340
      %v3717 = vpop.f32.mrf.mxu0
      %v3718 = vadd.f32 %v3699, %v3717
      %v3719 = vpop.f32.mrf.mxu0
      %v3720 = vadd.f32 %v3701, %v3719
      %3721 = vdwg.mxu0
      %3722 = vmatpush.bf16.msra.mxu0 %v2994
      %3723 = vmatpush.bf16.msra.mxu0 %v2989
      %3724 = vmatpush.bf16.msra.mxu0 %v2984
      %3725 = vmatpush.bf16.msra.mxu0 %v2979
      %3726 = vmatpush.bf16.msra.mxu0 %v2974
      %3727 = vmatpush.bf16.msra.mxu0 %v2969
      %3728 = vmatpush.bf16.msra.mxu0 %v2964
      %3729 = vmatpush.bf16.msra.mxu0 %v2959
      %3730 = vmatmul.bf16.gmra.mxu0 %v2326
      %v3731 = vpop.f32.mrf.mxu0
      %v3732 = vadd.f32 %v2341, %v3731
      %v3733 = vpop.f32.mrf.mxu0
      %v3734 = vadd.f32 %v2341, %v3733
      %3735 = vmatmul.bf16.gmra.mxu0 %v2331
      %v3736 = vpop.f32.mrf.mxu0
      %v3737 = vadd.f32 %v2341, %v3736
      %v3738 = vpop.f32.mrf.mxu0
      %v3739 = vadd.f32 %v2341, %v3738
      %3740 = vdwg.mxu0
      %3741 = vmatpush.bf16.msra.mxu0 %v3034
      %3742 = vmatpush.bf16.msra.mxu0 %v3029
      %3743 = vmatpush.bf16.msra.mxu0 %v3024
      %3744 = vmatpush.bf16.msra.mxu0 %v3019
      %3745 = vmatpush.bf16.msra.mxu0 %v3014
      %3746 = vmatpush.bf16.msra.mxu0 %v3009
      %3747 = vmatpush.bf16.msra.mxu0 %v3004
      %3748 = vmatpush.bf16.msra.mxu0 %v2999
      %3749 = vmatmul.bf16.gmra.mxu0 %v2327
      %v3750 = vpop.f32.mrf.mxu0
      %v3751 = vadd.f32 %v3732, %v3750
      %v3752 = vpop.f32.mrf.mxu0
      %v3753 = vadd.f32 %v3734, %v3752
      %3754 = vmatmul.bf16.gmra.mxu0 %v2332
      %v3755 = vpop.f32.mrf.mxu0
      %v3756 = vadd.f32 %v3737, %v3755
      %v3757 = vpop.f32.mrf.mxu0
      %v3758 = vadd.f32 %v3739, %v3757
      %3759 = vdwg.mxu0
      %3760 = vmatpush.bf16.msra.mxu0 %v3074
      %3761 = vmatpush.bf16.msra.mxu0 %v3069
      %3762 = vmatpush.bf16.msra.mxu0 %v3064
      %3763 = vmatpush.bf16.msra.mxu0 %v3059
      %3764 = vmatpush.bf16.msra.mxu0 %v3054
      %3765 = vmatpush.bf16.msra.mxu0 %v3049
      %3766 = vmatpush.bf16.msra.mxu0 %v3044
      %3767 = vmatpush.bf16.msra.mxu0 %v3039
      %3768 = vmatmul.bf16.gmra.mxu0 %v2328
      %v3769 = vpop.f32.mrf.mxu0
      %v3770 = vadd.f32 %v3751, %v3769
      %v3771 = vpop.f32.mrf.mxu0
      %v3772 = vadd.f32 %v3753, %v3771
      %3773 = vmatmul.bf16.gmra.mxu0 %v2333
      %v3774 = vpop.f32.mrf.mxu0
      %v3775 = vadd.f32 %v3756, %v3774
      %v3776 = vpop.f32.mrf.mxu0
      %v3777 = vadd.f32 %v3758, %v3776
      %3778 = vdwg.mxu0
      %3779 = vmatpush.bf16.msra.mxu0 %v3114
      %3780 = vmatpush.bf16.msra.mxu0 %v3109
      %3781 = vmatpush.bf16.msra.mxu0 %v3104
      %3782 = vmatpush.bf16.msra.mxu0 %v3099
      %3783 = vmatpush.bf16.msra.mxu0 %v3094
      %3784 = vmatpush.bf16.msra.mxu0 %v3089
      %3785 = vmatpush.bf16.msra.mxu0 %v3084
      %3786 = vmatpush.bf16.msra.mxu0 %v3079
      %3787 = vmatmul.bf16.gmra.mxu0 %v2329
      %v3788 = vpop.f32.mrf.mxu0
      %v3789 = vadd.f32 %v3770, %v3788
      %v3790 = vpop.f32.mrf.mxu0
      %v3791 = vadd.f32 %v3772, %v3790
      %3792 = vmatmul.bf16.gmra.mxu0 %v2334
      %v3793 = vpop.f32.mrf.mxu0
      %v3794 = vadd.f32 %v3775, %v3793
      %v3795 = vpop.f32.mrf.mxu0
      %v3796 = vadd.f32 %v3777, %v3795
      %3797 = vdwg.mxu0
      %3798 = vmatpush.bf16.msra.mxu0 0
      %3799 = vmatpush.bf16.msra.mxu0 0
      %3800 = vmatpush.bf16.msra.mxu0 %v3144
      %3801 = vmatpush.bf16.msra.mxu0 %v3139
      %3802 = vmatpush.bf16.msra.mxu0 %v3134
      %3803 = vmatpush.bf16.msra.mxu0 %v3129
      %3804 = vmatpush.bf16.msra.mxu0 %v3124
      %3805 = vmatpush.bf16.msra.mxu0 %v3119
      %3806 = vmatmul.bf16.gmra.mxu0 %v3337
      %v3807 = vpop.f32.mrf.mxu0
      %v3808 = vadd.f32 %v3789, %v3807
      %v3809 = vpop.f32.mrf.mxu0
      %v3810 = vadd.f32 %v3791, %v3809
      %3811 = vmatmul.bf16.gmra.mxu0 %v3340
      %v3812 = vpop.f32.mrf.mxu0
      %v3813 = vadd.f32 %v3794, %v3812
      %v3814 = vpop.f32.mrf.mxu0
      %v3815 = vadd.f32 %v3796, %v3814
      %3816 = vdwg.mxu0
      %v3817 = vmax.f32 %v3428, 0.0
      %v3818 = vmax.f32 %v3523, 0.0
      %v3819 = vmax.f32 %v3618, 0.0
      %v3820 = vmax.f32 %v3713, 0.0
      %v3821 = vmax.f32 %v3808, 0.0
      %v3822 = vmax.f32 %v3430, 0.0
      %v3823 = vmax.f32 %v3525, 0.0
      %v3824 = vmax.f32 %v3620, 0.0
      %v3825 = vmax.f32 %v3715, 0.0
      %v3826 = vmax.f32 %v3810, 0.0
      %v3827 = vmax.f32 %v3433, 0.0
      %v3828 = vmax.f32 %v3528, 0.0
      %v3829 = vmax.f32 %v3623, 0.0
      %v3830 = vmax.f32 %v3718, 0.0
      %v3831 = vmax.f32 %v3813, 0.0
      %v3832 = vmax.f32 %v3435, 0.0
      %v3833 = vmax.f32 %v3530, 0.0
      %v3834 = vmax.f32 %v3625, 0.0
      %v3835 = vmax.f32 %v3720, 0.0
      %v3836 = vmax.f32 %v3815, 0.0
      %3857 = vrot.lane.b32.xlu0 %v3817, 127
      %v3858 = vpop.permute.xlu0 %3857
      %3859 = vrot.lane.b32.xlu0 %v3818, 127
      %v3860 = vpop.permute.xlu0 %3859
      %3861 = vrot.lane.b32.xlu0 %v3819, 127
      %v3862 = vpop.permute.xlu0 %3861
      %3863 = vrot.lane.b32.xlu0 %v3820, 127
      %v3864 = vpop.permute.xlu0 %3863
      %3865 = vrot.lane.b32.xlu0 %v3821, 127
      %v3866 = vpop.permute.xlu0 %3865
      %3867 = vrot.lane.b32.xlu0 %v3822, 127
      %v3868 = vpop.permute.xlu0 %3867
      %3869 = vrot.lane.b32.xlu0 %v3823, 127
      %v3870 = vpop.permute.xlu0 %3869
      %3871 = vrot.lane.b32.xlu0 %v3824, 127
      %v3872 = vpop.permute.xlu0 %3871
      %3873 = vrot.lane.b32.xlu0 %v3825, 127
      %v3874 = vpop.permute.xlu0 %3873
      %3875 = vrot.lane.b32.xlu0 %v3826, 127
      %v3876 = vpop.permute.xlu0 %3875
      %3877 = vrot.lane.b32.xlu0 %v3827, 127
      %v3878 = vpop.permute.xlu0 %3877
      %3879 = vrot.lane.b32.xlu0 %v3828, 127
      %v3880 = vpop.permute.xlu0 %3879
      %3881 = vrot.lane.b32.xlu0 %v3829, 127
      %v3882 = vpop.permute.xlu0 %3881
      %3883 = vrot.lane.b32.xlu0 %v3830, 127
      %v3884 = vpop.permute.xlu0 %3883
      %3885 = vrot.lane.b32.xlu0 %v3831, 127
      %v3886 = vpop.permute.xlu0 %3885
      %3887 = vrot.lane.b32.xlu0 %v3832, 127
      %v3888 = vpop.permute.xlu0 %3887
      %3889 = vrot.lane.b32.xlu0 %v3833, 127
      %v3890 = vpop.permute.xlu0 %3889
      %3891 = vrot.lane.b32.xlu0 %v3834, 127
      %v3892 = vpop.permute.xlu0 %3891
      %3893 = vrot.lane.b32.xlu0 %v3835, 127
      %v3894 = vpop.permute.xlu0 %3893
      %3895 = vrot.lane.b32.xlu0 %v3836, 127
      %v3896 = vpop.permute.xlu0 %3895
      %vm3897 = vcmask 1039360
      %v3898 = vsel %vm3897, %v3858, %v3860
      %v3899 = vsel %vm3897, %v3860, %v3862
      %v3900 = vsel %vm3897, %v3862, %v3864
      %v3901 = vsel %vm3897, %v3864, %v3866
      %v3902 = vsel %vm3897, %v3868, %v3870
      %v3903 = vsel %vm3897, %v3870, %v3872
      %v3904 = vsel %vm3897, %v3872, %v3874
      %v3905 = vsel %vm3897, %v3874, %v3876
      %v3906 = vsel %vm3897, %v3878, %v3880
      %v3907 = vsel %vm3897, %v3880, %v3882
      %v3908 = vsel %vm3897, %v3882, %v3884
      %v3909 = vsel %vm3897, %v3884, %v3886
      %v3910 = vsel %vm3897, %v3888, %v3890
      %v3911 = vsel %vm3897, %v3890, %v3892
      %v3912 = vsel %vm3897, %v3892, %v3894
      %v3913 = vsel %vm3897, %v3894, %v3896
      %v3934 = vmax.f32 %v3817, %v3898
      %v3935 = vmax.f32 %v3818, %v3899
      %v3936 = vmax.f32 %v3819, %v3900
      %v3937 = vmax.f32 %v3820, %v3901
      %v3938 = vmax.f32 %v3821, %v3866
      %v3939 = vmax.f32 %v3822, %v3902
      %v3940 = vmax.f32 %v3823, %v3903
      %v3941 = vmax.f32 %v3824, %v3904
      %v3942 = vmax.f32 %v3825, %v3905
      %v3943 = vmax.f32 %v3826, %v3876
      %v3944 = vmax.f32 %v3827, %v3906
      %v3945 = vmax.f32 %v3828, %v3907
      %v3946 = vmax.f32 %v3829, %v3908
      %v3947 = vmax.f32 %v3830, %v3909
      %v3948 = vmax.f32 %v3831, %v3886
      %v3949 = vmax.f32 %v3832, %v3910
      %v3950 = vmax.f32 %v3833, %v3911
      %v3951 = vmax.f32 %v3834, %v3912
      %v3952 = vmax.f32 %v3835, %v3913
      %v3953 = vmax.f32 %v3836, %v3896
      %v3954 = vld [vmem:[%s10] sm:$0xff]
      %v3955 = vld [vmem:[%s10 + $0x8] sm:$0xff]
      %v3956 = vld [vmem:[%s10 + $0x10] sm:$0xff]
      %v3957 = vld [vmem:[%s10 + $0x18] sm:$0xff]
      %v3958 = vld [vmem:[%s10 + $0x20] sm:$0xff]
      %v3959 = vld [vmem:[%s10 + $0x28] sm:$0xff]
      %v3960 = vld [vmem:[%s10 + $0x30] sm:$0xff]
      %v3961 = vld [vmem:[%s10 + $0x38] sm:$0xff]
      %v3962 = vld [vmem:[%s10 + $0x40] sm:$0xff]
      %v3963 = vld [vmem:[%s10 + $0x48] sm:$0xff]
      %v3964 = vld [vmem:[%s10 + $0x50] sm:$0xff]
      %v3965 = vld [vmem:[%s10 + $0x58] sm:$0xff]
      %v3966 = vld [vmem:[%s10 + $0x60] sm:$0xff]
      %v3967 = vld [vmem:[%s10 + $0x68] sm:$0xff]
      %v3968 = vld [vmem:[%s10 + $0x70] sm:$0xff]
      %v3969 = vld [vmem:[%s10 + $0x78] sm:$0xff]
      %v3970 = vld [vmem:[%s10 + $0x80] sm:$0xff]
      %v3971 = vld [vmem:[%s10 + $0x88] sm:$0xff]
      %v3972 = vld [vmem:[%s10 + $0x90] sm:$0xff]
      %v3973 = vld [vmem:[%s10 + $0x98] sm:$0xff]
      %v3974 = vld [vmem:[%s10 + $0xa0] sm:$0xff]
      %v3975 = vld [vmem:[%s10 + $0xa8] sm:$0xff]
      %v3976 = vld [vmem:[%s10 + $0xb0] sm:$0xff]
      %v3977 = vld [vmem:[%s10 + $0xb8] sm:$0xff]
      %v3978 = vld [vmem:[%s10 + $0xc0] sm:$0xff]
      %v3979 = vld [vmem:[%s10 + $0xc8] sm:$0xff]
      %v3980 = vld [vmem:[%s10 + $0xd0] sm:$0xff]
      %v3981 = vld [vmem:[%s10 + $0xd8] sm:$0xff]
      %v3982 = vld [vmem:[%s10 + $0xe0] sm:$0xff]
      %v3983 = vld [vmem:[%s10 + $0xe8] sm:$0xff]
      %v3984 = vld [vmem:[%s10 + $0xf0] sm:$0xff]
      %v3985 = vld [vmem:[%s10 + $0xf8] sm:$0xff]
      %v3986 = vld [vmem:[%s10 + $0x100] sm:$0xff]
      %v3987 = vld [vmem:[%s10 + $0x108] sm:$0xff]
      %v3988 = vld [vmem:[%s10 + $0x110] sm:$0xff]
      %v3989 = vld [vmem:[%s10 + $0x118] sm:$0xff]
      %v3990 = vld [vmem:[%s10 + $0x120] sm:$0xff]
      %v3991 = vld [vmem:[%s10 + $0x128] sm:$0xff]
      %v3992 = vld [vmem:[%s10 + $0x130] sm:$0xff]
      %v3993 = vld [vmem:[%s10 + $0x138] sm:$0xff]
      %v3994 = vld [vmem:[%s10 + $0x140] sm:$0xff]
      %v3995 = vld [vmem:[%s10 + $0x148] sm:$0xff]
      %v3996 = vld [vmem:[%s10 + $0x150] sm:$0xff]
      %v3997 = vld [vmem:[%s10 + $0x158] sm:$0xff]
      %v3998 = vld [vmem:[%s10 + $0x160] sm:$0xff]
      %v3999 = vld [vmem:[%s10 + $0x168] sm:$0xff]
      %v4000 = vld [vmem:[%s10 + $0x170] sm:$0xff]
      %v4001 = vld [vmem:[%s10 + $0x178] sm:$0xff]
      %v4002 = vld [vmem:[%s10 + $0x180] sm:$0xff]
      %v4003 = vld [vmem:[%s10 + $0x188] sm:$0xff]
      %v4004 = vld [vmem:[%s10 + $0x190] sm:$0xff]
      %v4005 = vld [vmem:[%s10 + $0x198] sm:$0xff]
      %v4006 = vld [vmem:[%s10 + $0x1a0] sm:$0xff]
      %v4007 = vld [vmem:[%s10 + $0x1a8] sm:$0xff]
      %v4008 = vld [vmem:[%s10 + $0x1b0] sm:$0xff]
      %v4009 = vld [vmem:[%s10 + $0x1b8] sm:$0xff]
      %v4010 = vld [vmem:[%s10 + $0x1c0] sm:$0xff]
      %v4011 = vld [vmem:[%s10 + $0x1c8] sm:$0xff]
      %v4012 = vld [vmem:[%s10 + $0x1d0] sm:$0xff]
      %v4013 = vld [vmem:[%s10 + $0x1d8] sm:$0xff]
      %v4014 = vld [vmem:[%s10 + $0x1e0] sm:$0xff]
      %v4015 = vld [vmem:[%s10 + $0x1e8] sm:$0xff]
      %v4016 = vld [vmem:[%s10 + $0x1f0] sm:$0xff]
      %v4017 = vld [vmem:[%s10 + $0x1f8] sm:$0xff]
      %v4018 = vld [vmem:[%s10 + $0x200] sm:$0xff]
      %v4019 = vld [vmem:[%s10 + $0x208] sm:$0xff]
      %v4020 = vld [vmem:[%s10 + $0x210] sm:$0xff]
      %v4021 = vld [vmem:[%s10 + $0x218] sm:$0xff]
      %v4022 = vld [vmem:[%s10 + $0x220] sm:$0xff]
      %v4023 = vld [vmem:[%s10 + $0x228] sm:$0xff]
      %v4024 = vld [vmem:[%s10 + $0x230] sm:$0xff]
      %v4025 = vld [vmem:[%s10 + $0x238] sm:$0xff]
      %v4026 = vld [vmem:[%s10 + $0x240] sm:$0xff]
      %v4027 = vld [vmem:[%s10 + $0x248] sm:$0xff]
      %v4028 = vld [vmem:[%s10 + $0x250] sm:$0xff]
      %v4029 = vld [vmem:[%s10 + $0x258] sm:$0xff]
      %v4030 = vld [vmem:[%s10 + $0x260] sm:$0xff]
      %v4031 = vld [vmem:[%s10 + $0x268] sm:$0xff]
      %v4032 = vld [vmem:[%s10 + $0x270] sm:$0xff]
      %v4033 = vld [vmem:[%s10 + $0x278] sm:$0xff]
      %v4034 = vld [vmem:[%s10 + $0x280] sm:$0xff]
      %v4035 = vld [vmem:[%s10 + $0x288] sm:$0xff]
      %v4036 = vld [vmem:[%s10 + $0x290] sm:$0xff]
      %v4037 = vld [vmem:[%s10 + $0x298] sm:$0xff]
      %v4038 = vld [vmem:[%s10 + $0x2a0] sm:$0xff]
      %v4039 = vld [vmem:[%s10 + $0x2a8] sm:$0xff]
      %v4040 = vld [vmem:[%s10 + $0x2b0] sm:$0xff]
      %v4041 = vld [vmem:[%s10 + $0x2b8] sm:$0xff]
      %v4042 = vld [vmem:[%s10 + $0x2c0] sm:$0xff]
      %v4043 = vld [vmem:[%s10 + $0x2c8] sm:$0xff]
      %v4044 = vld [vmem:[%s10 + $0x2d0] sm:$0xff]
      %v4045 = vld [vmem:[%s10 + $0x2d8] sm:$0xff]
      %v4046 = vld [vmem:[%s10 + $0x2e0] sm:$0xff]
      %v4047 = vld [vmem:[%s10 + $0x2e8] sm:$0xff]
      %v4048 = vld [vmem:[%s10 + $0x2f0] sm:$0xff]
      %v4049 = vld [vmem:[%s10 + $0x2f8] sm:$0xff]
      %v4050 = vld [vmem:[%s10 + $0x300] sm:$0xff]
      %v4051 = vld [vmem:[%s10 + $0x308] sm:$0xff]
      %v4052 = vld [vmem:[%s10 + $0x310] sm:$0xff]
      %v4053 = vld [vmem:[%s10 + $0x318] sm:$0xff]
      %v4054 = vld [vmem:[%s10 + $0x320] sm:$0xff]
      %v4055 = vld [vmem:[%s10 + $0x328] sm:$0xff]
      %v4056 = vld [vmem:[%s10 + $0x330] sm:$0xff]
      %v4057 = vld [vmem:[%s10 + $0x338] sm:$0xff]
      %v4058 = vld [vmem:[%s10 + $0x340] sm:$0xff]
      %v4059 = vld [vmem:[%s10 + $0x348] sm:$0xff]
      %v4060 = vld [vmem:[%s10 + $0x350] sm:$0xff]
      %v4061 = vld [vmem:[%s10 + $0x358] sm:$0xff]
      %v4062 = vld [vmem:[%s10 + $0x360] sm:$0xff]
      %v4063 = vld [vmem:[%s10 + $0x368] sm:$0xff]
      %v4064 = vld [vmem:[%s10 + $0x370] sm:$0xff]
      %v4065 = vld [vmem:[%s10 + $0x378] sm:$0xff]
      %v4066 = vld [vmem:[%s10 + $0x380] sm:$0xff]
      %v4067 = vld [vmem:[%s10 + $0x388] sm:$0xff]
      %v4068 = vld [vmem:[%s10 + $0x390] sm:$0xff]
      %v4069 = vld [vmem:[%s10 + $0x398] sm:$0xff]
      %v4070 = vld [vmem:[%s10 + $0x3a0] sm:$0xff]
      %v4071 = vld [vmem:[%s10 + $0x3a8] sm:$0xff]
      %v4072 = vld [vmem:[%s10 + $0x3b0] sm:$0xff]
      %v4073 = vld [vmem:[%s10 + $0x3b8] sm:$0xff]
      %v4074 = vld [vmem:[%s10 + $0x3c0] sm:$0xff]
      %v4075 = vld [vmem:[%s10 + $0x3c8] sm:$0xff]
      %v4076 = vld [vmem:[%s10 + $0x3d0] sm:$0xff]
      %v4077 = vld [vmem:[%s10 + $0x3d8] sm:$0xff]
      %v4078 = vld [vmem:[%s10 + $0x3e0] sm:$0xff]
      %v4079 = vld [vmem:[%s10 + $0x3e8] sm:$0xff]
      %v4080 = vld [vmem:[%s10 + $0x3f0] sm:$0xff]
      %v4081 = vld [vmem:[%s10 + $0x3f8] sm:$0xff]
      %v4082 = vld [vmem:[%s10 + $0x400] sm:$0xff]
      %v4083 = vld [vmem:[%s10 + $0x408] sm:$0xff]
      %v4084 = vld [vmem:[%s10 + $0x410] sm:$0xff]
      %v4085 = vld [vmem:[%s10 + $0x418] sm:$0xff]
      %v4086 = vld [vmem:[%s10 + $0x420] sm:$0xff]
      %v4087 = vld [vmem:[%s10 + $0x428] sm:$0xff]
      %v4088 = vld [vmem:[%s10 + $0x430] sm:$0xff]
      %v4089 = vld [vmem:[%s10 + $0x438] sm:$0xff]
      %v4090 = vld [vmem:[%s10 + $0x440] sm:$0xff]
      %v4091 = vld [vmem:[%s10 + $0x448] sm:$0xff]
      %v4092 = vld [vmem:[%s10 + $0x450] sm:$0xff]
      %v4093 = vld [vmem:[%s10 + $0x458] sm:$0xff]
      %v4094 = vld [vmem:[%s10 + $0x460] sm:$0xff]
      %v4095 = vld [vmem:[%s10 + $0x468] sm:$0xff]
      %v4096 = vld [vmem:[%s10 + $0x470] sm:$0xff]
      %v4097 = vld [vmem:[%s10 + $0x478] sm:$0xff]
      %v4098 = vld [vmem:[%s11] sm:$0xf]
      %v4099 = vpack.c.bf16 %v3939, %v3934
      %v4100 = vpack.c.bf16 %v3940, %v3935
      %v4101 = vpack.c.bf16 %v3941, %v3936
      %v4102 = vpack.c.bf16 %v3942, %v3937
      %v4103 = vpack.c.bf16 %v3943, %v3938
      %v4104 = vpack.c.bf16 %v3949, %v3944
      %v4105 = vpack.c.bf16 %v3950, %v3945
      %v4106 = vpack.c.bf16 %v3951, %v3946
      %v4107 = vpack.c.bf16 %v3952, %v3947
      %v4108 = vpack.c.bf16 %v3953, %v3948
      %v4110 = vperm.slane %v4098, 0
      %v4111 = vperm.slane %v4098, 1
      %v4112 = vperm.slane %v4098, 2
      %v4113 = vperm.slane %v4098, 3
      %v4262 = vunpack.c.l.b16 %v3954
      %v4263 = vunpack.c.h.b16 %v3954
      %v4264 = vunpack.c.l.b16 %v3955
      %v4265 = vunpack.c.h.b16 %v3955
      %v4266 = vunpack.c.l.b16 %v3956
      %v4267 = vunpack.c.h.b16 %v3956
      %v4268 = vunpack.c.l.b16 %v3957
      %v4269 = vunpack.c.h.b16 %v3957
      %v4270 = vunpack.c.l.b16 %v3958
      %v4271 = vunpack.c.h.b16 %v3958
      %v4272 = vunpack.c.l.b16 %v3959
      %v4273 = vunpack.c.h.b16 %v3959
      %v4274 = vunpack.c.l.b16 %v3960
      %v4275 = vunpack.c.h.b16 %v3960
      %v4276 = vunpack.c.l.b16 %v3961
      %v4277 = vunpack.c.h.b16 %v3961
      %v4278 = vunpack.c.l.b16 %v3962
      %v4279 = vunpack.c.h.b16 %v3962
      %v4280 = vunpack.c.l.b16 %v3963
      %v4281 = vunpack.c.h.b16 %v3963
      %v4282 = vunpack.c.l.b16 %v3964
      %v4283 = vunpack.c.h.b16 %v3964
      %v4284 = vunpack.c.l.b16 %v3965
      %v4285 = vunpack.c.h.b16 %v3965
      %v4286 = vunpack.c.l.b16 %v3966
      %v4287 = vunpack.c.h.b16 %v3966
      %v4288 = vunpack.c.l.b16 %v3967
      %v4289 = vunpack.c.h.b16 %v3967
      %v4290 = vunpack.c.l.b16 %v3968
      %v4291 = vunpack.c.h.b16 %v3968
      %v4292 = vunpack.c.l.b16 %v3969
      %v4293 = vunpack.c.h.b16 %v3969
      %v4294 = vunpack.c.l.b16 %v3970
      %v4295 = vunpack.c.h.b16 %v3970
      %v4296 = vunpack.c.l.b16 %v3971
      %v4297 = vunpack.c.h.b16 %v3971
      %v4298 = vunpack.c.l.b16 %v3972
      %v4299 = vunpack.c.h.b16 %v3972
      %v4300 = vunpack.c.l.b16 %v3973
      %v4301 = vunpack.c.h.b16 %v3973
      %v4302 = vunpack.c.l.b16 %v3974
      %v4303 = vunpack.c.h.b16 %v3974
      %v4304 = vunpack.c.l.b16 %v3975
      %v4305 = vunpack.c.h.b16 %v3975
      %v4306 = vunpack.c.l.b16 %v3976
      %v4307 = vunpack.c.h.b16 %v3976
      %v4308 = vunpack.c.l.b16 %v3977
      %v4309 = vunpack.c.h.b16 %v3977
      %v4310 = vunpack.c.l.b16 %v3978
      %v4311 = vunpack.c.h.b16 %v3978
      %v4312 = vunpack.c.l.b16 %v3979
      %v4313 = vunpack.c.h.b16 %v3979
      %v4314 = vunpack.c.l.b16 %v3980
      %v4315 = vunpack.c.h.b16 %v3980
      %v4316 = vunpack.c.l.b16 %v3981
      %v4317 = vunpack.c.h.b16 %v3981
      %v4318 = vunpack.c.l.b16 %v3982
      %v4319 = vunpack.c.h.b16 %v3982
      %v4320 = vunpack.c.l.b16 %v3983
      %v4321 = vunpack.c.h.b16 %v3983
      %v4322 = vunpack.c.l.b16 %v3984
      %v4323 = vunpack.c.h.b16 %v3984
      %v4324 = vunpack.c.l.b16 %v3985
      %v4325 = vunpack.c.h.b16 %v3985
      %v4326 = vunpack.c.l.b16 %v3986
      %v4327 = vunpack.c.h.b16 %v3986
      %v4328 = vunpack.c.l.b16 %v3987
      %v4329 = vunpack.c.h.b16 %v3987
      %v4330 = vunpack.c.l.b16 %v3988
      %v4331 = vunpack.c.h.b16 %v3988
      %v4332 = vunpack.c.l.b16 %v3989
      %v4333 = vunpack.c.h.b16 %v3989
      %v4334 = vunpack.c.l.b16 %v3990
      %v4335 = vunpack.c.h.b16 %v3990
      %v4336 = vunpack.c.l.b16 %v3991
      %v4337 = vunpack.c.h.b16 %v3991
      %v4338 = vunpack.c.l.b16 %v3992
      %v4339 = vunpack.c.h.b16 %v3992
      %v4340 = vunpack.c.l.b16 %v3993
      %v4341 = vunpack.c.h.b16 %v3993
      %v4342 = vunpack.c.l.b16 %v3994
      %v4343 = vunpack.c.h.b16 %v3994
      %v4344 = vunpack.c.l.b16 %v3995
      %v4345 = vunpack.c.h.b16 %v3995
      %v4346 = vunpack.c.l.b16 %v3996
      %v4347 = vunpack.c.h.b16 %v3996
      %v4348 = vunpack.c.l.b16 %v3997
      %v4349 = vunpack.c.h.b16 %v3997
      %v4350 = vunpack.c.l.b16 %v3998
      %v4351 = vunpack.c.h.b16 %v3998
      %v4352 = vunpack.c.l.b16 %v3999
      %v4353 = vunpack.c.h.b16 %v3999
      %v4354 = vunpack.c.l.b16 %v4000
      %v4355 = vunpack.c.h.b16 %v4000
      %v4356 = vunpack.c.l.b16 %v4001
      %v4357 = vunpack.c.h.b16 %v4001
      %v4358 = vunpack.c.l.b16 %v4002
      %v4359 = vunpack.c.h.b16 %v4002
      %v4360 = vunpack.c.l.b16 %v4003
      %v4361 = vunpack.c.h.b16 %v4003
      %v4362 = vunpack.c.l.b16 %v4004
      %v4363 = vunpack.c.h.b16 %v4004
      %v4364 = vunpack.c.l.b16 %v4005
      %v4365 = vunpack.c.h.b16 %v4005
      %v4366 = vunpack.c.l.b16 %v4006
      %v4367 = vunpack.c.h.b16 %v4006
      %v4368 = vunpack.c.l.b16 %v4007
      %v4369 = vunpack.c.h.b16 %v4007
      %v4370 = vunpack.c.l.b16 %v4008
      %v4371 = vunpack.c.h.b16 %v4008
      %v4372 = vunpack.c.l.b16 %v4009
      %v4373 = vunpack.c.h.b16 %v4009
      %v4374 = vunpack.c.l.b16 %v4010
      %v4375 = vunpack.c.h.b16 %v4010
      %v4376 = vunpack.c.l.b16 %v4011
      %v4377 = vunpack.c.h.b16 %v4011
      %v4378 = vunpack.c.l.b16 %v4012
      %v4379 = vunpack.c.h.b16 %v4012
      %v4380 = vunpack.c.l.b16 %v4013
      %v4381 = vunpack.c.h.b16 %v4013
      %v4382 = vunpack.c.l.b16 %v4014
      %v4383 = vunpack.c.h.b16 %v4014
      %v4384 = vunpack.c.l.b16 %v4015
      %v4385 = vunpack.c.h.b16 %v4015
      %v4386 = vunpack.c.l.b16 %v4016
      %v4387 = vunpack.c.h.b16 %v4016
      %v4388 = vunpack.c.l.b16 %v4017
      %v4389 = vunpack.c.h.b16 %v4017
      %v4390 = vunpack.c.l.b16 %v4018
      %v4391 = vunpack.c.h.b16 %v4018
      %v4392 = vunpack.c.l.b16 %v4019
      %v4393 = vunpack.c.h.b16 %v4019
      %v4394 = vunpack.c.l.b16 %v4020
      %v4395 = vunpack.c.h.b16 %v4020
      %v4396 = vunpack.c.l.b16 %v4021
      %v4397 = vunpack.c.h.b16 %v4021
      %v4398 = vunpack.c.l.b16 %v4022
      %v4399 = vunpack.c.h.b16 %v4022
      %v4400 = vunpack.c.l.b16 %v4023
      %v4401 = vunpack.c.h.b16 %v4023
      %v4402 = vunpack.c.l.b16 %v4024
      %v4403 = vunpack.c.h.b16 %v4024
      %v4404 = vunpack.c.l.b16 %v4025
      %v4405 = vunpack.c.h.b16 %v4025
      %v4406 = vunpack.c.l.b16 %v4026
      %v4407 = vunpack.c.h.b16 %v4026
      %v4408 = vunpack.c.l.b16 %v4027
      %v4409 = vunpack.c.h.b16 %v4027
      %v4410 = vunpack.c.l.b16 %v4028
      %v4411 = vunpack.c.h.b16 %v4028
      %v4412 = vunpack.c.l.b16 %v4029
      %v4413 = vunpack.c.h.b16 %v4029
      %v4414 = vunpack.c.l.b16 %v4030
      %v4415 = vunpack.c.h.b16 %v4030
      %v4416 = vunpack.c.l.b16 %v4031
      %v4417 = vunpack.c.h.b16 %v4031
      %v4418 = vunpack.c.l.b16 %v4032
      %v4419 = vunpack.c.h.b16 %v4032
      %v4420 = vunpack.c.l.b16 %v4033
      %v4421 = vunpack.c.h.b16 %v4033
      %v4422 = vunpack.c.l.b16 %v4034
      %v4423 = vunpack.c.h.b16 %v4034
      %v4424 = vunpack.c.l.b16 %v4035
      %v4425 = vunpack.c.h.b16 %v4035
      %v4426 = vunpack.c.l.b16 %v4036
      %v4427 = vunpack.c.h.b16 %v4036
      %v4428 = vunpack.c.l.b16 %v4037
      %v4429 = vunpack.c.h.b16 %v4037
      %v4430 = vunpack.c.l.b16 %v4038
      %v4431 = vunpack.c.h.b16 %v4038
      %v4432 = vunpack.c.l.b16 %v4039
      %v4433 = vunpack.c.h.b16 %v4039
      %v4434 = vunpack.c.l.b16 %v4040
      %v4435 = vunpack.c.h.b16 %v4040
      %v4436 = vunpack.c.l.b16 %v4041
      %v4437 = vunpack.c.h.b16 %v4041
      %v4438 = vunpack.c.l.b16 %v4042
      %v4439 = vunpack.c.h.b16 %v4042
      %v4440 = vunpack.c.l.b16 %v4043
      %v4441 = vunpack.c.h.b16 %v4043
      %v4442 = vunpack.c.l.b16 %v4044
      %v4443 = vunpack.c.h.b16 %v4044
      %v4444 = vunpack.c.l.b16 %v4045
      %v4445 = vunpack.c.h.b16 %v4045
      %v4446 = vunpack.c.l.b16 %v4046
      %v4447 = vunpack.c.h.b16 %v4046
      %v4448 = vunpack.c.l.b16 %v4047
      %v4449 = vunpack.c.h.b16 %v4047
      %v4450 = vunpack.c.l.b16 %v4048
      %v4451 = vunpack.c.h.b16 %v4048
      %v4452 = vunpack.c.l.b16 %v4049
      %v4453 = vunpack.c.h.b16 %v4049
      %v4454 = vunpack.c.l.b16 %v4050
      %v4455 = vunpack.c.h.b16 %v4050
      %v4456 = vunpack.c.l.b16 %v4051
      %v4457 = vunpack.c.h.b16 %v4051
      %v4458 = vunpack.c.l.b16 %v4052
      %v4459 = vunpack.c.h.b16 %v4052
      %v4460 = vunpack.c.l.b16 %v4053
      %v4461 = vunpack.c.h.b16 %v4053
      %v4462 = vunpack.c.l.b16 %v4054
      %v4463 = vunpack.c.h.b16 %v4054
      %v4464 = vunpack.c.l.b16 %v4055
      %v4465 = vunpack.c.h.b16 %v4055
      %v4466 = vunpack.c.l.b16 %v4056
      %v4467 = vunpack.c.h.b16 %v4056
      %v4468 = vunpack.c.l.b16 %v4057
      %v4469 = vunpack.c.h.b16 %v4057
      %v4470 = vunpack.c.l.b16 %v4058
      %v4471 = vunpack.c.h.b16 %v4058
      %v4472 = vunpack.c.l.b16 %v4059
      %v4473 = vunpack.c.h.b16 %v4059
      %v4474 = vunpack.c.l.b16 %v4060
      %v4475 = vunpack.c.h.b16 %v4060
      %v4476 = vunpack.c.l.b16 %v4061
      %v4477 = vunpack.c.h.b16 %v4061
      %v4478 = vunpack.c.l.b16 %v4062
      %v4479 = vunpack.c.h.b16 %v4062
      %v4480 = vunpack.c.l.b16 %v4063
      %v4481 = vunpack.c.h.b16 %v4063
      %v4482 = vunpack.c.l.b16 %v4064
      %v4483 = vunpack.c.h.b16 %v4064
      %v4484 = vunpack.c.l.b16 %v4065
      %v4485 = vunpack.c.h.b16 %v4065
      %v4486 = vunpack.c.l.b16 %v4066
      %v4487 = vunpack.c.h.b16 %v4066
      %v4488 = vunpack.c.l.b16 %v4067
      %v4489 = vunpack.c.h.b16 %v4067
      %v4490 = vunpack.c.l.b16 %v4068
      %v4491 = vunpack.c.h.b16 %v4068
      %v4492 = vunpack.c.l.b16 %v4069
      %v4493 = vunpack.c.h.b16 %v4069
      %v4494 = vunpack.c.l.b16 %v4070
      %v4495 = vunpack.c.h.b16 %v4070
      %v4496 = vunpack.c.l.b16 %v4071
      %v4497 = vunpack.c.h.b16 %v4071
      %v4498 = vunpack.c.l.b16 %v4072
      %v4499 = vunpack.c.h.b16 %v4072
      %v4500 = vunpack.c.l.b16 %v4073
      %v4501 = vunpack.c.h.b16 %v4073
      %v4502 = vunpack.c.l.b16 %v4074
      %v4503 = vunpack.c.h.b16 %v4074
      %v4504 = vunpack.c.l.b16 %v4075
      %v4505 = vunpack.c.h.b16 %v4075
      %v4506 = vunpack.c.l.b16 %v4076
      %v4507 = vunpack.c.h.b16 %v4076
      %v4508 = vunpack.c.l.b16 %v4077
      %v4509 = vunpack.c.h.b16 %v4077
      %v4510 = vunpack.c.l.b16 %v4078
      %v4511 = vunpack.c.h.b16 %v4078
      %v4512 = vunpack.c.l.b16 %v4079
      %v4513 = vunpack.c.h.b16 %v4079
      %v4514 = vunpack.c.l.b16 %v4080
      %v4515 = vunpack.c.h.b16 %v4080
      %v4516 = vunpack.c.l.b16 %v4081
      %v4517 = vunpack.c.h.b16 %v4081
      %v4518 = vunpack.c.l.b16 %v4082
      %v4519 = vunpack.c.h.b16 %v4082
      %v4520 = vunpack.c.l.b16 %v4083
      %v4521 = vunpack.c.h.b16 %v4083
      %v4522 = vunpack.c.l.b16 %v4084
      %v4523 = vunpack.c.h.b16 %v4084
      %v4524 = vunpack.c.l.b16 %v4085
      %v4525 = vunpack.c.h.b16 %v4085
      %v4526 = vunpack.c.l.b16 %v4086
      %v4527 = vunpack.c.h.b16 %v4086
      %v4528 = vunpack.c.l.b16 %v4087
      %v4529 = vunpack.c.h.b16 %v4087
      %v4530 = vunpack.c.l.b16 %v4088
      %v4531 = vunpack.c.h.b16 %v4088
      %v4532 = vunpack.c.l.b16 %v4089
      %v4533 = vunpack.c.h.b16 %v4089
      %v4534 = vunpack.c.l.b16 %v4090
      %v4535 = vunpack.c.h.b16 %v4090
      %v4536 = vunpack.c.l.b16 %v4091
      %v4537 = vunpack.c.h.b16 %v4091
      %v4538 = vunpack.c.l.b16 %v4092
      %v4539 = vunpack.c.h.b16 %v4092
      %v4540 = vunpack.c.l.b16 %v4093
      %v4541 = vunpack.c.h.b16 %v4093
      %v4542 = vunpack.c.l.b16 %v4094
      %v4543 = vunpack.c.h.b16 %v4094
      %v4544 = vunpack.c.l.b16 %v4095
      %v4545 = vunpack.c.h.b16 %v4095
      %v4546 = vunpack.c.l.b16 %v4096
      %v4547 = vunpack.c.h.b16 %v4096
      %v4548 = vunpack.c.l.b16 %v4097
      %v4549 = vunpack.c.h.b16 %v4097
      %v4550 = vpack.c.b16 %v4266, %v4262
      %v4551 = vpack.c.b16 %v4267, %v4263
      %v4552 = vpack.c.b16 %v4268, %v4264
      %v4553 = vpack.c.b16 %v4269, %v4265
      %v4554 = vpack.c.b16 %v4274, %v4270
      %v4555 = vpack.c.b16 %v4275, %v4271
      %v4556 = vpack.c.b16 %v4276, %v4272
      %v4557 = vpack.c.b16 %v4277, %v4273
      %v4558 = vpack.c.b16 %v4282, %v4278
      %v4559 = vpack.c.b16 %v4283, %v4279
      %v4560 = vpack.c.b16 %v4284, %v4280
      %v4561 = vpack.c.b16 %v4285, %v4281
      %v4562 = vpack.c.b16 %v4290, %v4286
      %v4563 = vpack.c.b16 %v4291, %v4287
      %v4564 = vpack.c.b16 %v4292, %v4288
      %v4565 = vpack.c.b16 %v4293, %v4289
      %v4566 = vpack.c.b16 %v4298, %v4294
      %v4567 = vpack.c.b16 %v4299, %v4295
      %v4568 = vpack.c.b16 %v4300, %v4296
      %v4569 = vpack.c.b16 %v4301, %v4297
      %v4570 = vpack.c.b16 %v4306, %v4302
      %v4571 = vpack.c.b16 %v4307, %v4303
      %v4572 = vpack.c.b16 %v4308, %v4304
      %v4573 = vpack.c.b16 %v4309, %v4305
      %v4574 = vpack.c.b16 %v4314, %v4310
      %v4575 = vpack.c.b16 %v4315, %v4311
      %v4576 = vpack.c.b16 %v4316, %v4312
      %v4577 = vpack.c.b16 %v4317, %v4313
      %v4578 = vpack.c.b16 %v4322, %v4318
      %v4579 = vpack.c.b16 %v4323, %v4319
      %v4580 = vpack.c.b16 %v4324, %v4320
      %v4581 = vpack.c.b16 %v4325, %v4321
      %v4582 = vpack.c.b16 %v4330, %v4326
      %v4583 = vpack.c.b16 %v4331, %v4327
      %v4584 = vpack.c.b16 %v4332, %v4328
      %v4585 = vpack.c.b16 %v4333, %v4329
      %v4586 = vpack.c.b16 %v4338, %v4334
      %v4587 = vpack.c.b16 %v4339, %v4335
      %v4588 = vpack.c.b16 %v4340, %v4336
      %v4589 = vpack.c.b16 %v4341, %v4337
      %v4590 = vpack.c.b16 %v4346, %v4342
      %v4591 = vpack.c.b16 %v4347, %v4343
      %v4592 = vpack.c.b16 %v4348, %v4344
      %v4593 = vpack.c.b16 %v4349, %v4345
      %v4594 = vpack.c.b16 %v4354, %v4350
      %v4595 = vpack.c.b16 %v4355, %v4351
      %v4596 = vpack.c.b16 %v4356, %v4352
      %v4597 = vpack.c.b16 %v4357, %v4353
      %v4598 = vpack.c.b16 %v4362, %v4358
      %v4599 = vpack.c.b16 %v4363, %v4359
      %v4600 = vpack.c.b16 %v4364, %v4360
      %v4601 = vpack.c.b16 %v4365, %v4361
      %v4602 = vpack.c.b16 %v4370, %v4366
      %v4603 = vpack.c.b16 %v4371, %v4367
      %v4604 = vpack.c.b16 %v4372, %v4368
      %v4605 = vpack.c.b16 %v4373, %v4369
      %v4606 = vpack.c.b16 %v4378, %v4374
      %v4607 = vpack.c.b16 %v4379, %v4375
      %v4608 = vpack.c.b16 %v4380, %v4376
      %v4609 = vpack.c.b16 %v4381, %v4377
      %v4610 = vpack.c.b16 %v4386, %v4382
      %v4611 = vpack.c.b16 %v4387, %v4383
      %v4612 = vpack.c.b16 %v4388, %v4384
      %v4613 = vpack.c.b16 %v4389, %v4385
      %v4614 = vpack.c.b16 %v4394, %v4390
      %v4615 = vpack.c.b16 %v4395, %v4391
      %v4616 = vpack.c.b16 %v4396, %v4392
      %v4617 = vpack.c.b16 %v4397, %v4393
      %v4618 = vpack.c.b16 %v4402, %v4398
      %v4619 = vpack.c.b16 %v4403, %v4399
      %v4620 = vpack.c.b16 %v4404, %v4400
      %v4621 = vpack.c.b16 %v4405, %v4401
      %v4622 = vpack.c.b16 %v4410, %v4406
      %v4623 = vpack.c.b16 %v4411, %v4407
      %v4624 = vpack.c.b16 %v4412, %v4408
      %v4625 = vpack.c.b16 %v4413, %v4409
      %v4626 = vpack.c.b16 %v4418, %v4414
      %v4627 = vpack.c.b16 %v4419, %v4415
      %v4628 = vpack.c.b16 %v4420, %v4416
      %v4629 = vpack.c.b16 %v4421, %v4417
      %v4630 = vpack.c.b16 %v4426, %v4422
      %v4631 = vpack.c.b16 %v4427, %v4423
      %v4632 = vpack.c.b16 %v4428, %v4424
      %v4633 = vpack.c.b16 %v4429, %v4425
      %v4634 = vpack.c.b16 %v4434, %v4430
      %v4635 = vpack.c.b16 %v4435, %v4431
      %v4636 = vpack.c.b16 %v4436, %v4432
      %v4637 = vpack.c.b16 %v4437, %v4433
      %v4638 = vpack.c.b16 %v4442, %v4438
      %v4639 = vpack.c.b16 %v4443, %v4439
      %v4640 = vpack.c.b16 %v4444, %v4440
      %v4641 = vpack.c.b16 %v4445, %v4441
      %v4642 = vpack.c.b16 %v4450, %v4446
      %v4643 = vpack.c.b16 %v4451, %v4447
      %v4644 = vpack.c.b16 %v4452, %v4448
      %v4645 = vpack.c.b16 %v4453, %v4449
      %v4646 = vpack.c.b16 %v4458, %v4454
      %v4647 = vpack.c.b16 %v4459, %v4455
      %v4648 = vpack.c.b16 %v4460, %v4456
      %v4649 = vpack.c.b16 %v4461, %v4457
      %v4650 = vpack.c.b16 %v4466, %v4462
      %v4651 = vpack.c.b16 %v4467, %v4463
      %v4652 = vpack.c.b16 %v4468, %v4464
      %v4653 = vpack.c.b16 %v4469, %v4465
      %v4654 = vpack.c.b16 %v4474, %v4470
      %v4655 = vpack.c.b16 %v4475, %v4471
      %v4656 = vpack.c.b16 %v4476, %v4472
      %v4657 = vpack.c.b16 %v4477, %v4473
      %v4658 = vpack.c.b16 %v4482, %v4478
      %v4659 = vpack.c.b16 %v4483, %v4479
      %v4660 = vpack.c.b16 %v4484, %v4480
      %v4661 = vpack.c.b16 %v4485, %v4481
      %v4662 = vpack.c.b16 %v4490, %v4486
      %v4663 = vpack.c.b16 %v4491, %v4487
      %v4664 = vpack.c.b16 %v4492, %v4488
      %v4665 = vpack.c.b16 %v4493, %v4489
      %v4666 = vpack.c.b16 %v4498, %v4494
      %v4667 = vpack.c.b16 %v4499, %v4495
      %v4668 = vpack.c.b16 %v4500, %v4496
      %v4669 = vpack.c.b16 %v4501, %v4497
      %v4670 = vpack.c.b16 %v4506, %v4502
      %v4671 = vpack.c.b16 %v4507, %v4503
      %v4672 = vpack.c.b16 %v4508, %v4504
      %v4673 = vpack.c.b16 %v4509, %v4505
      %v4674 = vpack.c.b16 %v4514, %v4510
      %v4675 = vpack.c.b16 %v4515, %v4511
      %v4676 = vpack.c.b16 %v4516, %v4512
      %v4677 = vpack.c.b16 %v4517, %v4513
      %v4678 = vpack.c.b16 %v4522, %v4518
      %v4679 = vpack.c.b16 %v4523, %v4519
      %v4680 = vpack.c.b16 %v4524, %v4520
      %v4681 = vpack.c.b16 %v4525, %v4521
      %v4682 = vpack.c.b16 %v4530, %v4526
      %v4683 = vpack.c.b16 %v4531, %v4527
      %v4684 = vpack.c.b16 %v4532, %v4528
      %v4685 = vpack.c.b16 %v4533, %v4529
      %v4686 = vpack.c.b16 %v4538, %v4534
      %v4687 = vpack.c.b16 %v4539, %v4535
      %v4688 = vpack.c.b16 %v4540, %v4536
      %v4689 = vpack.c.b16 %v4541, %v4537
      %v4690 = vpack.c.b16 %v4546, %v4542
      %v4691 = vpack.c.b16 %v4547, %v4543
      %v4692 = vpack.c.b16 %v4548, %v4544
      %v4693 = vpack.c.b16 %v4549, %v4545
      %vm4834 = vcmask 515072
      %v4836 = vsel %vm4834, %v4103, 0
      %v4839 = vsel %vm4834, %v4108, 0
      %vm4841 = vcmask 1047552
      %v4842 = vsel %vm1444, 4294967295, 65535
      %v4843 = vsel %vm4841, %v4842, 0
      %v4845 = vand.u32 %v4690, %v4843
      %v4848 = vand.u32 %v4691, %v4843
      %v4851 = vand.u32 %v4692, %v4843
      %v4854 = vand.u32 %v4693, %v4843
      %4856 = vmatpush.bf16.msra.mxu0 %v4578
      %4857 = vmatpush.bf16.msra.mxu0 %v4574
      %4858 = vmatpush.bf16.msra.mxu0 %v4570
      %4859 = vmatpush.bf16.msra.mxu0 %v4566
      %4860 = vmatpush.bf16.msra.mxu0 %v4562
      %4861 = vmatpush.bf16.msra.mxu0 %v4558
      %4862 = vmatpush.bf16.msra.mxu0 %v4554
      %4863 = vmatpush.bf16.msra.mxu0 %v4550
      %4864 = vmatmul.bf16.gmra.mxu0 %v4099
      %v4865 = vpop.f32.mrf.mxu0
      %v4866 = vadd.f32 %v4110, %v4865
      %v4867 = vpop.f32.mrf.mxu0
      %v4868 = vadd.f32 %v4110, %v4867
      %4869 = vmatmul.bf16.gmra.mxu0 %v4104
      %v4870 = vpop.f32.mrf.mxu0
      %v4871 = vadd.f32 %v4110, %v4870
      %v4872 = vpop.f32.mrf.mxu0
      %v4873 = vadd.f32 %v4110, %v4872
      %4874 = vdwg.mxu0
      %4875 = vmatpush.bf16.msra.mxu0 %v4610
      %4876 = vmatpush.bf16.msra.mxu0 %v4606
      %4877 = vmatpush.bf16.msra.mxu0 %v4602
      %4878 = vmatpush.bf16.msra.mxu0 %v4598
      %4879 = vmatpush.bf16.msra.mxu0 %v4594
      %4880 = vmatpush.bf16.msra.mxu0 %v4590
      %4881 = vmatpush.bf16.msra.mxu0 %v4586
      %4882 = vmatpush.bf16.msra.mxu0 %v4582
      %4883 = vmatmul.bf16.gmra.mxu0 %v4100
      %v4884 = vpop.f32.mrf.mxu0
      %v4885 = vadd.f32 %v4866, %v4884
      %v4886 = vpop.f32.mrf.mxu0
      %v4887 = vadd.f32 %v4868, %v4886
      %4888 = vmatmul.bf16.gmra.mxu0 %v4105
      %v4889 = vpop.f32.mrf.mxu0
      %v4890 = vadd.f32 %v4871, %v4889
      %v4891 = vpop.f32.mrf.mxu0
      %v4892 = vadd.f32 %v4873, %v4891
      %4893 = vdwg.mxu0
      %4894 = vmatpush.bf16.msra.mxu0 %v4642
      %4895 = vmatpush.bf16.msra.mxu0 %v4638
      %4896 = vmatpush.bf16.msra.mxu0 %v4634
      %4897 = vmatpush.bf16.msra.mxu0 %v4630
      %4898 = vmatpush.bf16.msra.mxu0 %v4626
      %4899 = vmatpush.bf16.msra.mxu0 %v4622
      %4900 = vmatpush.bf16.msra.mxu0 %v4618
      %4901 = vmatpush.bf16.msra.mxu0 %v4614
      %4902 = vmatmul.bf16.gmra.mxu0 %v4101
      %v4903 = vpop.f32.mrf.mxu0
      %v4904 = vadd.f32 %v4885, %v4903
      %v4905 = vpop.f32.mrf.mxu0
      %v4906 = vadd.f32 %v4887, %v4905
      %4907 = vmatmul.bf16.gmra.mxu0 %v4106
      %v4908 = vpop.f32.mrf.mxu0
      %v4909 = vadd.f32 %v4890, %v4908
      %v4910 = vpop.f32.mrf.mxu0
      %v4911 = vadd.f32 %v4892, %v4910
      %4912 = vdwg.mxu0
      %4913 = vmatpush.bf16.msra.mxu0 %v4674
      %4914 = vmatpush.bf16.msra.mxu0 %v4670
      %4915 = vmatpush.bf16.msra.mxu0 %v4666
      %4916 = vmatpush.bf16.msra.mxu0 %v4662
      %4917 = vmatpush.bf16.msra.mxu0 %v4658
      %4918 = vmatpush.bf16.msra.mxu0 %v4654
      %4919 = vmatpush.bf16.msra.mxu0 %v4650
      %4920 = vmatpush.bf16.msra.mxu0 %v4646
      %4921 = vmatmul.bf16.gmra.mxu0 %v4102
      %v4922 = vpop.f32.mrf.mxu0
      %v4923 = vadd.f32 %v4904, %v4922
      %v4924 = vpop.f32.mrf.mxu0
      %v4925 = vadd.f32 %v4906, %v4924
      %4926 = vmatmul.bf16.gmra.mxu0 %v4107
      %v4927 = vpop.f32.mrf.mxu0
      %v4928 = vadd.f32 %v4909, %v4927
      %v4929 = vpop.f32.mrf.mxu0
      %v4930 = vadd.f32 %v4911, %v4929
      %4931 = vdwg.mxu0
      %4932 = vmatpush.bf16.msra.mxu0 0
      %4933 = vmatpush.bf16.msra.mxu0 0
      %4934 = vmatpush.bf16.msra.mxu0 0
      %4935 = vmatpush.bf16.msra.mxu0 0
      %4936 = vmatpush.bf16.msra.mxu0 %v4845
      %4937 = vmatpush.bf16.msra.mxu0 %v4686
      %4938 = vmatpush.bf16.msra.mxu0 %v4682
      %4939 = vmatpush.bf16.msra.mxu0 %v4678
      %4940 = vmatmul.bf16.gmra.mxu0 %v4836
      %v4941 = vpop.f32.mrf.mxu0
      %v4942 = vadd.f32 %v4923, %v4941
      %v4943 = vpop.f32.mrf.mxu0
      %v4944 = vadd.f32 %v4925, %v4943
      %4945 = vmatmul.bf16.gmra.mxu0 %v4839
      %v4946 = vpop.f32.mrf.mxu0
      %v4947 = vadd.f32 %v4928, %v4946
      %v4948 = vpop.f32.mrf.mxu0
      %v4949 = vadd.f32 %v4930, %v4948
      %4950 = vdwg.mxu0
      %4951 = vmatpush.bf16.msra.mxu0 %v4579
      %4952 = vmatpush.bf16.msra.mxu0 %v4575
      %4953 = vmatpush.bf16.msra.mxu0 %v4571
      %4954 = vmatpush.bf16.msra.mxu0 %v4567
      %4955 = vmatpush.bf16.msra.mxu0 %v4563
      %4956 = vmatpush.bf16.msra.mxu0 %v4559
      %4957 = vmatpush.bf16.msra.mxu0 %v4555
      %4958 = vmatpush.bf16.msra.mxu0 %v4551
      %4959 = vmatmul.bf16.gmra.mxu0 %v4099
      %v4960 = vpop.f32.mrf.mxu0
      %v4961 = vadd.f32 %v4111, %v4960
      %v4962 = vpop.f32.mrf.mxu0
      %v4963 = vadd.f32 %v4111, %v4962
      %4964 = vmatmul.bf16.gmra.mxu0 %v4104
      %v4965 = vpop.f32.mrf.mxu0
      %v4966 = vadd.f32 %v4111, %v4965
      %v4967 = vpop.f32.mrf.mxu0
      %v4968 = vadd.f32 %v4111, %v4967
      %4969 = vdwg.mxu0
      %4970 = vmatpush.bf16.msra.mxu0 %v4611
      %4971 = vmatpush.bf16.msra.mxu0 %v4607
      %4972 = vmatpush.bf16.msra.mxu0 %v4603
      %4973 = vmatpush.bf16.msra.mxu0 %v4599
      %4974 = vmatpush.bf16.msra.mxu0 %v4595
      %4975 = vmatpush.bf16.msra.mxu0 %v4591
      %4976 = vmatpush.bf16.msra.mxu0 %v4587
      %4977 = vmatpush.bf16.msra.mxu0 %v4583
      %4978 = vmatmul.bf16.gmra.mxu0 %v4100
      %v4979 = vpop.f32.mrf.mxu0
      %v4980 = vadd.f32 %v4961, %v4979
      %v4981 = vpop.f32.mrf.mxu0
      %v4982 = vadd.f32 %v4963, %v4981
      %4983 = vmatmul.bf16.gmra.mxu0 %v4105
      %v4984 = vpop.f32.mrf.mxu0
      %v4985 = vadd.f32 %v4966, %v4984
      %v4986 = vpop.f32.mrf.mxu0
      %v4987 = vadd.f32 %v4968, %v4986
      %4988 = vdwg.mxu0
      %4989 = vmatpush.bf16.msra.mxu0 %v4643
      %4990 = vmatpush.bf16.msra.mxu0 %v4639
      %4991 = vmatpush.bf16.msra.mxu0 %v4635
      %4992 = vmatpush.bf16.msra.mxu0 %v4631
      %4993 = vmatpush.bf16.msra.mxu0 %v4627
      %4994 = vmatpush.bf16.msra.mxu0 %v4623
      %4995 = vmatpush.bf16.msra.mxu0 %v4619
      %4996 = vmatpush.bf16.msra.mxu0 %v4615
      %4997 = vmatmul.bf16.gmra.mxu0 %v4101
      %v4998 = vpop.f32.mrf.mxu0
      %v4999 = vadd.f32 %v4980, %v4998
      %v5000 = vpop.f32.mrf.mxu0
      %v5001 = vadd.f32 %v4982, %v5000
      %5002 = vmatmul.bf16.gmra.mxu0 %v4106
      %v5003 = vpop.f32.mrf.mxu0
      %v5004 = vadd.f32 %v4985, %v5003
      %v5005 = vpop.f32.mrf.mxu0
      %v5006 = vadd.f32 %v4987, %v5005
      %5007 = vdwg.mxu0
      %5008 = vmatpush.bf16.msra.mxu0 %v4675
      %5009 = vmatpush.bf16.msra.mxu0 %v4671
      %5010 = vmatpush.bf16.msra.mxu0 %v4667
      %5011 = vmatpush.bf16.msra.mxu0 %v4663
      %5012 = vmatpush.bf16.msra.mxu0 %v4659
      %5013 = vmatpush.bf16.msra.mxu0 %v4655
      %5014 = vmatpush.bf16.msra.mxu0 %v4651
      %5015 = vmatpush.bf16.msra.mxu0 %v4647
      %5016 = vmatmul.bf16.gmra.mxu0 %v4102
      %v5017 = vpop.f32.mrf.mxu0
      %v5018 = vadd.f32 %v4999, %v5017
      %v5019 = vpop.f32.mrf.mxu0
      %v5020 = vadd.f32 %v5001, %v5019
      %5021 = vmatmul.bf16.gmra.mxu0 %v4107
      %v5022 = vpop.f32.mrf.mxu0
      %v5023 = vadd.f32 %v5004, %v5022
      %v5024 = vpop.f32.mrf.mxu0
      %v5025 = vadd.f32 %v5006, %v5024
      %5026 = vdwg.mxu0
      %5027 = vmatpush.bf16.msra.mxu0 0
      %5028 = vmatpush.bf16.msra.mxu0 0
      %5029 = vmatpush.bf16.msra.mxu0 0
      %5030 = vmatpush.bf16.msra.mxu0 0
      %5031 = vmatpush.bf16.msra.mxu0 %v4848
      %5032 = vmatpush.bf16.msra.mxu0 %v4687
      %5033 = vmatpush.bf16.msra.mxu0 %v4683
      %5034 = vmatpush.bf16.msra.mxu0 %v4679
      %5035 = vmatmul.bf16.gmra.mxu0 %v4836
      %v5036 = vpop.f32.mrf.mxu0
      %v5037 = vadd.f32 %v5018, %v5036
      %v5038 = vpop.f32.mrf.mxu0
      %v5039 = vadd.f32 %v5020, %v5038
      %5040 = vmatmul.bf16.gmra.mxu0 %v4839
      %v5041 = vpop.f32.mrf.mxu0
      %v5042 = vadd.f32 %v5023, %v5041
      %v5043 = vpop.f32.mrf.mxu0
      %v5044 = vadd.f32 %v5025, %v5043
      %5045 = vdwg.mxu0
      %5046 = vmatpush.bf16.msra.mxu0 %v4580
      %5047 = vmatpush.bf16.msra.mxu0 %v4576
      %5048 = vmatpush.bf16.msra.mxu0 %v4572
      %5049 = vmatpush.bf16.msra.mxu0 %v4568
      %5050 = vmatpush.bf16.msra.mxu0 %v4564
      %5051 = vmatpush.bf16.msra.mxu0 %v4560
      %5052 = vmatpush.bf16.msra.mxu0 %v4556
      %5053 = vmatpush.bf16.msra.mxu0 %v4552
      %5054 = vmatmul.bf16.gmra.mxu0 %v4099
      %v5055 = vpop.f32.mrf.mxu0
      %v5056 = vadd.f32 %v4112, %v5055
      %v5057 = vpop.f32.mrf.mxu0
      %v5058 = vadd.f32 %v4112, %v5057
      %5059 = vmatmul.bf16.gmra.mxu0 %v4104
      %v5060 = vpop.f32.mrf.mxu0
      %v5061 = vadd.f32 %v4112, %v5060
      %v5062 = vpop.f32.mrf.mxu0
      %v5063 = vadd.f32 %v4112, %v5062
      %5064 = vdwg.mxu0
      %5065 = vmatpush.bf16.msra.mxu0 %v4612
      %5066 = vmatpush.bf16.msra.mxu0 %v4608
      %5067 = vmatpush.bf16.msra.mxu0 %v4604
      %5068 = vmatpush.bf16.msra.mxu0 %v4600
      %5069 = vmatpush.bf16.msra.mxu0 %v4596
      %5070 = vmatpush.bf16.msra.mxu0 %v4592
      %5071 = vmatpush.bf16.msra.mxu0 %v4588
      %5072 = vmatpush.bf16.msra.mxu0 %v4584
      %5073 = vmatmul.bf16.gmra.mxu0 %v4100
      %v5074 = vpop.f32.mrf.mxu0
      %v5075 = vadd.f32 %v5056, %v5074
      %v5076 = vpop.f32.mrf.mxu0
      %v5077 = vadd.f32 %v5058, %v5076
      %5078 = vmatmul.bf16.gmra.mxu0 %v4105
      %v5079 = vpop.f32.mrf.mxu0
      %v5080 = vadd.f32 %v5061, %v5079
      %v5081 = vpop.f32.mrf.mxu0
      %v5082 = vadd.f32 %v5063, %v5081
      %5083 = vdwg.mxu0
      %5084 = vmatpush.bf16.msra.mxu0 %v4644
      %5085 = vmatpush.bf16.msra.mxu0 %v4640
      %5086 = vmatpush.bf16.msra.mxu0 %v4636
      %5087 = vmatpush.bf16.msra.mxu0 %v4632
      %5088 = vmatpush.bf16.msra.mxu0 %v4628
      %5089 = vmatpush.bf16.msra.mxu0 %v4624
      %5090 = vmatpush.bf16.msra.mxu0 %v4620
      %5091 = vmatpush.bf16.msra.mxu0 %v4616
      %5092 = vmatmul.bf16.gmra.mxu0 %v4101
      %v5093 = vpop.f32.mrf.mxu0
      %v5094 = vadd.f32 %v5075, %v5093
      %v5095 = vpop.f32.mrf.mxu0
      %v5096 = vadd.f32 %v5077, %v5095
      %5097 = vmatmul.bf16.gmra.mxu0 %v4106
      %v5098 = vpop.f32.mrf.mxu0
      %v5099 = vadd.f32 %v5080, %v5098
      %v5100 = vpop.f32.mrf.mxu0
      %v5101 = vadd.f32 %v5082, %v5100
      %5102 = vdwg.mxu0
      %5103 = vmatpush.bf16.msra.mxu0 %v4676
      %5104 = vmatpush.bf16.msra.mxu0 %v4672
      %5105 = vmatpush.bf16.msra.mxu0 %v4668
      %5106 = vmatpush.bf16.msra.mxu0 %v4664
      %5107 = vmatpush.bf16.msra.mxu0 %v4660
      %5108 = vmatpush.bf16.msra.mxu0 %v4656
      %5109 = vmatpush.bf16.msra.mxu0 %v4652
      %5110 = vmatpush.bf16.msra.mxu0 %v4648
      %5111 = vmatmul.bf16.gmra.mxu0 %v4102
      %v5112 = vpop.f32.mrf.mxu0
      %v5113 = vadd.f32 %v5094, %v5112
      %v5114 = vpop.f32.mrf.mxu0
      %v5115 = vadd.f32 %v5096, %v5114
      %5116 = vmatmul.bf16.gmra.mxu0 %v4107
      %v5117 = vpop.f32.mrf.mxu0
      %v5118 = vadd.f32 %v5099, %v5117
      %v5119 = vpop.f32.mrf.mxu0
      %v5120 = vadd.f32 %v5101, %v5119
      %5121 = vdwg.mxu0
      %5122 = vmatpush.bf16.msra.mxu0 0
      %5123 = vmatpush.bf16.msra.mxu0 0
      %5124 = vmatpush.bf16.msra.mxu0 0
      %5125 = vmatpush.bf16.msra.mxu0 0
      %5126 = vmatpush.bf16.msra.mxu0 %v4851
      %5127 = vmatpush.bf16.msra.mxu0 %v4688
      %5128 = vmatpush.bf16.msra.mxu0 %v4684
      %5129 = vmatpush.bf16.msra.mxu0 %v4680
      %5130 = vmatmul.bf16.gmra.mxu0 %v4836
      %v5131 = vpop.f32.mrf.mxu0
      %v5132 = vadd.f32 %v5113, %v5131
      %v5133 = vpop.f32.mrf.mxu0
      %v5134 = vadd.f32 %v5115, %v5133
      %5135 = vmatmul.bf16.gmra.mxu0 %v4839
      %v5136 = vpop.f32.mrf.mxu0
      %v5137 = vadd.f32 %v5118, %v5136
      %v5138 = vpop.f32.mrf.mxu0
      %v5139 = vadd.f32 %v5120, %v5138
      %5140 = vdwg.mxu0
      %5141 = vmatpush.bf16.msra.mxu0 %v4581
      %5142 = vmatpush.bf16.msra.mxu0 %v4577
      %5143 = vmatpush.bf16.msra.mxu0 %v4573
      %5144 = vmatpush.bf16.msra.mxu0 %v4569
      %5145 = vmatpush.bf16.msra.mxu0 %v4565
      %5146 = vmatpush.bf16.msra.mxu0 %v4561
      %5147 = vmatpush.bf16.msra.mxu0 %v4557
      %5148 = vmatpush.bf16.msra.mxu0 %v4553
      %5149 = vmatmul.bf16.gmra.mxu0 %v4099
      %v5150 = vpop.f32.mrf.mxu0
      %v5151 = vadd.f32 %v4113, %v5150
      %v5152 = vpop.f32.mrf.mxu0
      %v5153 = vadd.f32 %v4113, %v5152
      %5154 = vmatmul.bf16.gmra.mxu0 %v4104
      %v5155 = vpop.f32.mrf.mxu0
      %v5156 = vadd.f32 %v4113, %v5155
      %v5157 = vpop.f32.mrf.mxu0
      %v5158 = vadd.f32 %v4113, %v5157
      %5159 = vdwg.mxu0
      %5160 = vmatpush.bf16.msra.mxu0 %v4613
      %5161 = vmatpush.bf16.msra.mxu0 %v4609
      %5162 = vmatpush.bf16.msra.mxu0 %v4605
      %5163 = vmatpush.bf16.msra.mxu0 %v4601
      %5164 = vmatpush.bf16.msra.mxu0 %v4597
      %5165 = vmatpush.bf16.msra.mxu0 %v4593
      %5166 = vmatpush.bf16.msra.mxu0 %v4589
      %5167 = vmatpush.bf16.msra.mxu0 %v4585
      %5168 = vmatmul.bf16.gmra.mxu0 %v4100
      %v5169 = vpop.f32.mrf.mxu0
      %v5170 = vadd.f32 %v5151, %v5169
      %v5171 = vpop.f32.mrf.mxu0
      %v5172 = vadd.f32 %v5153, %v5171
      %5173 = vmatmul.bf16.gmra.mxu0 %v4105
      %v5174 = vpop.f32.mrf.mxu0
      %v5175 = vadd.f32 %v5156, %v5174
      %v5176 = vpop.f32.mrf.mxu0
      %v5177 = vadd.f32 %v5158, %v5176
      %5178 = vdwg.mxu0
      %5179 = vmatpush.bf16.msra.mxu0 %v4645
      %5180 = vmatpush.bf16.msra.mxu0 %v4641
      %5181 = vmatpush.bf16.msra.mxu0 %v4637
      %5182 = vmatpush.bf16.msra.mxu0 %v4633
      %5183 = vmatpush.bf16.msra.mxu0 %v4629
      %5184 = vmatpush.bf16.msra.mxu0 %v4625
      %5185 = vmatpush.bf16.msra.mxu0 %v4621
      %5186 = vmatpush.bf16.msra.mxu0 %v4617
      %5187 = vmatmul.bf16.gmra.mxu0 %v4101
      %v5188 = vpop.f32.mrf.mxu0
      %v5189 = vadd.f32 %v5170, %v5188
      %v5190 = vpop.f32.mrf.mxu0
      %v5191 = vadd.f32 %v5172, %v5190
      %5192 = vmatmul.bf16.gmra.mxu0 %v4106
      %v5193 = vpop.f32.mrf.mxu0
      %v5194 = vadd.f32 %v5175, %v5193
      %v5195 = vpop.f32.mrf.mxu0
      %v5196 = vadd.f32 %v5177, %v5195
      %5197 = vdwg.mxu0
      %5198 = vmatpush.bf16.msra.mxu0 %v4677
      %5199 = vmatpush.bf16.msra.mxu0 %v4673
      %5200 = vmatpush.bf16.msra.mxu0 %v4669
      %5201 = vmatpush.bf16.msra.mxu0 %v4665
      %5202 = vmatpush.bf16.msra.mxu0 %v4661
      %5203 = vmatpush.bf16.msra.mxu0 %v4657
      %5204 = vmatpush.bf16.msra.mxu0 %v4653
      %5205 = vmatpush.bf16.msra.mxu0 %v4649
      %5206 = vmatmul.bf16.gmra.mxu0 %v4102
      %v5207 = vpop.f32.mrf.mxu0
      %v5208 = vadd.f32 %v5189, %v5207
      %v5209 = vpop.f32.mrf.mxu0
      %v5210 = vadd.f32 %v5191, %v5209
      %5211 = vmatmul.bf16.gmra.mxu0 %v4107
      %v5212 = vpop.f32.mrf.mxu0
      %v5213 = vadd.f32 %v5194, %v5212
      %v5214 = vpop.f32.mrf.mxu0
      %v5215 = vadd.f32 %v5196, %v5214
      %5216 = vdwg.mxu0
      %5217 = vmatpush.bf16.msra.mxu0 0
      %5218 = vmatpush.bf16.msra.mxu0 0
      %5219 = vmatpush.bf16.msra.mxu0 0
      %5220 = vmatpush.bf16.msra.mxu0 0
      %5221 = vmatpush.bf16.msra.mxu0 %v4854
      %5222 = vmatpush.bf16.msra.mxu0 %v4689
      %5223 = vmatpush.bf16.msra.mxu0 %v4685
      %5224 = vmatpush.bf16.msra.mxu0 %v4681
      %5225 = vmatmul.bf16.gmra.mxu0 %v4836
      %v5226 = vpop.f32.mrf.mxu0
      %v5227 = vadd.f32 %v5208, %v5226
      %v5228 = vpop.f32.mrf.mxu0
      %v5229 = vadd.f32 %v5210, %v5228
      %5230 = vmatmul.bf16.gmra.mxu0 %v4839
      %v5231 = vpop.f32.mrf.mxu0
      %v5232 = vadd.f32 %v5213, %v5231
      %v5233 = vpop.f32.mrf.mxu0
      %v5234 = vadd.f32 %v5215, %v5233
      %5235 = vdwg.mxu0
      %v5236 = vmax.f32 %v4942, 0.0
      %v5237 = vmax.f32 %v5037, 0.0
      %v5238 = vmax.f32 %v5132, 0.0
      %v5239 = vmax.f32 %v5227, 0.0
      %v5240 = vmax.f32 %v4944, 0.0
      %v5241 = vmax.f32 %v5039, 0.0
      %v5242 = vmax.f32 %v5134, 0.0
      %v5243 = vmax.f32 %v5229, 0.0
      %v5244 = vmax.f32 %v4947, 0.0
      %v5245 = vmax.f32 %v5042, 0.0
      %v5246 = vmax.f32 %v5137, 0.0
      %v5247 = vmax.f32 %v5232, 0.0
      %v5248 = vmax.f32 %v4949, 0.0
      %v5249 = vmax.f32 %v5044, 0.0
      %v5250 = vmax.f32 %v5139, 0.0
      %v5251 = vmax.f32 %v5234, 0.0
      %v5252 = vld [vmem:[%s12] sm:$0xff]
      %v5253 = vld [vmem:[%s12 + $0x8] sm:$0xff]
      %v5254 = vld [vmem:[%s12 + $0x10] sm:$0xff]
      %v5255 = vld [vmem:[%s12 + $0x18] sm:$0xff]
      %v5256 = vld [vmem:[%s12 + $0x20] sm:$0xff]
      %v5257 = vld [vmem:[%s12 + $0x28] sm:$0xff]
      %v5258 = vld [vmem:[%s12 + $0x30] sm:$0xff]
      %v5259 = vld [vmem:[%s12 + $0x38] sm:$0xff]
      %v5260 = vld [vmem:[%s12 + $0x40] sm:$0xff]
      %v5261 = vld [vmem:[%s12 + $0x48] sm:$0xff]
      %v5262 = vld [vmem:[%s12 + $0x50] sm:$0xff]
      %v5263 = vld [vmem:[%s12 + $0x58] sm:$0xff]
      %v5264 = vld [vmem:[%s12 + $0x60] sm:$0xff]
      %v5265 = vld [vmem:[%s12 + $0x68] sm:$0xff]
      %v5266 = vld [vmem:[%s12 + $0x70] sm:$0xff]
      %v5267 = vld [vmem:[%s12 + $0x78] sm:$0xff]
      %v5268 = vld [vmem:[%s12 + $0x80] sm:$0xff]
      %v5269 = vld [vmem:[%s12 + $0x88] sm:$0xff]
      %v5270 = vld [vmem:[%s12 + $0x90] sm:$0xff]
      %v5271 = vld [vmem:[%s12 + $0x98] sm:$0xff]
      %v5272 = vld [vmem:[%s12 + $0xa0] sm:$0xff]
      %v5273 = vld [vmem:[%s12 + $0xa8] sm:$0xff]
      %v5274 = vld [vmem:[%s12 + $0xb0] sm:$0xff]
      %v5275 = vld [vmem:[%s12 + $0xb8] sm:$0xff]
      %v5276 = vld [vmem:[%s12 + $0xc0] sm:$0xff]
      %v5277 = vld [vmem:[%s12 + $0xc8] sm:$0xff]
      %v5278 = vld [vmem:[%s12 + $0xd0] sm:$0xff]
      %v5279 = vld [vmem:[%s12 + $0xd8] sm:$0xff]
      %v5280 = vld [vmem:[%s12 + $0xe0] sm:$0xff]
      %v5281 = vld [vmem:[%s12 + $0xe8] sm:$0xff]
      %v5282 = vld [vmem:[%s12 + $0xf0] sm:$0xff]
      %v5283 = vld [vmem:[%s12 + $0xf8] sm:$0xff]
      %v5284 = vld [vmem:[%s12 + $0x100] sm:$0xff]
      %v5285 = vld [vmem:[%s12 + $0x108] sm:$0xff]
      %v5286 = vld [vmem:[%s12 + $0x110] sm:$0xff]
      %v5287 = vld [vmem:[%s12 + $0x118] sm:$0xff]
      %v5288 = vld [vmem:[%s12 + $0x120] sm:$0xff]
      %v5289 = vld [vmem:[%s12 + $0x128] sm:$0xff]
      %v5290 = vld [vmem:[%s12 + $0x130] sm:$0xff]
      %v5291 = vld [vmem:[%s12 + $0x138] sm:$0xff]
      %v5292 = vld [vmem:[%s12 + $0x140] sm:$0xff]
      %v5293 = vld [vmem:[%s12 + $0x148] sm:$0xff]
      %v5294 = vld [vmem:[%s12 + $0x150] sm:$0xff]
      %v5295 = vld [vmem:[%s12 + $0x158] sm:$0xff]
      %v5296 = vld [vmem:[%s12 + $0x160] sm:$0xff]
      %v5297 = vld [vmem:[%s12 + $0x168] sm:$0xff]
      %v5298 = vld [vmem:[%s12 + $0x170] sm:$0xff]
      %v5299 = vld [vmem:[%s12 + $0x178] sm:$0xff]
      %v5300 = vld [vmem:[%s12 + $0x180] sm:$0xff]
      %v5301 = vld [vmem:[%s12 + $0x188] sm:$0xff]
      %v5302 = vld [vmem:[%s12 + $0x190] sm:$0xff]
      %v5303 = vld [vmem:[%s12 + $0x198] sm:$0xff]
      %v5304 = vld [vmem:[%s12 + $0x1a0] sm:$0xff]
      %v5305 = vld [vmem:[%s12 + $0x1a8] sm:$0xff]
      %v5306 = vld [vmem:[%s12 + $0x1b0] sm:$0xff]
      %v5307 = vld [vmem:[%s12 + $0x1b8] sm:$0xff]
      %v5308 = vld [vmem:[%s12 + $0x1c0] sm:$0xff]
      %v5309 = vld [vmem:[%s12 + $0x1c8] sm:$0xff]
      %v5310 = vld [vmem:[%s12 + $0x1d0] sm:$0xff]
      %v5311 = vld [vmem:[%s12 + $0x1d8] sm:$0xff]
      %v5312 = vld [vmem:[%s12 + $0x1e0] sm:$0xff]
      %v5313 = vld [vmem:[%s12 + $0x1e8] sm:$0xff]
      %v5314 = vld [vmem:[%s12 + $0x1f0] sm:$0xff]
      %v5315 = vld [vmem:[%s12 + $0x1f8] sm:$0xff]
      %v5316 = vld [vmem:[%s12 + $0x200] sm:$0xff]
      %v5317 = vld [vmem:[%s12 + $0x208] sm:$0xff]
      %v5318 = vld [vmem:[%s12 + $0x210] sm:$0xff]
      %v5319 = vld [vmem:[%s12 + $0x218] sm:$0xff]
      %v5320 = vld [vmem:[%s12 + $0x220] sm:$0xff]
      %v5321 = vld [vmem:[%s12 + $0x228] sm:$0xff]
      %v5322 = vld [vmem:[%s12 + $0x230] sm:$0xff]
      %v5323 = vld [vmem:[%s12 + $0x238] sm:$0xff]
      %v5324 = vld [vmem:[%s12 + $0x240] sm:$0xff]
      %v5325 = vld [vmem:[%s12 + $0x248] sm:$0xff]
      %v5326 = vld [vmem:[%s12 + $0x250] sm:$0xff]
      %v5327 = vld [vmem:[%s12 + $0x258] sm:$0xff]
      %v5328 = vld [vmem:[%s12 + $0x260] sm:$0xff]
      %v5329 = vld [vmem:[%s12 + $0x268] sm:$0xff]
      %v5330 = vld [vmem:[%s12 + $0x270] sm:$0xff]
      %v5331 = vld [vmem:[%s12 + $0x278] sm:$0xff]
      %v5332 = vld [vmem:[%s12 + $0x280] sm:$0xff]
      %v5333 = vld [vmem:[%s12 + $0x288] sm:$0xff]
      %v5334 = vld [vmem:[%s12 + $0x290] sm:$0xff]
      %v5335 = vld [vmem:[%s12 + $0x298] sm:$0xff]
      %v5336 = vld [vmem:[%s12 + $0x2a0] sm:$0xff]
      %v5337 = vld [vmem:[%s12 + $0x2a8] sm:$0xff]
      %v5338 = vld [vmem:[%s12 + $0x2b0] sm:$0xff]
      %v5339 = vld [vmem:[%s12 + $0x2b8] sm:$0xff]
      %v5340 = vld [vmem:[%s12 + $0x2c0] sm:$0xff]
      %v5341 = vld [vmem:[%s12 + $0x2c8] sm:$0xff]
      %v5342 = vld [vmem:[%s12 + $0x2d0] sm:$0xff]
      %v5343 = vld [vmem:[%s12 + $0x2d8] sm:$0xff]
      %v5344 = vld [vmem:[%s12 + $0x2e0] sm:$0xff]
      %v5345 = vld [vmem:[%s12 + $0x2e8] sm:$0xff]
      %v5346 = vld [vmem:[%s12 + $0x2f0] sm:$0xff]
      %v5347 = vld [vmem:[%s12 + $0x2f8] sm:$0xff]
      %v5348 = vld [vmem:[%s12 + $0x300] sm:$0xff]
      %v5349 = vld [vmem:[%s12 + $0x308] sm:$0xff]
      %v5350 = vld [vmem:[%s12 + $0x310] sm:$0xff]
      %v5351 = vld [vmem:[%s12 + $0x318] sm:$0xff]
      %v5352 = vld [vmem:[%s12 + $0x320] sm:$0xff]
      %v5353 = vld [vmem:[%s12 + $0x328] sm:$0xff]
      %v5354 = vld [vmem:[%s12 + $0x330] sm:$0xff]
      %v5355 = vld [vmem:[%s12 + $0x338] sm:$0xff]
      %v5356 = vld [vmem:[%s12 + $0x340] sm:$0xff]
      %v5357 = vld [vmem:[%s12 + $0x348] sm:$0xff]
      %v5358 = vld [vmem:[%s12 + $0x350] sm:$0xff]
      %v5359 = vld [vmem:[%s12 + $0x358] sm:$0xff]
      %v5360 = vld [vmem:[%s12 + $0x360] sm:$0xff]
      %v5361 = vld [vmem:[%s12 + $0x368] sm:$0xff]
      %v5362 = vld [vmem:[%s12 + $0x370] sm:$0xff]
      %v5363 = vld [vmem:[%s12 + $0x378] sm:$0xff]
      %v5364 = vld [vmem:[%s12 + $0x380] sm:$0xff]
      %v5365 = vld [vmem:[%s12 + $0x388] sm:$0xff]
      %v5366 = vld [vmem:[%s12 + $0x390] sm:$0xff]
      %v5367 = vld [vmem:[%s12 + $0x398] sm:$0xff]
      %v5368 = vld [vmem:[%s12 + $0x3a0] sm:$0xff]
      %v5369 = vld [vmem:[%s12 + $0x3a8] sm:$0xff]
      %v5370 = vld [vmem:[%s12 + $0x3b0] sm:$0xff]
      %v5371 = vld [vmem:[%s12 + $0x3b8] sm:$0xff]
      %v5372 = vld [vmem:[%s12 + $0x3c0] sm:$0xff]
      %v5373 = vld [vmem:[%s12 + $0x3c8] sm:$0xff]
      %v5374 = vld [vmem:[%s12 + $0x3d0] sm:$0xff]
      %v5375 = vld [vmem:[%s12 + $0x3d8] sm:$0xff]
      %v5376 = vld [vmem:[%s12 + $0x3e0] sm:$0xff]
      %v5377 = vld [vmem:[%s12 + $0x3e8] sm:$0xff]
      %v5378 = vld [vmem:[%s12 + $0x3f0] sm:$0xff]
      %v5379 = vld [vmem:[%s12 + $0x3f8] sm:$0xff]
      %v5380 = vld [vmem:[%s13] sm:$0xf]
      %v5381 = vpack.c.bf16 %v5240, %v5236
      %v5382 = vpack.c.bf16 %v5241, %v5237
      %v5383 = vpack.c.bf16 %v5242, %v5238
      %v5384 = vpack.c.bf16 %v5243, %v5239
      %v5385 = vpack.c.bf16 %v5248, %v5244
      %v5386 = vpack.c.bf16 %v5249, %v5245
      %v5387 = vpack.c.bf16 %v5250, %v5246
      %v5388 = vpack.c.bf16 %v5251, %v5247
      %v5390 = vperm.slane %v5380, 0
      %v5391 = vperm.slane %v5380, 1
      %v5392 = vperm.slane %v5380, 2
      %v5393 = vperm.slane %v5380, 3
      %v5526 = vunpack.c.l.b16 %v5252
      %v5527 = vunpack.c.h.b16 %v5252
      %v5528 = vunpack.c.l.b16 %v5253
      %v5529 = vunpack.c.h.b16 %v5253
      %v5530 = vunpack.c.l.b16 %v5254
      %v5531 = vunpack.c.h.b16 %v5254
      %v5532 = vunpack.c.l.b16 %v5255
      %v5533 = vunpack.c.h.b16 %v5255
      %v5534 = vunpack.c.l.b16 %v5256
      %v5535 = vunpack.c.h.b16 %v5256
      %v5536 = vunpack.c.l.b16 %v5257
      %v5537 = vunpack.c.h.b16 %v5257
      %v5538 = vunpack.c.l.b16 %v5258
      %v5539 = vunpack.c.h.b16 %v5258
      %v5540 = vunpack.c.l.b16 %v5259
      %v5541 = vunpack.c.h.b16 %v5259
      %v5542 = vunpack.c.l.b16 %v5260
      %v5543 = vunpack.c.h.b16 %v5260
      %v5544 = vunpack.c.l.b16 %v5261
      %v5545 = vunpack.c.h.b16 %v5261
      %v5546 = vunpack.c.l.b16 %v5262
      %v5547 = vunpack.c.h.b16 %v5262
      %v5548 = vunpack.c.l.b16 %v5263
      %v5549 = vunpack.c.h.b16 %v5263
      %v5550 = vunpack.c.l.b16 %v5264
      %v5551 = vunpack.c.h.b16 %v5264
      %v5552 = vunpack.c.l.b16 %v5265
      %v5553 = vunpack.c.h.b16 %v5265
      %v5554 = vunpack.c.l.b16 %v5266
      %v5555 = vunpack.c.h.b16 %v5266
      %v5556 = vunpack.c.l.b16 %v5267
      %v5557 = vunpack.c.h.b16 %v5267
      %v5558 = vunpack.c.l.b16 %v5268
      %v5559 = vunpack.c.h.b16 %v5268
      %v5560 = vunpack.c.l.b16 %v5269
      %v5561 = vunpack.c.h.b16 %v5269
      %v5562 = vunpack.c.l.b16 %v5270
      %v5563 = vunpack.c.h.b16 %v5270
      %v5564 = vunpack.c.l.b16 %v5271
      %v5565 = vunpack.c.h.b16 %v5271
      %v5566 = vunpack.c.l.b16 %v5272
      %v5567 = vunpack.c.h.b16 %v5272
      %v5568 = vunpack.c.l.b16 %v5273
      %v5569 = vunpack.c.h.b16 %v5273
      %v5570 = vunpack.c.l.b16 %v5274
      %v5571 = vunpack.c.h.b16 %v5274
      %v5572 = vunpack.c.l.b16 %v5275
      %v5573 = vunpack.c.h.b16 %v5275
      %v5574 = vunpack.c.l.b16 %v5276
      %v5575 = vunpack.c.h.b16 %v5276
      %v5576 = vunpack.c.l.b16 %v5277
      %v5577 = vunpack.c.h.b16 %v5277
      %v5578 = vunpack.c.l.b16 %v5278
      %v5579 = vunpack.c.h.b16 %v5278
      %v5580 = vunpack.c.l.b16 %v5279
      %v5581 = vunpack.c.h.b16 %v5279
      %v5582 = vunpack.c.l.b16 %v5280
      %v5583 = vunpack.c.h.b16 %v5280
      %v5584 = vunpack.c.l.b16 %v5281
      %v5585 = vunpack.c.h.b16 %v5281
      %v5586 = vunpack.c.l.b16 %v5282
      %v5587 = vunpack.c.h.b16 %v5282
      %v5588 = vunpack.c.l.b16 %v5283
      %v5589 = vunpack.c.h.b16 %v5283
      %v5590 = vunpack.c.l.b16 %v5284
      %v5591 = vunpack.c.h.b16 %v5284
      %v5592 = vunpack.c.l.b16 %v5285
      %v5593 = vunpack.c.h.b16 %v5285
      %v5594 = vunpack.c.l.b16 %v5286
      %v5595 = vunpack.c.h.b16 %v5286
      %v5596 = vunpack.c.l.b16 %v5287
      %v5597 = vunpack.c.h.b16 %v5287
      %v5598 = vunpack.c.l.b16 %v5288
      %v5599 = vunpack.c.h.b16 %v5288
      %v5600 = vunpack.c.l.b16 %v5289
      %v5601 = vunpack.c.h.b16 %v5289
      %v5602 = vunpack.c.l.b16 %v5290
      %v5603 = vunpack.c.h.b16 %v5290
      %v5604 = vunpack.c.l.b16 %v5291
      %v5605 = vunpack.c.h.b16 %v5291
      %v5606 = vunpack.c.l.b16 %v5292
      %v5607 = vunpack.c.h.b16 %v5292
      %v5608 = vunpack.c.l.b16 %v5293
      %v5609 = vunpack.c.h.b16 %v5293
      %v5610 = vunpack.c.l.b16 %v5294
      %v5611 = vunpack.c.h.b16 %v5294
      %v5612 = vunpack.c.l.b16 %v5295
      %v5613 = vunpack.c.h.b16 %v5295
      %v5614 = vunpack.c.l.b16 %v5296
      %v5615 = vunpack.c.h.b16 %v5296
      %v5616 = vunpack.c.l.b16 %v5297
      %v5617 = vunpack.c.h.b16 %v5297
      %v5618 = vunpack.c.l.b16 %v5298
      %v5619 = vunpack.c.h.b16 %v5298
      %v5620 = vunpack.c.l.b16 %v5299
      %v5621 = vunpack.c.h.b16 %v5299
      %v5622 = vunpack.c.l.b16 %v5300
      %v5623 = vunpack.c.h.b16 %v5300
      %v5624 = vunpack.c.l.b16 %v5301
      %v5625 = vunpack.c.h.b16 %v5301
      %v5626 = vunpack.c.l.b16 %v5302
      %v5627 = vunpack.c.h.b16 %v5302
      %v5628 = vunpack.c.l.b16 %v5303
      %v5629 = vunpack.c.h.b16 %v5303
      %v5630 = vunpack.c.l.b16 %v5304
      %v5631 = vunpack.c.h.b16 %v5304
      %v5632 = vunpack.c.l.b16 %v5305
      %v5633 = vunpack.c.h.b16 %v5305
      %v5634 = vunpack.c.l.b16 %v5306
      %v5635 = vunpack.c.h.b16 %v5306
      %v5636 = vunpack.c.l.b16 %v5307
      %v5637 = vunpack.c.h.b16 %v5307
      %v5638 = vunpack.c.l.b16 %v5308
      %v5639 = vunpack.c.h.b16 %v5308
      %v5640 = vunpack.c.l.b16 %v5309
      %v5641 = vunpack.c.h.b16 %v5309
      %v5642 = vunpack.c.l.b16 %v5310
      %v5643 = vunpack.c.h.b16 %v5310
      %v5644 = vunpack.c.l.b16 %v5311
      %v5645 = vunpack.c.h.b16 %v5311
      %v5646 = vunpack.c.l.b16 %v5312
      %v5647 = vunpack.c.h.b16 %v5312
      %v5648 = vunpack.c.l.b16 %v5313
      %v5649 = vunpack.c.h.b16 %v5313
      %v5650 = vunpack.c.l.b16 %v5314
      %v5651 = vunpack.c.h.b16 %v5314
      %v5652 = vunpack.c.l.b16 %v5315
      %v5653 = vunpack.c.h.b16 %v5315
      %v5654 = vunpack.c.l.b16 %v5316
      %v5655 = vunpack.c.h.b16 %v5316
      %v5656 = vunpack.c.l.b16 %v5317
      %v5657 = vunpack.c.h.b16 %v5317
      %v5658 = vunpack.c.l.b16 %v5318
      %v5659 = vunpack.c.h.b16 %v5318
      %v5660 = vunpack.c.l.b16 %v5319
      %v5661 = vunpack.c.h.b16 %v5319
      %v5662 = vunpack.c.l.b16 %v5320
      %v5663 = vunpack.c.h.b16 %v5320
      %v5664 = vunpack.c.l.b16 %v5321
      %v5665 = vunpack.c.h.b16 %v5321
      %v5666 = vunpack.c.l.b16 %v5322
      %v5667 = vunpack.c.h.b16 %v5322
      %v5668 = vunpack.c.l.b16 %v5323
      %v5669 = vunpack.c.h.b16 %v5323
      %v5670 = vunpack.c.l.b16 %v5324
      %v5671 = vunpack.c.h.b16 %v5324
      %v5672 = vunpack.c.l.b16 %v5325
      %v5673 = vunpack.c.h.b16 %v5325
      %v5674 = vunpack.c.l.b16 %v5326
      %v5675 = vunpack.c.h.b16 %v5326
      %v5676 = vunpack.c.l.b16 %v5327
      %v5677 = vunpack.c.h.b16 %v5327
      %v5678 = vunpack.c.l.b16 %v5328
      %v5679 = vunpack.c.h.b16 %v5328
      %v5680 = vunpack.c.l.b16 %v5329
      %v5681 = vunpack.c.h.b16 %v5329
      %v5682 = vunpack.c.l.b16 %v5330
      %v5683 = vunpack.c.h.b16 %v5330
      %v5684 = vunpack.c.l.b16 %v5331
      %v5685 = vunpack.c.h.b16 %v5331
      %v5686 = vunpack.c.l.b16 %v5332
      %v5687 = vunpack.c.h.b16 %v5332
      %v5688 = vunpack.c.l.b16 %v5333
      %v5689 = vunpack.c.h.b16 %v5333
      %v5690 = vunpack.c.l.b16 %v5334
      %v5691 = vunpack.c.h.b16 %v5334
      %v5692 = vunpack.c.l.b16 %v5335
      %v5693 = vunpack.c.h.b16 %v5335
      %v5694 = vunpack.c.l.b16 %v5336
      %v5695 = vunpack.c.h.b16 %v5336
      %v5696 = vunpack.c.l.b16 %v5337
      %v5697 = vunpack.c.h.b16 %v5337
      %v5698 = vunpack.c.l.b16 %v5338
      %v5699 = vunpack.c.h.b16 %v5338
      %v5700 = vunpack.c.l.b16 %v5339
      %v5701 = vunpack.c.h.b16 %v5339
      %v5702 = vunpack.c.l.b16 %v5340
      %v5703 = vunpack.c.h.b16 %v5340
      %v5704 = vunpack.c.l.b16 %v5341
      %v5705 = vunpack.c.h.b16 %v5341
      %v5706 = vunpack.c.l.b16 %v5342
      %v5707 = vunpack.c.h.b16 %v5342
      %v5708 = vunpack.c.l.b16 %v5343
      %v5709 = vunpack.c.h.b16 %v5343
      %v5710 = vunpack.c.l.b16 %v5344
      %v5711 = vunpack.c.h.b16 %v5344
      %v5712 = vunpack.c.l.b16 %v5345
      %v5713 = vunpack.c.h.b16 %v5345
      %v5714 = vunpack.c.l.b16 %v5346
      %v5715 = vunpack.c.h.b16 %v5346
      %v5716 = vunpack.c.l.b16 %v5347
      %v5717 = vunpack.c.h.b16 %v5347
      %v5718 = vunpack.c.l.b16 %v5348
      %v5719 = vunpack.c.h.b16 %v5348
      %v5720 = vunpack.c.l.b16 %v5349
      %v5721 = vunpack.c.h.b16 %v5349
      %v5722 = vunpack.c.l.b16 %v5350
      %v5723 = vunpack.c.h.b16 %v5350
      %v5724 = vunpack.c.l.b16 %v5351
      %v5725 = vunpack.c.h.b16 %v5351
      %v5726 = vunpack.c.l.b16 %v5352
      %v5727 = vunpack.c.h.b16 %v5352
      %v5728 = vunpack.c.l.b16 %v5353
      %v5729 = vunpack.c.h.b16 %v5353
      %v5730 = vunpack.c.l.b16 %v5354
      %v5731 = vunpack.c.h.b16 %v5354
      %v5732 = vunpack.c.l.b16 %v5355
      %v5733 = vunpack.c.h.b16 %v5355
      %v5734 = vunpack.c.l.b16 %v5356
      %v5735 = vunpack.c.h.b16 %v5356
      %v5736 = vunpack.c.l.b16 %v5357
      %v5737 = vunpack.c.h.b16 %v5357
      %v5738 = vunpack.c.l.b16 %v5358
      %v5739 = vunpack.c.h.b16 %v5358
      %v5740 = vunpack.c.l.b16 %v5359
      %v5741 = vunpack.c.h.b16 %v5359
      %v5742 = vunpack.c.l.b16 %v5360
      %v5743 = vunpack.c.h.b16 %v5360
      %v5744 = vunpack.c.l.b16 %v5361
      %v5745 = vunpack.c.h.b16 %v5361
      %v5746 = vunpack.c.l.b16 %v5362
      %v5747 = vunpack.c.h.b16 %v5362
      %v5748 = vunpack.c.l.b16 %v5363
      %v5749 = vunpack.c.h.b16 %v5363
      %v5750 = vunpack.c.l.b16 %v5364
      %v5751 = vunpack.c.h.b16 %v5364
      %v5752 = vunpack.c.l.b16 %v5365
      %v5753 = vunpack.c.h.b16 %v5365
      %v5754 = vunpack.c.l.b16 %v5366
      %v5755 = vunpack.c.h.b16 %v5366
      %v5756 = vunpack.c.l.b16 %v5367
      %v5757 = vunpack.c.h.b16 %v5367
      %v5758 = vunpack.c.l.b16 %v5368
      %v5759 = vunpack.c.h.b16 %v5368
      %v5760 = vunpack.c.l.b16 %v5369
      %v5761 = vunpack.c.h.b16 %v5369
      %v5762 = vunpack.c.l.b16 %v5370
      %v5763 = vunpack.c.h.b16 %v5370
      %v5764 = vunpack.c.l.b16 %v5371
      %v5765 = vunpack.c.h.b16 %v5371
      %v5766 = vunpack.c.l.b16 %v5372
      %v5767 = vunpack.c.h.b16 %v5372
      %v5768 = vunpack.c.l.b16 %v5373
      %v5769 = vunpack.c.h.b16 %v5373
      %v5770 = vunpack.c.l.b16 %v5374
      %v5771 = vunpack.c.h.b16 %v5374
      %v5772 = vunpack.c.l.b16 %v5375
      %v5773 = vunpack.c.h.b16 %v5375
      %v5774 = vunpack.c.l.b16 %v5376
      %v5775 = vunpack.c.h.b16 %v5376
      %v5776 = vunpack.c.l.b16 %v5377
      %v5777 = vunpack.c.h.b16 %v5377
      %v5778 = vunpack.c.l.b16 %v5378
      %v5779 = vunpack.c.h.b16 %v5378
      %v5780 = vunpack.c.l.b16 %v5379
      %v5781 = vunpack.c.h.b16 %v5379
      %v5782 = vpack.c.b16 %v5530, %v5526
      %v5783 = vpack.c.b16 %v5531, %v5527
      %v5784 = vpack.c.b16 %v5532, %v5528
      %v5785 = vpack.c.b16 %v5533, %v5529
      %v5786 = vpack.c.b16 %v5538, %v5534
      %v5787 = vpack.c.b16 %v5539, %v5535
      %v5788 = vpack.c.b16 %v5540, %v5536
      %v5789 = vpack.c.b16 %v5541, %v5537
      %v5790 = vpack.c.b16 %v5546, %v5542
      %v5791 = vpack.c.b16 %v5547, %v5543
      %v5792 = vpack.c.b16 %v5548, %v5544
      %v5793 = vpack.c.b16 %v5549, %v5545
      %v5794 = vpack.c.b16 %v5554, %v5550
      %v5795 = vpack.c.b16 %v5555, %v5551
      %v5796 = vpack.c.b16 %v5556, %v5552
      %v5797 = vpack.c.b16 %v5557, %v5553
      %v5798 = vpack.c.b16 %v5562, %v5558
      %v5799 = vpack.c.b16 %v5563, %v5559
      %v5800 = vpack.c.b16 %v5564, %v5560
      %v5801 = vpack.c.b16 %v5565, %v5561
      %v5802 = vpack.c.b16 %v5570, %v5566
      %v5803 = vpack.c.b16 %v5571, %v5567
      %v5804 = vpack.c.b16 %v5572, %v5568
      %v5805 = vpack.c.b16 %v5573, %v5569
      %v5806 = vpack.c.b16 %v5578, %v5574
      %v5807 = vpack.c.b16 %v5579, %v5575
      %v5808 = vpack.c.b16 %v5580, %v5576
      %v5809 = vpack.c.b16 %v5581, %v5577
      %v5810 = vpack.c.b16 %v5586, %v5582
      %v5811 = vpack.c.b16 %v5587, %v5583
      %v5812 = vpack.c.b16 %v5588, %v5584
      %v5813 = vpack.c.b16 %v5589, %v5585
      %v5814 = vpack.c.b16 %v5594, %v5590
      %v5815 = vpack.c.b16 %v5595, %v5591
      %v5816 = vpack.c.b16 %v5596, %v5592
      %v5817 = vpack.c.b16 %v5597, %v5593
      %v5818 = vpack.c.b16 %v5602, %v5598
      %v5819 = vpack.c.b16 %v5603, %v5599
      %v5820 = vpack.c.b16 %v5604, %v5600
      %v5821 = vpack.c.b16 %v5605, %v5601
      %v5822 = vpack.c.b16 %v5610, %v5606
      %v5823 = vpack.c.b16 %v5611, %v5607
      %v5824 = vpack.c.b16 %v5612, %v5608
      %v5825 = vpack.c.b16 %v5613, %v5609
      %v5826 = vpack.c.b16 %v5618, %v5614
      %v5827 = vpack.c.b16 %v5619, %v5615
      %v5828 = vpack.c.b16 %v5620, %v5616
      %v5829 = vpack.c.b16 %v5621, %v5617
      %v5830 = vpack.c.b16 %v5626, %v5622
      %v5831 = vpack.c.b16 %v5627, %v5623
      %v5832 = vpack.c.b16 %v5628, %v5624
      %v5833 = vpack.c.b16 %v5629, %v5625
      %v5834 = vpack.c.b16 %v5634, %v5630
      %v5835 = vpack.c.b16 %v5635, %v5631
      %v5836 = vpack.c.b16 %v5636, %v5632
      %v5837 = vpack.c.b16 %v5637, %v5633
      %v5838 = vpack.c.b16 %v5642, %v5638
      %v5839 = vpack.c.b16 %v5643, %v5639
      %v5840 = vpack.c.b16 %v5644, %v5640
      %v5841 = vpack.c.b16 %v5645, %v5641
      %v5842 = vpack.c.b16 %v5650, %v5646
      %v5843 = vpack.c.b16 %v5651, %v5647
      %v5844 = vpack.c.b16 %v5652, %v5648
      %v5845 = vpack.c.b16 %v5653, %v5649
      %v5846 = vpack.c.b16 %v5658, %v5654
      %v5847 = vpack.c.b16 %v5659, %v5655
      %v5848 = vpack.c.b16 %v5660, %v5656
      %v5849 = vpack.c.b16 %v5661, %v5657
      %v5850 = vpack.c.b16 %v5666, %v5662
      %v5851 = vpack.c.b16 %v5667, %v5663
      %v5852 = vpack.c.b16 %v5668, %v5664
      %v5853 = vpack.c.b16 %v5669, %v5665
      %v5854 = vpack.c.b16 %v5674, %v5670
      %v5855 = vpack.c.b16 %v5675, %v5671
      %v5856 = vpack.c.b16 %v5676, %v5672
      %v5857 = vpack.c.b16 %v5677, %v5673
      %v5858 = vpack.c.b16 %v5682, %v5678
      %v5859 = vpack.c.b16 %v5683, %v5679
      %v5860 = vpack.c.b16 %v5684, %v5680
      %v5861 = vpack.c.b16 %v5685, %v5681
      %v5862 = vpack.c.b16 %v5690, %v5686
      %v5863 = vpack.c.b16 %v5691, %v5687
      %v5864 = vpack.c.b16 %v5692, %v5688
      %v5865 = vpack.c.b16 %v5693, %v5689
      %v5866 = vpack.c.b16 %v5698, %v5694
      %v5867 = vpack.c.b16 %v5699, %v5695
      %v5868 = vpack.c.b16 %v5700, %v5696
      %v5869 = vpack.c.b16 %v5701, %v5697
      %v5870 = vpack.c.b16 %v5706, %v5702
      %v5871 = vpack.c.b16 %v5707, %v5703
      %v5872 = vpack.c.b16 %v5708, %v5704
      %v5873 = vpack.c.b16 %v5709, %v5705
      %v5874 = vpack.c.b16 %v5714, %v5710
      %v5875 = vpack.c.b16 %v5715, %v5711
      %v5876 = vpack.c.b16 %v5716, %v5712
      %v5877 = vpack.c.b16 %v5717, %v5713
      %v5878 = vpack.c.b16 %v5722, %v5718
      %v5879 = vpack.c.b16 %v5723, %v5719
      %v5880 = vpack.c.b16 %v5724, %v5720
      %v5881 = vpack.c.b16 %v5725, %v5721
      %v5882 = vpack.c.b16 %v5730, %v5726
      %v5883 = vpack.c.b16 %v5731, %v5727
      %v5884 = vpack.c.b16 %v5732, %v5728
      %v5885 = vpack.c.b16 %v5733, %v5729
      %v5886 = vpack.c.b16 %v5738, %v5734
      %v5887 = vpack.c.b16 %v5739, %v5735
      %v5888 = vpack.c.b16 %v5740, %v5736
      %v5889 = vpack.c.b16 %v5741, %v5737
      %v5890 = vpack.c.b16 %v5746, %v5742
      %v5891 = vpack.c.b16 %v5747, %v5743
      %v5892 = vpack.c.b16 %v5748, %v5744
      %v5893 = vpack.c.b16 %v5749, %v5745
      %v5894 = vpack.c.b16 %v5754, %v5750
      %v5895 = vpack.c.b16 %v5755, %v5751
      %v5896 = vpack.c.b16 %v5756, %v5752
      %v5897 = vpack.c.b16 %v5757, %v5753
      %v5898 = vpack.c.b16 %v5762, %v5758
      %v5899 = vpack.c.b16 %v5763, %v5759
      %v5900 = vpack.c.b16 %v5764, %v5760
      %v5901 = vpack.c.b16 %v5765, %v5761
      %v5902 = vpack.c.b16 %v5770, %v5766
      %v5903 = vpack.c.b16 %v5771, %v5767
      %v5904 = vpack.c.b16 %v5772, %v5768
      %v5905 = vpack.c.b16 %v5773, %v5769
      %v5906 = vpack.c.b16 %v5778, %v5774
      %v5907 = vpack.c.b16 %v5779, %v5775
      %v5908 = vpack.c.b16 %v5780, %v5776
      %v5909 = vpack.c.b16 %v5781, %v5777
      %6038 = vmatpush.bf16.msra.mxu0 %v5810
      %6039 = vmatpush.bf16.msra.mxu0 %v5806
      %6040 = vmatpush.bf16.msra.mxu0 %v5802
      %6041 = vmatpush.bf16.msra.mxu0 %v5798
      %6042 = vmatpush.bf16.msra.mxu0 %v5794
      %6043 = vmatpush.bf16.msra.mxu0 %v5790
      %6044 = vmatpush.bf16.msra.mxu0 %v5786
      %6045 = vmatpush.bf16.msra.mxu0 %v5782
      %6046 = vmatmul.bf16.gmra.mxu0 %v5381
      %v6047 = vpop.f32.mrf.mxu0
      %v6048 = vadd.f32 %v5390, %v6047
      %v6049 = vpop.f32.mrf.mxu0
      %v6050 = vadd.f32 %v5390, %v6049
      %6051 = vmatmul.bf16.gmra.mxu0 %v5385
      %v6052 = vpop.f32.mrf.mxu0
      %v6053 = vadd.f32 %v5390, %v6052
      %v6054 = vpop.f32.mrf.mxu0
      %v6055 = vadd.f32 %v5390, %v6054
      %6056 = vdwg.mxu0
      %6057 = vmatpush.bf16.msra.mxu0 %v5842
      %6058 = vmatpush.bf16.msra.mxu0 %v5838
      %6059 = vmatpush.bf16.msra.mxu0 %v5834
      %6060 = vmatpush.bf16.msra.mxu0 %v5830
      %6061 = vmatpush.bf16.msra.mxu0 %v5826
      %6062 = vmatpush.bf16.msra.mxu0 %v5822
      %6063 = vmatpush.bf16.msra.mxu0 %v5818
      %6064 = vmatpush.bf16.msra.mxu0 %v5814
      %6065 = vmatmul.bf16.gmra.mxu0 %v5382
      %v6066 = vpop.f32.mrf.mxu0
      %v6067 = vadd.f32 %v6048, %v6066
      %v6068 = vpop.f32.mrf.mxu0
      %v6069 = vadd.f32 %v6050, %v6068
      %6070 = vmatmul.bf16.gmra.mxu0 %v5386
      %v6071 = vpop.f32.mrf.mxu0
      %v6072 = vadd.f32 %v6053, %v6071
      %v6073 = vpop.f32.mrf.mxu0
      %v6074 = vadd.f32 %v6055, %v6073
      %6075 = vdwg.mxu0
      %6076 = vmatpush.bf16.msra.mxu0 %v5874
      %6077 = vmatpush.bf16.msra.mxu0 %v5870
      %6078 = vmatpush.bf16.msra.mxu0 %v5866
      %6079 = vmatpush.bf16.msra.mxu0 %v5862
      %6080 = vmatpush.bf16.msra.mxu0 %v5858
      %6081 = vmatpush.bf16.msra.mxu0 %v5854
      %6082 = vmatpush.bf16.msra.mxu0 %v5850
      %6083 = vmatpush.bf16.msra.mxu0 %v5846
      %6084 = vmatmul.bf16.gmra.mxu0 %v5383
      %v6085 = vpop.f32.mrf.mxu0
      %v6086 = vadd.f32 %v6067, %v6085
      %v6087 = vpop.f32.mrf.mxu0
      %v6088 = vadd.f32 %v6069, %v6087
      %6089 = vmatmul.bf16.gmra.mxu0 %v5387
      %v6090 = vpop.f32.mrf.mxu0
      %v6091 = vadd.f32 %v6072, %v6090
      %v6092 = vpop.f32.mrf.mxu0
      %v6093 = vadd.f32 %v6074, %v6092
      %6094 = vdwg.mxu0
      %6095 = vmatpush.bf16.msra.mxu0 %v5906
      %6096 = vmatpush.bf16.msra.mxu0 %v5902
      %6097 = vmatpush.bf16.msra.mxu0 %v5898
      %6098 = vmatpush.bf16.msra.mxu0 %v5894
      %6099 = vmatpush.bf16.msra.mxu0 %v5890
      %6100 = vmatpush.bf16.msra.mxu0 %v5886
      %6101 = vmatpush.bf16.msra.mxu0 %v5882
      %6102 = vmatpush.bf16.msra.mxu0 %v5878
      %6103 = vmatmul.bf16.gmra.mxu0 %v5384
      %v6104 = vpop.f32.mrf.mxu0
      %v6105 = vadd.f32 %v6086, %v6104
      %v6106 = vpop.f32.mrf.mxu0
      %v6107 = vadd.f32 %v6088, %v6106
      %6108 = vmatmul.bf16.gmra.mxu0 %v5388
      %v6109 = vpop.f32.mrf.mxu0
      %v6110 = vadd.f32 %v6091, %v6109
      %v6111 = vpop.f32.mrf.mxu0
      %v6112 = vadd.f32 %v6093, %v6111
      %6113 = vdwg.mxu0
      %6114 = vmatpush.bf16.msra.mxu0 %v5811
      %6115 = vmatpush.bf16.msra.mxu0 %v5807
      %6116 = vmatpush.bf16.msra.mxu0 %v5803
      %6117 = vmatpush.bf16.msra.mxu0 %v5799
      %6118 = vmatpush.bf16.msra.mxu0 %v5795
      %6119 = vmatpush.bf16.msra.mxu0 %v5791
      %6120 = vmatpush.bf16.msra.mxu0 %v5787
      %6121 = vmatpush.bf16.msra.mxu0 %v5783
      %6122 = vmatmul.bf16.gmra.mxu0 %v5381
      %v6123 = vpop.f32.mrf.mxu0
      %v6124 = vadd.f32 %v5391, %v6123
      %v6125 = vpop.f32.mrf.mxu0
      %v6126 = vadd.f32 %v5391, %v6125
      %6127 = vmatmul.bf16.gmra.mxu0 %v5385
      %v6128 = vpop.f32.mrf.mxu0
      %v6129 = vadd.f32 %v5391, %v6128
      %v6130 = vpop.f32.mrf.mxu0
      %v6131 = vadd.f32 %v5391, %v6130
      %6132 = vdwg.mxu0
      %6133 = vmatpush.bf16.msra.mxu0 %v5843
      %6134 = vmatpush.bf16.msra.mxu0 %v5839
      %6135 = vmatpush.bf16.msra.mxu0 %v5835
      %6136 = vmatpush.bf16.msra.mxu0 %v5831
      %6137 = vmatpush.bf16.msra.mxu0 %v5827
      %6138 = vmatpush.bf16.msra.mxu0 %v5823
      %6139 = vmatpush.bf16.msra.mxu0 %v5819
      %6140 = vmatpush.bf16.msra.mxu0 %v5815
      %6141 = vmatmul.bf16.gmra.mxu0 %v5382
      %v6142 = vpop.f32.mrf.mxu0
      %v6143 = vadd.f32 %v6124, %v6142
      %v6144 = vpop.f32.mrf.mxu0
      %v6145 = vadd.f32 %v6126, %v6144
      %6146 = vmatmul.bf16.gmra.mxu0 %v5386
      %v6147 = vpop.f32.mrf.mxu0
      %v6148 = vadd.f32 %v6129, %v6147
      %v6149 = vpop.f32.mrf.mxu0
      %v6150 = vadd.f32 %v6131, %v6149
      %6151 = vdwg.mxu0
      %6152 = vmatpush.bf16.msra.mxu0 %v5875
      %6153 = vmatpush.bf16.msra.mxu0 %v5871
      %6154 = vmatpush.bf16.msra.mxu0 %v5867
      %6155 = vmatpush.bf16.msra.mxu0 %v5863
      %6156 = vmatpush.bf16.msra.mxu0 %v5859
      %6157 = vmatpush.bf16.msra.mxu0 %v5855
      %6158 = vmatpush.bf16.msra.mxu0 %v5851
      %6159 = vmatpush.bf16.msra.mxu0 %v5847
      %6160 = vmatmul.bf16.gmra.mxu0 %v5383
      %v6161 = vpop.f32.mrf.mxu0
      %v6162 = vadd.f32 %v6143, %v6161
      %v6163 = vpop.f32.mrf.mxu0
      %v6164 = vadd.f32 %v6145, %v6163
      %6165 = vmatmul.bf16.gmra.mxu0 %v5387
      %v6166 = vpop.f32.mrf.mxu0
      %v6167 = vadd.f32 %v6148, %v6166
      %v6168 = vpop.f32.mrf.mxu0
      %v6169 = vadd.f32 %v6150, %v6168
      %6170 = vdwg.mxu0
      %6171 = vmatpush.bf16.msra.mxu0 %v5907
      %6172 = vmatpush.bf16.msra.mxu0 %v5903
      %6173 = vmatpush.bf16.msra.mxu0 %v5899
      %6174 = vmatpush.bf16.msra.mxu0 %v5895
      %6175 = vmatpush.bf16.msra.mxu0 %v5891
      %6176 = vmatpush.bf16.msra.mxu0 %v5887
      %6177 = vmatpush.bf16.msra.mxu0 %v5883
      %6178 = vmatpush.bf16.msra.mxu0 %v5879
      %6179 = vmatmul.bf16.gmra.mxu0 %v5384
      %v6180 = vpop.f32.mrf.mxu0
      %v6181 = vadd.f32 %v6162, %v6180
      %v6182 = vpop.f32.mrf.mxu0
      %v6183 = vadd.f32 %v6164, %v6182
      %6184 = vmatmul.bf16.gmra.mxu0 %v5388
      %v6185 = vpop.f32.mrf.mxu0
      %v6186 = vadd.f32 %v6167, %v6185
      %v6187 = vpop.f32.mrf.mxu0
      %v6188 = vadd.f32 %v6169, %v6187
      %6189 = vdwg.mxu0
      %6190 = vmatpush.bf16.msra.mxu0 %v5812
      %6191 = vmatpush.bf16.msra.mxu0 %v5808
      %6192 = vmatpush.bf16.msra.mxu0 %v5804
      %6193 = vmatpush.bf16.msra.mxu0 %v5800
      %6194 = vmatpush.bf16.msra.mxu0 %v5796
      %6195 = vmatpush.bf16.msra.mxu0 %v5792
      %6196 = vmatpush.bf16.msra.mxu0 %v5788
      %6197 = vmatpush.bf16.msra.mxu0 %v5784
      %6198 = vmatmul.bf16.gmra.mxu0 %v5381
      %v6199 = vpop.f32.mrf.mxu0
      %v6200 = vadd.f32 %v5392, %v6199
      %v6201 = vpop.f32.mrf.mxu0
      %v6202 = vadd.f32 %v5392, %v6201
      %6203 = vmatmul.bf16.gmra.mxu0 %v5385
      %v6204 = vpop.f32.mrf.mxu0
      %v6205 = vadd.f32 %v5392, %v6204
      %v6206 = vpop.f32.mrf.mxu0
      %v6207 = vadd.f32 %v5392, %v6206
      %6208 = vdwg.mxu0
      %6209 = vmatpush.bf16.msra.mxu0 %v5844
      %6210 = vmatpush.bf16.msra.mxu0 %v5840
      %6211 = vmatpush.bf16.msra.mxu0 %v5836
      %6212 = vmatpush.bf16.msra.mxu0 %v5832
      %6213 = vmatpush.bf16.msra.mxu0 %v5828
      %6214 = vmatpush.bf16.msra.mxu0 %v5824
      %6215 = vmatpush.bf16.msra.mxu0 %v5820
      %6216 = vmatpush.bf16.msra.mxu0 %v5816
      %6217 = vmatmul.bf16.gmra.mxu0 %v5382
      %v6218 = vpop.f32.mrf.mxu0
      %v6219 = vadd.f32 %v6200, %v6218
      %v6220 = vpop.f32.mrf.mxu0
      %v6221 = vadd.f32 %v6202, %v6220
      %6222 = vmatmul.bf16.gmra.mxu0 %v5386
      %v6223 = vpop.f32.mrf.mxu0
      %v6224 = vadd.f32 %v6205, %v6223
      %v6225 = vpop.f32.mrf.mxu0
      %v6226 = vadd.f32 %v6207, %v6225
      %6227 = vdwg.mxu0
      %6228 = vmatpush.bf16.msra.mxu0 %v5876
      %6229 = vmatpush.bf16.msra.mxu0 %v5872
      %6230 = vmatpush.bf16.msra.mxu0 %v5868
      %6231 = vmatpush.bf16.msra.mxu0 %v5864
      %6232 = vmatpush.bf16.msra.mxu0 %v5860
      %6233 = vmatpush.bf16.msra.mxu0 %v5856
      %6234 = vmatpush.bf16.msra.mxu0 %v5852
      %6235 = vmatpush.bf16.msra.mxu0 %v5848
      %6236 = vmatmul.bf16.gmra.mxu0 %v5383
      %v6237 = vpop.f32.mrf.mxu0
      %v6238 = vadd.f32 %v6219, %v6237
      %v6239 = vpop.f32.mrf.mxu0
      %v6240 = vadd.f32 %v6221, %v6239
      %6241 = vmatmul.bf16.gmra.mxu0 %v5387
      %v6242 = vpop.f32.mrf.mxu0
      %v6243 = vadd.f32 %v6224, %v6242
      %v6244 = vpop.f32.mrf.mxu0
      %v6245 = vadd.f32 %v6226, %v6244
      %6246 = vdwg.mxu0
      %6247 = vmatpush.bf16.msra.mxu0 %v5908
      %6248 = vmatpush.bf16.msra.mxu0 %v5904
      %6249 = vmatpush.bf16.msra.mxu0 %v5900
      %6250 = vmatpush.bf16.msra.mxu0 %v5896
      %6251 = vmatpush.bf16.msra.mxu0 %v5892
      %6252 = vmatpush.bf16.msra.mxu0 %v5888
      %6253 = vmatpush.bf16.msra.mxu0 %v5884
      %6254 = vmatpush.bf16.msra.mxu0 %v5880
      %6255 = vmatmul.bf16.gmra.mxu0 %v5384
      %v6256 = vpop.f32.mrf.mxu0
      %v6257 = vadd.f32 %v6238, %v6256
      %v6258 = vpop.f32.mrf.mxu0
      %v6259 = vadd.f32 %v6240, %v6258
      %6260 = vmatmul.bf16.gmra.mxu0 %v5388
      %v6261 = vpop.f32.mrf.mxu0
      %v6262 = vadd.f32 %v6243, %v6261
      %v6263 = vpop.f32.mrf.mxu0
      %v6264 = vadd.f32 %v6245, %v6263
      %6265 = vdwg.mxu0
      %6266 = vmatpush.bf16.msra.mxu0 %v5813
      %6267 = vmatpush.bf16.msra.mxu0 %v5809
      %6268 = vmatpush.bf16.msra.mxu0 %v5805
      %6269 = vmatpush.bf16.msra.mxu0 %v5801
      %6270 = vmatpush.bf16.msra.mxu0 %v5797
      %6271 = vmatpush.bf16.msra.mxu0 %v5793
      %6272 = vmatpush.bf16.msra.mxu0 %v5789
      %6273 = vmatpush.bf16.msra.mxu0 %v5785
      %6274 = vmatmul.bf16.gmra.mxu0 %v5381
      %v6275 = vpop.f32.mrf.mxu0
      %v6276 = vadd.f32 %v5393, %v6275
      %v6277 = vpop.f32.mrf.mxu0
      %v6278 = vadd.f32 %v5393, %v6277
      %6279 = vmatmul.bf16.gmra.mxu0 %v5385
      %v6280 = vpop.f32.mrf.mxu0
      %v6281 = vadd.f32 %v5393, %v6280
      %v6282 = vpop.f32.mrf.mxu0
      %v6283 = vadd.f32 %v5393, %v6282
      %6284 = vdwg.mxu0
      %6285 = vmatpush.bf16.msra.mxu0 %v5845
      %6286 = vmatpush.bf16.msra.mxu0 %v5841
      %6287 = vmatpush.bf16.msra.mxu0 %v5837
      %6288 = vmatpush.bf16.msra.mxu0 %v5833
      %6289 = vmatpush.bf16.msra.mxu0 %v5829
      %6290 = vmatpush.bf16.msra.mxu0 %v5825
      %6291 = vmatpush.bf16.msra.mxu0 %v5821
      %6292 = vmatpush.bf16.msra.mxu0 %v5817
      %6293 = vmatmul.bf16.gmra.mxu0 %v5382
      %v6294 = vpop.f32.mrf.mxu0
      %v6295 = vadd.f32 %v6276, %v6294
      %v6296 = vpop.f32.mrf.mxu0
      %v6297 = vadd.f32 %v6278, %v6296
      %6298 = vmatmul.bf16.gmra.mxu0 %v5386
      %v6299 = vpop.f32.mrf.mxu0
      %v6300 = vadd.f32 %v6281, %v6299
      %v6301 = vpop.f32.mrf.mxu0
      %v6302 = vadd.f32 %v6283, %v6301
      %6303 = vdwg.mxu0
      %6304 = vmatpush.bf16.msra.mxu0 %v5877
      %6305 = vmatpush.bf16.msra.mxu0 %v5873
      %6306 = vmatpush.bf16.msra.mxu0 %v5869
      %6307 = vmatpush.bf16.msra.mxu0 %v5865
      %6308 = vmatpush.bf16.msra.mxu0 %v5861
      %6309 = vmatpush.bf16.msra.mxu0 %v5857
      %6310 = vmatpush.bf16.msra.mxu0 %v5853
      %6311 = vmatpush.bf16.msra.mxu0 %v5849
      %6312 = vmatmul.bf16.gmra.mxu0 %v5383
      %v6313 = vpop.f32.mrf.mxu0
      %v6314 = vadd.f32 %v6295, %v6313
      %v6315 = vpop.f32.mrf.mxu0
      %v6316 = vadd.f32 %v6297, %v6315
      %6317 = vmatmul.bf16.gmra.mxu0 %v5387
      %v6318 = vpop.f32.mrf.mxu0
      %v6319 = vadd.f32 %v6300, %v6318
      %v6320 = vpop.f32.mrf.mxu0
      %v6321 = vadd.f32 %v6302, %v6320
      %6322 = vdwg.mxu0
      %6323 = vmatpush.bf16.msra.mxu0 %v5909
      %6324 = vmatpush.bf16.msra.mxu0 %v5905
      %6325 = vmatpush.bf16.msra.mxu0 %v5901
      %6326 = vmatpush.bf16.msra.mxu0 %v5897
      %6327 = vmatpush.bf16.msra.mxu0 %v5893
      %6328 = vmatpush.bf16.msra.mxu0 %v5889
      %6329 = vmatpush.bf16.msra.mxu0 %v5885
      %6330 = vmatpush.bf16.msra.mxu0 %v5881
      %6331 = vmatmul.bf16.gmra.mxu0 %v5384
      %v6332 = vpop.f32.mrf.mxu0
      %v6333 = vadd.f32 %v6314, %v6332
      %v6334 = vpop.f32.mrf.mxu0
      %v6335 = vadd.f32 %v6316, %v6334
      %6336 = vmatmul.bf16.gmra.mxu0 %v5388
      %v6337 = vpop.f32.mrf.mxu0
      %v6338 = vadd.f32 %v6319, %v6337
      %v6339 = vpop.f32.mrf.mxu0
      %v6340 = vadd.f32 %v6321, %v6339
      %6341 = vdwg.mxu0
      %v6342 = vmax.f32 %v6105, 0.0
      %v6343 = vmax.f32 %v6181, 0.0
      %v6344 = vmax.f32 %v6257, 0.0
      %v6345 = vmax.f32 %v6333, 0.0
      %v6346 = vmax.f32 %v6107, 0.0
      %v6347 = vmax.f32 %v6183, 0.0
      %v6348 = vmax.f32 %v6259, 0.0
      %v6349 = vmax.f32 %v6335, 0.0
      %v6350 = vmax.f32 %v6110, 0.0
      %v6351 = vmax.f32 %v6186, 0.0
      %v6352 = vmax.f32 %v6262, 0.0
      %v6353 = vmax.f32 %v6338, 0.0
      %v6354 = vmax.f32 %v6112, 0.0
      %v6355 = vmax.f32 %v6188, 0.0
      %v6356 = vmax.f32 %v6264, 0.0
      %v6357 = vmax.f32 %v6340, 0.0
      %6374 = vrot.lane.b32.xlu0 %v6342, 127
      %v6375 = vpop.permute.xlu0 %6374
      %6376 = vrot.lane.b32.xlu0 %v6343, 127
      %v6377 = vpop.permute.xlu0 %6376
      %6378 = vrot.lane.b32.xlu0 %v6344, 127
      %v6379 = vpop.permute.xlu0 %6378
      %6380 = vrot.lane.b32.xlu0 %v6345, 127
      %v6381 = vpop.permute.xlu0 %6380
      %6382 = vrot.lane.b32.xlu0 %v6346, 127
      %v6383 = vpop.permute.xlu0 %6382
      %6384 = vrot.lane.b32.xlu0 %v6347, 127
      %v6385 = vpop.permute.xlu0 %6384
      %6386 = vrot.lane.b32.xlu0 %v6348, 127
      %v6387 = vpop.permute.xlu0 %6386
      %6388 = vrot.lane.b32.xlu0 %v6349, 127
      %v6389 = vpop.permute.xlu0 %6388
      %6390 = vrot.lane.b32.xlu0 %v6350, 127
      %v6391 = vpop.permute.xlu0 %6390
      %6392 = vrot.lane.b32.xlu0 %v6351, 127
      %v6393 = vpop.permute.xlu0 %6392
      %6394 = vrot.lane.b32.xlu0 %v6352, 127
      %v6395 = vpop.permute.xlu0 %6394
      %6396 = vrot.lane.b32.xlu0 %v6353, 127
      %v6397 = vpop.permute.xlu0 %6396
      %6398 = vrot.lane.b32.xlu0 %v6354, 127
      %v6399 = vpop.permute.xlu0 %6398
      %6400 = vrot.lane.b32.xlu0 %v6355, 127
      %v6401 = vpop.permute.xlu0 %6400
      %6402 = vrot.lane.b32.xlu0 %v6356, 127
      %v6403 = vpop.permute.xlu0 %6402
      %6404 = vrot.lane.b32.xlu0 %v6357, 127
      %v6405 = vpop.permute.xlu0 %6404
      %v6406 = vsel %vm3897, %v6375, %v6377
      %v6407 = vsel %vm3897, %v6377, %v6379
      %v6408 = vsel %vm3897, %v6379, %v6381
      %v6409 = vsel %vm3897, %v6383, %v6385
      %v6410 = vsel %vm3897, %v6385, %v6387
      %v6411 = vsel %vm3897, %v6387, %v6389
      %v6412 = vsel %vm3897, %v6391, %v6393
      %v6413 = vsel %vm3897, %v6393, %v6395
      %v6414 = vsel %vm3897, %v6395, %v6397
      %v6415 = vsel %vm3897, %v6399, %v6401
      %v6416 = vsel %vm3897, %v6401, %v6403
      %v6417 = vsel %vm3897, %v6403, %v6405
      %v6434 = vmax.f32 %v6342, %v6406
      %v6435 = vmax.f32 %v6343, %v6407
      %v6436 = vmax.f32 %v6344, %v6408
      %v6437 = vmax.f32 %v6345, %v6381
      %v6438 = vmax.f32 %v6346, %v6409
      %v6439 = vmax.f32 %v6347, %v6410
      %v6440 = vmax.f32 %v6348, %v6411
      %v6441 = vmax.f32 %v6349, %v6389
      %v6442 = vmax.f32 %v6350, %v6412
      %v6443 = vmax.f32 %v6351, %v6413
      %v6444 = vmax.f32 %v6352, %v6414
      %v6445 = vmax.f32 %v6353, %v6397
      %v6446 = vmax.f32 %v6354, %v6415
      %v6447 = vmax.f32 %v6355, %v6416
      %v6448 = vmax.f32 %v6356, %v6417
      %v6449 = vmax.f32 %v6357, %v6405
      %v6450 = vld [vmem:[%s14] sm:$0xff]
      %v6451 = vld [vmem:[%s14 + $0x8] sm:$0xff]
      %v6452 = vld [vmem:[%s14 + $0x10] sm:$0xff]
      %v6453 = vld [vmem:[%s14 + $0x18] sm:$0xff]
      %v6454 = vld [vmem:[%s14 + $0x20] sm:$0xff]
      %v6455 = vld [vmem:[%s14 + $0x28] sm:$0xff]
      %v6456 = vld [vmem:[%s14 + $0x30] sm:$0xff]
      %v6457 = vld [vmem:[%s14 + $0x38] sm:$0xff]
      %v6458 = vld [vmem:[%s14 + $0x40] sm:$0xff]
      %v6459 = vld [vmem:[%s14 + $0x48] sm:$0xff]
      %v6460 = vld [vmem:[%s14 + $0x50] sm:$0xff]
      %v6461 = vld [vmem:[%s14 + $0x58] sm:$0xff]
      %v6462 = vld [vmem:[%s14 + $0x60] sm:$0xff]
      %v6463 = vld [vmem:[%s14 + $0x68] sm:$0xff]
      %v6464 = vld [vmem:[%s14 + $0x70] sm:$0xff]
      %v6465 = vld [vmem:[%s14 + $0x78] sm:$0xff]
      %v6466 = vld [vmem:[%s14 + $0x80] sm:$0xff]
      %v6467 = vld [vmem:[%s14 + $0x88] sm:$0xff]
      %v6468 = vld [vmem:[%s14 + $0x90] sm:$0xff]
      %v6469 = vld [vmem:[%s14 + $0x98] sm:$0xff]
      %v6470 = vld [vmem:[%s14 + $0xa0] sm:$0xff]
      %v6471 = vld [vmem:[%s14 + $0xa8] sm:$0xff]
      %v6472 = vld [vmem:[%s14 + $0xb0] sm:$0xff]
      %v6473 = vld [vmem:[%s14 + $0xb8] sm:$0xff]
      %v6474 = vld [vmem:[%s14 + $0xc0] sm:$0xff]
      %v6475 = vld [vmem:[%s14 + $0xc8] sm:$0xff]
      %v6476 = vld [vmem:[%s14 + $0xd0] sm:$0xff]
      %v6477 = vld [vmem:[%s14 + $0xd8] sm:$0xff]
      %v6478 = vld [vmem:[%s14 + $0xe0] sm:$0xff]
      %v6479 = vld [vmem:[%s14 + $0xe8] sm:$0xff]
      %v6480 = vld [vmem:[%s14 + $0xf0] sm:$0xff]
      %v6481 = vld [vmem:[%s14 + $0xf8] sm:$0xff]
      %v6482 = vld [vmem:[%s14 + $0x100] sm:$0xff]
      %v6483 = vld [vmem:[%s14 + $0x108] sm:$0xff]
      %v6484 = vld [vmem:[%s14 + $0x110] sm:$0xff]
      %v6485 = vld [vmem:[%s14 + $0x118] sm:$0xff]
      %v6486 = vld [vmem:[%s14 + $0x120] sm:$0xff]
      %v6487 = vld [vmem:[%s14 + $0x128] sm:$0xff]
      %v6488 = vld [vmem:[%s14 + $0x130] sm:$0xff]
      %v6489 = vld [vmem:[%s14 + $0x138] sm:$0xff]
      %v6490 = vld [vmem:[%s14 + $0x140] sm:$0xff]
      %v6491 = vld [vmem:[%s14 + $0x148] sm:$0xff]
      %v6492 = vld [vmem:[%s14 + $0x150] sm:$0xff]
      %v6493 = vld [vmem:[%s14 + $0x158] sm:$0xff]
      %v6494 = vld [vmem:[%s14 + $0x160] sm:$0xff]
      %v6495 = vld [vmem:[%s14 + $0x168] sm:$0xff]
      %v6496 = vld [vmem:[%s14 + $0x170] sm:$0xff]
      %v6497 = vld [vmem:[%s14 + $0x178] sm:$0xff]
      %v6498 = vld [vmem:[%s14 + $0x180] sm:$0xff]
      %v6499 = vld [vmem:[%s14 + $0x188] sm:$0xff]
      %v6500 = vld [vmem:[%s14 + $0x190] sm:$0xff]
      %v6501 = vld [vmem:[%s14 + $0x198] sm:$0xff]
      %v6502 = vld [vmem:[%s14 + $0x1a0] sm:$0xff]
      %v6503 = vld [vmem:[%s14 + $0x1a8] sm:$0xff]
      %v6504 = vld [vmem:[%s14 + $0x1b0] sm:$0xff]
      %v6505 = vld [vmem:[%s14 + $0x1b8] sm:$0xff]
      %v6506 = vld [vmem:[%s14 + $0x1c0] sm:$0xff]
      %v6507 = vld [vmem:[%s14 + $0x1c8] sm:$0xff]
      %v6508 = vld [vmem:[%s14 + $0x1d0] sm:$0xff]
      %v6509 = vld [vmem:[%s14 + $0x1d8] sm:$0xff]
      %v6510 = vld [vmem:[%s14 + $0x1e0] sm:$0xff]
      %v6511 = vld [vmem:[%s14 + $0x1e8] sm:$0xff]
      %v6512 = vld [vmem:[%s14 + $0x1f0] sm:$0xff]
      %v6513 = vld [vmem:[%s14 + $0x1f8] sm:$0xff]
      %v6514 = vld [vmem:[%s14 + $0x200] sm:$0xff]
      %v6515 = vld [vmem:[%s14 + $0x208] sm:$0xff]
      %v6516 = vld [vmem:[%s14 + $0x210] sm:$0xff]
      %v6517 = vld [vmem:[%s14 + $0x218] sm:$0xff]
      %v6518 = vld [vmem:[%s14 + $0x220] sm:$0xff]
      %v6519 = vld [vmem:[%s14 + $0x228] sm:$0xff]
      %v6520 = vld [vmem:[%s14 + $0x230] sm:$0xff]
      %v6521 = vld [vmem:[%s14 + $0x238] sm:$0xff]
      %v6522 = vld [vmem:[%s14 + $0x240] sm:$0xff]
      %v6523 = vld [vmem:[%s14 + $0x248] sm:$0xff]
      %v6524 = vld [vmem:[%s14 + $0x250] sm:$0xff]
      %v6525 = vld [vmem:[%s14 + $0x258] sm:$0xff]
      %v6526 = vld [vmem:[%s14 + $0x260] sm:$0xff]
      %v6527 = vld [vmem:[%s14 + $0x268] sm:$0xff]
      %v6528 = vld [vmem:[%s14 + $0x270] sm:$0xff]
      %v6529 = vld [vmem:[%s14 + $0x278] sm:$0xff]
      %v6530 = vld [vmem:[%s14 + $0x280] sm:$0xff]
      %v6531 = vld [vmem:[%s14 + $0x288] sm:$0xff]
      %v6532 = vld [vmem:[%s14 + $0x290] sm:$0xff]
      %v6533 = vld [vmem:[%s14 + $0x298] sm:$0xff]
      %v6534 = vld [vmem:[%s14 + $0x2a0] sm:$0xff]
      %v6535 = vld [vmem:[%s14 + $0x2a8] sm:$0xff]
      %v6536 = vld [vmem:[%s14 + $0x2b0] sm:$0xff]
      %v6537 = vld [vmem:[%s14 + $0x2b8] sm:$0xff]
      %v6538 = vld [vmem:[%s14 + $0x2c0] sm:$0xff]
      %v6539 = vld [vmem:[%s14 + $0x2c8] sm:$0xff]
      %v6540 = vld [vmem:[%s14 + $0x2d0] sm:$0xff]
      %v6541 = vld [vmem:[%s14 + $0x2d8] sm:$0xff]
      %v6542 = vld [vmem:[%s14 + $0x2e0] sm:$0xff]
      %v6543 = vld [vmem:[%s14 + $0x2e8] sm:$0xff]
      %v6544 = vld [vmem:[%s14 + $0x2f0] sm:$0xff]
      %v6545 = vld [vmem:[%s14 + $0x2f8] sm:$0xff]
      %v6546 = vld [vmem:[%s14 + $0x300] sm:$0xff]
      %v6547 = vld [vmem:[%s14 + $0x308] sm:$0xff]
      %v6548 = vld [vmem:[%s14 + $0x310] sm:$0xff]
      %v6549 = vld [vmem:[%s14 + $0x318] sm:$0xff]
      %v6550 = vld [vmem:[%s14 + $0x320] sm:$0xff]
      %v6551 = vld [vmem:[%s14 + $0x328] sm:$0xff]
      %v6552 = vld [vmem:[%s14 + $0x330] sm:$0xff]
      %v6553 = vld [vmem:[%s14 + $0x338] sm:$0xff]
      %v6554 = vld [vmem:[%s14 + $0x340] sm:$0xff]
      %v6555 = vld [vmem:[%s14 + $0x348] sm:$0xff]
      %v6556 = vld [vmem:[%s14 + $0x350] sm:$0xff]
      %v6557 = vld [vmem:[%s14 + $0x358] sm:$0xff]
      %v6558 = vld [vmem:[%s14 + $0x360] sm:$0xff]
      %v6559 = vld [vmem:[%s14 + $0x368] sm:$0xff]
      %v6560 = vld [vmem:[%s14 + $0x370] sm:$0xff]
      %v6561 = vld [vmem:[%s14 + $0x378] sm:$0xff]
      %v6562 = vld [vmem:[%s14 + $0x380] sm:$0xff]
      %v6563 = vld [vmem:[%s14 + $0x388] sm:$0xff]
      %v6564 = vld [vmem:[%s14 + $0x390] sm:$0xff]
      %v6565 = vld [vmem:[%s14 + $0x398] sm:$0xff]
      %v6566 = vld [vmem:[%s14 + $0x3a0] sm:$0xff]
      %v6567 = vld [vmem:[%s14 + $0x3a8] sm:$0xff]
      %v6568 = vld [vmem:[%s14 + $0x3b0] sm:$0xff]
      %v6569 = vld [vmem:[%s14 + $0x3b8] sm:$0xff]
      %v6570 = vld [vmem:[%s14 + $0x3c0] sm:$0xff]
      %v6571 = vld [vmem:[%s14 + $0x3c8] sm:$0xff]
      %v6572 = vld [vmem:[%s14 + $0x3d0] sm:$0xff]
      %v6573 = vld [vmem:[%s14 + $0x3d8] sm:$0xff]
      %v6574 = vld [vmem:[%s14 + $0x3e0] sm:$0xff]
      %v6575 = vld [vmem:[%s14 + $0x3e8] sm:$0xff]
      %v6576 = vld [vmem:[%s14 + $0x3f0] sm:$0xff]
      %v6577 = vld [vmem:[%s14 + $0x3f8] sm:$0xff]
      %v6578 = vld [vmem:[%s14 + $0x400] sm:$0xff]
      %v6579 = vld [vmem:[%s14 + $0x408] sm:$0xff]
      %v6580 = vld [vmem:[%s14 + $0x410] sm:$0xff]
      %v6581 = vld [vmem:[%s14 + $0x418] sm:$0xff]
      %v6582 = vld [vmem:[%s14 + $0x420] sm:$0xff]
      %v6583 = vld [vmem:[%s14 + $0x428] sm:$0xff]
      %v6584 = vld [vmem:[%s14 + $0x430] sm:$0xff]
      %v6585 = vld [vmem:[%s14 + $0x438] sm:$0xff]
      %v6586 = vld [vmem:[%s14 + $0x440] sm:$0xff]
      %v6587 = vld [vmem:[%s14 + $0x448] sm:$0xff]
      %v6588 = vld [vmem:[%s14 + $0x450] sm:$0xff]
      %v6589 = vld [vmem:[%s14 + $0x458] sm:$0xff]
      %v6590 = vld [vmem:[%s14 + $0x460] sm:$0xff]
      %v6591 = vld [vmem:[%s14 + $0x468] sm:$0xff]
      %v6592 = vld [vmem:[%s14 + $0x470] sm:$0xff]
      %v6593 = vld [vmem:[%s14 + $0x478] sm:$0xff]
      %v6594 = vld [vmem:[%s14 + $0x480] sm:$0xff]
      %v6595 = vld [vmem:[%s14 + $0x488] sm:$0xff]
      %v6596 = vld [vmem:[%s14 + $0x490] sm:$0xff]
      %v6597 = vld [vmem:[%s14 + $0x498] sm:$0xff]
      %v6598 = vld [vmem:[%s14 + $0x4a0] sm:$0xff]
      %v6599 = vld [vmem:[%s14 + $0x4a8] sm:$0xff]
      %v6600 = vld [vmem:[%s14 + $0x4b0] sm:$0xff]
      %v6601 = vld [vmem:[%s14 + $0x4b8] sm:$0xff]
      %v6602 = vld [vmem:[%s14 + $0x4c0] sm:$0xff]
      %v6603 = vld [vmem:[%s14 + $0x4c8] sm:$0xff]
      %v6604 = vld [vmem:[%s14 + $0x4d0] sm:$0xff]
      %v6605 = vld [vmem:[%s14 + $0x4d8] sm:$0xff]
      %v6606 = vld [vmem:[%s14 + $0x4e0] sm:$0xff]
      %v6607 = vld [vmem:[%s14 + $0x4e8] sm:$0xff]
      %v6608 = vld [vmem:[%s14 + $0x4f0] sm:$0xff]
      %v6609 = vld [vmem:[%s14 + $0x4f8] sm:$0xff]
      %v6610 = vld [vmem:[%s14 + $0x500] sm:$0xff]
      %v6611 = vld [vmem:[%s14 + $0x508] sm:$0xff]
      %v6612 = vld [vmem:[%s14 + $0x510] sm:$0xff]
      %v6613 = vld [vmem:[%s14 + $0x518] sm:$0xff]
      %v6614 = vld [vmem:[%s14 + $0x520] sm:$0xff]
      %v6615 = vld [vmem:[%s14 + $0x528] sm:$0xff]
      %v6616 = vld [vmem:[%s14 + $0x530] sm:$0xff]
      %v6617 = vld [vmem:[%s14 + $0x538] sm:$0xff]
      %v6618 = vld [vmem:[%s14 + $0x540] sm:$0xff]
      %v6619 = vld [vmem:[%s14 + $0x548] sm:$0xff]
      %v6620 = vld [vmem:[%s14 + $0x550] sm:$0xff]
      %v6621 = vld [vmem:[%s14 + $0x558] sm:$0xff]
      %v6622 = vld [vmem:[%s14 + $0x560] sm:$0xff]
      %v6623 = vld [vmem:[%s14 + $0x568] sm:$0xff]
      %v6624 = vld [vmem:[%s14 + $0x570] sm:$0xff]
      %v6625 = vld [vmem:[%s14 + $0x578] sm:$0xff]
      %v6626 = vld [vmem:[%s14 + $0x580] sm:$0xff]
      %v6627 = vld [vmem:[%s14 + $0x588] sm:$0xff]
      %v6628 = vld [vmem:[%s14 + $0x590] sm:$0xff]
      %v6629 = vld [vmem:[%s14 + $0x598] sm:$0xff]
      %v6630 = vld [vmem:[%s14 + $0x5a0] sm:$0xff]
      %v6631 = vld [vmem:[%s14 + $0x5a8] sm:$0xff]
      %v6632 = vld [vmem:[%s14 + $0x5b0] sm:$0xff]
      %v6633 = vld [vmem:[%s14 + $0x5b8] sm:$0xff]
      %v6634 = vld [vmem:[%s14 + $0x5c0] sm:$0xff]
      %v6635 = vld [vmem:[%s14 + $0x5c8] sm:$0xff]
      %v6636 = vld [vmem:[%s14 + $0x5d0] sm:$0xff]
      %v6637 = vld [vmem:[%s14 + $0x5d8] sm:$0xff]
      %v6638 = vld [vmem:[%s14 + $0x5e0] sm:$0xff]
      %v6639 = vld [vmem:[%s14 + $0x5e8] sm:$0xff]
      %v6640 = vld [vmem:[%s14 + $0x5f0] sm:$0xff]
      %v6641 = vld [vmem:[%s14 + $0x5f8] sm:$0xff]
      %v6642 = vld [vmem:[%s14 + $0x600] sm:$0xff]
      %v6643 = vld [vmem:[%s14 + $0x608] sm:$0xff]
      %v6644 = vld [vmem:[%s14 + $0x610] sm:$0xff]
      %v6645 = vld [vmem:[%s14 + $0x618] sm:$0xff]
      %v6646 = vld [vmem:[%s14 + $0x620] sm:$0xff]
      %v6647 = vld [vmem:[%s14 + $0x628] sm:$0xff]
      %v6648 = vld [vmem:[%s14 + $0x630] sm:$0xff]
      %v6649 = vld [vmem:[%s14 + $0x638] sm:$0xff]
      %v6650 = vld [vmem:[%s14 + $0x640] sm:$0xff]
      %v6651 = vld [vmem:[%s14 + $0x648] sm:$0xff]
      %v6652 = vld [vmem:[%s14 + $0x650] sm:$0xff]
      %v6653 = vld [vmem:[%s14 + $0x658] sm:$0xff]
      %v6654 = vld [vmem:[%s14 + $0x660] sm:$0xff]
      %v6655 = vld [vmem:[%s14 + $0x668] sm:$0xff]
      %v6656 = vld [vmem:[%s14 + $0x670] sm:$0xff]
      %v6657 = vld [vmem:[%s14 + $0x678] sm:$0xff]
      %v6658 = vld [vmem:[%s14 + $0x680] sm:$0xff]
      %v6659 = vld [vmem:[%s14 + $0x688] sm:$0xff]
      %v6660 = vld [vmem:[%s14 + $0x690] sm:$0xff]
      %v6661 = vld [vmem:[%s14 + $0x698] sm:$0xff]
      %v6662 = vld [vmem:[%s14 + $0x6a0] sm:$0xff]
      %v6663 = vld [vmem:[%s14 + $0x6a8] sm:$0xff]
      %v6664 = vld [vmem:[%s14 + $0x6b0] sm:$0xff]
      %v6665 = vld [vmem:[%s14 + $0x6b8] sm:$0xff]
      %v6666 = vld [vmem:[%s14 + $0x6c0] sm:$0xff]
      %v6667 = vld [vmem:[%s14 + $0x6c8] sm:$0xff]
      %v6668 = vld [vmem:[%s14 + $0x6d0] sm:$0xff]
      %v6669 = vld [vmem:[%s14 + $0x6d8] sm:$0xff]
      %v6670 = vld [vmem:[%s14 + $0x6e0] sm:$0xff]
      %v6671 = vld [vmem:[%s14 + $0x6e8] sm:$0xff]
      %v6672 = vld [vmem:[%s14 + $0x6f0] sm:$0xff]
      %v6673 = vld [vmem:[%s14 + $0x6f8] sm:$0xff]
      %v6674 = vld [vmem:[%s15] sm:$0xff]
      %v6675 = vld [vmem:[%s15 + $0x8] sm:$0xff]
      %v6676 = vld [vmem:[%s15 + $0x10] sm:$0xff]
      %v6677 = vld [vmem:[%s15 + $0x18] sm:$0xff]
      %v6678 = vld [vmem:[%s15 + $0x20] sm:$0xff]
      %v6679 = vld [vmem:[%s15 + $0x28] sm:$0xff]
      %v6680 = vld [vmem:[%s15 + $0x30] sm:$0xff]
      %v6681 = vld [vmem:[%s15 + $0x38] sm:$0xff]
      %v6682 = vld [vmem:[%s15 + $0x40] sm:$0xff]
      %v6683 = vld [vmem:[%s15 + $0x48] sm:$0xff]
      %v6684 = vld [vmem:[%s15 + $0x50] sm:$0xff]
      %v6685 = vld [vmem:[%s15 + $0x58] sm:$0xff]
      %v6686 = vld [vmem:[%s15 + $0x60] sm:$0xff]
      %v6687 = vld [vmem:[%s15 + $0x68] sm:$0xff]
      %v6688 = vld [vmem:[%s15 + $0x70] sm:$0xff]
      %v6689 = vld [vmem:[%s15 + $0x78] sm:$0xff]
      %v6690 = vld [vmem:[%s15 + $0x80] sm:$0xff]
      %v6691 = vld [vmem:[%s15 + $0x88] sm:$0xff]
      %v6692 = vld [vmem:[%s15 + $0x90] sm:$0xff]
      %v6693 = vld [vmem:[%s15 + $0x98] sm:$0xff]
      %v6694 = vld [vmem:[%s15 + $0xa0] sm:$0xff]
      %v6695 = vld [vmem:[%s15 + $0xa8] sm:$0xff]
      %v6696 = vld [vmem:[%s15 + $0xb0] sm:$0xff]
      %v6697 = vld [vmem:[%s15 + $0xb8] sm:$0xff]
      %v6698 = vld [vmem:[%s15 + $0xc0] sm:$0xff]
      %v6699 = vld [vmem:[%s15 + $0xc8] sm:$0xff]
      %v6700 = vld [vmem:[%s15 + $0xd0] sm:$0xff]
      %v6701 = vld [vmem:[%s15 + $0xd8] sm:$0xff]
      %v6702 = vld [vmem:[%s15 + $0xe0] sm:$0xff]
      %v6703 = vld [vmem:[%s15 + $0xe8] sm:$0xff]
      %v6704 = vld [vmem:[%s15 + $0xf0] sm:$0xff]
      %v6705 = vld [vmem:[%s15 + $0xf8] sm:$0xff]
      %v6706 = vld [vmem:[%s16] sm:$0xf]
      %v6707 = vld [vmem:[%s16 + $0x4] sm:$0xf]
      %v6708 = vld [vmem:[%s16 + $0x8] sm:$0xf]
      %v6709 = vld [vmem:[%s16 + $0xc] sm:$0xf]
      %v6710 = vld [vmem:[%s16 + $0x10] sm:$0xf]
      %v6711 = vld [vmem:[%s16 + $0x14] sm:$0xf]
      %v6712 = vld [vmem:[%s16 + $0x18] sm:$0xf]
      %v6713 = vld [vmem:[%s16 + $0x1c] sm:$0xf]
      %v6714 = vld [vmem:[%s16 + $0x20] sm:$0xf]
      %v6715 = vld [vmem:[%s16 + $0x24] sm:$0xf]
      %v6716 = vld [vmem:[%s16 + $0x28] sm:$0xf]
      %v6717 = vld [vmem:[%s16 + $0x2c] sm:$0xf]
      %v6718 = vld [vmem:[%s16 + $0x30] sm:$0xf]
      %v6719 = vld [vmem:[%s16 + $0x34] sm:$0xf]
      %v6720 = vld [vmem:[%s16 + $0x38] sm:$0xf]
      %v6721 = vld [vmem:[%s16 + $0x3c] sm:$0xf]
      %v6722 = vld [vmem:[%s16 + $0x40] sm:$0xf]
      %v6723 = vld [vmem:[%s16 + $0x44] sm:$0xf]
      %v6724 = vld [vmem:[%s16 + $0x48] sm:$0xf]
      %v6725 = vld [vmem:[%s16 + $0x4c] sm:$0xf]
      %v6726 = vld [vmem:[%s16 + $0x50] sm:$0xf]
      %v6727 = vld [vmem:[%s16 + $0x54] sm:$0xf]
      %v6728 = vld [vmem:[%s16 + $0x58] sm:$0xf]
      %v6729 = vld [vmem:[%s16 + $0x5c] sm:$0xf]
      %v6730 = vld [vmem:[%s16 + $0x60] sm:$0xf]
      %v6731 = vld [vmem:[%s16 + $0x64] sm:$0xf]
      %v6732 = vld [vmem:[%s16 + $0x68] sm:$0xf]
      %v6733 = vld [vmem:[%s16 + $0x6c] sm:$0xf]
      %v6734 = vld [vmem:[%s16 + $0x70] sm:$0xf]
      %v6735 = vld [vmem:[%s16 + $0x74] sm:$0xf]
      %v6736 = vld [vmem:[%s16 + $0x78] sm:$0xf]
      %v6737 = vld [vmem:[%s16 + $0x7c] sm:$0xf]
      %v6738 = vld [vmem:[%s16 + $0x80] sm:$0xf]
      %v6739 = vld [vmem:[%s16 + $0x84] sm:$0xf]
      %v6740 = vld [vmem:[%s16 + $0x88] sm:$0xf]
      %v6741 = vld [vmem:[%s16 + $0x8c] sm:$0xf]
      %v6742 = vld [vmem:[%s16 + $0x90] sm:$0xf]
      %v6743 = vld [vmem:[%s16 + $0x94] sm:$0xf]
      %v6744 = vld [vmem:[%s16 + $0x98] sm:$0xf]
      %v6745 = vld [vmem:[%s16 + $0x9c] sm:$0xf]
      %v6746 = vld [vmem:[%s16 + $0xa0] sm:$0xf]
      %v6747 = vld [vmem:[%s16 + $0xa4] sm:$0xf]
      %v6748 = vld [vmem:[%s16 + $0xa8] sm:$0xf]
      %v6749 = vld [vmem:[%s16 + $0xac] sm:$0xf]
      %v6750 = vld [vmem:[%s16 + $0xb0] sm:$0xf]
      %v6751 = vld [vmem:[%s16 + $0xb4] sm:$0xf]
      %v6752 = vld [vmem:[%s16 + $0xb8] sm:$0xf]
      %v6753 = vld [vmem:[%s16 + $0xbc] sm:$0xf]
      %v6754 = vld [vmem:[%s16 + $0xc0] sm:$0xf]
      %v6755 = vld [vmem:[%s16 + $0xc4] sm:$0xf]
      %v6756 = vld [vmem:[%s16 + $0xc8] sm:$0xf]
      %v6757 = vld [vmem:[%s16 + $0xcc] sm:$0xf]
      %v6758 = vld [vmem:[%s16 + $0xd0] sm:$0xf]
      %v6759 = vld [vmem:[%s16 + $0xd4] sm:$0xf]
      %v6760 = vld [vmem:[%s16 + $0xd8] sm:$0xf]
      %v6761 = vld [vmem:[%s16 + $0xdc] sm:$0xf]
      %v6762 = vld [vmem:[%s16 + $0xe0] sm:$0xf]
      %v6763 = vld [vmem:[%s16 + $0xe4] sm:$0xf]
      %v6764 = vld [vmem:[%s16 + $0xe8] sm:$0xf]
      %v6765 = vld [vmem:[%s16 + $0xec] sm:$0xf]
      %v6766 = vld [vmem:[%s16 + $0xf0] sm:$0xf]
      %v6767 = vld [vmem:[%s16 + $0xf4] sm:$0xf]
      %v6768 = vld [vmem:[%s16 + $0xf8] sm:$0xf]
      %v6769 = vld [vmem:[%s16 + $0xfc] sm:$0xf]
      %v6770 = vld [vmem:[%s16 + $0x100] sm:$0xf]
      %v6771 = vld [vmem:[%s16 + $0x104] sm:$0xf]
      %v6772 = vld [vmem:[%s16 + $0x108] sm:$0xf]
      %v6773 = vld [vmem:[%s16 + $0x10c] sm:$0xf]
      %v6774 = vld [vmem:[%s16 + $0x110] sm:$0xf]
      %v6775 = vld [vmem:[%s16 + $0x114] sm:$0xf]
      %v6776 = vld [vmem:[%s16 + $0x118] sm:$0xf]
      %v6777 = vld [vmem:[%s16 + $0x11c] sm:$0xf]
      %v6778 = vld [vmem:[%s16 + $0x120] sm:$0xf]
      %v6779 = vld [vmem:[%s16 + $0x124] sm:$0xf]
      %v6780 = vld [vmem:[%s16 + $0x128] sm:$0xf]
      %v6781 = vld [vmem:[%s16 + $0x12c] sm:$0xf]
      %v6782 = vld [vmem:[%s16 + $0x130] sm:$0xf]
      %v6783 = vld [vmem:[%s16 + $0x134] sm:$0xf]
      %v6784 = vld [vmem:[%s16 + $0x138] sm:$0xf]
      %v6785 = vld [vmem:[%s16 + $0x13c] sm:$0xf]
      %v6786 = vld [vmem:[%s16 + $0x140] sm:$0xf]
      %v6787 = vld [vmem:[%s16 + $0x144] sm:$0xf]
      %v6788 = vld [vmem:[%s16 + $0x148] sm:$0xf]
      %v6789 = vld [vmem:[%s16 + $0x14c] sm:$0xf]
      %v6790 = vld [vmem:[%s16 + $0x150] sm:$0xf]
      %v6791 = vld [vmem:[%s16 + $0x154] sm:$0xf]
      %v6792 = vld [vmem:[%s16 + $0x158] sm:$0xf]
      %v6793 = vld [vmem:[%s16 + $0x15c] sm:$0xf]
      %v6794 = vld [vmem:[%s16 + $0x160] sm:$0xf]
      %v6795 = vld [vmem:[%s16 + $0x164] sm:$0xf]
      %v6796 = vld [vmem:[%s16 + $0x168] sm:$0xf]
      %v6797 = vld [vmem:[%s16 + $0x16c] sm:$0xf]
      %v6798 = vld [vmem:[%s16 + $0x170] sm:$0xf]
      %v6799 = vld [vmem:[%s16 + $0x174] sm:$0xf]
      %v6800 = vld [vmem:[%s16 + $0x178] sm:$0xf]
      %v6801 = vld [vmem:[%s16 + $0x17c] sm:$0xf]
      %v6802 = vld [vmem:[%s16 + $0x180] sm:$0xf]
      %v6803 = vld [vmem:[%s16 + $0x184] sm:$0xf]
      %v6804 = vld [vmem:[%s16 + $0x188] sm:$0xf]
      %v6805 = vld [vmem:[%s16 + $0x18c] sm:$0xf]
      %v6806 = vld [vmem:[%s16 + $0x190] sm:$0xf]
      %v6807 = vld [vmem:[%s16 + $0x194] sm:$0xf]
      %v6808 = vld [vmem:[%s16 + $0x198] sm:$0xf]
      %v6809 = vld [vmem:[%s16 + $0x19c] sm:$0xf]
      %v6810 = vld [vmem:[%s16 + $0x1a0] sm:$0xf]
      %v6811 = vld [vmem:[%s16 + $0x1a4] sm:$0xf]
      %v6812 = vld [vmem:[%s16 + $0x1a8] sm:$0xf]
      %v6813 = vld [vmem:[%s16 + $0x1ac] sm:$0xf]
      %v6814 = vld [vmem:[%s16 + $0x1b0] sm:$0xf]
      %v6815 = vld [vmem:[%s16 + $0x1b4] sm:$0xf]
      %v6816 = vld [vmem:[%s16 + $0x1b8] sm:$0xf]
      %v6817 = vld [vmem:[%s16 + $0x1bc] sm:$0xf]
      %v6818 = vld [vmem:[%s16 + $0x1c0] sm:$0xf]
      %v6819 = vld [vmem:[%s16 + $0x1c4] sm:$0xf]
      %v6820 = vld [vmem:[%s16 + $0x1c8] sm:$0xf]
      %v6821 = vld [vmem:[%s16 + $0x1cc] sm:$0xf]
      %v6822 = vld [vmem:[%s16 + $0x1d0] sm:$0xf]
      %v6823 = vld [vmem:[%s16 + $0x1d4] sm:$0xf]
      %v6824 = vld [vmem:[%s16 + $0x1d8] sm:$0xf]
      %v6825 = vld [vmem:[%s16 + $0x1dc] sm:$0xf]
      %v6826 = vld [vmem:[%s16 + $0x1e0] sm:$0xf]
      %v6827 = vld [vmem:[%s16 + $0x1e4] sm:$0xf]
      %v6828 = vld [vmem:[%s16 + $0x1e8] sm:$0xf]
      %v6829 = vld [vmem:[%s16 + $0x1ec] sm:$0xf]
      %v6830 = vld [vmem:[%s16 + $0x1f0] sm:$0xf]
      %v6831 = vld [vmem:[%s16 + $0x1f4] sm:$0xf]
      %v6832 = vld [vmem:[%s16 + $0x1f8] sm:$0xf]
      %v6833 = vld [vmem:[%s16 + $0x1fc] sm:$0xf]
      %v6834 = vld [vmem:[%s17] sm:$0xf]
      %v6835 = vld [vmem:[%s17 + $0x4] sm:$0xf]
      %v6836 = vld [vmem:[%s17 + $0x8] sm:$0xf]
      %v6837 = vld [vmem:[%s17 + $0xc] sm:$0xf]
      %v6838 = vld [vmem:[%s17 + $0x10] sm:$0xf]
      %v6839 = vld [vmem:[%s17 + $0x14] sm:$0xf]
      %v6840 = vld [vmem:[%s17 + $0x18] sm:$0xf]
      %v6841 = vld [vmem:[%s17 + $0x1c] sm:$0xf]
      %v6842 = vld [vmem:[%s17 + $0x20] sm:$0xf]
      %v6843 = vld [vmem:[%s17 + $0x24] sm:$0xf]
      %v6844 = vld [vmem:[%s17 + $0x28] sm:$0xf]
      %v6845 = vld [vmem:[%s17 + $0x2c] sm:$0xf]
      %v6846 = vld [vmem:[%s17 + $0x30] sm:$0xf]
      %v6847 = vld [vmem:[%s17 + $0x34] sm:$0xf]
      %v6848 = vld [vmem:[%s17 + $0x38] sm:$0xf]
      %v6849 = vld [vmem:[%s17 + $0x3c] sm:$0xf]
      %v6850 = vld [vmem:[%s17 + $0x40] sm:$0xf]
      %v6851 = vld [vmem:[%s17 + $0x44] sm:$0xf]
      %v6852 = vld [vmem:[%s17 + $0x48] sm:$0xf]
      %v6853 = vld [vmem:[%s17 + $0x4c] sm:$0xf]
      %v6854 = vld [vmem:[%s17 + $0x50] sm:$0xf]
      %v6855 = vld [vmem:[%s17 + $0x54] sm:$0xf]
      %v6856 = vld [vmem:[%s17 + $0x58] sm:$0xf]
      %v6857 = vld [vmem:[%s17 + $0x5c] sm:$0xf]
      %v6858 = vld [vmem:[%s17 + $0x60] sm:$0xf]
      %v6859 = vld [vmem:[%s17 + $0x64] sm:$0xf]
      %v6860 = vld [vmem:[%s17 + $0x68] sm:$0xf]
      %v6861 = vld [vmem:[%s17 + $0x6c] sm:$0xf]
      %v6862 = vld [vmem:[%s17 + $0x70] sm:$0xf]
      %v6863 = vld [vmem:[%s17 + $0x74] sm:$0xf]
      %v6864 = vld [vmem:[%s17 + $0x78] sm:$0xf]
      %v6865 = vld [vmem:[%s17 + $0x7c] sm:$0xf]
      %v6866 = vld [vmem:[%s17 + $0x80] sm:$0xf]
      %v6867 = vld [vmem:[%s17 + $0x84] sm:$0xf]
      %v6868 = vld [vmem:[%s17 + $0x88] sm:$0xf]
      %v6869 = vld [vmem:[%s17 + $0x8c] sm:$0xf]
      %v6870 = vld [vmem:[%s17 + $0x90] sm:$0xf]
      %v6871 = vld [vmem:[%s17 + $0x94] sm:$0xf]
      %v6872 = vld [vmem:[%s17 + $0x98] sm:$0xf]
      %v6873 = vld [vmem:[%s17 + $0x9c] sm:$0xf]
      %v6874 = vld [vmem:[%s17 + $0xa0] sm:$0xf]
      %v6875 = vld [vmem:[%s17 + $0xa4] sm:$0xf]
      %v6876 = vld [vmem:[%s17 + $0xa8] sm:$0xf]
      %v6877 = vld [vmem:[%s17 + $0xac] sm:$0xf]
      %v6878 = vld [vmem:[%s17 + $0xb0] sm:$0xf]
      %v6879 = vld [vmem:[%s17 + $0xb4] sm:$0xf]
      %v6880 = vld [vmem:[%s17 + $0xb8] sm:$0x3]
      %v6881 = vld [vmem:[%s18] sm:$0x1]
      %v6882 = vpack.c.bf16 %v6438, %v6434
      %v6883 = vpack.c.bf16 %v6439, %v6435
      %v6884 = vpack.c.bf16 %v6440, %v6436
      %v6885 = vpack.c.bf16 %v6441, %v6437
      %v6886 = vpack.c.bf16 %v6446, %v6442
      %v6887 = vpack.c.bf16 %v6447, %v6443
      %v6888 = vpack.c.bf16 %v6448, %v6444
      %v6889 = vpack.c.bf16 %v6449, %v6445
      %v7114 = vunpack.c.l.b16 %v6450
      %v7115 = vunpack.c.h.b16 %v6450
      %v7116 = vunpack.c.l.b16 %v6451
      %v7117 = vunpack.c.h.b16 %v6451
      %v7118 = vunpack.c.l.b16 %v6452
      %v7119 = vunpack.c.h.b16 %v6452
      %v7120 = vunpack.c.l.b16 %v6453
      %v7121 = vunpack.c.h.b16 %v6453
      %v7122 = vunpack.c.l.b16 %v6454
      %v7123 = vunpack.c.h.b16 %v6454
      %v7124 = vunpack.c.l.b16 %v6455
      %v7125 = vunpack.c.h.b16 %v6455
      %v7126 = vunpack.c.l.b16 %v6456
      %v7127 = vunpack.c.h.b16 %v6456
      %v7128 = vunpack.c.l.b16 %v6457
      %v7129 = vunpack.c.h.b16 %v6457
      %v7130 = vunpack.c.l.b16 %v6458
      %v7131 = vunpack.c.h.b16 %v6458
      %v7132 = vunpack.c.l.b16 %v6459
      %v7133 = vunpack.c.h.b16 %v6459
      %v7134 = vunpack.c.l.b16 %v6460
      %v7135 = vunpack.c.h.b16 %v6460
      %v7136 = vunpack.c.l.b16 %v6461
      %v7137 = vunpack.c.h.b16 %v6461
      %v7138 = vunpack.c.l.b16 %v6462
      %v7139 = vunpack.c.h.b16 %v6462
      %v7140 = vunpack.c.l.b16 %v6463
      %v7141 = vunpack.c.h.b16 %v6463
      %v7142 = vunpack.c.l.b16 %v6464
      %v7143 = vunpack.c.h.b16 %v6464
      %v7144 = vunpack.c.l.b16 %v6465
      %v7145 = vunpack.c.h.b16 %v6465
      %v7146 = vunpack.c.l.b16 %v6466
      %v7147 = vunpack.c.h.b16 %v6466
      %v7148 = vunpack.c.l.b16 %v6467
      %v7149 = vunpack.c.h.b16 %v6467
      %v7150 = vunpack.c.l.b16 %v6468
      %v7151 = vunpack.c.h.b16 %v6468
      %v7152 = vunpack.c.l.b16 %v6469
      %v7153 = vunpack.c.h.b16 %v6469
      %v7154 = vunpack.c.l.b16 %v6470
      %v7155 = vunpack.c.h.b16 %v6470
      %v7156 = vunpack.c.l.b16 %v6471
      %v7157 = vunpack.c.h.b16 %v6471
      %v7158 = vunpack.c.l.b16 %v6472
      %v7159 = vunpack.c.h.b16 %v6472
      %v7160 = vunpack.c.l.b16 %v6473
      %v7161 = vunpack.c.h.b16 %v6473
      %v7162 = vunpack.c.l.b16 %v6474
      %v7163 = vunpack.c.h.b16 %v6474
      %v7164 = vunpack.c.l.b16 %v6475
      %v7165 = vunpack.c.h.b16 %v6475
      %v7166 = vunpack.c.l.b16 %v6476
      %v7167 = vunpack.c.h.b16 %v6476
      %v7168 = vunpack.c.l.b16 %v6477
      %v7169 = vunpack.c.h.b16 %v6477
      %v7170 = vunpack.c.l.b16 %v6478
      %v7171 = vunpack.c.h.b16 %v6478
      %v7172 = vunpack.c.l.b16 %v6479
      %v7173 = vunpack.c.h.b16 %v6479
      %v7174 = vunpack.c.l.b16 %v6480
      %v7175 = vunpack.c.h.b16 %v6480
      %v7176 = vunpack.c.l.b16 %v6481
      %v7177 = vunpack.c.h.b16 %v6481
      %v7178 = vunpack.c.l.b16 %v6482
      %v7179 = vunpack.c.h.b16 %v6482
      %v7180 = vunpack.c.l.b16 %v6483
      %v7181 = vunpack.c.h.b16 %v6483
      %v7182 = vunpack.c.l.b16 %v6484
      %v7183 = vunpack.c.h.b16 %v6484
      %v7184 = vunpack.c.l.b16 %v6485
      %v7185 = vunpack.c.h.b16 %v6485
      %v7186 = vunpack.c.l.b16 %v6486
      %v7187 = vunpack.c.h.b16 %v6486
      %v7188 = vunpack.c.l.b16 %v6487
      %v7189 = vunpack.c.h.b16 %v6487
      %v7190 = vunpack.c.l.b16 %v6488
      %v7191 = vunpack.c.h.b16 %v6488
      %v7192 = vunpack.c.l.b16 %v6489
      %v7193 = vunpack.c.h.b16 %v6489
      %v7194 = vunpack.c.l.b16 %v6490
      %v7195 = vunpack.c.h.b16 %v6490
      %v7196 = vunpack.c.l.b16 %v6491
      %v7197 = vunpack.c.h.b16 %v6491
      %v7198 = vunpack.c.l.b16 %v6492
      %v7199 = vunpack.c.h.b16 %v6492
      %v7200 = vunpack.c.l.b16 %v6493
      %v7201 = vunpack.c.h.b16 %v6493
      %v7202 = vunpack.c.l.b16 %v6494
      %v7203 = vunpack.c.h.b16 %v6494
      %v7204 = vunpack.c.l.b16 %v6495
      %v7205 = vunpack.c.h.b16 %v6495
      %v7206 = vunpack.c.l.b16 %v6496
      %v7207 = vunpack.c.h.b16 %v6496
      %v7208 = vunpack.c.l.b16 %v6497
      %v7209 = vunpack.c.h.b16 %v6497
      %v7210 = vunpack.c.l.b16 %v6498
      %v7211 = vunpack.c.h.b16 %v6498
      %v7212 = vunpack.c.l.b16 %v6499
      %v7213 = vunpack.c.h.b16 %v6499
      %v7214 = vunpack.c.l.b16 %v6500
      %v7215 = vunpack.c.h.b16 %v6500
      %v7216 = vunpack.c.l.b16 %v6501
      %v7217 = vunpack.c.h.b16 %v6501
      %v7218 = vunpack.c.l.b16 %v6502
      %v7219 = vunpack.c.h.b16 %v6502
      %v7220 = vunpack.c.l.b16 %v6503
      %v7221 = vunpack.c.h.b16 %v6503
      %v7222 = vunpack.c.l.b16 %v6504
      %v7223 = vunpack.c.h.b16 %v6504
      %v7224 = vunpack.c.l.b16 %v6505
      %v7225 = vunpack.c.h.b16 %v6505
      %v7226 = vunpack.c.l.b16 %v6506
      %v7227 = vunpack.c.h.b16 %v6506
      %v7228 = vunpack.c.l.b16 %v6507
      %v7229 = vunpack.c.h.b16 %v6507
      %v7230 = vunpack.c.l.b16 %v6508
      %v7231 = vunpack.c.h.b16 %v6508
      %v7232 = vunpack.c.l.b16 %v6509
      %v7233 = vunpack.c.h.b16 %v6509
      %v7234 = vunpack.c.l.b16 %v6510
      %v7235 = vunpack.c.h.b16 %v6510
      %v7236 = vunpack.c.l.b16 %v6511
      %v7237 = vunpack.c.h.b16 %v6511
      %v7238 = vunpack.c.l.b16 %v6512
      %v7239 = vunpack.c.h.b16 %v6512
      %v7240 = vunpack.c.l.b16 %v6513
      %v7241 = vunpack.c.h.b16 %v6513
      %v7242 = vunpack.c.l.b16 %v6514
      %v7243 = vunpack.c.h.b16 %v6514
      %v7244 = vunpack.c.l.b16 %v6515
      %v7245 = vunpack.c.h.b16 %v6515
      %v7246 = vunpack.c.l.b16 %v6516
      %v7247 = vunpack.c.h.b16 %v6516
      %v7248 = vunpack.c.l.b16 %v6517
      %v7249 = vunpack.c.h.b16 %v6517
      %v7250 = vunpack.c.l.b16 %v6518
      %v7251 = vunpack.c.h.b16 %v6518
      %v7252 = vunpack.c.l.b16 %v6519
      %v7253 = vunpack.c.h.b16 %v6519
      %v7254 = vunpack.c.l.b16 %v6520
      %v7255 = vunpack.c.h.b16 %v6520
      %v7256 = vunpack.c.l.b16 %v6521
      %v7257 = vunpack.c.h.b16 %v6521
      %v7258 = vunpack.c.l.b16 %v6522
      %v7259 = vunpack.c.h.b16 %v6522
      %v7260 = vunpack.c.l.b16 %v6523
      %v7261 = vunpack.c.h.b16 %v6523
      %v7262 = vunpack.c.l.b16 %v6524
      %v7263 = vunpack.c.h.b16 %v6524
      %v7264 = vunpack.c.l.b16 %v6525
      %v7265 = vunpack.c.h.b16 %v6525
      %v7266 = vunpack.c.l.b16 %v6526
      %v7267 = vunpack.c.h.b16 %v6526
      %v7268 = vunpack.c.l.b16 %v6527
      %v7269 = vunpack.c.h.b16 %v6527
      %v7270 = vunpack.c.l.b16 %v6528
      %v7271 = vunpack.c.h.b16 %v6528
      %v7272 = vunpack.c.l.b16 %v6529
      %v7273 = vunpack.c.h.b16 %v6529
      %v7274 = vunpack.c.l.b16 %v6530
      %v7275 = vunpack.c.h.b16 %v6530
      %v7276 = vunpack.c.l.b16 %v6531
      %v7277 = vunpack.c.h.b16 %v6531
      %v7278 = vunpack.c.l.b16 %v6532
      %v7279 = vunpack.c.h.b16 %v6532
      %v7280 = vunpack.c.l.b16 %v6533
      %v7281 = vunpack.c.h.b16 %v6533
      %v7282 = vunpack.c.l.b16 %v6534
      %v7283 = vunpack.c.h.b16 %v6534
      %v7284 = vunpack.c.l.b16 %v6535
      %v7285 = vunpack.c.h.b16 %v6535
      %v7286 = vunpack.c.l.b16 %v6536
      %v7287 = vunpack.c.h.b16 %v6536
      %v7288 = vunpack.c.l.b16 %v6537
      %v7289 = vunpack.c.h.b16 %v6537
      %v7290 = vunpack.c.l.b16 %v6538
      %v7291 = vunpack.c.h.b16 %v6538
      %v7292 = vunpack.c.l.b16 %v6539
      %v7293 = vunpack.c.h.b16 %v6539
      %v7294 = vunpack.c.l.b16 %v6540
      %v7295 = vunpack.c.h.b16 %v6540
      %v7296 = vunpack.c.l.b16 %v6541
      %v7297 = vunpack.c.h.b16 %v6541
      %v7298 = vunpack.c.l.b16 %v6542
      %v7299 = vunpack.c.h.b16 %v6542
      %v7300 = vunpack.c.l.b16 %v6543
      %v7301 = vunpack.c.h.b16 %v6543
      %v7302 = vunpack.c.l.b16 %v6544
      %v7303 = vunpack.c.h.b16 %v6544
      %v7304 = vunpack.c.l.b16 %v6545
      %v7305 = vunpack.c.h.b16 %v6545
      %v7306 = vunpack.c.l.b16 %v6546
      %v7307 = vunpack.c.h.b16 %v6546
      %v7308 = vunpack.c.l.b16 %v6547
      %v7309 = vunpack.c.h.b16 %v6547
      %v7310 = vunpack.c.l.b16 %v6548
      %v7311 = vunpack.c.h.b16 %v6548
      %v7312 = vunpack.c.l.b16 %v6549
      %v7313 = vunpack.c.h.b16 %v6549
      %v7314 = vunpack.c.l.b16 %v6550
      %v7315 = vunpack.c.h.b16 %v6550
      %v7316 = vunpack.c.l.b16 %v6551
      %v7317 = vunpack.c.h.b16 %v6551
      %v7318 = vunpack.c.l.b16 %v6552
      %v7319 = vunpack.c.h.b16 %v6552
      %v7320 = vunpack.c.l.b16 %v6553
      %v7321 = vunpack.c.h.b16 %v6553
      %v7322 = vunpack.c.l.b16 %v6554
      %v7323 = vunpack.c.h.b16 %v6554
      %v7324 = vunpack.c.l.b16 %v6555
      %v7325 = vunpack.c.h.b16 %v6555
      %v7326 = vunpack.c.l.b16 %v6556
      %v7327 = vunpack.c.h.b16 %v6556
      %v7328 = vunpack.c.l.b16 %v6557
      %v7329 = vunpack.c.h.b16 %v6557
      %v7330 = vunpack.c.l.b16 %v6558
      %v7331 = vunpack.c.h.b16 %v6558
      %v7332 = vunpack.c.l.b16 %v6559
      %v7333 = vunpack.c.h.b16 %v6559
      %v7334 = vunpack.c.l.b16 %v6560
      %v7335 = vunpack.c.h.b16 %v6560
      %v7336 = vunpack.c.l.b16 %v6561
      %v7337 = vunpack.c.h.b16 %v6561
      %v7338 = vunpack.c.l.b16 %v6562
      %v7339 = vunpack.c.h.b16 %v6562
      %v7340 = vunpack.c.l.b16 %v6563
      %v7341 = vunpack.c.h.b16 %v6563
      %v7342 = vunpack.c.l.b16 %v6564
      %v7343 = vunpack.c.h.b16 %v6564
      %v7344 = vunpack.c.l.b16 %v6565
      %v7345 = vunpack.c.h.b16 %v6565
      %v7346 = vunpack.c.l.b16 %v6566
      %v7347 = vunpack.c.h.b16 %v6566
      %v7348 = vunpack.c.l.b16 %v6567
      %v7349 = vunpack.c.h.b16 %v6567
      %v7350 = vunpack.c.l.b16 %v6568
      %v7351 = vunpack.c.h.b16 %v6568
      %v7352 = vunpack.c.l.b16 %v6569
      %v7353 = vunpack.c.h.b16 %v6569
      %v7354 = vunpack.c.l.b16 %v6570
      %v7355 = vunpack.c.h.b16 %v6570
      %v7356 = vunpack.c.l.b16 %v6571
      %v7357 = vunpack.c.h.b16 %v6571
      %v7358 = vunpack.c.l.b16 %v6572
      %v7359 = vunpack.c.h.b16 %v6572
      %v7360 = vunpack.c.l.b16 %v6573
      %v7361 = vunpack.c.h.b16 %v6573
      %v7362 = vunpack.c.l.b16 %v6574
      %v7363 = vunpack.c.h.b16 %v6574
      %v7364 = vunpack.c.l.b16 %v6575
      %v7365 = vunpack.c.h.b16 %v6575
      %v7366 = vunpack.c.l.b16 %v6576
      %v7367 = vunpack.c.h.b16 %v6576
      %v7368 = vunpack.c.l.b16 %v6577
      %v7369 = vunpack.c.h.b16 %v6577
      %v7370 = vunpack.c.l.b16 %v6578
      %v7371 = vunpack.c.h.b16 %v6578
      %v7372 = vunpack.c.l.b16 %v6579
      %v7373 = vunpack.c.h.b16 %v6579
      %v7374 = vunpack.c.l.b16 %v6580
      %v7375 = vunpack.c.h.b16 %v6580
      %v7376 = vunpack.c.l.b16 %v6581
      %v7377 = vunpack.c.h.b16 %v6581
      %v7378 = vunpack.c.l.b16 %v6582
      %v7379 = vunpack.c.h.b16 %v6582
      %v7380 = vunpack.c.l.b16 %v6583
      %v7381 = vunpack.c.h.b16 %v6583
      %v7382 = vunpack.c.l.b16 %v6584
      %v7383 = vunpack.c.h.b16 %v6584
      %v7384 = vunpack.c.l.b16 %v6585
      %v7385 = vunpack.c.h.b16 %v6585
      %v7386 = vunpack.c.l.b16 %v6586
      %v7387 = vunpack.c.h.b16 %v6586
      %v7388 = vunpack.c.l.b16 %v6587
      %v7389 = vunpack.c.h.b16 %v6587
      %v7390 = vunpack.c.l.b16 %v6588
      %v7391 = vunpack.c.h.b16 %v6588
      %v7392 = vunpack.c.l.b16 %v6589
      %v7393 = vunpack.c.h.b16 %v6589
      %v7394 = vunpack.c.l.b16 %v6590
      %v7395 = vunpack.c.h.b16 %v6590
      %v7396 = vunpack.c.l.b16 %v6591
      %v7397 = vunpack.c.h.b16 %v6591
      %v7398 = vunpack.c.l.b16 %v6592
      %v7399 = vunpack.c.h.b16 %v6592
      %v7400 = vunpack.c.l.b16 %v6593
      %v7401 = vunpack.c.h.b16 %v6593
      %v7402 = vunpack.c.l.b16 %v6594
      %v7403 = vunpack.c.h.b16 %v6594
      %v7404 = vunpack.c.l.b16 %v6595
      %v7405 = vunpack.c.h.b16 %v6595
      %v7406 = vunpack.c.l.b16 %v6596
      %v7407 = vunpack.c.h.b16 %v6596
      %v7408 = vunpack.c.l.b16 %v6597
      %v7409 = vunpack.c.h.b16 %v6597
      %v7410 = vunpack.c.l.b16 %v6598
      %v7411 = vunpack.c.h.b16 %v6598
      %v7412 = vunpack.c.l.b16 %v6599
      %v7413 = vunpack.c.h.b16 %v6599
      %v7414 = vunpack.c.l.b16 %v6600
      %v7415 = vunpack.c.h.b16 %v6600
      %v7416 = vunpack.c.l.b16 %v6601
      %v7417 = vunpack.c.h.b16 %v6601
      %v7418 = vunpack.c.l.b16 %v6602
      %v7419 = vunpack.c.h.b16 %v6602
      %v7420 = vunpack.c.l.b16 %v6603
      %v7421 = vunpack.c.h.b16 %v6603
      %v7422 = vunpack.c.l.b16 %v6604
      %v7423 = vunpack.c.h.b16 %v6604
      %v7424 = vunpack.c.l.b16 %v6605
      %v7425 = vunpack.c.h.b16 %v6605
      %v7426 = vunpack.c.l.b16 %v6606
      %v7427 = vunpack.c.h.b16 %v6606
      %v7428 = vunpack.c.l.b16 %v6607
      %v7429 = vunpack.c.h.b16 %v6607
      %v7430 = vunpack.c.l.b16 %v6608
      %v7431 = vunpack.c.h.b16 %v6608
      %v7432 = vunpack.c.l.b16 %v6609
      %v7433 = vunpack.c.h.b16 %v6609
      %v7434 = vunpack.c.l.b16 %v6610
      %v7435 = vunpack.c.h.b16 %v6610
      %v7436 = vunpack.c.l.b16 %v6611
      %v7437 = vunpack.c.h.b16 %v6611
      %v7438 = vunpack.c.l.b16 %v6612
      %v7439 = vunpack.c.h.b16 %v6612
      %v7440 = vunpack.c.l.b16 %v6613
      %v7441 = vunpack.c.h.b16 %v6613
      %v7442 = vunpack.c.l.b16 %v6614
      %v7443 = vunpack.c.h.b16 %v6614
      %v7444 = vunpack.c.l.b16 %v6615
      %v7445 = vunpack.c.h.b16 %v6615
      %v7446 = vunpack.c.l.b16 %v6616
      %v7447 = vunpack.c.h.b16 %v6616
      %v7448 = vunpack.c.l.b16 %v6617
      %v7449 = vunpack.c.h.b16 %v6617
      %v7450 = vunpack.c.l.b16 %v6618
      %v7451 = vunpack.c.h.b16 %v6618
      %v7452 = vunpack.c.l.b16 %v6619
      %v7453 = vunpack.c.h.b16 %v6619
      %v7454 = vunpack.c.l.b16 %v6620
      %v7455 = vunpack.c.h.b16 %v6620
      %v7456 = vunpack.c.l.b16 %v6621
      %v7457 = vunpack.c.h.b16 %v6621
      %v7458 = vunpack.c.l.b16 %v6622
      %v7459 = vunpack.c.h.b16 %v6622
      %v7460 = vunpack.c.l.b16 %v6623
      %v7461 = vunpack.c.h.b16 %v6623
      %v7462 = vunpack.c.l.b16 %v6624
      %v7463 = vunpack.c.h.b16 %v6624
      %v7464 = vunpack.c.l.b16 %v6625
      %v7465 = vunpack.c.h.b16 %v6625
      %v7466 = vunpack.c.l.b16 %v6626
      %v7467 = vunpack.c.h.b16 %v6626
      %v7468 = vunpack.c.l.b16 %v6627
      %v7469 = vunpack.c.h.b16 %v6627
      %v7470 = vunpack.c.l.b16 %v6628
      %v7471 = vunpack.c.h.b16 %v6628
      %v7472 = vunpack.c.l.b16 %v6629
      %v7473 = vunpack.c.h.b16 %v6629
      %v7474 = vunpack.c.l.b16 %v6630
      %v7475 = vunpack.c.h.b16 %v6630
      %v7476 = vunpack.c.l.b16 %v6631
      %v7477 = vunpack.c.h.b16 %v6631
      %v7478 = vunpack.c.l.b16 %v6632
      %v7479 = vunpack.c.h.b16 %v6632
      %v7480 = vunpack.c.l.b16 %v6633
      %v7481 = vunpack.c.h.b16 %v6633
      %v7482 = vunpack.c.l.b16 %v6634
      %v7483 = vunpack.c.h.b16 %v6634
      %v7484 = vunpack.c.l.b16 %v6635
      %v7485 = vunpack.c.h.b16 %v6635
      %v7486 = vunpack.c.l.b16 %v6636
      %v7487 = vunpack.c.h.b16 %v6636
      %v7488 = vunpack.c.l.b16 %v6637
      %v7489 = vunpack.c.h.b16 %v6637
      %v7490 = vunpack.c.l.b16 %v6638
      %v7491 = vunpack.c.h.b16 %v6638
      %v7492 = vunpack.c.l.b16 %v6639
      %v7493 = vunpack.c.h.b16 %v6639
      %v7494 = vunpack.c.l.b16 %v6640
      %v7495 = vunpack.c.h.b16 %v6640
      %v7496 = vunpack.c.l.b16 %v6641
      %v7497 = vunpack.c.h.b16 %v6641
      %v7498 = vunpack.c.l.b16 %v6642
      %v7499 = vunpack.c.h.b16 %v6642
      %v7500 = vunpack.c.l.b16 %v6643
      %v7501 = vunpack.c.h.b16 %v6643
      %v7502 = vunpack.c.l.b16 %v6644
      %v7503 = vunpack.c.h.b16 %v6644
      %v7504 = vunpack.c.l.b16 %v6645
      %v7505 = vunpack.c.h.b16 %v6645
      %v7506 = vunpack.c.l.b16 %v6646
      %v7507 = vunpack.c.h.b16 %v6646
      %v7508 = vunpack.c.l.b16 %v6647
      %v7509 = vunpack.c.h.b16 %v6647
      %v7510 = vunpack.c.l.b16 %v6648
      %v7511 = vunpack.c.h.b16 %v6648
      %v7512 = vunpack.c.l.b16 %v6649
      %v7513 = vunpack.c.h.b16 %v6649
      %v7514 = vunpack.c.l.b16 %v6650
      %v7515 = vunpack.c.h.b16 %v6650
      %v7516 = vunpack.c.l.b16 %v6651
      %v7517 = vunpack.c.h.b16 %v6651
      %v7518 = vunpack.c.l.b16 %v6652
      %v7519 = vunpack.c.h.b16 %v6652
      %v7520 = vunpack.c.l.b16 %v6653
      %v7521 = vunpack.c.h.b16 %v6653
      %v7522 = vunpack.c.l.b16 %v6654
      %v7523 = vunpack.c.h.b16 %v6654
      %v7524 = vunpack.c.l.b16 %v6655
      %v7525 = vunpack.c.h.b16 %v6655
      %v7526 = vunpack.c.l.b16 %v6656
      %v7527 = vunpack.c.h.b16 %v6656
      %v7528 = vunpack.c.l.b16 %v6657
      %v7529 = vunpack.c.h.b16 %v6657
      %v7530 = vunpack.c.l.b16 %v6658
      %v7531 = vunpack.c.h.b16 %v6658
      %v7532 = vunpack.c.l.b16 %v6659
      %v7533 = vunpack.c.h.b16 %v6659
      %v7534 = vunpack.c.l.b16 %v6660
      %v7535 = vunpack.c.h.b16 %v6660
      %v7536 = vunpack.c.l.b16 %v6661
      %v7537 = vunpack.c.h.b16 %v6661
      %v7538 = vunpack.c.l.b16 %v6662
      %v7539 = vunpack.c.h.b16 %v6662
      %v7540 = vunpack.c.l.b16 %v6663
      %v7541 = vunpack.c.h.b16 %v6663
      %v7542 = vunpack.c.l.b16 %v6664
      %v7543 = vunpack.c.h.b16 %v6664
      %v7544 = vunpack.c.l.b16 %v6665
      %v7545 = vunpack.c.h.b16 %v6665
      %v7546 = vunpack.c.l.b16 %v6666
      %v7547 = vunpack.c.h.b16 %v6666
      %v7548 = vunpack.c.l.b16 %v6667
      %v7549 = vunpack.c.h.b16 %v6667
      %v7550 = vunpack.c.l.b16 %v6668
      %v7551 = vunpack.c.h.b16 %v6668
      %v7552 = vunpack.c.l.b16 %v6669
      %v7553 = vunpack.c.h.b16 %v6669
      %v7554 = vunpack.c.l.b16 %v6670
      %v7555 = vunpack.c.h.b16 %v6670
      %v7556 = vunpack.c.l.b16 %v6671
      %v7557 = vunpack.c.h.b16 %v6671
      %v7558 = vunpack.c.l.b16 %v6672
      %v7559 = vunpack.c.h.b16 %v6672
      %v7560 = vunpack.c.l.b16 %v6673
      %v7561 = vunpack.c.h.b16 %v6673
      %v7562 = vpack.c.b16 %v7122, %v7114
      %v7563 = vpack.c.b16 %v7123, %v7115
      %v7564 = vpack.c.b16 %v7124, %v7116
      %v7565 = vpack.c.b16 %v7125, %v7117
      %v7566 = vpack.c.b16 %v7126, %v7118
      %v7567 = vpack.c.b16 %v7127, %v7119
      %v7568 = vpack.c.b16 %v7128, %v7120
      %v7569 = vpack.c.b16 %v7129, %v7121
      %v7570 = vpack.c.b16 %v7138, %v7130
      %v7571 = vpack.c.b16 %v7139, %v7131
      %v7572 = vpack.c.b16 %v7140, %v7132
      %v7573 = vpack.c.b16 %v7141, %v7133
      %v7574 = vpack.c.b16 %v7142, %v7134
      %v7575 = vpack.c.b16 %v7143, %v7135
      %v7576 = vpack.c.b16 %v7144, %v7136
      %v7577 = vpack.c.b16 %v7145, %v7137
      %v7578 = vpack.c.b16 %v7154, %v7146
      %v7579 = vpack.c.b16 %v7155, %v7147
      %v7580 = vpack.c.b16 %v7156, %v7148
      %v7581 = vpack.c.b16 %v7157, %v7149
      %v7582 = vpack.c.b16 %v7158, %v7150
      %v7583 = vpack.c.b16 %v7159, %v7151
      %v7584 = vpack.c.b16 %v7160, %v7152
      %v7585 = vpack.c.b16 %v7161, %v7153
      %v7586 = vpack.c.b16 %v7170, %v7162
      %v7587 = vpack.c.b16 %v7171, %v7163
      %v7588 = vpack.c.b16 %v7172, %v7164
      %v7589 = vpack.c.b16 %v7173, %v7165
      %v7590 = vpack.c.b16 %v7174, %v7166
      %v7591 = vpack.c.b16 %v7175, %v7167
      %v7592 = vpack.c.b16 %v7176, %v7168
      %v7593 = vpack.c.b16 %v7177, %v7169
      %v7594 = vpack.c.b16 %v7186, %v7178
      %v7595 = vpack.c.b16 %v7187, %v7179
      %v7596 = vpack.c.b16 %v7188, %v7180
      %v7597 = vpack.c.b16 %v7189, %v7181
      %v7598 = vpack.c.b16 %v7190, %v7182
      %v7599 = vpack.c.b16 %v7191, %v7183
      %v7600 = vpack.c.b16 %v7192, %v7184
      %v7601 = vpack.c.b16 %v7193, %v7185
      %v7602 = vpack.c.b16 %v7202, %v7194
      %v7603 = vpack.c.b16 %v7203, %v7195
      %v7604 = vpack.c.b16 %v7204, %v7196
      %v7605 = vpack.c.b16 %v7205, %v7197
      %v7606 = vpack.c.b16 %v7206, %v7198
      %v7607 = vpack.c.b16 %v7207, %v7199
      %v7608 = vpack.c.b16 %v7208, %v7200
      %v7609 = vpack.c.b16 %v7209, %v7201
      %v7610 = vpack.c.b16 %v7218, %v7210
      %v7611 = vpack.c.b16 %v7219, %v7211
      %v7612 = vpack.c.b16 %v7220, %v7212
      %v7613 = vpack.c.b16 %v7221, %v7213
      %v7614 = vpack.c.b16 %v7222, %v7214
      %v7615 = vpack.c.b16 %v7223, %v7215
      %v7616 = vpack.c.b16 %v7224, %v7216
      %v7617 = vpack.c.b16 %v7225, %v7217
      %v7618 = vpack.c.b16 %v7234, %v7226
      %v7619 = vpack.c.b16 %v7235, %v7227
      %v7620 = vpack.c.b16 %v7236, %v7228
      %v7621 = vpack.c.b16 %v7237, %v7229
      %v7622 = vpack.c.b16 %v7238, %v7230
      %v7623 = vpack.c.b16 %v7239, %v7231
      %v7624 = vpack.c.b16 %v7240, %v7232
      %v7625 = vpack.c.b16 %v7241, %v7233
      %v7626 = vpack.c.b16 %v7250, %v7242
      %v7627 = vpack.c.b16 %v7251, %v7243
      %v7628 = vpack.c.b16 %v7252, %v7244
      %v7629 = vpack.c.b16 %v7253, %v7245
      %v7630 = vpack.c.b16 %v7254, %v7246
      %v7631 = vpack.c.b16 %v7255, %v7247
      %v7632 = vpack.c.b16 %v7256, %v7248
      %v7633 = vpack.c.b16 %v7257, %v7249
      %v7634 = vpack.c.b16 %v7266, %v7258
      %v7635 = vpack.c.b16 %v7267, %v7259
      %v7636 = vpack.c.b16 %v7268, %v7260
      %v7637 = vpack.c.b16 %v7269, %v7261
      %v7638 = vpack.c.b16 %v7270, %v7262
      %v7639 = vpack.c.b16 %v7271, %v7263
      %v7640 = vpack.c.b16 %v7272, %v7264
      %v7641 = vpack.c.b16 %v7273, %v7265
      %v7642 = vpack.c.b16 %v7282, %v7274
      %v7643 = vpack.c.b16 %v7283, %v7275
      %v7644 = vpack.c.b16 %v7284, %v7276
      %v7645 = vpack.c.b16 %v7285, %v7277
      %v7646 = vpack.c.b16 %v7286, %v7278
      %v7647 = vpack.c.b16 %v7287, %v7279
      %v7648 = vpack.c.b16 %v7288, %v7280
      %v7649 = vpack.c.b16 %v7289, %v7281
      %v7650 = vpack.c.b16 %v7298, %v7290
      %v7651 = vpack.c.b16 %v7299, %v7291
      %v7652 = vpack.c.b16 %v7300, %v7292
      %v7653 = vpack.c.b16 %v7301, %v7293
      %v7654 = vpack.c.b16 %v7302, %v7294
      %v7655 = vpack.c.b16 %v7303, %v7295
      %v7656 = vpack.c.b16 %v7304, %v7296
      %v7657 = vpack.c.b16 %v7305, %v7297
      %v7658 = vpack.c.b16 %v7314, %v7306
      %v7659 = vpack.c.b16 %v7315, %v7307
      %v7660 = vpack.c.b16 %v7316, %v7308
      %v7661 = vpack.c.b16 %v7317, %v7309
      %v7662 = vpack.c.b16 %v7318, %v7310
      %v7663 = vpack.c.b16 %v7319, %v7311
      %v7664 = vpack.c.b16 %v7320, %v7312
      %v7665 = vpack.c.b16 %v7321, %v7313
      %v7666 = vpack.c.b16 %v7330, %v7322
      %v7667 = vpack.c.b16 %v7331, %v7323
      %v7668 = vpack.c.b16 %v7332, %v7324
      %v7669 = vpack.c.b16 %v7333, %v7325
      %v7670 = vpack.c.b16 %v7334, %v7326
      %v7671 = vpack.c.b16 %v7335, %v7327
      %v7672 = vpack.c.b16 %v7336, %v7328
      %v7673 = vpack.c.b16 %v7337, %v7329
      %v7674 = vpack.c.b16 %v7346, %v7338
      %v7675 = vpack.c.b16 %v7347, %v7339
      %v7676 = vpack.c.b16 %v7348, %v7340
      %v7677 = vpack.c.b16 %v7349, %v7341
      %v7678 = vpack.c.b16 %v7350, %v7342
      %v7679 = vpack.c.b16 %v7351, %v7343
      %v7680 = vpack.c.b16 %v7352, %v7344
      %v7681 = vpack.c.b16 %v7353, %v7345
      %v7682 = vpack.c.b16 %v7362, %v7354
      %v7683 = vpack.c.b16 %v7363, %v7355
      %v7684 = vpack.c.b16 %v7364, %v7356
      %v7685 = vpack.c.b16 %v7365, %v7357
      %v7686 = vpack.c.b16 %v7366, %v7358
      %v7687 = vpack.c.b16 %v7367, %v7359
      %v7688 = vpack.c.b16 %v7368, %v7360
      %v7689 = vpack.c.b16 %v7369, %v7361
      %v7690 = vpack.c.b16 %v7378, %v7370
      %v7691 = vpack.c.b16 %v7379, %v7371
      %v7692 = vpack.c.b16 %v7380, %v7372
      %v7693 = vpack.c.b16 %v7381, %v7373
      %v7694 = vpack.c.b16 %v7382, %v7374
      %v7695 = vpack.c.b16 %v7383, %v7375
      %v7696 = vpack.c.b16 %v7384, %v7376
      %v7697 = vpack.c.b16 %v7385, %v7377
      %v7698 = vpack.c.b16 %v7394, %v7386
      %v7699 = vpack.c.b16 %v7395, %v7387
      %v7700 = vpack.c.b16 %v7396, %v7388
      %v7701 = vpack.c.b16 %v7397, %v7389
      %v7702 = vpack.c.b16 %v7398, %v7390
      %v7703 = vpack.c.b16 %v7399, %v7391
      %v7704 = vpack.c.b16 %v7400, %v7392
      %v7705 = vpack.c.b16 %v7401, %v7393
      %v7706 = vpack.c.b16 %v7410, %v7402
      %v7707 = vpack.c.b16 %v7411, %v7403
      %v7708 = vpack.c.b16 %v7412, %v7404
      %v7709 = vpack.c.b16 %v7413, %v7405
      %v7710 = vpack.c.b16 %v7414, %v7406
      %v7711 = vpack.c.b16 %v7415, %v7407
      %v7712 = vpack.c.b16 %v7416, %v7408
      %v7713 = vpack.c.b16 %v7417, %v7409
      %v7714 = vpack.c.b16 %v7426, %v7418
      %v7715 = vpack.c.b16 %v7427, %v7419
      %v7716 = vpack.c.b16 %v7428, %v7420
      %v7717 = vpack.c.b16 %v7429, %v7421
      %v7718 = vpack.c.b16 %v7430, %v7422
      %v7719 = vpack.c.b16 %v7431, %v7423
      %v7720 = vpack.c.b16 %v7432, %v7424
      %v7721 = vpack.c.b16 %v7433, %v7425
      %v7722 = vpack.c.b16 %v7442, %v7434
      %v7723 = vpack.c.b16 %v7443, %v7435
      %v7724 = vpack.c.b16 %v7444, %v7436
      %v7725 = vpack.c.b16 %v7445, %v7437
      %v7726 = vpack.c.b16 %v7446, %v7438
      %v7727 = vpack.c.b16 %v7447, %v7439
      %v7728 = vpack.c.b16 %v7448, %v7440
      %v7729 = vpack.c.b16 %v7449, %v7441
      %v7730 = vpack.c.b16 %v7458, %v7450
      %v7731 = vpack.c.b16 %v7459, %v7451
      %v7732 = vpack.c.b16 %v7460, %v7452
      %v7733 = vpack.c.b16 %v7461, %v7453
      %v7734 = vpack.c.b16 %v7462, %v7454
      %v7735 = vpack.c.b16 %v7463, %v7455
      %v7736 = vpack.c.b16 %v7464, %v7456
      %v7737 = vpack.c.b16 %v7465, %v7457
      %v7738 = vpack.c.b16 %v7474, %v7466
      %v7739 = vpack.c.b16 %v7475, %v7467
      %v7740 = vpack.c.b16 %v7476, %v7468
      %v7741 = vpack.c.b16 %v7477, %v7469
      %v7742 = vpack.c.b16 %v7478, %v7470
      %v7743 = vpack.c.b16 %v7479, %v7471
      %v7744 = vpack.c.b16 %v7480, %v7472
      %v7745 = vpack.c.b16 %v7481, %v7473
      %v7746 = vpack.c.b16 %v7490, %v7482
      %v7747 = vpack.c.b16 %v7491, %v7483
      %v7748 = vpack.c.b16 %v7492, %v7484
      %v7749 = vpack.c.b16 %v7493, %v7485
      %v7750 = vpack.c.b16 %v7494, %v7486
      %v7751 = vpack.c.b16 %v7495, %v7487
      %v7752 = vpack.c.b16 %v7496, %v7488
      %v7753 = vpack.c.b16 %v7497, %v7489
      %v7754 = vpack.c.b16 %v7506, %v7498
      %v7755 = vpack.c.b16 %v7507, %v7499
      %v7756 = vpack.c.b16 %v7508, %v7500
      %v7757 = vpack.c.b16 %v7509, %v7501
      %v7758 = vpack.c.b16 %v7510, %v7502
      %v7759 = vpack.c.b16 %v7511, %v7503
      %v7760 = vpack.c.b16 %v7512, %v7504
      %v7761 = vpack.c.b16 %v7513, %v7505
      %v7762 = vpack.c.b16 %v7522, %v7514
      %v7763 = vpack.c.b16 %v7523, %v7515
      %v7764 = vpack.c.b16 %v7524, %v7516
      %v7765 = vpack.c.b16 %v7525, %v7517
      %v7766 = vpack.c.b16 %v7526, %v7518
      %v7767 = vpack.c.b16 %v7527, %v7519
      %v7768 = vpack.c.b16 %v7528, %v7520
      %v7769 = vpack.c.b16 %v7529, %v7521
      %v7770 = vpack.c.b16 %v7538, %v7530
      %v7771 = vpack.c.b16 %v7539, %v7531
      %v7772 = vpack.c.b16 %v7540, %v7532
      %v7773 = vpack.c.b16 %v7541, %v7533
      %v7774 = vpack.c.b16 %v7542, %v7534
      %v7775 = vpack.c.b16 %v7543, %v7535
      %v7776 = vpack.c.b16 %v7544, %v7536
      %v7777 = vpack.c.b16 %v7545, %v7537
      %v7778 = vpack.c.b16 %v7554, %v7546
      %v7779 = vpack.c.b16 %v7555, %v7547
      %v7780 = vpack.c.b16 %v7556, %v7548
      %v7781 = vpack.c.b16 %v7557, %v7549
      %v7782 = vpack.c.b16 %v7558, %v7550
      %v7783 = vpack.c.b16 %v7559, %v7551
      %v7784 = vpack.c.b16 %v7560, %v7552
      %v7785 = vpack.c.b16 %v7561, %v7553
      %v8003 = vsel %vm4834, %v6885, 0
      %v8006 = vsel %vm4834, %v6889, 0
      %v8009 = vand.u32 %v7778, %v4843
      %v8012 = vand.u32 %v7779, %v4843
      %v8015 = vand.u32 %v7780, %v4843
      %v8018 = vand.u32 %v7781, %v4843
      %v8021 = vand.u32 %v7782, %v4843
      %v8024 = vand.u32 %v7783, %v4843
      %v8027 = vand.u32 %v7784, %v4843
      %v8030 = vand.u32 %v7785, %v4843
      %8032 = vmatpush.bf16.msra.mxu0 %v7618
      %8033 = vmatpush.bf16.msra.mxu0 %v7610
      %8034 = vmatpush.bf16.msra.mxu0 %v7602
      %8035 = vmatpush.bf16.msra.mxu0 %v7594
      %8036 = vmatpush.bf16.msra.mxu0 %v7586
      %8037 = vmatpush.bf16.msra.mxu0 %v7578
      %8038 = vmatpush.bf16.msra.mxu0 %v7570
      %8039 = vmatpush.bf16.msra.mxu0 %v7562
      %8040 = vmatmul.bf16.gmra.mxu0 %v6882
      %v8041 = vpop.f32.mrf.mxu0
      %v8042 = vadd.f32 0.0, %v8041
      %v8043 = vpop.f32.mrf.mxu0
      %v8044 = vadd.f32 0.0, %v8043
      %8045 = vmatmul.bf16.gmra.mxu0 %v6886
      %v8046 = vpop.f32.mrf.mxu0
      %v8047 = vadd.f32 0.0, %v8046
      %v8048 = vpop.f32.mrf.mxu0
      %v8049 = vadd.f32 0.0, %v8048
      %8050 = vdwg.mxu0
      %8051 = vmatpush.bf16.msra.mxu0 %v7682
      %8052 = vmatpush.bf16.msra.mxu0 %v7674
      %8053 = vmatpush.bf16.msra.mxu0 %v7666
      %8054 = vmatpush.bf16.msra.mxu0 %v7658
      %8055 = vmatpush.bf16.msra.mxu0 %v7650
      %8056 = vmatpush.bf16.msra.mxu0 %v7642
      %8057 = vmatpush.bf16.msra.mxu0 %v7634
      %8058 = vmatpush.bf16.msra.mxu0 %v7626
      %8059 = vmatmul.bf16.gmra.mxu0 %v6883
      %v8060 = vpop.f32.mrf.mxu0
      %v8061 = vadd.f32 %v8042, %v8060
      %v8062 = vpop.f32.mrf.mxu0
      %v8063 = vadd.f32 %v8044, %v8062
      %8064 = vmatmul.bf16.gmra.mxu0 %v6887
      %v8065 = vpop.f32.mrf.mxu0
      %v8066 = vadd.f32 %v8047, %v8065
      %v8067 = vpop.f32.mrf.mxu0
      %v8068 = vadd.f32 %v8049, %v8067
      %8069 = vdwg.mxu0
      %8070 = vmatpush.bf16.msra.mxu0 %v7746
      %8071 = vmatpush.bf16.msra.mxu0 %v7738
      %8072 = vmatpush.bf16.msra.mxu0 %v7730
      %8073 = vmatpush.bf16.msra.mxu0 %v7722
      %8074 = vmatpush.bf16.msra.mxu0 %v7714
      %8075 = vmatpush.bf16.msra.mxu0 %v7706
      %8076 = vmatpush.bf16.msra.mxu0 %v7698
      %8077 = vmatpush.bf16.msra.mxu0 %v7690
      %8078 = vmatmul.bf16.gmra.mxu0 %v6884
      %v8079 = vpop.f32.mrf.mxu0
      %v8080 = vadd.f32 %v8061, %v8079
      %v8081 = vpop.f32.mrf.mxu0
      %v8082 = vadd.f32 %v8063, %v8081
      %8083 = vmatmul.bf16.gmra.mxu0 %v6888
      %v8084 = vpop.f32.mrf.mxu0
      %v8085 = vadd.f32 %v8066, %v8084
      %v8086 = vpop.f32.mrf.mxu0
      %v8087 = vadd.f32 %v8068, %v8086
      %8088 = vdwg.mxu0
      %8089 = vmatpush.bf16.msra.mxu0 0
      %8090 = vmatpush.bf16.msra.mxu0 0
      %8091 = vmatpush.bf16.msra.mxu0 0
      %8092 = vmatpush.bf16.msra.mxu0 0
      %8093 = vmatpush.bf16.msra.mxu0 %v8009
      %8094 = vmatpush.bf16.msra.mxu0 %v7770
      %8095 = vmatpush.bf16.msra.mxu0 %v7762
      %8096 = vmatpush.bf16.msra.mxu0 %v7754
      %8097 = vmatmul.bf16.gmra.mxu0 %v8003
      %v8098 = vpop.f32.mrf.mxu0
      %v8099 = vadd.f32 %v8080, %v8098
      %v8100 = vpop.f32.mrf.mxu0
      %v8101 = vadd.f32 %v8082, %v8100
      %8102 = vmatmul.bf16.gmra.mxu0 %v8006
      %v8103 = vpop.f32.mrf.mxu0
      %v8104 = vadd.f32 %v8085, %v8103
      %v8105 = vpop.f32.mrf.mxu0
      %v8106 = vadd.f32 %v8087, %v8105
      %8107 = vdwg.mxu0
      %8108 = vmatpush.bf16.msra.mxu0 %v7619
      %8109 = vmatpush.bf16.msra.mxu0 %v7611
      %8110 = vmatpush.bf16.msra.mxu0 %v7603
      %8111 = vmatpush.bf16.msra.mxu0 %v7595
      %8112 = vmatpush.bf16.msra.mxu0 %v7587
      %8113 = vmatpush.bf16.msra.mxu0 %v7579
      %8114 = vmatpush.bf16.msra.mxu0 %v7571
      %8115 = vmatpush.bf16.msra.mxu0 %v7563
      %8116 = vmatmul.bf16.gmra.mxu0 %v6882
      %v8117 = vpop.f32.mrf.mxu0
      %v8118 = vadd.f32 0.0, %v8117
      %v8119 = vpop.f32.mrf.mxu0
      %v8120 = vadd.f32 0.0, %v8119
      %8121 = vmatmul.bf16.gmra.mxu0 %v6886
      %v8122 = vpop.f32.mrf.mxu0
      %v8123 = vadd.f32 0.0, %v8122
      %v8124 = vpop.f32.mrf.mxu0
      %v8125 = vadd.f32 0.0, %v8124
      %8126 = vdwg.mxu0
      %8127 = vmatpush.bf16.msra.mxu0 %v7683
      %8128 = vmatpush.bf16.msra.mxu0 %v7675
      %8129 = vmatpush.bf16.msra.mxu0 %v7667
      %8130 = vmatpush.bf16.msra.mxu0 %v7659
      %8131 = vmatpush.bf16.msra.mxu0 %v7651
      %8132 = vmatpush.bf16.msra.mxu0 %v7643
      %8133 = vmatpush.bf16.msra.mxu0 %v7635
      %8134 = vmatpush.bf16.msra.mxu0 %v7627
      %8135 = vmatmul.bf16.gmra.mxu0 %v6883
      %v8136 = vpop.f32.mrf.mxu0
      %v8137 = vadd.f32 %v8118, %v8136
      %v8138 = vpop.f32.mrf.mxu0
      %v8139 = vadd.f32 %v8120, %v8138
      %8140 = vmatmul.bf16.gmra.mxu0 %v6887
      %v8141 = vpop.f32.mrf.mxu0
      %v8142 = vadd.f32 %v8123, %v8141
      %v8143 = vpop.f32.mrf.mxu0
      %v8144 = vadd.f32 %v8125, %v8143
      %8145 = vdwg.mxu0
      %8146 = vmatpush.bf16.msra.mxu0 %v7747
      %8147 = vmatpush.bf16.msra.mxu0 %v7739
      %8148 = vmatpush.bf16.msra.mxu0 %v7731
      %8149 = vmatpush.bf16.msra.mxu0 %v7723
      %8150 = vmatpush.bf16.msra.mxu0 %v7715
      %8151 = vmatpush.bf16.msra.mxu0 %v7707
      %8152 = vmatpush.bf16.msra.mxu0 %v7699
      %8153 = vmatpush.bf16.msra.mxu0 %v7691
      %8154 = vmatmul.bf16.gmra.mxu0 %v6884
      %v8155 = vpop.f32.mrf.mxu0
      %v8156 = vadd.f32 %v8137, %v8155
      %v8157 = vpop.f32.mrf.mxu0
      %v8158 = vadd.f32 %v8139, %v8157
      %8159 = vmatmul.bf16.gmra.mxu0 %v6888
      %v8160 = vpop.f32.mrf.mxu0
      %v8161 = vadd.f32 %v8142, %v8160
      %v8162 = vpop.f32.mrf.mxu0
      %v8163 = vadd.f32 %v8144, %v8162
      %8164 = vdwg.mxu0
      %8165 = vmatpush.bf16.msra.mxu0 0
      %8166 = vmatpush.bf16.msra.mxu0 0
      %8167 = vmatpush.bf16.msra.mxu0 0
      %8168 = vmatpush.bf16.msra.mxu0 0
      %8169 = vmatpush.bf16.msra.mxu0 %v8012
      %8170 = vmatpush.bf16.msra.mxu0 %v7771
      %8171 = vmatpush.bf16.msra.mxu0 %v7763
      %8172 = vmatpush.bf16.msra.mxu0 %v7755
      %8173 = vmatmul.bf16.gmra.mxu0 %v8003
      %v8174 = vpop.f32.mrf.mxu0
      %v8175 = vadd.f32 %v8156, %v8174
      %v8176 = vpop.f32.mrf.mxu0
      %v8177 = vadd.f32 %v8158, %v8176
      %8178 = vmatmul.bf16.gmra.mxu0 %v8006
      %v8179 = vpop.f32.mrf.mxu0
      %v8180 = vadd.f32 %v8161, %v8179
      %v8181 = vpop.f32.mrf.mxu0
      %v8182 = vadd.f32 %v8163, %v8181
      %8183 = vdwg.mxu0
      %8184 = vmatpush.bf16.msra.mxu0 %v7620
      %8185 = vmatpush.bf16.msra.mxu0 %v7612
      %8186 = vmatpush.bf16.msra.mxu0 %v7604
      %8187 = vmatpush.bf16.msra.mxu0 %v7596
      %8188 = vmatpush.bf16.msra.mxu0 %v7588
      %8189 = vmatpush.bf16.msra.mxu0 %v7580
      %8190 = vmatpush.bf16.msra.mxu0 %v7572
      %8191 = vmatpush.bf16.msra.mxu0 %v7564
      %8192 = vmatmul.bf16.gmra.mxu0 %v6882
      %v8193 = vpop.f32.mrf.mxu0
      %v8194 = vadd.f32 0.0, %v8193
      %v8195 = vpop.f32.mrf.mxu0
      %v8196 = vadd.f32 0.0, %v8195
      %8197 = vmatmul.bf16.gmra.mxu0 %v6886
      %v8198 = vpop.f32.mrf.mxu0
      %v8199 = vadd.f32 0.0, %v8198
      %v8200 = vpop.f32.mrf.mxu0
      %v8201 = vadd.f32 0.0, %v8200
      %8202 = vdwg.mxu0
      %8203 = vmatpush.bf16.msra.mxu0 %v7684
      %8204 = vmatpush.bf16.msra.mxu0 %v7676
      %8205 = vmatpush.bf16.msra.mxu0 %v7668
      %8206 = vmatpush.bf16.msra.mxu0 %v7660
      %8207 = vmatpush.bf16.msra.mxu0 %v7652
      %8208 = vmatpush.bf16.msra.mxu0 %v7644
      %8209 = vmatpush.bf16.msra.mxu0 %v7636
      %8210 = vmatpush.bf16.msra.mxu0 %v7628
      %8211 = vmatmul.bf16.gmra.mxu0 %v6883
      %v8212 = vpop.f32.mrf.mxu0
      %v8213 = vadd.f32 %v8194, %v8212
      %v8214 = vpop.f32.mrf.mxu0
      %v8215 = vadd.f32 %v8196, %v8214
      %8216 = vmatmul.bf16.gmra.mxu0 %v6887
      %v8217 = vpop.f32.mrf.mxu0
      %v8218 = vadd.f32 %v8199, %v8217
      %v8219 = vpop.f32.mrf.mxu0
      %v8220 = vadd.f32 %v8201, %v8219
      %8221 = vdwg.mxu0
      %8222 = vmatpush.bf16.msra.mxu0 %v7748
      %8223 = vmatpush.bf16.msra.mxu0 %v7740
      %8224 = vmatpush.bf16.msra.mxu0 %v7732
      %8225 = vmatpush.bf16.msra.mxu0 %v7724
      %8226 = vmatpush.bf16.msra.mxu0 %v7716
      %8227 = vmatpush.bf16.msra.mxu0 %v7708
      %8228 = vmatpush.bf16.msra.mxu0 %v7700
      %8229 = vmatpush.bf16.msra.mxu0 %v7692
      %8230 = vmatmul.bf16.gmra.mxu0 %v6884
      %v8231 = vpop.f32.mrf.mxu0
      %v8232 = vadd.f32 %v8213, %v8231
      %v8233 = vpop.f32.mrf.mxu0
      %v8234 = vadd.f32 %v8215, %v8233
      %8235 = vmatmul.bf16.gmra.mxu0 %v6888
      %v8236 = vpop.f32.mrf.mxu0
      %v8237 = vadd.f32 %v8218, %v8236
      %v8238 = vpop.f32.mrf.mxu0
      %v8239 = vadd.f32 %v8220, %v8238
      %8240 = vdwg.mxu0
      %8241 = vmatpush.bf16.msra.mxu0 0
      %8242 = vmatpush.bf16.msra.mxu0 0
      %8243 = vmatpush.bf16.msra.mxu0 0
      %8244 = vmatpush.bf16.msra.mxu0 0
      %8245 = vmatpush.bf16.msra.mxu0 %v8015
      %8246 = vmatpush.bf16.msra.mxu0 %v7772
      %8247 = vmatpush.bf16.msra.mxu0 %v7764
      %8248 = vmatpush.bf16.msra.mxu0 %v7756
      %8249 = vmatmul.bf16.gmra.mxu0 %v8003
      %v8250 = vpop.f32.mrf.mxu0
      %v8251 = vadd.f32 %v8232, %v8250
      %v8252 = vpop.f32.mrf.mxu0
      %v8253 = vadd.f32 %v8234, %v8252
      %8254 = vmatmul.bf16.gmra.mxu0 %v8006
      %v8255 = vpop.f32.mrf.mxu0
      %v8256 = vadd.f32 %v8237, %v8255
      %v8257 = vpop.f32.mrf.mxu0
      %v8258 = vadd.f32 %v8239, %v8257
      %8259 = vdwg.mxu0
      %8260 = vmatpush.bf16.msra.mxu0 %v7621
      %8261 = vmatpush.bf16.msra.mxu0 %v7613
      %8262 = vmatpush.bf16.msra.mxu0 %v7605
      %8263 = vmatpush.bf16.msra.mxu0 %v7597
      %8264 = vmatpush.bf16.msra.mxu0 %v7589
      %8265 = vmatpush.bf16.msra.mxu0 %v7581
      %8266 = vmatpush.bf16.msra.mxu0 %v7573
      %8267 = vmatpush.bf16.msra.mxu0 %v7565
      %8268 = vmatmul.bf16.gmra.mxu0 %v6882
      %v8269 = vpop.f32.mrf.mxu0
      %v8270 = vadd.f32 0.0, %v8269
      %v8271 = vpop.f32.mrf.mxu0
      %v8272 = vadd.f32 0.0, %v8271
      %8273 = vmatmul.bf16.gmra.mxu0 %v6886
      %v8274 = vpop.f32.mrf.mxu0
      %v8275 = vadd.f32 0.0, %v8274
      %v8276 = vpop.f32.mrf.mxu0
      %v8277 = vadd.f32 0.0, %v8276
      %8278 = vdwg.mxu0
      %8279 = vmatpush.bf16.msra.mxu0 %v7685
      %8280 = vmatpush.bf16.msra.mxu0 %v7677
      %8281 = vmatpush.bf16.msra.mxu0 %v7669
      %8282 = vmatpush.bf16.msra.mxu0 %v7661
      %8283 = vmatpush.bf16.msra.mxu0 %v7653
      %8284 = vmatpush.bf16.msra.mxu0 %v7645
      %8285 = vmatpush.bf16.msra.mxu0 %v7637
      %8286 = vmatpush.bf16.msra.mxu0 %v7629
      %8287 = vmatmul.bf16.gmra.mxu0 %v6883
      %v8288 = vpop.f32.mrf.mxu0
      %v8289 = vadd.f32 %v8270, %v8288
      %v8290 = vpop.f32.mrf.mxu0
      %v8291 = vadd.f32 %v8272, %v8290
      %8292 = vmatmul.bf16.gmra.mxu0 %v6887
      %v8293 = vpop.f32.mrf.mxu0
      %v8294 = vadd.f32 %v8275, %v8293
      %v8295 = vpop.f32.mrf.mxu0
      %v8296 = vadd.f32 %v8277, %v8295
      %8297 = vdwg.mxu0
      %8298 = vmatpush.bf16.msra.mxu0 %v7749
      %8299 = vmatpush.bf16.msra.mxu0 %v7741
      %8300 = vmatpush.bf16.msra.mxu0 %v7733
      %8301 = vmatpush.bf16.msra.mxu0 %v7725
      %8302 = vmatpush.bf16.msra.mxu0 %v7717
      %8303 = vmatpush.bf16.msra.mxu0 %v7709
      %8304 = vmatpush.bf16.msra.mxu0 %v7701
      %8305 = vmatpush.bf16.msra.mxu0 %v7693
      %8306 = vmatmul.bf16.gmra.mxu0 %v6884
      %v8307 = vpop.f32.mrf.mxu0
      %v8308 = vadd.f32 %v8289, %v8307
      %v8309 = vpop.f32.mrf.mxu0
      %v8310 = vadd.f32 %v8291, %v8309
      %8311 = vmatmul.bf16.gmra.mxu0 %v6888
      %v8312 = vpop.f32.mrf.mxu0
      %v8313 = vadd.f32 %v8294, %v8312
      %v8314 = vpop.f32.mrf.mxu0
      %v8315 = vadd.f32 %v8296, %v8314
      %8316 = vdwg.mxu0
      %8317 = vmatpush.bf16.msra.mxu0 0
      %8318 = vmatpush.bf16.msra.mxu0 0
      %8319 = vmatpush.bf16.msra.mxu0 0
      %8320 = vmatpush.bf16.msra.mxu0 0
      %8321 = vmatpush.bf16.msra.mxu0 %v8018
      %8322 = vmatpush.bf16.msra.mxu0 %v7773
      %8323 = vmatpush.bf16.msra.mxu0 %v7765
      %8324 = vmatpush.bf16.msra.mxu0 %v7757
      %8325 = vmatmul.bf16.gmra.mxu0 %v8003
      %v8326 = vpop.f32.mrf.mxu0
      %v8327 = vadd.f32 %v8308, %v8326
      %v8328 = vpop.f32.mrf.mxu0
      %v8329 = vadd.f32 %v8310, %v8328
      %8330 = vmatmul.bf16.gmra.mxu0 %v8006
      %v8331 = vpop.f32.mrf.mxu0
      %v8332 = vadd.f32 %v8313, %v8331
      %v8333 = vpop.f32.mrf.mxu0
      %v8334 = vadd.f32 %v8315, %v8333
      %8335 = vdwg.mxu0
      %8336 = vmatpush.bf16.msra.mxu0 %v7622
      %8337 = vmatpush.bf16.msra.mxu0 %v7614
      %8338 = vmatpush.bf16.msra.mxu0 %v7606
      %8339 = vmatpush.bf16.msra.mxu0 %v7598
      %8340 = vmatpush.bf16.msra.mxu0 %v7590
      %8341 = vmatpush.bf16.msra.mxu0 %v7582
      %8342 = vmatpush.bf16.msra.mxu0 %v7574
      %8343 = vmatpush.bf16.msra.mxu0 %v7566
      %8344 = vmatmul.bf16.gmra.mxu0 %v6882
      %v8345 = vpop.f32.mrf.mxu0
      %v8346 = vadd.f32 0.0, %v8345
      %v8347 = vpop.f32.mrf.mxu0
      %v8348 = vadd.f32 0.0, %v8347
      %8349 = vmatmul.bf16.gmra.mxu0 %v6886
      %v8350 = vpop.f32.mrf.mxu0
      %v8351 = vadd.f32 0.0, %v8350
      %v8352 = vpop.f32.mrf.mxu0
      %v8353 = vadd.f32 0.0, %v8352
      %8354 = vdwg.mxu0
      %8355 = vmatpush.bf16.msra.mxu0 %v7686
      %8356 = vmatpush.bf16.msra.mxu0 %v7678
      %8357 = vmatpush.bf16.msra.mxu0 %v7670
      %8358 = vmatpush.bf16.msra.mxu0 %v7662
      %8359 = vmatpush.bf16.msra.mxu0 %v7654
      %8360 = vmatpush.bf16.msra.mxu0 %v7646
      %8361 = vmatpush.bf16.msra.mxu0 %v7638
      %8362 = vmatpush.bf16.msra.mxu0 %v7630
      %8363 = vmatmul.bf16.gmra.mxu0 %v6883
      %v8364 = vpop.f32.mrf.mxu0
      %v8365 = vadd.f32 %v8346, %v8364
      %v8366 = vpop.f32.mrf.mxu0
      %v8367 = vadd.f32 %v8348, %v8366
      %8368 = vmatmul.bf16.gmra.mxu0 %v6887
      %v8369 = vpop.f32.mrf.mxu0
      %v8370 = vadd.f32 %v8351, %v8369
      %v8371 = vpop.f32.mrf.mxu0
      %v8372 = vadd.f32 %v8353, %v8371
      %8373 = vdwg.mxu0
      %8374 = vmatpush.bf16.msra.mxu0 %v7750
      %8375 = vmatpush.bf16.msra.mxu0 %v7742
      %8376 = vmatpush.bf16.msra.mxu0 %v7734
      %8377 = vmatpush.bf16.msra.mxu0 %v7726
      %8378 = vmatpush.bf16.msra.mxu0 %v7718
      %8379 = vmatpush.bf16.msra.mxu0 %v7710
      %8380 = vmatpush.bf16.msra.mxu0 %v7702
      %8381 = vmatpush.bf16.msra.mxu0 %v7694
      %8382 = vmatmul.bf16.gmra.mxu0 %v6884
      %v8383 = vpop.f32.mrf.mxu0
      %v8384 = vadd.f32 %v8365, %v8383
      %v8385 = vpop.f32.mrf.mxu0
      %v8386 = vadd.f32 %v8367, %v8385
      %8387 = vmatmul.bf16.gmra.mxu0 %v6888
      %v8388 = vpop.f32.mrf.mxu0
      %v8389 = vadd.f32 %v8370, %v8388
      %v8390 = vpop.f32.mrf.mxu0
      %v8391 = vadd.f32 %v8372, %v8390
      %8392 = vdwg.mxu0
      %8393 = vmatpush.bf16.msra.mxu0 0
      %8394 = vmatpush.bf16.msra.mxu0 0
      %8395 = vmatpush.bf16.msra.mxu0 0
      %8396 = vmatpush.bf16.msra.mxu0 0
      %8397 = vmatpush.bf16.msra.mxu0 %v8021
      %8398 = vmatpush.bf16.msra.mxu0 %v7774
      %8399 = vmatpush.bf16.msra.mxu0 %v7766
      %8400 = vmatpush.bf16.msra.mxu0 %v7758
      %8401 = vmatmul.bf16.gmra.mxu0 %v8003
      %v8402 = vpop.f32.mrf.mxu0
      %v8403 = vadd.f32 %v8384, %v8402
      %v8404 = vpop.f32.mrf.mxu0
      %v8405 = vadd.f32 %v8386, %v8404
      %8406 = vmatmul.bf16.gmra.mxu0 %v8006
      %v8407 = vpop.f32.mrf.mxu0
      %v8408 = vadd.f32 %v8389, %v8407
      %v8409 = vpop.f32.mrf.mxu0
      %v8410 = vadd.f32 %v8391, %v8409
      %8411 = vdwg.mxu0
      %8412 = vmatpush.bf16.msra.mxu0 %v7623
      %8413 = vmatpush.bf16.msra.mxu0 %v7615
      %8414 = vmatpush.bf16.msra.mxu0 %v7607
      %8415 = vmatpush.bf16.msra.mxu0 %v7599
      %8416 = vmatpush.bf16.msra.mxu0 %v7591
      %8417 = vmatpush.bf16.msra.mxu0 %v7583
      %8418 = vmatpush.bf16.msra.mxu0 %v7575
      %8419 = vmatpush.bf16.msra.mxu0 %v7567
      %8420 = vmatmul.bf16.gmra.mxu0 %v6882
      %v8421 = vpop.f32.mrf.mxu0
      %v8422 = vadd.f32 0.0, %v8421
      %v8423 = vpop.f32.mrf.mxu0
      %v8424 = vadd.f32 0.0, %v8423
      %8425 = vmatmul.bf16.gmra.mxu0 %v6886
      %v8426 = vpop.f32.mrf.mxu0
      %v8427 = vadd.f32 0.0, %v8426
      %v8428 = vpop.f32.mrf.mxu0
      %v8429 = vadd.f32 0.0, %v8428
      %8430 = vdwg.mxu0
      %8431 = vmatpush.bf16.msra.mxu0 %v7687
      %8432 = vmatpush.bf16.msra.mxu0 %v7679
      %8433 = vmatpush.bf16.msra.mxu0 %v7671
      %8434 = vmatpush.bf16.msra.mxu0 %v7663
      %8435 = vmatpush.bf16.msra.mxu0 %v7655
      %8436 = vmatpush.bf16.msra.mxu0 %v7647
      %8437 = vmatpush.bf16.msra.mxu0 %v7639
      %8438 = vmatpush.bf16.msra.mxu0 %v7631
      %8439 = vmatmul.bf16.gmra.mxu0 %v6883
      %v8440 = vpop.f32.mrf.mxu0
      %v8441 = vadd.f32 %v8422, %v8440
      %v8442 = vpop.f32.mrf.mxu0
      %v8443 = vadd.f32 %v8424, %v8442
      %8444 = vmatmul.bf16.gmra.mxu0 %v6887
      %v8445 = vpop.f32.mrf.mxu0
      %v8446 = vadd.f32 %v8427, %v8445
      %v8447 = vpop.f32.mrf.mxu0
      %v8448 = vadd.f32 %v8429, %v8447
      %8449 = vdwg.mxu0
      %8450 = vmatpush.bf16.msra.mxu0 %v7751
      %8451 = vmatpush.bf16.msra.mxu0 %v7743
      %8452 = vmatpush.bf16.msra.mxu0 %v7735
      %8453 = vmatpush.bf16.msra.mxu0 %v7727
      %8454 = vmatpush.bf16.msra.mxu0 %v7719
      %8455 = vmatpush.bf16.msra.mxu0 %v7711
      %8456 = vmatpush.bf16.msra.mxu0 %v7703
      %8457 = vmatpush.bf16.msra.mxu0 %v7695
      %8458 = vmatmul.bf16.gmra.mxu0 %v6884
      %v8459 = vpop.f32.mrf.mxu0
      %v8460 = vadd.f32 %v8441, %v8459
      %v8461 = vpop.f32.mrf.mxu0
      %v8462 = vadd.f32 %v8443, %v8461
      %8463 = vmatmul.bf16.gmra.mxu0 %v6888
      %v8464 = vpop.f32.mrf.mxu0
      %v8465 = vadd.f32 %v8446, %v8464
      %v8466 = vpop.f32.mrf.mxu0
      %v8467 = vadd.f32 %v8448, %v8466
      %8468 = vdwg.mxu0
      %8469 = vmatpush.bf16.msra.mxu0 0
      %8470 = vmatpush.bf16.msra.mxu0 0
      %8471 = vmatpush.bf16.msra.mxu0 0
      %8472 = vmatpush.bf16.msra.mxu0 0
      %8473 = vmatpush.bf16.msra.mxu0 %v8024
      %8474 = vmatpush.bf16.msra.mxu0 %v7775
      %8475 = vmatpush.bf16.msra.mxu0 %v7767
      %8476 = vmatpush.bf16.msra.mxu0 %v7759
      %8477 = vmatmul.bf16.gmra.mxu0 %v8003
      %v8478 = vpop.f32.mrf.mxu0
      %v8479 = vadd.f32 %v8460, %v8478
      %v8480 = vpop.f32.mrf.mxu0
      %v8481 = vadd.f32 %v8462, %v8480
      %8482 = vmatmul.bf16.gmra.mxu0 %v8006
      %v8483 = vpop.f32.mrf.mxu0
      %v8484 = vadd.f32 %v8465, %v8483
      %v8485 = vpop.f32.mrf.mxu0
      %v8486 = vadd.f32 %v8467, %v8485
      %8487 = vdwg.mxu0
      %8488 = vmatpush.bf16.msra.mxu0 %v7624
      %8489 = vmatpush.bf16.msra.mxu0 %v7616
      %8490 = vmatpush.bf16.msra.mxu0 %v7608
      %8491 = vmatpush.bf16.msra.mxu0 %v7600
      %8492 = vmatpush.bf16.msra.mxu0 %v7592
      %8493 = vmatpush.bf16.msra.mxu0 %v7584
      %8494 = vmatpush.bf16.msra.mxu0 %v7576
      %8495 = vmatpush.bf16.msra.mxu0 %v7568
      %8496 = vmatmul.bf16.gmra.mxu0 %v6882
      %v8497 = vpop.f32.mrf.mxu0
      %v8498 = vadd.f32 0.0, %v8497
      %v8499 = vpop.f32.mrf.mxu0
      %v8500 = vadd.f32 0.0, %v8499
      %8501 = vmatmul.bf16.gmra.mxu0 %v6886
      %v8502 = vpop.f32.mrf.mxu0
      %v8503 = vadd.f32 0.0, %v8502
      %v8504 = vpop.f32.mrf.mxu0
      %v8505 = vadd.f32 0.0, %v8504
      %8506 = vdwg.mxu0
      %8507 = vmatpush.bf16.msra.mxu0 %v7688
      %8508 = vmatpush.bf16.msra.mxu0 %v7680
      %8509 = vmatpush.bf16.msra.mxu0 %v7672
      %8510 = vmatpush.bf16.msra.mxu0 %v7664
      %8511 = vmatpush.bf16.msra.mxu0 %v7656
      %8512 = vmatpush.bf16.msra.mxu0 %v7648
      %8513 = vmatpush.bf16.msra.mxu0 %v7640
      %8514 = vmatpush.bf16.msra.mxu0 %v7632
      %8515 = vmatmul.bf16.gmra.mxu0 %v6883
      %v8516 = vpop.f32.mrf.mxu0
      %v8517 = vadd.f32 %v8498, %v8516
      %v8518 = vpop.f32.mrf.mxu0
      %v8519 = vadd.f32 %v8500, %v8518
      %8520 = vmatmul.bf16.gmra.mxu0 %v6887
      %v8521 = vpop.f32.mrf.mxu0
      %v8522 = vadd.f32 %v8503, %v8521
      %v8523 = vpop.f32.mrf.mxu0
      %v8524 = vadd.f32 %v8505, %v8523
      %8525 = vdwg.mxu0
      %8526 = vmatpush.bf16.msra.mxu0 %v7752
      %8527 = vmatpush.bf16.msra.mxu0 %v7744
      %8528 = vmatpush.bf16.msra.mxu0 %v7736
      %8529 = vmatpush.bf16.msra.mxu0 %v7728
      %8530 = vmatpush.bf16.msra.mxu0 %v7720
      %8531 = vmatpush.bf16.msra.mxu0 %v7712
      %8532 = vmatpush.bf16.msra.mxu0 %v7704
      %8533 = vmatpush.bf16.msra.mxu0 %v7696
      %8534 = vmatmul.bf16.gmra.mxu0 %v6884
      %v8535 = vpop.f32.mrf.mxu0
      %v8536 = vadd.f32 %v8517, %v8535
      %v8537 = vpop.f32.mrf.mxu0
      %v8538 = vadd.f32 %v8519, %v8537
      %8539 = vmatmul.bf16.gmra.mxu0 %v6888
      %v8540 = vpop.f32.mrf.mxu0
      %v8541 = vadd.f32 %v8522, %v8540
      %v8542 = vpop.f32.mrf.mxu0
      %v8543 = vadd.f32 %v8524, %v8542
      %8544 = vdwg.mxu0
      %8545 = vmatpush.bf16.msra.mxu0 0
      %8546 = vmatpush.bf16.msra.mxu0 0
      %8547 = vmatpush.bf16.msra.mxu0 0
      %8548 = vmatpush.bf16.msra.mxu0 0
      %8549 = vmatpush.bf16.msra.mxu0 %v8027
      %8550 = vmatpush.bf16.msra.mxu0 %v7776
      %8551 = vmatpush.bf16.msra.mxu0 %v7768
      %8552 = vmatpush.bf16.msra.mxu0 %v7760
      %8553 = vmatmul.bf16.gmra.mxu0 %v8003
      %v8554 = vpop.f32.mrf.mxu0
      %v8555 = vadd.f32 %v8536, %v8554
      %v8556 = vpop.f32.mrf.mxu0
      %v8557 = vadd.f32 %v8538, %v8556
      %8558 = vmatmul.bf16.gmra.mxu0 %v8006
      %v8559 = vpop.f32.mrf.mxu0
      %v8560 = vadd.f32 %v8541, %v8559
      %v8561 = vpop.f32.mrf.mxu0
      %v8562 = vadd.f32 %v8543, %v8561
      %8563 = vdwg.mxu0
      %8564 = vmatpush.bf16.msra.mxu0 %v7625
      %8565 = vmatpush.bf16.msra.mxu0 %v7617
      %8566 = vmatpush.bf16.msra.mxu0 %v7609
      %8567 = vmatpush.bf16.msra.mxu0 %v7601
      %8568 = vmatpush.bf16.msra.mxu0 %v7593
      %8569 = vmatpush.bf16.msra.mxu0 %v7585
      %8570 = vmatpush.bf16.msra.mxu0 %v7577
      %8571 = vmatpush.bf16.msra.mxu0 %v7569
      %8572 = vmatmul.bf16.gmra.mxu0 %v6882
      %v8573 = vpop.f32.mrf.mxu0
      %v8574 = vadd.f32 0.0, %v8573
      %v8575 = vpop.f32.mrf.mxu0
      %v8576 = vadd.f32 0.0, %v8575
      %8577 = vmatmul.bf16.gmra.mxu0 %v6886
      %v8578 = vpop.f32.mrf.mxu0
      %v8579 = vadd.f32 0.0, %v8578
      %v8580 = vpop.f32.mrf.mxu0
      %v8581 = vadd.f32 0.0, %v8580
      %8582 = vdwg.mxu0
      %8583 = vmatpush.bf16.msra.mxu0 %v7689
      %8584 = vmatpush.bf16.msra.mxu0 %v7681
      %8585 = vmatpush.bf16.msra.mxu0 %v7673
      %8586 = vmatpush.bf16.msra.mxu0 %v7665
      %8587 = vmatpush.bf16.msra.mxu0 %v7657
      %8588 = vmatpush.bf16.msra.mxu0 %v7649
      %8589 = vmatpush.bf16.msra.mxu0 %v7641
      %8590 = vmatpush.bf16.msra.mxu0 %v7633
      %8591 = vmatmul.bf16.gmra.mxu0 %v6883
      %v8592 = vpop.f32.mrf.mxu0
      %v8593 = vadd.f32 %v8574, %v8592
      %v8594 = vpop.f32.mrf.mxu0
      %v8595 = vadd.f32 %v8576, %v8594
      %8596 = vmatmul.bf16.gmra.mxu0 %v6887
      %v8597 = vpop.f32.mrf.mxu0
      %v8598 = vadd.f32 %v8579, %v8597
      %v8599 = vpop.f32.mrf.mxu0
      %v8600 = vadd.f32 %v8581, %v8599
      %8601 = vdwg.mxu0
      %8602 = vmatpush.bf16.msra.mxu0 %v7753
      %8603 = vmatpush.bf16.msra.mxu0 %v7745
      %8604 = vmatpush.bf16.msra.mxu0 %v7737
      %8605 = vmatpush.bf16.msra.mxu0 %v7729
      %8606 = vmatpush.bf16.msra.mxu0 %v7721
      %8607 = vmatpush.bf16.msra.mxu0 %v7713
      %8608 = vmatpush.bf16.msra.mxu0 %v7705
      %8609 = vmatpush.bf16.msra.mxu0 %v7697
      %8610 = vmatmul.bf16.gmra.mxu0 %v6884
      %v8611 = vpop.f32.mrf.mxu0
      %v8612 = vadd.f32 %v8593, %v8611
      %v8613 = vpop.f32.mrf.mxu0
      %v8614 = vadd.f32 %v8595, %v8613
      %8615 = vmatmul.bf16.gmra.mxu0 %v6888
      %v8616 = vpop.f32.mrf.mxu0
      %v8617 = vadd.f32 %v8598, %v8616
      %v8618 = vpop.f32.mrf.mxu0
      %v8619 = vadd.f32 %v8600, %v8618
      %8620 = vdwg.mxu0
      %8621 = vmatpush.bf16.msra.mxu0 0
      %8622 = vmatpush.bf16.msra.mxu0 0
      %8623 = vmatpush.bf16.msra.mxu0 0
      %8624 = vmatpush.bf16.msra.mxu0 0
      %8625 = vmatpush.bf16.msra.mxu0 %v8030
      %8626 = vmatpush.bf16.msra.mxu0 %v7777
      %8627 = vmatpush.bf16.msra.mxu0 %v7769
      %8628 = vmatpush.bf16.msra.mxu0 %v7761
      %8629 = vmatmul.bf16.gmra.mxu0 %v8003
      %v8630 = vpop.f32.mrf.mxu0
      %v8631 = vadd.f32 %v8612, %v8630
      %v8632 = vpop.f32.mrf.mxu0
      %v8633 = vadd.f32 %v8614, %v8632
      %8634 = vmatmul.bf16.gmra.mxu0 %v8006
      %v8635 = vpop.f32.mrf.mxu0
      %v8636 = vadd.f32 %v8617, %v8635
      %v8637 = vpop.f32.mrf.mxu0
      %v8638 = vadd.f32 %v8619, %v8637
      %8639 = vdwg.mxu0
      %v8640 = vmul.f32 %v8099, %v6674
      %v8641 = vmul.f32 %v8175, %v6675
      %v8642 = vmul.f32 %v8251, %v6676
      %v8643 = vmul.f32 %v8327, %v6677
      %v8644 = vmul.f32 %v8403, %v6678
      %v8645 = vmul.f32 %v8479, %v6679
      %v8646 = vmul.f32 %v8555, %v6680
      %v8647 = vmul.f32 %v8631, %v6681
      %v8648 = vmul.f32 %v8101, %v6682
      %v8649 = vmul.f32 %v8177, %v6683
      %v8650 = vmul.f32 %v8253, %v6684
      %v8651 = vmul.f32 %v8329, %v6685
      %v8652 = vmul.f32 %v8405, %v6686
      %v8653 = vmul.f32 %v8481, %v6687
      %v8654 = vmul.f32 %v8557, %v6688
      %v8655 = vmul.f32 %v8633, %v6689
      %v8656 = vmul.f32 %v8104, %v6690
      %v8657 = vmul.f32 %v8180, %v6691
      %v8658 = vmul.f32 %v8256, %v6692
      %v8659 = vmul.f32 %v8332, %v6693
      %v8660 = vmul.f32 %v8408, %v6694
      %v8661 = vmul.f32 %v8484, %v6695
      %v8662 = vmul.f32 %v8560, %v6696
      %v8663 = vmul.f32 %v8636, %v6697
      %v8664 = vmul.f32 %v8106, %v6698
      %v8665 = vmul.f32 %v8182, %v6699
      %v8666 = vmul.f32 %v8258, %v6700
      %v8667 = vmul.f32 %v8334, %v6701
      %v8668 = vmul.f32 %v8410, %v6702
      %v8669 = vmul.f32 %v8486, %v6703
      %v8670 = vmul.f32 %v8562, %v6704
      %v8671 = vmul.f32 %v8638, %v6705
      %v8672 = vadd.f32 %v8640, %v8648
      %v8673 = vadd.f32 %v8672, %v8656
      %v8674 = vadd.f32 %v8673, %v8664
      %v8675 = vrot.slane %v8674, 4
      %v8676 = vadd.f32 %v8674, %v8675
      %v8677 = vrot.slane %v8676, 2
      %v8678 = vadd.f32 %v8676, %v8677
      %v8679 = vrot.slane %v8678, 1
      %v8680 = vadd.f32 %v8678, %v8679
      %v8681 = vadd.f32 %v8641, %v8649
      %v8682 = vadd.f32 %v8681, %v8657
      %v8683 = vadd.f32 %v8682, %v8665
      %v8684 = vrot.slane %v8683, 4
      %v8685 = vadd.f32 %v8683, %v8684
      %v8686 = vrot.slane %v8685, 2
      %v8687 = vadd.f32 %v8685, %v8686
      %v8688 = vrot.slane %v8687, 1
      %v8689 = vadd.f32 %v8687, %v8688
      %v8690 = vadd.f32 %v8642, %v8650
      %v8691 = vadd.f32 %v8690, %v8658
      %v8692 = vadd.f32 %v8691, %v8666
      %v8693 = vrot.slane %v8692, 4
      %v8694 = vadd.f32 %v8692, %v8693
      %v8695 = vrot.slane %v8694, 2
      %v8696 = vadd.f32 %v8694, %v8695
      %v8697 = vrot.slane %v8696, 1
      %v8698 = vadd.f32 %v8696, %v8697
      %v8699 = vadd.f32 %v8643, %v8651
      %v8700 = vadd.f32 %v8699, %v8659
      %v8701 = vadd.f32 %v8700, %v8667
      %v8702 = vrot.slane %v8701, 4
      %v8703 = vadd.f32 %v8701, %v8702
      %v8704 = vrot.slane %v8703, 2
      %v8705 = vadd.f32 %v8703, %v8704
      %v8706 = vrot.slane %v8705, 1
      %v8707 = vadd.f32 %v8705, %v8706
      %v8708 = vadd.f32 %v8644, %v8652
      %v8709 = vadd.f32 %v8708, %v8660
      %v8710 = vadd.f32 %v8709, %v8668
      %v8711 = vrot.slane %v8710, 4
      %v8712 = vadd.f32 %v8710, %v8711
      %v8713 = vrot.slane %v8712, 2
      %v8714 = vadd.f32 %v8712, %v8713
      %v8715 = vrot.slane %v8714, 1
      %v8716 = vadd.f32 %v8714, %v8715
      %v8717 = vadd.f32 %v8645, %v8653
      %v8718 = vadd.f32 %v8717, %v8661
      %v8719 = vadd.f32 %v8718, %v8669
      %v8720 = vrot.slane %v8719, 4
      %v8721 = vadd.f32 %v8719, %v8720
      %v8722 = vrot.slane %v8721, 2
      %v8723 = vadd.f32 %v8721, %v8722
      %v8724 = vrot.slane %v8723, 1
      %v8725 = vadd.f32 %v8723, %v8724
      %v8726 = vadd.f32 %v8646, %v8654
      %v8727 = vadd.f32 %v8726, %v8662
      %v8728 = vadd.f32 %v8727, %v8670
      %v8729 = vrot.slane %v8728, 4
      %v8730 = vadd.f32 %v8728, %v8729
      %v8731 = vrot.slane %v8730, 2
      %v8732 = vadd.f32 %v8730, %v8731
      %v8733 = vrot.slane %v8732, 1
      %v8734 = vadd.f32 %v8732, %v8733
      %v8735 = vadd.f32 %v8647, %v8655
      %v8736 = vadd.f32 %v8735, %v8663
      %v8737 = vadd.f32 %v8736, %v8671
      %v8738 = vrot.slane %v8737, 4
      %v8739 = vadd.f32 %v8737, %v8738
      %v8740 = vrot.slane %v8739, 2
      %v8741 = vadd.f32 %v8739, %v8740
      %v8742 = vrot.slane %v8741, 1
      %v8743 = vadd.f32 %v8741, %v8742
      %v8744 = vpack.c.bf16 %v8680, %v8680
      %v8745 = vpack.c.bf16 %v8689, %v8689
      %v8746 = vpack.c.bf16 %v8698, %v8698
      %v8747 = vpack.c.bf16 %v8707, %v8707
      %v8748 = vpack.c.bf16 %v8716, %v8716
      %v8749 = vpack.c.bf16 %v8725, %v8725
      %v8750 = vpack.c.bf16 %v8734, %v8734
      %v8751 = vpack.c.bf16 %v8743, %v8743
      %v8752 = vld [vmem:[%s722] sm:$0x7]
      %v8754 = vperm.slane %v8752, 0
      %v8755 = vperm.slane %v8752, 1
      %v8756 = vperm.slane %v8752, 2
      %v8760 = vpack.c.bf16 %v8754, %v8754
      %v8761 = vpack.c.bf16 %v8755, %v8755
      %v8762 = vpack.c.bf16 %v8756, %v8756
      %v8810 = vunpack.c.l.b16 %v6834
      %v8811 = vunpack.c.l.b16 %v6835
      %v8812 = vunpack.c.l.b16 %v6836
      %v8813 = vunpack.c.l.b16 %v6837
      %v8814 = vunpack.c.l.b16 %v6838
      %v8815 = vunpack.c.l.b16 %v6839
      %v8816 = vunpack.c.l.b16 %v6840
      %v8817 = vunpack.c.l.b16 %v6841
      %v8818 = vunpack.c.l.b16 %v6842
      %v8819 = vunpack.c.l.b16 %v6843
      %v8820 = vunpack.c.l.b16 %v6844
      %v8821 = vunpack.c.l.b16 %v6845
      %v8822 = vunpack.c.l.b16 %v6846
      %v8823 = vunpack.c.l.b16 %v6847
      %v8824 = vunpack.c.l.b16 %v6848
      %v8825 = vunpack.c.l.b16 %v6849
      %v8826 = vunpack.c.l.b16 %v6850
      %v8827 = vunpack.c.l.b16 %v6851
      %v8828 = vunpack.c.l.b16 %v6852
      %v8829 = vunpack.c.l.b16 %v6853
      %v8830 = vunpack.c.l.b16 %v6854
      %v8831 = vunpack.c.l.b16 %v6855
      %v8832 = vunpack.c.l.b16 %v6856
      %v8833 = vunpack.c.l.b16 %v6857
      %v8834 = vunpack.c.l.b16 %v6858
      %v8835 = vunpack.c.l.b16 %v6859
      %v8836 = vunpack.c.l.b16 %v6860
      %v8837 = vunpack.c.l.b16 %v6861
      %v8838 = vunpack.c.l.b16 %v6862
      %v8839 = vunpack.c.l.b16 %v6863
      %v8840 = vunpack.c.l.b16 %v6864
      %v8841 = vunpack.c.l.b16 %v6865
      %v8842 = vunpack.c.l.b16 %v6866
      %v8843 = vunpack.c.l.b16 %v6867
      %v8844 = vunpack.c.l.b16 %v6868
      %v8845 = vunpack.c.l.b16 %v6869
      %v8846 = vunpack.c.l.b16 %v6870
      %v8847 = vunpack.c.l.b16 %v6871
      %v8848 = vunpack.c.l.b16 %v6872
      %v8849 = vunpack.c.l.b16 %v6873
      %v8850 = vunpack.c.l.b16 %v6874
      %v8851 = vunpack.c.l.b16 %v6875
      %v8852 = vunpack.c.l.b16 %v6876
      %v8853 = vunpack.c.l.b16 %v6877
      %v8854 = vunpack.c.l.b16 %v6878
      %v8855 = vunpack.c.l.b16 %v6879
      %v8856 = vunpack.c.l.b16 %v6880
      %v8857 = vpack.c.b16 %v8811, %v8810
      %v8858 = vpack.c.b16 %v8813, %v8812
      %v8859 = vpack.c.b16 %v8815, %v8814
      %v8860 = vpack.c.b16 %v8817, %v8816
      %v8861 = vpack.c.b16 %v8819, %v8818
      %v8862 = vpack.c.b16 %v8821, %v8820
      %v8863 = vpack.c.b16 %v8823, %v8822
      %v8864 = vpack.c.b16 %v8825, %v8824
      %v8865 = vpack.c.b16 %v8827, %v8826
      %v8866 = vpack.c.b16 %v8829, %v8828
      %v8867 = vpack.c.b16 %v8831, %v8830
      %v8868 = vpack.c.b16 %v8833, %v8832
      %v8869 = vpack.c.b16 %v8835, %v8834
      %v8870 = vpack.c.b16 %v8837, %v8836
      %v8871 = vpack.c.b16 %v8839, %v8838
      %v8872 = vpack.c.b16 %v8841, %v8840
      %v8873 = vpack.c.b16 %v8843, %v8842
      %v8874 = vpack.c.b16 %v8845, %v8844
      %v8875 = vpack.c.b16 %v8847, %v8846
      %v8876 = vpack.c.b16 %v8849, %v8848
      %v8877 = vpack.c.b16 %v8851, %v8850
      %v8878 = vpack.c.b16 %v8853, %v8852
      %v8879 = vpack.c.b16 %v8855, %v8854
      %v8880 = vpack.c.b16 %v8856, %v8856
      %vm8904 = vcmask 949248
      %v8906 = vsel %vm8904, %v8762, 0
      %vm8908 = vcmask 1041408
      %v8910 = vsel %vm8908, %v8880, 0
      %8912 = vmatpush.bf16.msra.mxu0 %v8864
      %8913 = vmatpush.bf16.msra.mxu0 %v8863
      %8914 = vmatpush.bf16.msra.mxu0 %v8862
      %8915 = vmatpush.bf16.msra.mxu0 %v8861
      %8916 = vmatpush.bf16.msra.mxu0 %v8860
      %8917 = vmatpush.bf16.msra.mxu0 %v8859
      %8918 = vmatpush.bf16.msra.mxu0 %v8858
      %8919 = vmatpush.bf16.msra.mxu0 %v8857
      %8920 = vmatmul.bf16.gmra.mxu0 %v8760
      %v8921 = vpop.f32.mrf.mxu0
      %v8922 = vadd.f32 0.0, %v8921
      %v8923 = vpop.f32.mrf.mxu0
      %8924 = vdwg.mxu0
      %8925 = vmatpush.bf16.msra.mxu0 %v8872
      %8926 = vmatpush.bf16.msra.mxu0 %v8871
      %8927 = vmatpush.bf16.msra.mxu0 %v8870
      %8928 = vmatpush.bf16.msra.mxu0 %v8869
      %8929 = vmatpush.bf16.msra.mxu0 %v8868
      %8930 = vmatpush.bf16.msra.mxu0 %v8867
      %8931 = vmatpush.bf16.msra.mxu0 %v8866
      %8932 = vmatpush.bf16.msra.mxu0 %v8865
      %8933 = vmatmul.bf16.gmra.mxu0 %v8761
      %v8934 = vpop.f32.mrf.mxu0
      %v8935 = vadd.f32 %v8922, %v8934
      %v8936 = vpop.f32.mrf.mxu0
      %8937 = vdwg.mxu0
      %8938 = vmatpush.bf16.msra.mxu0 %v8910
      %8939 = vmatpush.bf16.msra.mxu0 %v8879
      %8940 = vmatpush.bf16.msra.mxu0 %v8878
      %8941 = vmatpush.bf16.msra.mxu0 %v8877
      %8942 = vmatpush.bf16.msra.mxu0 %v8876
      %8943 = vmatpush.bf16.msra.mxu0 %v8875
      %8944 = vmatpush.bf16.msra.mxu0 %v8874
      %8945 = vmatpush.bf16.msra.mxu0 %v8873
      %8946 = vmatmul.bf16.gmra.mxu0 %v8906
      %v8947 = vpop.f32.mrf.mxu0
      %v8948 = vadd.f32 %v8935, %v8947
      %v8949 = vpop.f32.mrf.mxu0
      %8950 = vdwg.mxu0
      %v9079 = vunpack.c.l.b16 %v6706
      %v9080 = vunpack.c.l.b16 %v6707
      %v9081 = vunpack.c.l.b16 %v6708
      %v9082 = vunpack.c.l.b16 %v6709
      %v9083 = vunpack.c.l.b16 %v6710
      %v9084 = vunpack.c.l.b16 %v6711
      %v9085 = vunpack.c.l.b16 %v6712
      %v9086 = vunpack.c.l.b16 %v6713
      %v9087 = vunpack.c.l.b16 %v6714
      %v9088 = vunpack.c.l.b16 %v6715
      %v9089 = vunpack.c.l.b16 %v6716
      %v9090 = vunpack.c.l.b16 %v6717
      %v9091 = vunpack.c.l.b16 %v6718
      %v9092 = vunpack.c.l.b16 %v6719
      %v9093 = vunpack.c.l.b16 %v6720
      %v9094 = vunpack.c.l.b16 %v6721
      %v9095 = vunpack.c.l.b16 %v6722
      %v9096 = vunpack.c.l.b16 %v6723
      %v9097 = vunpack.c.l.b16 %v6724
      %v9098 = vunpack.c.l.b16 %v6725
      %v9099 = vunpack.c.l.b16 %v6726
      %v9100 = vunpack.c.l.b16 %v6727
      %v9101 = vunpack.c.l.b16 %v6728
      %v9102 = vunpack.c.l.b16 %v6729
      %v9103 = vunpack.c.l.b16 %v6730
      %v9104 = vunpack.c.l.b16 %v6731
      %v9105 = vunpack.c.l.b16 %v6732
      %v9106 = vunpack.c.l.b16 %v6733
      %v9107 = vunpack.c.l.b16 %v6734
      %v9108 = vunpack.c.l.b16 %v6735
      %v9109 = vunpack.c.l.b16 %v6736
      %v9110 = vunpack.c.l.b16 %v6737
      %v9111 = vunpack.c.l.b16 %v6738
      %v9112 = vunpack.c.l.b16 %v6739
      %v9113 = vunpack.c.l.b16 %v6740
      %v9114 = vunpack.c.l.b16 %v6741
      %v9115 = vunpack.c.l.b16 %v6742
      %v9116 = vunpack.c.l.b16 %v6743
      %v9117 = vunpack.c.l.b16 %v6744
      %v9118 = vunpack.c.l.b16 %v6745
      %v9119 = vunpack.c.l.b16 %v6746
      %v9120 = vunpack.c.l.b16 %v6747
      %v9121 = vunpack.c.l.b16 %v6748
      %v9122 = vunpack.c.l.b16 %v6749
      %v9123 = vunpack.c.l.b16 %v6750
      %v9124 = vunpack.c.l.b16 %v6751
      %v9125 = vunpack.c.l.b16 %v6752
      %v9126 = vunpack.c.l.b16 %v6753
      %v9127 = vunpack.c.l.b16 %v6754
      %v9128 = vunpack.c.l.b16 %v6755
      %v9129 = vunpack.c.l.b16 %v6756
      %v9130 = vunpack.c.l.b16 %v6757
      %v9131 = vunpack.c.l.b16 %v6758
      %v9132 = vunpack.c.l.b16 %v6759
      %v9133 = vunpack.c.l.b16 %v6760
      %v9134 = vunpack.c.l.b16 %v6761
      %v9135 = vunpack.c.l.b16 %v6762
      %v9136 = vunpack.c.l.b16 %v6763
      %v9137 = vunpack.c.l.b16 %v6764
      %v9138 = vunpack.c.l.b16 %v6765
      %v9139 = vunpack.c.l.b16 %v6766
      %v9140 = vunpack.c.l.b16 %v6767
      %v9141 = vunpack.c.l.b16 %v6768
      %v9142 = vunpack.c.l.b16 %v6769
      %v9143 = vunpack.c.l.b16 %v6770
      %v9144 = vunpack.c.l.b16 %v6771
      %v9145 = vunpack.c.l.b16 %v6772
      %v9146 = vunpack.c.l.b16 %v6773
      %v9147 = vunpack.c.l.b16 %v6774
      %v9148 = vunpack.c.l.b16 %v6775
      %v9149 = vunpack.c.l.b16 %v6776
      %v9150 = vunpack.c.l.b16 %v6777
      %v9151 = vunpack.c.l.b16 %v6778
      %v9152 = vunpack.c.l.b16 %v6779
      %v9153 = vunpack.c.l.b16 %v6780
      %v9154 = vunpack.c.l.b16 %v6781
      %v9155 = vunpack.c.l.b16 %v6782
      %v9156 = vunpack.c.l.b16 %v6783
      %v9157 = vunpack.c.l.b16 %v6784
      %v9158 = vunpack.c.l.b16 %v6785
      %v9159 = vunpack.c.l.b16 %v6786
      %v9160 = vunpack.c.l.b16 %v6787
      %v9161 = vunpack.c.l.b16 %v6788
      %v9162 = vunpack.c.l.b16 %v6789
      %v9163 = vunpack.c.l.b16 %v6790
      %v9164 = vunpack.c.l.b16 %v6791
      %v9165 = vunpack.c.l.b16 %v6792
      %v9166 = vunpack.c.l.b16 %v6793
      %v9167 = vunpack.c.l.b16 %v6794
      %v9168 = vunpack.c.l.b16 %v6795
      %v9169 = vunpack.c.l.b16 %v6796
      %v9170 = vunpack.c.l.b16 %v6797
      %v9171 = vunpack.c.l.b16 %v6798
      %v9172 = vunpack.c.l.b16 %v6799
      %v9173 = vunpack.c.l.b16 %v6800
      %v9174 = vunpack.c.l.b16 %v6801
      %v9175 = vunpack.c.l.b16 %v6802
      %v9176 = vunpack.c.l.b16 %v6803
      %v9177 = vunpack.c.l.b16 %v6804
      %v9178 = vunpack.c.l.b16 %v6805
      %v9179 = vunpack.c.l.b16 %v6806
      %v9180 = vunpack.c.l.b16 %v6807
      %v9181 = vunpack.c.l.b16 %v6808
      %v9182 = vunpack.c.l.b16 %v6809
      %v9183 = vunpack.c.l.b16 %v6810
      %v9184 = vunpack.c.l.b16 %v6811
      %v9185 = vunpack.c.l.b16 %v6812
      %v9186 = vunpack.c.l.b16 %v6813
      %v9187 = vunpack.c.l.b16 %v6814
      %v9188 = vunpack.c.l.b16 %v6815
      %v9189 = vunpack.c.l.b16 %v6816
      %v9190 = vunpack.c.l.b16 %v6817
      %v9191 = vunpack.c.l.b16 %v6818
      %v9192 = vunpack.c.l.b16 %v6819
      %v9193 = vunpack.c.l.b16 %v6820
      %v9194 = vunpack.c.l.b16 %v6821
      %v9195 = vunpack.c.l.b16 %v6822
      %v9196 = vunpack.c.l.b16 %v6823
      %v9197 = vunpack.c.l.b16 %v6824
      %v9198 = vunpack.c.l.b16 %v6825
      %v9199 = vunpack.c.l.b16 %v6826
      %v9200 = vunpack.c.l.b16 %v6827
      %v9201 = vunpack.c.l.b16 %v6828
      %v9202 = vunpack.c.l.b16 %v6829
      %v9203 = vunpack.c.l.b16 %v6830
      %v9204 = vunpack.c.l.b16 %v6831
      %v9205 = vunpack.c.l.b16 %v6832
      %v9206 = vunpack.c.l.b16 %v6833
      %v9207 = vpack.c.b16 %v9080, %v9079
      %v9208 = vpack.c.b16 %v9082, %v9081
      %v9209 = vpack.c.b16 %v9084, %v9083
      %v9210 = vpack.c.b16 %v9086, %v9085
      %v9211 = vpack.c.b16 %v9088, %v9087
      %v9212 = vpack.c.b16 %v9090, %v9089
      %v9213 = vpack.c.b16 %v9092, %v9091
      %v9214 = vpack.c.b16 %v9094, %v9093
      %v9215 = vpack.c.b16 %v9096, %v9095
      %v9216 = vpack.c.b16 %v9098, %v9097
      %v9217 = vpack.c.b16 %v9100, %v9099
      %v9218 = vpack.c.b16 %v9102, %v9101
      %v9219 = vpack.c.b16 %v9104, %v9103
      %v9220 = vpack.c.b16 %v9106, %v9105
      %v9221 = vpack.c.b16 %v9108, %v9107
      %v9222 = vpack.c.b16 %v9110, %v9109
      %v9223 = vpack.c.b16 %v9112, %v9111
      %v9224 = vpack.c.b16 %v9114, %v9113
      %v9225 = vpack.c.b16 %v9116, %v9115
      %v9226 = vpack.c.b16 %v9118, %v9117
      %v9227 = vpack.c.b16 %v9120, %v9119
      %v9228 = vpack.c.b16 %v9122, %v9121
      %v9229 = vpack.c.b16 %v9124, %v9123
      %v9230 = vpack.c.b16 %v9126, %v9125
      %v9231 = vpack.c.b16 %v9128, %v9127
      %v9232 = vpack.c.b16 %v9130, %v9129
      %v9233 = vpack.c.b16 %v9132, %v9131
      %v9234 = vpack.c.b16 %v9134, %v9133
      %v9235 = vpack.c.b16 %v9136, %v9135
      %v9236 = vpack.c.b16 %v9138, %v9137
      %v9237 = vpack.c.b16 %v9140, %v9139
      %v9238 = vpack.c.b16 %v9142, %v9141
      %v9239 = vpack.c.b16 %v9144, %v9143
      %v9240 = vpack.c.b16 %v9146, %v9145
      %v9241 = vpack.c.b16 %v9148, %v9147
      %v9242 = vpack.c.b16 %v9150, %v9149
      %v9243 = vpack.c.b16 %v9152, %v9151
      %v9244 = vpack.c.b16 %v9154, %v9153
      %v9245 = vpack.c.b16 %v9156, %v9155
      %v9246 = vpack.c.b16 %v9158, %v9157
      %v9247 = vpack.c.b16 %v9160, %v9159
      %v9248 = vpack.c.b16 %v9162, %v9161
      %v9249 = vpack.c.b16 %v9164, %v9163
      %v9250 = vpack.c.b16 %v9166, %v9165
      %v9251 = vpack.c.b16 %v9168, %v9167
      %v9252 = vpack.c.b16 %v9170, %v9169
      %v9253 = vpack.c.b16 %v9172, %v9171
      %v9254 = vpack.c.b16 %v9174, %v9173
      %v9255 = vpack.c.b16 %v9176, %v9175
      %v9256 = vpack.c.b16 %v9178, %v9177
      %v9257 = vpack.c.b16 %v9180, %v9179
      %v9258 = vpack.c.b16 %v9182, %v9181
      %v9259 = vpack.c.b16 %v9184, %v9183
      %v9260 = vpack.c.b16 %v9186, %v9185
      %v9261 = vpack.c.b16 %v9188, %v9187
      %v9262 = vpack.c.b16 %v9190, %v9189
      %v9263 = vpack.c.b16 %v9192, %v9191
      %v9264 = vpack.c.b16 %v9194, %v9193
      %v9265 = vpack.c.b16 %v9196, %v9195
      %v9266 = vpack.c.b16 %v9198, %v9197
      %v9267 = vpack.c.b16 %v9200, %v9199
      %v9268 = vpack.c.b16 %v9202, %v9201
      %v9269 = vpack.c.b16 %v9204, %v9203
      %v9270 = vpack.c.b16 %v9206, %v9205
      %9335 = vmatpush.bf16.msra.mxu0 %v9214
      %9336 = vmatpush.bf16.msra.mxu0 %v9213
      %9337 = vmatpush.bf16.msra.mxu0 %v9212
      %9338 = vmatpush.bf16.msra.mxu0 %v9211
      %9339 = vmatpush.bf16.msra.mxu0 %v9210
      %9340 = vmatpush.bf16.msra.mxu0 %v9209
      %9341 = vmatpush.bf16.msra.mxu0 %v9208
      %9342 = vmatpush.bf16.msra.mxu0 %v9207
      %9343 = vmatmul.bf16.gmra.mxu0 %v8744
      %v9344 = vpop.f32.mrf.mxu0
      %v9345 = vadd.f32 %v8948, %v9344
      %v9346 = vpop.f32.mrf.mxu0
      %9347 = vdwg.mxu0
      %9348 = vmatpush.bf16.msra.mxu0 %v9222
      %9349 = vmatpush.bf16.msra.mxu0 %v9221
      %9350 = vmatpush.bf16.msra.mxu0 %v9220
      %9351 = vmatpush.bf16.msra.mxu0 %v9219
      %9352 = vmatpush.bf16.msra.mxu0 %v9218
      %9353 = vmatpush.bf16.msra.mxu0 %v9217
      %9354 = vmatpush.bf16.msra.mxu0 %v9216
      %9355 = vmatpush.bf16.msra.mxu0 %v9215
      %9356 = vmatmul.bf16.gmra.mxu0 %v8745
      %v9357 = vpop.f32.mrf.mxu0
      %v9358 = vadd.f32 %v9345, %v9357
      %v9359 = vpop.f32.mrf.mxu0
      %9360 = vdwg.mxu0
      %9361 = vmatpush.bf16.msra.mxu0 %v9230
      %9362 = vmatpush.bf16.msra.mxu0 %v9229
      %9363 = vmatpush.bf16.msra.mxu0 %v9228
      %9364 = vmatpush.bf16.msra.mxu0 %v9227
      %9365 = vmatpush.bf16.msra.mxu0 %v9226
      %9366 = vmatpush.bf16.msra.mxu0 %v9225
      %9367 = vmatpush.bf16.msra.mxu0 %v9224
      %9368 = vmatpush.bf16.msra.mxu0 %v9223
      %9369 = vmatmul.bf16.gmra.mxu0 %v8746
      %v9370 = vpop.f32.mrf.mxu0
      %v9371 = vadd.f32 %v9358, %v9370
      %v9372 = vpop.f32.mrf.mxu0
      %9373 = vdwg.mxu0
      %9374 = vmatpush.bf16.msra.mxu0 %v9238
      %9375 = vmatpush.bf16.msra.mxu0 %v9237
      %9376 = vmatpush.bf16.msra.mxu0 %v9236
      %9377 = vmatpush.bf16.msra.mxu0 %v9235
      %9378 = vmatpush.bf16.msra.mxu0 %v9234
      %9379 = vmatpush.bf16.msra.mxu0 %v9233
      %9380 = vmatpush.bf16.msra.mxu0 %v9232
      %9381 = vmatpush.bf16.msra.mxu0 %v9231
      %9382 = vmatmul.bf16.gmra.mxu0 %v8747
      %v9383 = vpop.f32.mrf.mxu0
      %v9384 = vadd.f32 %v9371, %v9383
      %v9385 = vpop.f32.mrf.mxu0
      %9386 = vdwg.mxu0
      %9387 = vmatpush.bf16.msra.mxu0 %v9246
      %9388 = vmatpush.bf16.msra.mxu0 %v9245
      %9389 = vmatpush.bf16.msra.mxu0 %v9244
      %9390 = vmatpush.bf16.msra.mxu0 %v9243
      %9391 = vmatpush.bf16.msra.mxu0 %v9242
      %9392 = vmatpush.bf16.msra.mxu0 %v9241
      %9393 = vmatpush.bf16.msra.mxu0 %v9240
      %9394 = vmatpush.bf16.msra.mxu0 %v9239
      %9395 = vmatmul.bf16.gmra.mxu0 %v8748
      %v9396 = vpop.f32.mrf.mxu0
      %v9397 = vadd.f32 %v9384, %v9396
      %v9398 = vpop.f32.mrf.mxu0
      %9399 = vdwg.mxu0
      %9400 = vmatpush.bf16.msra.mxu0 %v9254
      %9401 = vmatpush.bf16.msra.mxu0 %v9253
      %9402 = vmatpush.bf16.msra.mxu0 %v9252
      %9403 = vmatpush.bf16.msra.mxu0 %v9251
      %9404 = vmatpush.bf16.msra.mxu0 %v9250
      %9405 = vmatpush.bf16.msra.mxu0 %v9249
      %9406 = vmatpush.bf16.msra.mxu0 %v9248
      %9407 = vmatpush.bf16.msra.mxu0 %v9247
      %9408 = vmatmul.bf16.gmra.mxu0 %v8749
      %v9409 = vpop.f32.mrf.mxu0
      %v9410 = vadd.f32 %v9397, %v9409
      %v9411 = vpop.f32.mrf.mxu0
      %9412 = vdwg.mxu0
      %9413 = vmatpush.bf16.msra.mxu0 %v9262
      %9414 = vmatpush.bf16.msra.mxu0 %v9261
      %9415 = vmatpush.bf16.msra.mxu0 %v9260
      %9416 = vmatpush.bf16.msra.mxu0 %v9259
      %9417 = vmatpush.bf16.msra.mxu0 %v9258
      %9418 = vmatpush.bf16.msra.mxu0 %v9257
      %9419 = vmatpush.bf16.msra.mxu0 %v9256
      %9420 = vmatpush.bf16.msra.mxu0 %v9255
      %9421 = vmatmul.bf16.gmra.mxu0 %v8750
      %v9422 = vpop.f32.mrf.mxu0
      %v9423 = vadd.f32 %v9410, %v9422
      %v9424 = vpop.f32.mrf.mxu0
      %9425 = vdwg.mxu0
      %9426 = vmatpush.bf16.msra.mxu0 %v9270
      %9427 = vmatpush.bf16.msra.mxu0 %v9269
      %9428 = vmatpush.bf16.msra.mxu0 %v9268
      %9429 = vmatpush.bf16.msra.mxu0 %v9267
      %9430 = vmatpush.bf16.msra.mxu0 %v9266
      %9431 = vmatpush.bf16.msra.mxu0 %v9265
      %9432 = vmatpush.bf16.msra.mxu0 %v9264
      %9433 = vmatpush.bf16.msra.mxu0 %v9263
      %9434 = vmatmul.bf16.gmra.mxu0 %v8751
      %v9435 = vpop.f32.mrf.mxu0
      %v9436 = vadd.f32 %v9423, %v9435
      %v9437 = vpop.f32.mrf.mxu0
      %9438 = vdwg.mxu0
      %v9439 = vadd.f32 %v9436, %v6881
      %v9440 = vmax.f32 %v9439, 0.0
      %v9441 = vld [vmem:[%s19] sm:$0xf]
      %v9442 = vld [vmem:[%s19 + $0x4] sm:$0xf]
      %v9443 = vld [vmem:[%s19 + $0x8] sm:$0xf]
      %v9444 = vld [vmem:[%s19 + $0xc] sm:$0xf]
      %v9445 = vld [vmem:[%s20] sm:$0x1]
      %v9446 = vpack.c.bf16 %v9440, %v9440
      %v9451 = vunpack.c.l.b16 %v9441
      %v9452 = vunpack.c.l.b16 %v9442
      %v9453 = vunpack.c.l.b16 %v9443
      %v9454 = vunpack.c.l.b16 %v9444
      %v9455 = vpack.c.b16 %v9452, %v9451
      %v9456 = vpack.c.b16 %v9454, %v9453
      %vm9459 = vcmask 261120
      %v9461 = vsel %vm9459, %v9446, 0
      %9463 = vmatpush.bf16.msra.mxu0 0
      %9464 = vmatpush.bf16.msra.mxu0 0
      %9465 = vmatpush.bf16.msra.mxu0 0
      %9466 = vmatpush.bf16.msra.mxu0 0
      %9467 = vmatpush.bf16.msra.mxu0 0
      %9468 = vmatpush.bf16.msra.mxu0 0
      %9469 = vmatpush.bf16.msra.mxu0 %v9456
      %9470 = vmatpush.bf16.msra.mxu0 %v9455
      %9471 = vmatmul.bf16.gmra.mxu0 %v9461
      %v9472 = vpop.f32.mrf.mxu0
      %v9473 = vadd.f32 %v9445, %v9472
      %v9474 = vpop.f32.mrf.mxu0
      %9475 = vdwg.mxu0
      %v9476 = vmax.f32 %v9473, 0.0
      %v9477 = vld [vmem:[%s21] sm:$0xf]
      %v9478 = vld [vmem:[%s21 + $0x4] sm:$0xf]
      %v9479 = vld [vmem:[%s21 + $0x8] sm:$0xf]
      %v9480 = vld [vmem:[%s21 + $0xc] sm:$0xf]
      %v9481 = vld [vmem:[#allocation2] sm:$0x1]
      %v9482 = vpack.c.bf16 %v9476, %v9476
      %v9487 = vunpack.c.l.b16 %v9477
      %v9488 = vunpack.c.l.b16 %v9478
      %v9489 = vunpack.c.l.b16 %v9479
      %v9490 = vunpack.c.l.b16 %v9480
      %v9491 = vpack.c.b16 %v9488, %v9487
      %v9492 = vpack.c.b16 %v9490, %v9489
      %v9496 = vsel %vm9459, %v9482, 0
      %9498 = vmatpush.bf16.msra.mxu0 0
      %9499 = vmatpush.bf16.msra.mxu0 0
      %9500 = vmatpush.bf16.msra.mxu0 0
      %9501 = vmatpush.bf16.msra.mxu0 0
      %9502 = vmatpush.bf16.msra.mxu0 0
      %9503 = vmatpush.bf16.msra.mxu0 0
      %9504 = vmatpush.bf16.msra.mxu0 %v9492
      %9505 = vmatpush.bf16.msra.mxu0 %v9491
      %9506 = vmatmul.bf16.gmra.mxu0 %v9496
      %v9507 = vpop.f32.mrf.mxu0
      %v9508 = vadd.f32 %v9481, %v9507
      %v9509 = vpop.f32.mrf.mxu0
      %9510 = vdwg.mxu0
      %vm9511 = vcmask 0
      %9512 = vst.msk [vmem:[%s725] sm:$0x1] %vm9511, %v9508
      %p9513 = scmp.lt.s32.totalorder %s36, 1
      %s9514 = scalar_select %p9513, %s36, 1
      %s9515 = scalar_lea.vmem %s23, %s9514
      // Predicated region
      $region113: #{rps_scnn_ecog_forward.1} parent=111 // pred_check
        %p9516 = pneg %p547
      $region114: #{rps_scnn_ecog_forward.1} parent=111 // pred_check_branch
        %9518 = sbr.rel (%p9516) target = $region116
      $region115: #{rps_scnn_ecog_forward.1} parent=111 // pred_region
        _
      $region116: #{rps_scnn_ecog_forward.1} parent=111 // pred_fallthru
        _
    $region112: #{rps_scnn_ecog_forward.1} parent=5 // pred_fallthru
      _
    %p9519 = scmp.le.s32.totalorder 2, %s31
    // Predicated region
    $region117: #{rps_scnn_ecog_forward.1} parent=5 // pred_check
      %p9520 = pneg %p9519
    $region118: #{rps_scnn_ecog_forward.1} parent=5 // pred_check_branch
      %9522 = sbr.rel (%p9520) target = $region120
    $region119: #{rps_scnn_ecog_forward.1} parent=5 // pred_region
      %s9523 = ssub.s32 %s31, 2
      // Predicated region
      $region121: #{rps_scnn_ecog_forward.1} parent=119 // pred_check
        %p9524 = pneg %p553
      $region122: #{rps_scnn_ecog_forward.1} parent=119 // pred_check_branch
        %9526 = sbr.rel (%p9524) target = $region124
      $region123: #{rps_scnn_ecog_forward.1} parent=119 // pred_region
        %p9527 = scmp.lt.s32.totalorder %s37, 1
        %s9528 = scalar_select %p9527, %s37, 1
        %s9529 = scalar_lea.vmem %s23, %s9528
      $region124: #{rps_scnn_ecog_forward.1} parent=119 // pred_fallthru
        _
    $region120: #{rps_scnn_ecog_forward.1} parent=5 // pred_fallthru
      _
  $region6: #{rps_scnn_ecog_forward.1} parent=0 // loop_footer
    %s35 = sadd.s32 1, %s31
  $region7: #{rps_scnn_ecog_forward.1} parent=0 // loop_footer_branch
    %30 = sbr.rel target = $region3
  $region8: #{rps_scnn_ecog_forward.1} parent=0 // loop_exit
    _

</llo_original>
